<compile_context>
chip_gen: v7x
topology: tpu7x:2x2x1
jax: 0.10.0
libtpu: 0.0.40
codegen_flags: <defaults>
</compile_context>

<pallas_src>
import math
import functools

import jax
import jax.numpy as jnp
from jax.experimental import pallas as pl
from jax.experimental.pallas import tpu as pltpu


def _layer_norm(x, gamma, beta, eps=1e-5):
    mu = jnp.mean(x, axis=-1, keepdims=True)
    xc = x - mu
    var = jnp.mean(xc * xc, axis=-1, keepdims=True)
    return xc * jax.lax.rsqrt(var + eps) * gamma + beta


def transformer_layer_kernel(q_ref, k_ref, v_ref,
                             wq_ref, bq_ref, wk_ref, bk_ref, wv_ref, bv_ref,
                             wo_ref, bo_ref,
                             ln1_g_ref, ln1_b_ref,
                             w1_ref, b1_ref, w2_ref, b2_ref,
                             ln2_g_ref, ln2_b_ref,
                             out_ref,
                             *, n_heads, d_k, mask_k, zero_pad, apply_pos):
    f32 = jnp.float32
    bf16 = jnp.bfloat16
    Bt, S, D = q_ref.shape
    M = Bt * S

    # Stack the Bt batch rows -> (M, D) so projections / FFN get a big MXU M dim.
    xq = q_ref[...].reshape(M, D)
    xk = k_ref[...].reshape(M, D)
    xv = v_ref[...].reshape(M, D)

    # Projections: bf16 operands, f32 accumulation.  1/sqrt(d_k) folded into q once.
    scale = 1.0 / math.sqrt(d_k)
    qp = (jnp.dot(xq.astype(bf16), wq_ref[...], preferred_element_type=f32)
          + bq_ref[...]) * scale
    kp = jnp.dot(xk.astype(bf16), wk_ref[...], preferred_element_type=f32) + bk_ref[...]
    vp = jnp.dot(xv.astype(bf16), wv_ref[...], preferred_element_type=f32) + bv_ref[...]
    qp_b = qp.astype(bf16)
    kp_b = kp.astype(bf16)
    vp_b = vp.astype(bf16)

    # Causal mask shared across heads/batches:
    # allowed iff col < row + mask_k   (matches np.triu(..., k=mask) == 0).
    row = jax.lax.broadcasted_iota(jnp.int32, (1, S, S), 1)
    col = jax.lax.broadcasted_iota(jnp.int32, (1, S, S), 2)
    allowed = col < (row + mask_k)
    neg_big = jnp.float32(-1e32)

    # Per-head attention; accumulate straight into the out-projection (no concat).
    acc = jnp.zeros((M, D), f32)
    for h in range(n_heads):
        lo, hi = h * d_k, (h + 1) * d_k
        qh = qp_b[:, lo:hi].reshape(Bt, S, d_k)
        kh = kp_b[:, lo:hi].reshape(Bt, S, d_k)
        vh = vp_b[:, lo:hi].reshape(Bt, S, d_k)

        # (Bt, S, S) f32 scores; the transposed K operand is consumed by the matmul.
        scores = jnp.einsum("bqd,bkd->bqk", qh, kh, preferred_element_type=f32)
        scores = jnp.where(allowed, scores, neg_big)
        scores = scores - jnp.max(scores, axis=-1, keepdims=True)
        p = jnp.exp(scores)
        l = jnp.sum(p, axis=-1, keepdims=True)
        p = p * pl.reciprocal(l, approx=True)            # EUP, not VALU divide

        ctx = jnp.einsum("bqk,bkd->bqd", p.astype(bf16), vh,
                         preferred_element_type=f32)      # (Bt, S, d_k)
        # Out-projection slice of Wo on the sublane axis -- cheap; accumulate.
        acc = acc + jnp.dot(ctx.reshape(M, d_k).astype(bf16),
                            wo_ref[lo:hi, :], preferred_element_type=f32)

    if zero_pad:
        # Zeroing row 0 of the attention probs == zeroing row 0 of the (pre-bias)
        # projected context; done once after the head loop.
        seq_idx = jax.lax.broadcasted_iota(jnp.int32, (1, S, 1), 1)
        acc = jnp.where(seq_idx == 0, 0.0, acc.reshape(Bt, S, D)).reshape(M, D)

    # TODO(synk): nn.Dropout layers are identity here (inference / eval mode).
    attn_out = acc + bo_ref[...]

    # Residual + LayerNorm1 (f32).
    x = _layer_norm(xq + attn_out, ln1_g_ref[...], ln1_b_ref[...])

    if apply_pos:
        # Position-wise FFN, bf16 operands / f32 accumulation.
        h1 = jnp.dot(x.astype(bf16), w1_ref[...], preferred_element_type=f32) + b1_ref[...]
        h1 = jnp.maximum(h1, 0.0)
        ff = jnp.dot(h1.astype(bf16), w2_ref[...], preferred_element_type=f32) + b2_ref[...]
        x = _layer_norm(x + ff, ln2_g_ref[...], ln2_b_ref[...])

    out_ref[...] = x.reshape(Bt, S, D).astype(out_ref.dtype)


def _pick_batch_tile(B, S, target_rows=256, max_rows=512):
    """Smallest divisor Bt of B with Bt*S >= target_rows (fills the MXU M dim),
    bounded by max_rows; otherwise the largest divisor that stays <= max_rows."""
    best = 1
    for bt in range(1, B + 1):
        if B % bt:
            continue
        if bt * S > max_rows:
            break
        best = bt
        if bt * S >= target_rows:
            break
    return best


def transformer_layer(mask, query, key, values, params, *, n_heads,
                      apply_pos=True, batch_tile=None):
    B, S, D = query.shape
    assert D % n_heads == 0
    d_k = D // n_heads

    if batch_tile is None:
        batch_tile = _pick_batch_tile(B, S)
    if B % batch_tile:
        raise ValueError(f"batch_tile={batch_tile} must divide batch={B}")
    grid = (B // batch_tile,)

    kernel = functools.partial(
        transformer_layer_kernel,
        n_heads=n_heads, d_k=d_k,
        mask_k=int(mask), zero_pad=(mask == 0), apply_pos=apply_pos)

    bf16 = jnp.bfloat16
    # Weight matrices go to bf16 (MXU operands; half the VMEM / HBM traffic);
    # biases and LayerNorm params stay f32 (added to / scale f32 accumulators).
    weight_order = ["wq", "bq", "wk", "bk", "wv", "bv", "wo", "bo",
                    "ln1_g", "ln1_b", "w1", "b1", "w2", "b2", "ln2_g", "ln2_b"]
    cast_to_bf16 = {"wq", "wk", "wv", "wo", "w1", "w2"}
    weights = [params[n].astype(bf16) if n in cast_to_bf16 else params[n]
               for n in weight_order]

    act_spec = pl.BlockSpec((batch_tile, S, D), lambda b: (b, 0, 0))
    out_shape = jax.ShapeDtypeStruct((B, S, D), query.dtype)

    def build(single_buffer_weights):
        if single_buffer_weights:
            wspecs = [pl.BlockSpec(w.shape, lambda b: (0, 0),
                                   pipeline_mode=pl.Buffered(1)) for w in weights]
        else:
            wspecs = [pl.BlockSpec(w.shape, lambda b: (0, 0)) for w in weights]
        return pl.pallas_call(
            kernel,
            out_shape=out_shape,
            grid_spec=pltpu.PrefetchScalarGridSpec(
                num_scalar_prefetch=0,
                grid=grid,
                in_specs=[act_spec, act_spec, act_spec] + wspecs,
                out_specs=act_spec),
            compiler_params=pltpu.CompilerParams(
                dimension_semantics=("parallel",),
                vmem_limit_bytes=64 * 1024 * 1024))

    args = (query, key, values, *weights)
    try:
        # Constant index maps -> weights never change across the grid; one VMEM
        # buffer per weight halves their footprint (matters on v7x's 64 MiB VMEM).
        return build(True)(*args)
    except Exception:
        # TODO(synk): pl.Buffered(1) unsupported on this jax build; fall back to the
        # default (double-buffered) weight pipelining.
        return build(False)(*args)


# ---------------- plain-JAX reference (mirrors the kernel's bf16-operand /
# f32-accumulate matmul precision; same math as the PyTorch module) -----------
def reference(mask, query, key, values, params, n_heads, apply_pos=True):
    B, S, D = query.shape
    d_k = D // n_heads
    bf16, f32 = jnp.bfloat16, jnp.float32

    def proj(x, w, b):
        return jnp.einsum("...i,io->...o", x.astype(bf16), w.astype(bf16),
                          preferred_element_type=f32) + b[0]

    qp = proj(query, params["wq"], params["bq"]) * (1.0 / math.sqrt(d_k))
    kp = proj(key, params["wk"], params["bk"])
    vp = proj(values, params["wv"], params["bv"])

    qh = qp.reshape(B, S, n_heads, d_k).transpose(0, 2, 1, 3)
    kh = kp.reshape(B, S, n_heads, d_k).transpose(0, 2, 1, 3)
    vh = vp.reshape(B, S, n_heads, d_k).transpose(0, 2, 1, 3)

    scores = jnp.einsum("bhqd,bhkd->bhqk", qh.astype(bf16), kh.astype(bf16),
                        preferred_element_type=f32)
    row = jax.lax.broadcasted_iota(jnp.int32, (S, S), 0)
    col = jax.lax.broadcasted_iota(jnp.int32, (S, S), 1)
    allowed = col < (row + int(mask))
    scores = jnp.where(allowed[None, None], scores, -1e32)
    scores = scores - jnp.max(scores, axis=-1, keepdims=True)
    p = jnp.exp(scores)
    p = p / jnp.sum(p, axis=-1, keepdims=True)
    if mask == 0:
        p = jnp.where((row == 0)[None, None], 0.0, p)
    attn = jnp.einsum("bhqk,bhkd->bhqd", p.astype(bf16), vh.astype(bf16),
                      preferred_element_type=f32)
    attn = attn.transpose(0, 2, 1, 3).reshape(B, S, D)
    attn_out = proj(attn, params["wo"], params["bo"])

    def ln(x, g, b):
        mu = jnp.mean(x, axis=-1, keepdims=True)
        var = jnp.mean((x - mu) ** 2, axis=-1, keepdims=True)
        return (x - mu) / jnp.sqrt(var + 1e-5) * g[0] + b[0]

    x = ln(query + attn_out, params["ln1_g"], params["ln1_b"])
    if apply_pos:
        h1 = jnp.maximum(proj(x, params["w1"], params["b1"]), 0.0)
        ff = proj(h1, params["w2"], params["b2"])
        x = ln(x + ff, params["ln2_g"], params["ln2_b"])
    return x


def make_params(key, d_model, d_ff, kq_same):
    ks = jax.random.split(key, 16)

    def xavier(k, fan_in, fan_out):
        bound = math.sqrt(6.0 / (fan_in + fan_out))
        # stored as (in, out), i.e. already transposed vs. torch Linear.weight
        return jax.random.uniform(k, (fan_in, fan_out), jnp.float32, -bound, bound)

    def small(k, n):
        return 0.1 * jax.random.normal(k, (1, n), jnp.float32)

    wk = xavier(ks[0], d_model, d_model)
    wv = xavier(ks[1], d_model, d_model)
    wq = wk if kq_same else xavier(ks[2], d_model, d_model)
    wo = xavier(ks[3], d_model, d_model)
    w1 = xavier(ks[4], d_model, d_ff)
    w2 = xavier(ks[5], d_ff, d_model)

    # NOTE: PyTorch initializes biases to 0 and LayerNorm to (1, 0); we use small
    # random values so the test actually exercises the bias / affine paths.
    bk = small(ks[6], d_model)
    bv = small(ks[7], d_model)
    bq = bk if kq_same else small(ks[8], d_model)   # kq_same -> q uses k_linear
    bo = small(ks[9], d_model)
    b1 = small(ks[10], d_ff)
    b2 = small(ks[11], d_model)

    return {
        "wq": wq, "bq": bq,
        "wk": wk, "bk": bk,
        "wv": wv, "bv": bv,
        "wo": wo, "bo": bo,
        "ln1_g": 1.0 + small(ks[12], d_model), "ln1_b": small(ks[13], d_model),
        "w1": w1, "b1": b1,
        "w2": w2, "b2": b2,
        "ln2_g": 1.0 + small(ks[14], d_model), "ln2_b": small(ks[15], d_model),
    }


if __name__ == "__main__":
    B, S, d_model, d_ff, n_heads = 8, 8, 128, 256, 2
    kq_same = True          # kq_same == 1 in the PyTorch module

    root = jax.random.PRNGKey(0)
    kq, kk, kv, kp = jax.random.split(root, 4)
    query = jax.random.normal(kq, (B, S, d_model), jnp.float32)
    keyt = jax.random.normal(kk, (B, S, d_model), jnp.float32)
    values = jax.random.normal(kv, (B, S, d_model), jnp.float32)
    params = make_params(kp, d_model, d_ff, kq_same)

    # mask == 0 -> strict causal + zero_pad; explicit batch_tile=4 gives 2 grid steps.
    out0 = jax.block_until_ready(
        transformer_layer(0, query, keyt, values, params,
                          n_heads=n_heads, apply_pos=True, batch_tile=4))
    ref0 = jax.block_until_ready(
        reference(0, query, keyt, values, params, n_heads, apply_pos=True))
    err0 = float(jnp.max(jnp.abs(out0 - ref0)))
    assert err0 < 2e-2, f"mask=0 mismatch vs reference: {err0}"

    # mask == 1 -> peek current + past, no zero_pad; auto batch tile.
    out1 = jax.block_until_ready(
        transformer_layer(1, query, keyt, values, params,
                          n_heads=n_heads, apply_pos=True))
    ref1 = jax.block_until_ready(
        reference(1, query, keyt, values, params, n_heads, apply_pos=True))
    err1 = float(jnp.max(jnp.abs(out1 - ref1)))
    assert err1 < 2e-2, f"mask=1 mismatch vs reference: {err1}"

    # apply_pos=False path (attention + LayerNorm1 only).
    out2 = jax.block_until_ready(
        transformer_layer(1, query, keyt, values, params,
                          n_heads=n_heads, apply_pos=False))
    ref2 = jax.block_until_ready(
        reference(1, query, keyt, values, params, n_heads, apply_pos=False))
    err2 = float(jnp.max(jnp.abs(out2 - ref2)))
    assert err2 < 2e-2, f"apply_pos=False mismatch vs reference: {err2}"

    print("KERNEL_OK")
</pallas_src>

<mosaic_0001>
module attributes {stable_mosaic.version = 11 : i64} {
  func.func @transformer_layer_kernel(%arg0: i32, %arg1: memref<4x8x128xf32, #tpu.memory_space<vmem>>, %arg2: memref<4x8x128xf32, #tpu.memory_space<vmem>>, %arg3: memref<4x8x128xf32, #tpu.memory_space<vmem>>, %arg4: memref<128x128xbf16, #tpu.memory_space<vmem>>, %arg5: memref<1x128xf32, #tpu.memory_space<vmem>>, %arg6: memref<128x128xbf16, #tpu.memory_space<vmem>>, %arg7: memref<1x128xf32, #tpu.memory_space<vmem>>, %arg8: memref<128x128xbf16, #tpu.memory_space<vmem>>, %arg9: memref<1x128xf32, #tpu.memory_space<vmem>>, %arg10: memref<128x128xbf16, #tpu.memory_space<vmem>>, %arg11: memref<1x128xf32, #tpu.memory_space<vmem>>, %arg12: memref<1x128xf32, #tpu.memory_space<vmem>>, %arg13: memref<1x128xf32, #tpu.memory_space<vmem>>, %arg14: memref<128x256xbf16, #tpu.memory_space<vmem>>, %arg15: memref<1x256xf32, #tpu.memory_space<vmem>>, %arg16: memref<256x128xbf16, #tpu.memory_space<vmem>>, %arg17: memref<1x128xf32, #tpu.memory_space<vmem>>, %arg18: memref<1x128xf32, #tpu.memory_space<vmem>>, %arg19: memref<1x128xf32, #tpu.memory_space<vmem>>, %arg20: memref<4x8x128xf32, #tpu.memory_space<vmem>>) attributes {dimension_semantics = [#tpu.dimension_semantics<parallel>], iteration_bounds = array<i64: 2>, scalar_prefetch = 0 : i64, scratch_operands = 0 : i64, tpu.core_type = #tpu.core_type<tc>, window_params = [{transform_indices = @transform_0, window_bounds = array<i64: 4, 8, 128>}, {transform_indices = @transform_1, window_bounds = array<i64: 4, 8, 128>}, {transform_indices = @transform_2, window_bounds = array<i64: 4, 8, 128>}, {pipeline_mode = #tpu.pipeline_mode<synchronous>, transform_indices = @transform_3, window_bounds = array<i64: 128, 128>}, {pipeline_mode = #tpu.pipeline_mode<synchronous>, transform_indices = @transform_4, window_bounds = array<i64: 1, 128>}, {pipeline_mode = #tpu.pipeline_mode<synchronous>, transform_indices = @transform_5, window_bounds = array<i64: 128, 128>}, {pipeline_mode = #tpu.pipeline_mode<synchronous>, transform_indices = @transform_6, window_bounds = array<i64: 1, 128>}, {pipeline_mode = #tpu.pipeline_mode<synchronous>, transform_indices = @transform_7, window_bounds = array<i64: 128, 128>}, {pipeline_mode = #tpu.pipeline_mode<synchronous>, transform_indices = @transform_8, window_bounds = array<i64: 1, 128>}, {pipeline_mode = #tpu.pipeline_mode<synchronous>, transform_indices = @transform_9, window_bounds = array<i64: 128, 128>}, {pipeline_mode = #tpu.pipeline_mode<synchronous>, transform_indices = @transform_10, window_bounds = array<i64: 1, 128>}, {pipeline_mode = #tpu.pipeline_mode<synchronous>, transform_indices = @transform_11, window_bounds = array<i64: 1, 128>}, {pipeline_mode = #tpu.pipeline_mode<synchronous>, transform_indices = @transform_12, window_bounds = array<i64: 1, 128>}, {pipeline_mode = #tpu.pipeline_mode<synchronous>, transform_indices = @transform_13, window_bounds = array<i64: 128, 256>}, {pipeline_mode = #tpu.pipeline_mode<synchronous>, transform_indices = @transform_14, window_bounds = array<i64: 1, 256>}, {pipeline_mode = #tpu.pipeline_mode<synchronous>, transform_indices = @transform_15, window_bounds = array<i64: 256, 128>}, {pipeline_mode = #tpu.pipeline_mode<synchronous>, transform_indices = @transform_16, window_bounds = array<i64: 1, 128>}, {pipeline_mode = #tpu.pipeline_mode<synchronous>, transform_indices = @transform_17, window_bounds = array<i64: 1, 128>}, {pipeline_mode = #tpu.pipeline_mode<synchronous>, transform_indices = @transform_18, window_bounds = array<i64: 1, 128>}, {transform_indices = @transform_19, window_bounds = array<i64: 4, 8, 128>}]} {
    %c0 = arith.constant 0 : index
    %c0_0 = arith.constant 0 : index
    %c0_1 = arith.constant 0 : index
    %0 = vector.load %arg1[%c0, %c0_0, %c0_1] : memref<4x8x128xf32, #tpu.memory_space<vmem>>, vector<4x8x128xf32>
    %1 = vector.shape_cast %0 : vector<4x8x128xf32> to vector<32x128xf32>
    %c0_2 = arith.constant 0 : index
    %c0_3 = arith.constant 0 : index
    %c0_4 = arith.constant 0 : index
    %2 = vector.load %arg2[%c0_2, %c0_3, %c0_4] : memref<4x8x128xf32, #tpu.memory_space<vmem>>, vector<4x8x128xf32>
    %3 = vector.shape_cast %2 : vector<4x8x128xf32> to vector<32x128xf32>
    %c0_5 = arith.constant 0 : index
    %c0_6 = arith.constant 0 : index
    %c0_7 = arith.constant 0 : index
    %4 = vector.load %arg3[%c0_5, %c0_6, %c0_7] : memref<4x8x128xf32, #tpu.memory_space<vmem>>, vector<4x8x128xf32>
    %5 = vector.shape_cast %4 : vector<4x8x128xf32> to vector<32x128xf32>
    %6 = arith.truncf %1 : vector<32x128xf32> to vector<32x128xbf16>
    %c0_8 = arith.constant 0 : index
    %c0_9 = arith.constant 0 : index
    %7 = vector.load %arg4[%c0_8, %c0_9] : memref<128x128xbf16, #tpu.memory_space<vmem>>, vector<128x128xbf16>
    %cst = arith.constant dense<0.000000e+00> : vector<32x128xf32>
    %8 = tpu.matmul %6, %7, %cst {dimension_numbers = #tpu.dot_dimension_numbers<[1], [0], [0], [1], [0, 0, 1, 1], [], []>} : vector<32x128xbf16>, vector<128x128xbf16>, vector<32x128xf32> -> vector<32x128xf32>
    %c0_10 = arith.constant 0 : index
    %c0_11 = arith.constant 0 : index
    %9 = vector.load %arg5[%c0_10, %c0_11] : memref<1x128xf32, #tpu.memory_space<vmem>>, vector<1x128xf32>
    %10 = vector.broadcast %9 : vector<1x128xf32> to vector<32x128xf32>
    %11 = arith.addf %8, %10 : vector<32x128xf32>
    %cst_12 = arith.constant 1.250000e-01 : f32
    %12 = vector.broadcast %cst_12 : f32 to vector<32x128xf32>
    %13 = arith.mulf %11, %12 : vector<32x128xf32>
    %14 = arith.truncf %3 : vector<32x128xf32> to vector<32x128xbf16>
    %c0_13 = arith.constant 0 : index
    %c0_14 = arith.constant 0 : index
    %15 = vector.load %arg6[%c0_13, %c0_14] : memref<128x128xbf16, #tpu.memory_space<vmem>>, vector<128x128xbf16>
    %cst_15 = arith.constant dense<0.000000e+00> : vector<32x128xf32>
    %16 = tpu.matmul %14, %15, %cst_15 {dimension_numbers = #tpu.dot_dimension_numbers<[1], [0], [0], [1], [0, 0, 1, 1], [], []>} : vector<32x128xbf16>, vector<128x128xbf16>, vector<32x128xf32> -> vector<32x128xf32>
    %c0_16 = arith.constant 0 : index
    %c0_17 = arith.constant 0 : index
    %17 = vector.load %arg7[%c0_16, %c0_17] : memref<1x128xf32, #tpu.memory_space<vmem>>, vector<1x128xf32>
    %18 = vector.broadcast %17 : vector<1x128xf32> to vector<32x128xf32>
    %19 = arith.addf %16, %18 : vector<32x128xf32>
    %20 = arith.truncf %5 : vector<32x128xf32> to vector<32x128xbf16>
    %c0_18 = arith.constant 0 : index
    %c0_19 = arith.constant 0 : index
    %21 = vector.load %arg8[%c0_18, %c0_19] : memref<128x128xbf16, #tpu.memory_space<vmem>>, vector<128x128xbf16>
    %cst_20 = arith.constant dense<0.000000e+00> : vector<32x128xf32>
    %22 = tpu.matmul %20, %21, %cst_20 {dimension_numbers = #tpu.dot_dimension_numbers<[1], [0], [0], [1], [0, 0, 1, 1], [], []>} : vector<32x128xbf16>, vector<128x128xbf16>, vector<32x128xf32> -> vector<32x128xf32>
    %c0_21 = arith.constant 0 : index
    %c0_22 = arith.constant 0 : index
    %23 = vector.load %arg9[%c0_21, %c0_22] : memref<1x128xf32, #tpu.memory_space<vmem>>, vector<1x128xf32>
    %24 = vector.broadcast %23 : vector<1x128xf32> to vector<32x128xf32>
    %25 = arith.addf %22, %24 : vector<32x128xf32>
    %26 = arith.truncf %13 : vector<32x128xf32> to vector<32x128xbf16>
    %27 = arith.truncf %19 : vector<32x128xf32> to vector<32x128xbf16>
    %28 = arith.truncf %25 : vector<32x128xf32> to vector<32x128xbf16>
    %29 = tpu.iota {dimensions = array<i32: 1>} : vector<1x8x8xi32>
    %30 = tpu.iota {dimensions = array<i32: 2>} : vector<1x8x8xi32>
    %c0_i32 = arith.constant 0 : i32
    %31 = vector.broadcast %c0_i32 : i32 to vector<1x8x8xi32>
    %32 = arith.addi %29, %31 : vector<1x8x8xi32>
    %33 = arith.cmpi slt, %30, %32 : vector<1x8x8xi32>
    %cst_23 = arith.constant 0.000000e+00 : f32
    %34 = vector.broadcast %cst_23 : f32 to vector<32x128xf32>
    %35 = vector.extract_strided_slice %26 {offsets = [0, 0], sizes = [32, 64], strides = [1, 1]} : vector<32x128xbf16> to vector<32x64xbf16>
    %36 = vector.shape_cast %35 : vector<32x64xbf16> to vector<4x8x64xbf16>
    %37 = vector.extract_strided_slice %27 {offsets = [0, 0], sizes = [32, 64], strides = [1, 1]} : vector<32x128xbf16> to vector<32x64xbf16>
    %38 = vector.shape_cast %37 : vector<32x64xbf16> to vector<4x8x64xbf16>
    %39 = vector.extract_strided_slice %28 {offsets = [0, 0], sizes = [32, 64], strides = [1, 1]} : vector<32x128xbf16> to vector<32x64xbf16>
    %40 = vector.shape_cast %39 : vector<32x64xbf16> to vector<4x8x64xbf16>
    "tpu.trace_start"() <{level = 10 : i32, message = "bqd,bkd->bqk"}> : () -> ()
    %cst_24 = arith.constant dense<0.000000e+00> : vector<4x8x8xf32>
    %41 = tpu.matmul %36, %38, %cst_24 {dimension_numbers = #tpu.dot_dimension_numbers<[2], [2], [1], [1], [0, 0, 0, 1, 1, 1], [0], [0]>} : vector<4x8x64xbf16>, vector<4x8x64xbf16>, vector<4x8x8xf32> -> vector<4x8x8xf32>
    %cst_25 = arith.constant -1.000000e+32 : f32
    "tpu.trace_stop"() : () -> ()
    %42 = vector.shape_cast %33 : vector<1x8x8xi1> to vector<1x8x8xi1>
    %43 = vector.broadcast %42 : vector<1x8x8xi1> to vector<4x8x8xi1>
    %44 = vector.broadcast %cst_25 : f32 to vector<4x8x8xf32>
    %45 = arith.select %43, %41, %44 : vector<4x8x8xi1>, vector<4x8x8xf32>
    %cst_26 = arith.constant dense<0xFF800000> : vector<4x8xf32>
    %46 = vector.multi_reduction <maximumf>, %45, %cst_26 [2] : vector<4x8x8xf32> to vector<4x8xf32>
    %47 = vector.shape_cast %46 : vector<4x8xf32> to vector<4x8x1xf32>
    %48 = vector.broadcast %47 : vector<4x8x1xf32> to vector<4x8x8xf32>
    %49 = arith.subf %45, %48 : vector<4x8x8xf32>
    %50 = math.exp %49 : vector<4x8x8xf32>
    %cst_27 = arith.constant dense<0.000000e+00> : vector<4x8xf32>
    %51 = vector.multi_reduction <add>, %50, %cst_27 [2] : vector<4x8x8xf32> to vector<4x8xf32>
    %52 = vector.shape_cast %51 : vector<4x8xf32> to vector<4x8x1xf32>
    %53 = tpu.reciprocal %52 {approx = true} : vector<4x8x1xf32> -> vector<4x8x1xf32>
    %54 = vector.broadcast %53 : vector<4x8x1xf32> to vector<4x8x8xf32>
    %55 = arith.mulf %50, %54 : vector<4x8x8xf32>
    %56 = arith.truncf %55 : vector<4x8x8xf32> to vector<4x8x8xbf16>
    "tpu.trace_start"() <{level = 10 : i32, message = "bqk,bkd->bqd"}> : () -> ()
    %cst_28 = arith.constant dense<0.000000e+00> : vector<4x8x64xf32>
    %57 = tpu.matmul %56, %40, %cst_28 {dimension_numbers = #tpu.dot_dimension_numbers<[2], [1], [1], [2], [0, 0, 0, 1, 1, 2], [0], [0]>} : vector<4x8x8xbf16>, vector<4x8x64xbf16>, vector<4x8x64xf32> -> vector<4x8x64xf32>
    "tpu.trace_stop"() : () -> ()
    %58 = vector.shape_cast %57 : vector<4x8x64xf32> to vector<32x64xf32>
    %59 = arith.truncf %58 : vector<32x64xf32> to vector<32x64xbf16>
    %c0_29 = arith.constant 0 : index
    %c0_30 = arith.constant 0 : index
    %60 = vector.load %arg10[%c0_29, %c0_30] : memref<128x128xbf16, #tpu.memory_space<vmem>>, vector<64x128xbf16>
    %cst_31 = arith.constant dense<0.000000e+00> : vector<32x128xf32>
    %61 = tpu.matmul %59, %60, %cst_31 {dimension_numbers = #tpu.dot_dimension_numbers<[1], [0], [0], [1], [0, 0, 1, 1], [], []>} : vector<32x64xbf16>, vector<64x128xbf16>, vector<32x128xf32> -> vector<32x128xf32>
    %62 = arith.addf %34, %61 : vector<32x128xf32>
    %63 = vector.extract_strided_slice %26 {offsets = [0, 64], sizes = [32, 64], strides = [1, 1]} : vector<32x128xbf16> to vector<32x64xbf16>
    %64 = vector.shape_cast %63 : vector<32x64xbf16> to vector<4x8x64xbf16>
    %65 = vector.extract_strided_slice %27 {offsets = [0, 64], sizes = [32, 64], strides = [1, 1]} : vector<32x128xbf16> to vector<32x64xbf16>
    %66 = vector.shape_cast %65 : vector<32x64xbf16> to vector<4x8x64xbf16>
    %67 = vector.extract_strided_slice %28 {offsets = [0, 64], sizes = [32, 64], strides = [1, 1]} : vector<32x128xbf16> to vector<32x64xbf16>
    %68 = vector.shape_cast %67 : vector<32x64xbf16> to vector<4x8x64xbf16>
    "tpu.trace_start"() <{level = 10 : i32, message = "bqd,bkd->bqk"}> : () -> ()
    %cst_32 = arith.constant dense<0.000000e+00> : vector<4x8x8xf32>
    %69 = tpu.matmul %64, %66, %cst_32 {dimension_numbers = #tpu.dot_dimension_numbers<[2], [2], [1], [1], [0, 0, 0, 1, 1, 1], [0], [0]>} : vector<4x8x64xbf16>, vector<4x8x64xbf16>, vector<4x8x8xf32> -> vector<4x8x8xf32>
    %cst_33 = arith.constant -1.000000e+32 : f32
    "tpu.trace_stop"() : () -> ()
    %70 = vector.shape_cast %33 : vector<1x8x8xi1> to vector<1x8x8xi1>
    %71 = vector.broadcast %70 : vector<1x8x8xi1> to vector<4x8x8xi1>
    %72 = vector.broadcast %cst_33 : f32 to vector<4x8x8xf32>
    %73 = arith.select %71, %69, %72 : vector<4x8x8xi1>, vector<4x8x8xf32>
    %cst_34 = arith.constant dense<0xFF800000> : vector<4x8xf32>
    %74 = vector.multi_reduction <maximumf>, %73, %cst_34 [2] : vector<4x8x8xf32> to vector<4x8xf32>
    %75 = vector.shape_cast %74 : vector<4x8xf32> to vector<4x8x1xf32>
    %76 = vector.broadcast %75 : vector<4x8x1xf32> to vector<4x8x8xf32>
    %77 = arith.subf %73, %76 : vector<4x8x8xf32>
    %78 = math.exp %77 : vector<4x8x8xf32>
    %cst_35 = arith.constant dense<0.000000e+00> : vector<4x8xf32>
    %79 = vector.multi_reduction <add>, %78, %cst_35 [2] : vector<4x8x8xf32> to vector<4x8xf32>
    %80 = vector.shape_cast %79 : vector<4x8xf32> to vector<4x8x1xf32>
    %81 = tpu.reciprocal %80 {approx = true} : vector<4x8x1xf32> -> vector<4x8x1xf32>
    %82 = vector.broadcast %81 : vector<4x8x1xf32> to vector<4x8x8xf32>
    %83 = arith.mulf %78, %82 : vector<4x8x8xf32>
    %84 = arith.truncf %83 : vector<4x8x8xf32> to vector<4x8x8xbf16>
    "tpu.trace_start"() <{level = 10 : i32, message = "bqk,bkd->bqd"}> : () -> ()
    %cst_36 = arith.constant dense<0.000000e+00> : vector<4x8x64xf32>
    %85 = tpu.matmul %84, %68, %cst_36 {dimension_numbers = #tpu.dot_dimension_numbers<[2], [1], [1], [2], [0, 0, 0, 1, 1, 2], [0], [0]>} : vector<4x8x8xbf16>, vector<4x8x64xbf16>, vector<4x8x64xf32> -> vector<4x8x64xf32>
    "tpu.trace_stop"() : () -> ()
    %86 = vector.shape_cast %85 : vector<4x8x64xf32> to vector<32x64xf32>
    %87 = arith.truncf %86 : vector<32x64xf32> to vector<32x64xbf16>
    %c64 = arith.constant 64 : index
    %c0_37 = arith.constant 0 : index
    %88 = vector.load %arg10[%c64, %c0_37] : memref<128x128xbf16, #tpu.memory_space<vmem>>, vector<64x128xbf16>
    %cst_38 = arith.constant dense<0.000000e+00> : vector<32x128xf32>
    %89 = tpu.matmul %87, %88, %cst_38 {dimension_numbers = #tpu.dot_dimension_numbers<[1], [0], [0], [1], [0, 0, 1, 1], [], []>} : vector<32x64xbf16>, vector<64x128xbf16>, vector<32x128xf32> -> vector<32x128xf32>
    %90 = arith.addf %62, %89 : vector<32x128xf32>
    %91 = tpu.iota {dimensions = array<i32: 1>} : vector<1x8x1xi32>
    %c0_i32_39 = arith.constant 0 : i32
    %92 = vector.broadcast %c0_i32_39 : i32 to vector<1x8x1xi32>
    %93 = arith.cmpi eq, %91, %92 : vector<1x8x1xi32>
    %94 = vector.shape_cast %90 : vector<32x128xf32> to vector<4x8x128xf32>
    %cst_40 = arith.constant 0.000000e+00 : f32
    %95 = vector.shape_cast %93 : vector<1x8x1xi1> to vector<1x8x1xi1>
    %96 = vector.broadcast %95 : vector<1x8x1xi1> to vector<4x8x128xi1>
    %97 = vector.broadcast %cst_40 : f32 to vector<4x8x128xf32>
    %98 = arith.select %96, %97, %94 : vector<4x8x128xi1>, vector<4x8x128xf32>
    %99 = vector.shape_cast %98 : vector<4x8x128xf32> to vector<32x128xf32>
    %c0_41 = arith.constant 0 : index
    %c0_42 = arith.constant 0 : index
    %100 = vector.load %arg11[%c0_41, %c0_42] : memref<1x128xf32, #tpu.memory_space<vmem>>, vector<1x128xf32>
    %101 = vector.broadcast %100 : vector<1x128xf32> to vector<32x128xf32>
    %102 = arith.addf %99, %101 : vector<32x128xf32>
    %103 = arith.addf %1, %102 : vector<32x128xf32>
    %c0_43 = arith.constant 0 : index
    %c0_44 = arith.constant 0 : index
    %104 = vector.load %arg12[%c0_43, %c0_44] : memref<1x128xf32, #tpu.memory_space<vmem>>, vector<1x128xf32>
    %c0_45 = arith.constant 0 : index
    %c0_46 = arith.constant 0 : index
    %105 = vector.load %arg13[%c0_45, %c0_46] : memref<1x128xf32, #tpu.memory_space<vmem>>, vector<1x128xf32>
    %cst_47 = arith.constant dense<0.000000e+00> : vector<32xf32>
    %106 = vector.multi_reduction <add>, %103, %cst_47 [1] : vector<32x128xf32> to vector<32xf32>
    %107 = vector.shape_cast %106 : vector<32xf32> to vector<32x1xf32>
    %cst_48 = arith.constant 1.280000e+02 : f32
    %108 = vector.broadcast %cst_48 : f32 to vector<32x1xf32>
    %109 = arith.divf %107, %108 : vector<32x1xf32>
    %110 = vector.broadcast %109 : vector<32x1xf32> to vector<32x128xf32>
    %111 = arith.subf %103, %110 : vector<32x128xf32>
    %112 = arith.mulf %111, %111 : vector<32x128xf32>
    %cst_49 = arith.constant dense<0.000000e+00> : vector<32xf32>
    %113 = vector.multi_reduction <add>, %112, %cst_49 [1] : vector<32x128xf32> to vector<32xf32>
    %114 = vector.shape_cast %113 : vector<32xf32> to vector<32x1xf32>
    %cst_50 = arith.constant 1.280000e+02 : f32
    %115 = vector.broadcast %cst_50 : f32 to vector<32x1xf32>
    %116 = arith.divf %114, %115 : vector<32x1xf32>
    %cst_51 = arith.constant 9.99999974E-6 : f32
    %117 = vector.broadcast %cst_51 : f32 to vector<32x1xf32>
    %118 = arith.addf %116, %117 : vector<32x1xf32>
    %119 = math.rsqrt %118 : vector<32x1xf32>
    %120 = vector.broadcast %119 : vector<32x1xf32> to vector<32x128xf32>
    %121 = arith.mulf %111, %120 : vector<32x128xf32>
    %122 = vector.broadcast %104 : vector<1x128xf32> to vector<32x128xf32>
    %123 = arith.mulf %121, %122 : vector<32x128xf32>
    %124 = vector.broadcast %105 : vector<1x128xf32> to vector<32x128xf32>
    %125 = arith.addf %123, %124 : vector<32x128xf32>
    %126 = arith.truncf %125 : vector<32x128xf32> to vector<32x128xbf16>
    %c0_52 = arith.constant 0 : index
    %c0_53 = arith.constant 0 : index
    %127 = vector.load %arg14[%c0_52, %c0_53] : memref<128x256xbf16, #tpu.memory_space<vmem>>, vector<128x256xbf16>
    %cst_54 = arith.constant dense<0.000000e+00> : vector<32x256xf32>
    %128 = tpu.matmul %126, %127, %cst_54 {dimension_numbers = #tpu.dot_dimension_numbers<[1], [0], [0], [1], [0, 0, 1, 1], [], []>} : vector<32x128xbf16>, vector<128x256xbf16>, vector<32x256xf32> -> vector<32x256xf32>
    %c0_55 = arith.constant 0 : index
    %c0_56 = arith.constant 0 : index
    %129 = vector.load %arg15[%c0_55, %c0_56] : memref<1x256xf32, #tpu.memory_space<vmem>>, vector<1x256xf32>
    %130 = vector.broadcast %129 : vector<1x256xf32> to vector<32x256xf32>
    %131 = arith.addf %128, %130 : vector<32x256xf32>
    %cst_57 = arith.constant 0.000000e+00 : f32
    %132 = vector.broadcast %cst_57 : f32 to vector<32x256xf32>
    %133 = arith.maximumf %131, %132 : vector<32x256xf32>
    %134 = arith.truncf %133 : vector<32x256xf32> to vector<32x256xbf16>
    %c0_58 = arith.constant 0 : index
    %c0_59 = arith.constant 0 : index
    %135 = vector.load %arg16[%c0_58, %c0_59] : memref<256x128xbf16, #tpu.memory_space<vmem>>, vector<256x128xbf16>
    %cst_60 = arith.constant dense<0.000000e+00> : vector<32x128xf32>
    %136 = tpu.matmul %134, %135, %cst_60 {dimension_numbers = #tpu.dot_dimension_numbers<[1], [0], [0], [1], [0, 0, 1, 1], [], []>} : vector<32x256xbf16>, vector<256x128xbf16>, vector<32x128xf32> -> vector<32x128xf32>
    %c0_61 = arith.constant 0 : index
    %c0_62 = arith.constant 0 : index
    %137 = vector.load %arg17[%c0_61, %c0_62] : memref<1x128xf32, #tpu.memory_space<vmem>>, vector<1x128xf32>
    %138 = vector.broadcast %137 : vector<1x128xf32> to vector<32x128xf32>
    %139 = arith.addf %136, %138 : vector<32x128xf32>
    %140 = arith.addf %125, %139 : vector<32x128xf32>
    %c0_63 = arith.constant 0 : index
    %c0_64 = arith.constant 0 : index
    %141 = vector.load %arg18[%c0_63, %c0_64] : memref<1x128xf32, #tpu.memory_space<vmem>>, vector<1x128xf32>
    %c0_65 = arith.constant 0 : index
    %c0_66 = arith.constant 0 : index
    %142 = vector.load %arg19[%c0_65, %c0_66] : memref<1x128xf32, #tpu.memory_space<vmem>>, vector<1x128xf32>
    %cst_67 = arith.constant dense<0.000000e+00> : vector<32xf32>
    %143 = vector.multi_reduction <add>, %140, %cst_67 [1] : vector<32x128xf32> to vector<32xf32>
    %144 = vector.shape_cast %143 : vector<32xf32> to vector<32x1xf32>
    %cst_68 = arith.constant 1.280000e+02 : f32
    %145 = vector.broadcast %cst_68 : f32 to vector<32x1xf32>
    %146 = arith.divf %144, %145 : vector<32x1xf32>
    %147 = vector.broadcast %146 : vector<32x1xf32> to vector<32x128xf32>
    %148 = arith.subf %140, %147 : vector<32x128xf32>
    %149 = arith.mulf %148, %148 : vector<32x128xf32>
    %cst_69 = arith.constant dense<0.000000e+00> : vector<32xf32>
    %150 = vector.multi_reduction <add>, %149, %cst_69 [1] : vector<32x128xf32> to vector<32xf32>
    %151 = vector.shape_cast %150 : vector<32xf32> to vector<32x1xf32>
    %cst_70 = arith.constant 1.280000e+02 : f32
    %152 = vector.broadcast %cst_70 : f32 to vector<32x1xf32>
    %153 = arith.divf %151, %152 : vector<32x1xf32>
    %cst_71 = arith.constant 9.99999974E-6 : f32
    %154 = vector.broadcast %cst_71 : f32 to vector<32x1xf32>
    %155 = arith.addf %153, %154 : vector<32x1xf32>
    %156 = math.rsqrt %155 : vector<32x1xf32>
    %157 = vector.broadcast %156 : vector<32x1xf32> to vector<32x128xf32>
    %158 = arith.mulf %148, %157 : vector<32x128xf32>
    %159 = vector.broadcast %141 : vector<1x128xf32> to vector<32x128xf32>
    %160 = arith.mulf %158, %159 : vector<32x128xf32>
    %161 = vector.broadcast %142 : vector<1x128xf32> to vector<32x128xf32>
    %162 = arith.addf %160, %161 : vector<32x128xf32>
    %163 = vector.shape_cast %162 : vector<32x128xf32> to vector<4x8x128xf32>
    %c0_72 = arith.constant 0 : index
    %c0_73 = arith.constant 0 : index
    %c0_74 = arith.constant 0 : index
    %164 = vector.load %arg20[%c0_72, %c0_73, %c0_74] : memref<4x8x128xf32, #tpu.memory_space<vmem>>, vector<4x8x128xf32>
    tpu.vector_store %arg20[%c0_72, %c0_73, %c0_74], %163 {strides = array<i32>} : memref<4x8x128xf32, #tpu.memory_space<vmem>>, vector<4x8x128xf32>,
    return
  }
  func.func @transform_0(%arg0: i32) -> (i32, i32, i32) {
    %c0_i32 = arith.constant 0 : i32
    %c0_i32_0 = arith.constant 0 : i32
    %c0_i32_1 = arith.constant 0 : i32
    return %arg0, %c0_i32, %c0_i32_0 : i32, i32, i32
  }
  func.func @transform_1(%arg0: i32) -> (i32, i32, i32) {
    %c0_i32 = arith.constant 0 : i32
    %c0_i32_0 = arith.constant 0 : i32
    %c0_i32_1 = arith.constant 0 : i32
    return %arg0, %c0_i32, %c0_i32_0 : i32, i32, i32
  }
  func.func @transform_2(%arg0: i32) -> (i32, i32, i32) {
    %c0_i32 = arith.constant 0 : i32
    %c0_i32_0 = arith.constant 0 : i32
    %c0_i32_1 = arith.constant 0 : i32
    return %arg0, %c0_i32, %c0_i32_0 : i32, i32, i32
  }
  func.func @transform_3(%arg0: i32) -> (i32, i32) {
    %c0_i32 = arith.constant 0 : i32
    %c0_i32_0 = arith.constant 0 : i32
    %c0_i32_1 = arith.constant 0 : i32
    return %c0_i32, %c0_i32_0 : i32, i32
  }
  func.func @transform_4(%arg0: i32) -> (i32, i32) {
    %c0_i32 = arith.constant 0 : i32
    %c0_i32_0 = arith.constant 0 : i32
    %c0_i32_1 = arith.constant 0 : i32
    return %c0_i32, %c0_i32_0 : i32, i32
  }
  func.func @transform_5(%arg0: i32) -> (i32, i32) {
    %c0_i32 = arith.constant 0 : i32
    %c0_i32_0 = arith.constant 0 : i32
    %c0_i32_1 = arith.constant 0 : i32
    return %c0_i32, %c0_i32_0 : i32, i32
  }
  func.func @transform_6(%arg0: i32) -> (i32, i32) {
    %c0_i32 = arith.constant 0 : i32
    %c0_i32_0 = arith.constant 0 : i32
    %c0_i32_1 = arith.constant 0 : i32
    return %c0_i32, %c0_i32_0 : i32, i32
  }
  func.func @transform_7(%arg0: i32) -> (i32, i32) {
    %c0_i32 = arith.constant 0 : i32
    %c0_i32_0 = arith.constant 0 : i32
    %c0_i32_1 = arith.constant 0 : i32
    return %c0_i32, %c0_i32_0 : i32, i32
  }
  func.func @transform_8(%arg0: i32) -> (i32, i32) {
    %c0_i32 = arith.constant 0 : i32
    %c0_i32_0 = arith.constant 0 : i32
    %c0_i32_1 = arith.constant 0 : i32
    return %c0_i32, %c0_i32_0 : i32, i32
  }
  func.func @transform_9(%arg0: i32) -> (i32, i32) {
    %c0_i32 = arith.constant 0 : i32
    %c0_i32_0 = arith.constant 0 : i32
    %c0_i32_1 = arith.constant 0 : i32
    return %c0_i32, %c0_i32_0 : i32, i32
  }
  func.func @transform_10(%arg0: i32) -> (i32, i32) {
    %c0_i32 = arith.constant 0 : i32
    %c0_i32_0 = arith.constant 0 : i32
    %c0_i32_1 = arith.constant 0 : i32
    return %c0_i32, %c0_i32_0 : i32, i32
  }
  func.func @transform_11(%arg0: i32) -> (i32, i32) {
    %c0_i32 = arith.constant 0 : i32
    %c0_i32_0 = arith.constant 0 : i32
    %c0_i32_1 = arith.constant 0 : i32
    return %c0_i32, %c0_i32_0 : i32, i32
  }
  func.func @transform_12(%arg0: i32) -> (i32, i32) {
    %c0_i32 = arith.constant 0 : i32
    %c0_i32_0 = arith.constant 0 : i32
    %c0_i32_1 = arith.constant 0 : i32
    return %c0_i32, %c0_i32_0 : i32, i32
  }
  func.func @transform_13(%arg0: i32) -> (i32, i32) {
    %c0_i32 = arith.constant 0 : i32
    %c0_i32_0 = arith.constant 0 : i32
    %c0_i32_1 = arith.constant 0 : i32
    return %c0_i32, %c0_i32_0 : i32, i32
  }
  func.func @transform_14(%arg0: i32) -> (i32, i32) {
    %c0_i32 = arith.constant 0 : i32
    %c0_i32_0 = arith.constant 0 : i32
    %c0_i32_1 = arith.constant 0 : i32
    return %c0_i32, %c0_i32_0 : i32, i32
  }
  func.func @transform_15(%arg0: i32) -> (i32, i32) {
    %c0_i32 = arith.constant 0 : i32
    %c0_i32_0 = arith.constant 0 : i32
    %c0_i32_1 = arith.constant 0 : i32
    return %c0_i32, %c0_i32_0 : i32, i32
  }
  func.func @transform_16(%arg0: i32) -> (i32, i32) {
    %c0_i32 = arith.constant 0 : i32
    %c0_i32_0 = arith.constant 0 : i32
    %c0_i32_1 = arith.constant 0 : i32
    return %c0_i32, %c0_i32_0 : i32, i32
  }
  func.func @transform_17(%arg0: i32) -> (i32, i32) {
    %c0_i32 = arith.constant 0 : i32
    %c0_i32_0 = arith.constant 0 : i32
    %c0_i32_1 = arith.constant 0 : i32
    return %c0_i32, %c0_i32_0 : i32, i32
  }
  func.func @transform_18(%arg0: i32) -> (i32, i32) {
    %c0_i32 = arith.constant 0 : i32
    %c0_i32_0 = arith.constant 0 : i32
    %c0_i32_1 = arith.constant 0 : i32
    return %c0_i32, %c0_i32_0 : i32, i32
  }
  func.func @transform_19(%arg0: i32) -> (i32, i32, i32) {
    %c0_i32 = arith.constant 0 : i32
    %c0_i32_0 = arith.constant 0 : i32
    %c0_i32_1 = arith.constant 0 : i32
    return %arg0, %c0_i32, %c0_i32_0 : i32, i32, i32
  }
}

module attributes {stable_mosaic.version = 11 : i64} {
  func.func @transformer_layer_kernel(%arg0: i32, %arg1: memref<4x8x128xf32, #tpu.memory_space<vmem>>, %arg2: memref<4x8x128xf32, #tpu.memory_space<vmem>>, %arg3: memref<4x8x128xf32, #tpu.memory_space<vmem>>, %arg4: memref<128x128xbf16, #tpu.memory_space<vmem>>, %arg5: memref<1x128xf32, #tpu.memory_space<vmem>>, %arg6: memref<128x128xbf16, #tpu.memory_space<vmem>>, %arg7: memref<1x128xf32, #tpu.memory_space<vmem>>, %arg8: memref<128x128xbf16, #tpu.memory_space<vmem>>, %arg9: memref<1x128xf32, #tpu.memory_space<vmem>>, %arg10: memref<128x128xbf16, #tpu.memory_space<vmem>>, %arg11: memref<1x128xf32, #tpu.memory_space<vmem>>, %arg12: memref<1x128xf32, #tpu.memory_space<vmem>>, %arg13: memref<1x128xf32, #tpu.memory_space<vmem>>, %arg14: memref<128x256xbf16, #tpu.memory_space<vmem>>, %arg15: memref<1x256xf32, #tpu.memory_space<vmem>>, %arg16: memref<256x128xbf16, #tpu.memory_space<vmem>>, %arg17: memref<1x128xf32, #tpu.memory_space<vmem>>, %arg18: memref<1x128xf32, #tpu.memory_space<vmem>>, %arg19: memref<1x128xf32, #tpu.memory_space<vmem>>, %arg20: memref<4x8x128xf32, #tpu.memory_space<vmem>>) attributes {dimension_semantics = [#tpu.dimension_semantics<parallel>], iteration_bounds = array<i64: 2>, scalar_prefetch = 0 : i64, scratch_operands = 0 : i64, tpu.core_type = #tpu.core_type<tc>, window_params = [{transform_indices = @transform_0, window_bounds = array<i64: 4, 8, 128>}, {transform_indices = @transform_1, window_bounds = array<i64: 4, 8, 128>}, {transform_indices = @transform_2, window_bounds = array<i64: 4, 8, 128>}, {pipeline_mode = #tpu.pipeline_mode<synchronous>, transform_indices = @transform_3, window_bounds = array<i64: 128, 128>}, {pipeline_mode = #tpu.pipeline_mode<synchronous>, transform_indices = @transform_4, window_bounds = array<i64: 1, 128>}, {pipeline_mode = #tpu.pipeline_mode<synchronous>, transform_indices = @transform_5, window_bounds = array<i64: 128, 128>}, {pipeline_mode = #tpu.pipeline_mode<synchronous>, transform_indices = @transform_6, window_bounds = array<i64: 1, 128>}, {pipeline_mode = #tpu.pipeline_mode<synchronous>, transform_indices = @transform_7, window_bounds = array<i64: 128, 128>}, {pipeline_mode = #tpu.pipeline_mode<synchronous>, transform_indices = @transform_8, window_bounds = array<i64: 1, 128>}, {pipeline_mode = #tpu.pipeline_mode<synchronous>, transform_indices = @transform_9, window_bounds = array<i64: 128, 128>}, {pipeline_mode = #tpu.pipeline_mode<synchronous>, transform_indices = @transform_10, window_bounds = array<i64: 1, 128>}, {pipeline_mode = #tpu.pipeline_mode<synchronous>, transform_indices = @transform_11, window_bounds = array<i64: 1, 128>}, {pipeline_mode = #tpu.pipeline_mode<synchronous>, transform_indices = @transform_12, window_bounds = array<i64: 1, 128>}, {pipeline_mode = #tpu.pipeline_mode<synchronous>, transform_indices = @transform_13, window_bounds = array<i64: 128, 256>}, {pipeline_mode = #tpu.pipeline_mode<synchronous>, transform_indices = @transform_14, window_bounds = array<i64: 1, 256>}, {pipeline_mode = #tpu.pipeline_mode<synchronous>, transform_indices = @transform_15, window_bounds = array<i64: 256, 128>}, {pipeline_mode = #tpu.pipeline_mode<synchronous>, transform_indices = @transform_16, window_bounds = array<i64: 1, 128>}, {pipeline_mode = #tpu.pipeline_mode<synchronous>, transform_indices = @transform_17, window_bounds = array<i64: 1, 128>}, {pipeline_mode = #tpu.pipeline_mode<synchronous>, transform_indices = @transform_18, window_bounds = array<i64: 1, 128>}, {transform_indices = @transform_19, window_bounds = array<i64: 4, 8, 128>}]} {
    %c0 = arith.constant 0 : index
    %c0_0 = arith.constant 0 : index
    %c0_1 = arith.constant 0 : index
    %0 = vector.load %arg1[%c0, %c0_0, %c0_1] : memref<4x8x128xf32, #tpu.memory_space<vmem>>, vector<4x8x128xf32>
    %1 = vector.shape_cast %0 : vector<4x8x128xf32> to vector<32x128xf32>
    %c0_2 = arith.constant 0 : index
    %c0_3 = arith.constant 0 : index
    %c0_4 = arith.constant 0 : index
    %2 = vector.load %arg2[%c0_2, %c0_3, %c0_4] : memref<4x8x128xf32, #tpu.memory_space<vmem>>, vector<4x8x128xf32>
    %3 = vector.shape_cast %2 : vector<4x8x128xf32> to vector<32x128xf32>
    %c0_5 = arith.constant 0 : index
    %c0_6 = arith.constant 0 : index
    %c0_7 = arith.constant 0 : index
    %4 = vector.load %arg3[%c0_5, %c0_6, %c0_7] : memref<4x8x128xf32, #tpu.memory_space<vmem>>, vector<4x8x128xf32>
    %5 = vector.shape_cast %4 : vector<4x8x128xf32> to vector<32x128xf32>
    %6 = arith.truncf %1 : vector<32x128xf32> to vector<32x128xbf16>
    %c0_8 = arith.constant 0 : index
    %c0_9 = arith.constant 0 : index
    %7 = vector.load %arg4[%c0_8, %c0_9] : memref<128x128xbf16, #tpu.memory_space<vmem>>, vector<128x128xbf16>
    %cst = arith.constant dense<0.000000e+00> : vector<32x128xf32>
    %8 = tpu.matmul %6, %7, %cst {dimension_numbers = #tpu.dot_dimension_numbers<[1], [0], [0], [1], [0, 0, 1, 1], [], []>} : vector<32x128xbf16>, vector<128x128xbf16>, vector<32x128xf32> -> vector<32x128xf32>
    %c0_10 = arith.constant 0 : index
    %c0_11 = arith.constant 0 : index
    %9 = vector.load %arg5[%c0_10, %c0_11] : memref<1x128xf32, #tpu.memory_space<vmem>>, vector<1x128xf32>
    %10 = vector.broadcast %9 : vector<1x128xf32> to vector<32x128xf32>
    %11 = arith.addf %8, %10 : vector<32x128xf32>
    %cst_12 = arith.constant 1.250000e-01 : f32
    %12 = vector.broadcast %cst_12 : f32 to vector<32x128xf32>
    %13 = arith.mulf %11, %12 : vector<32x128xf32>
    %14 = arith.truncf %3 : vector<32x128xf32> to vector<32x128xbf16>
    %c0_13 = arith.constant 0 : index
    %c0_14 = arith.constant 0 : index
    %15 = vector.load %arg6[%c0_13, %c0_14] : memref<128x128xbf16, #tpu.memory_space<vmem>>, vector<128x128xbf16>
    %cst_15 = arith.constant dense<0.000000e+00> : vector<32x128xf32>
    %16 = tpu.matmul %14, %15, %cst_15 {dimension_numbers = #tpu.dot_dimension_numbers<[1], [0], [0], [1], [0, 0, 1, 1], [], []>} : vector<32x128xbf16>, vector<128x128xbf16>, vector<32x128xf32> -> vector<32x128xf32>
    %c0_16 = arith.constant 0 : index
    %c0_17 = arith.constant 0 : index
    %17 = vector.load %arg7[%c0_16, %c0_17] : memref<1x128xf32, #tpu.memory_space<vmem>>, vector<1x128xf32>
    %18 = vector.broadcast %17 : vector<1x128xf32> to vector<32x128xf32>
    %19 = arith.addf %16, %18 : vector<32x128xf32>
    %20 = arith.truncf %5 : vector<32x128xf32> to vector<32x128xbf16>
    %c0_18 = arith.constant 0 : index
    %c0_19 = arith.constant 0 : index
    %21 = vector.load %arg8[%c0_18, %c0_19] : memref<128x128xbf16, #tpu.memory_space<vmem>>, vector<128x128xbf16>
    %cst_20 = arith.constant dense<0.000000e+00> : vector<32x128xf32>
    %22 = tpu.matmul %20, %21, %cst_20 {dimension_numbers = #tpu.dot_dimension_numbers<[1], [0], [0], [1], [0, 0, 1, 1], [], []>} : vector<32x128xbf16>, vector<128x128xbf16>, vector<32x128xf32> -> vector<32x128xf32>
    %c0_21 = arith.constant 0 : index
    %c0_22 = arith.constant 0 : index
    %23 = vector.load %arg9[%c0_21, %c0_22] : memref<1x128xf32, #tpu.memory_space<vmem>>, vector<1x128xf32>
    %24 = vector.broadcast %23 : vector<1x128xf32> to vector<32x128xf32>
    %25 = arith.addf %22, %24 : vector<32x128xf32>
    %26 = arith.truncf %13 : vector<32x128xf32> to vector<32x128xbf16>
    %27 = arith.truncf %19 : vector<32x128xf32> to vector<32x128xbf16>
    %28 = arith.truncf %25 : vector<32x128xf32> to vector<32x128xbf16>
    %29 = tpu.iota {dimensions = array<i32: 1>} : vector<1x8x8xi32>
    %30 = tpu.iota {dimensions = array<i32: 2>} : vector<1x8x8xi32>
    %c0_i32 = arith.constant 0 : i32
    %31 = vector.broadcast %c0_i32 : i32 to vector<1x8x8xi32>
    %32 = arith.addi %29, %31 : vector<1x8x8xi32>
    %33 = arith.cmpi slt, %30, %32 : vector<1x8x8xi32>
    %cst_23 = arith.constant 0.000000e+00 : f32
    %34 = vector.broadcast %cst_23 : f32 to vector<32x128xf32>
    %35 = vector.extract_strided_slice %26 {offsets = [0, 0], sizes = [32, 64], strides = [1, 1]} : vector<32x128xbf16> to vector<32x64xbf16>
    %36 = vector.shape_cast %35 : vector<32x64xbf16> to vector<4x8x64xbf16>
    %37 = vector.extract_strided_slice %27 {offsets = [0, 0], sizes = [32, 64], strides = [1, 1]} : vector<32x128xbf16> to vector<32x64xbf16>
    %38 = vector.shape_cast %37 : vector<32x64xbf16> to vector<4x8x64xbf16>
    %39 = vector.extract_strided_slice %28 {offsets = [0, 0], sizes = [32, 64], strides = [1, 1]} : vector<32x128xbf16> to vector<32x64xbf16>
    %40 = vector.shape_cast %39 : vector<32x64xbf16> to vector<4x8x64xbf16>
    "tpu.trace_start"() <{level = 10 : i32, message = "bqd,bkd->bqk"}> : () -> ()
    %cst_24 = arith.constant dense<0.000000e+00> : vector<4x8x8xf32>
    %41 = tpu.matmul %36, %38, %cst_24 {dimension_numbers = #tpu.dot_dimension_numbers<[2], [2], [1], [1], [0, 0, 0, 1, 1, 1], [0], [0]>} : vector<4x8x64xbf16>, vector<4x8x64xbf16>, vector<4x8x8xf32> -> vector<4x8x8xf32>
    %cst_25 = arith.constant -1.000000e+32 : f32
    "tpu.trace_stop"() : () -> ()
    %42 = vector.shape_cast %33 : vector<1x8x8xi1> to vector<1x8x8xi1>
    %43 = vector.broadcast %42 : vector<1x8x8xi1> to vector<4x8x8xi1>
    %44 = vector.broadcast %cst_25 : f32 to vector<4x8x8xf32>
    %45 = arith.select %43, %41, %44 : vector<4x8x8xi1>, vector<4x8x8xf32>
    %cst_26 = arith.constant dense<0xFF800000> : vector<4x8xf32>
    %46 = vector.multi_reduction <maximumf>, %45, %cst_26 [2] : vector<4x8x8xf32> to vector<4x8xf32>
    %47 = vector.shape_cast %46 : vector<4x8xf32> to vector<4x8x1xf32>
    %48 = vector.broadcast %47 : vector<4x8x1xf32> to vector<4x8x8xf32>
    %49 = arith.subf %45, %48 : vector<4x8x8xf32>
    %50 = math.exp %49 : vector<4x8x8xf32>
    %cst_27 = arith.constant dense<0.000000e+00> : vector<4x8xf32>
    %51 = vector.multi_reduction <add>, %50, %cst_27 [2] : vector<4x8x8xf32> to vector<4x8xf32>
    %52 = vector.shape_cast %51 : vector<4x8xf32> to vector<4x8x1xf32>
    %53 = tpu.reciprocal %52 {approx = true} : vector<4x8x1xf32> -> vector<4x8x1xf32>
    %54 = vector.broadcast %53 : vector<4x8x1xf32> to vector<4x8x8xf32>
    %55 = arith.mulf %50, %54 : vector<4x8x8xf32>
    %56 = arith.truncf %55 : vector<4x8x8xf32> to vector<4x8x8xbf16>
    "tpu.trace_start"() <{level = 10 : i32, message = "bqk,bkd->bqd"}> : () -> ()
    %cst_28 = arith.constant dense<0.000000e+00> : vector<4x8x64xf32>
    %57 = tpu.matmul %56, %40, %cst_28 {dimension_numbers = #tpu.dot_dimension_numbers<[2], [1], [1], [2], [0, 0, 0, 1, 1, 2], [0], [0]>} : vector<4x8x8xbf16>, vector<4x8x64xbf16>, vector<4x8x64xf32> -> vector<4x8x64xf32>
    "tpu.trace_stop"() : () -> ()
    %58 = vector.shape_cast %57 : vector<4x8x64xf32> to vector<32x64xf32>
    %59 = arith.truncf %58 : vector<32x64xf32> to vector<32x64xbf16>
    %c0_29 = arith.constant 0 : index
    %c0_30 = arith.constant 0 : index
    %60 = vector.load %arg10[%c0_29, %c0_30] : memref<128x128xbf16, #tpu.memory_space<vmem>>, vector<64x128xbf16>
    %cst_31 = arith.constant dense<0.000000e+00> : vector<32x128xf32>
    %61 = tpu.matmul %59, %60, %cst_31 {dimension_numbers = #tpu.dot_dimension_numbers<[1], [0], [0], [1], [0, 0, 1, 1], [], []>} : vector<32x64xbf16>, vector<64x128xbf16>, vector<32x128xf32> -> vector<32x128xf32>
    %62 = arith.addf %34, %61 : vector<32x128xf32>
    %63 = vector.extract_strided_slice %26 {offsets = [0, 64], sizes = [32, 64], strides = [1, 1]} : vector<32x128xbf16> to vector<32x64xbf16>
    %64 = vector.shape_cast %63 : vector<32x64xbf16> to vector<4x8x64xbf16>
    %65 = vector.extract_strided_slice %27 {offsets = [0, 64], sizes = [32, 64], strides = [1, 1]} : vector<32x128xbf16> to vector<32x64xbf16>
    %66 = vector.shape_cast %65 : vector<32x64xbf16> to vector<4x8x64xbf16>
    %67 = vector.extract_strided_slice %28 {offsets = [0, 64], sizes = [32, 64], strides = [1, 1]} : vector<32x128xbf16> to vector<32x64xbf16>
    %68 = vector.shape_cast %67 : vector<32x64xbf16> to vector<4x8x64xbf16>
    "tpu.trace_start"() <{level = 10 : i32, message = "bqd,bkd->bqk"}> : () -> ()
    %cst_32 = arith.constant dense<0.000000e+00> : vector<4x8x8xf32>
    %69 = tpu.matmul %64, %66, %cst_32 {dimension_numbers = #tpu.dot_dimension_numbers<[2], [2], [1], [1], [0, 0, 0, 1, 1, 1], [0], [0]>} : vector<4x8x64xbf16>, vector<4x8x64xbf16>, vector<4x8x8xf32> -> vector<4x8x8xf32>
    %cst_33 = arith.constant -1.000000e+32 : f32
    "tpu.trace_stop"() : () -> ()
    %70 = vector.shape_cast %33 : vector<1x8x8xi1> to vector<1x8x8xi1>
    %71 = vector.broadcast %70 : vector<1x8x8xi1> to vector<4x8x8xi1>
    %72 = vector.broadcast %cst_33 : f32 to vector<4x8x8xf32>
    %73 = arith.select %71, %69, %72 : vector<4x8x8xi1>, vector<4x8x8xf32>
    %cst_34 = arith.constant dense<0xFF800000> : vector<4x8xf32>
    %74 = vector.multi_reduction <maximumf>, %73, %cst_34 [2] : vector<4x8x8xf32> to vector<4x8xf32>
    %75 = vector.shape_cast %74 : vector<4x8xf32> to vector<4x8x1xf32>
    %76 = vector.broadcast %75 : vector<4x8x1xf32> to vector<4x8x8xf32>
    %77 = arith.subf %73, %76 : vector<4x8x8xf32>
    %78 = math.exp %77 : vector<4x8x8xf32>
    %cst_35 = arith.constant dense<0.000000e+00> : vector<4x8xf32>
    %79 = vector.multi_reduction <add>, %78, %cst_35 [2] : vector<4x8x8xf32> to vector<4x8xf32>
    %80 = vector.shape_cast %79 : vector<4x8xf32> to vector<4x8x1xf32>
    %81 = tpu.reciprocal %80 {approx = true} : vector<4x8x1xf32> -> vector<4x8x1xf32>
    %82 = vector.broadcast %81 : vector<4x8x1xf32> to vector<4x8x8xf32>
    %83 = arith.mulf %78, %82 : vector<4x8x8xf32>
    %84 = arith.truncf %83 : vector<4x8x8xf32> to vector<4x8x8xbf16>
    "tpu.trace_start"() <{level = 10 : i32, message = "bqk,bkd->bqd"}> : () -> ()
    %cst_36 = arith.constant dense<0.000000e+00> : vector<4x8x64xf32>
    %85 = tpu.matmul %84, %68, %cst_36 {dimension_numbers = #tpu.dot_dimension_numbers<[2], [1], [1], [2], [0, 0, 0, 1, 1, 2], [0], [0]>} : vector<4x8x8xbf16>, vector<4x8x64xbf16>, vector<4x8x64xf32> -> vector<4x8x64xf32>
    "tpu.trace_stop"() : () -> ()
    %86 = vector.shape_cast %85 : vector<4x8x64xf32> to vector<32x64xf32>
    %87 = arith.truncf %86 : vector<32x64xf32> to vector<32x64xbf16>
    %c64 = arith.constant 64 : index
    %c0_37 = arith.constant 0 : index
    %88 = vector.load %arg10[%c64, %c0_37] : memref<128x128xbf16, #tpu.memory_space<vmem>>, vector<64x128xbf16>
    %cst_38 = arith.constant dense<0.000000e+00> : vector<32x128xf32>
    %89 = tpu.matmul %87, %88, %cst_38 {dimension_numbers = #tpu.dot_dimension_numbers<[1], [0], [0], [1], [0, 0, 1, 1], [], []>} : vector<32x64xbf16>, vector<64x128xbf16>, vector<32x128xf32> -> vector<32x128xf32>
    %90 = arith.addf %62, %89 : vector<32x128xf32>
    %91 = tpu.iota {dimensions = array<i32: 1>} : vector<1x8x1xi32>
    %c0_i32_39 = arith.constant 0 : i32
    %92 = vector.broadcast %c0_i32_39 : i32 to vector<1x8x1xi32>
    %93 = arith.cmpi eq, %91, %92 : vector<1x8x1xi32>
    %94 = vector.shape_cast %90 : vector<32x128xf32> to vector<4x8x128xf32>
    %cst_40 = arith.constant 0.000000e+00 : f32
    %95 = vector.shape_cast %93 : vector<1x8x1xi1> to vector<1x8x1xi1>
    %96 = vector.broadcast %95 : vector<1x8x1xi1> to vector<4x8x128xi1>
    %97 = vector.broadcast %cst_40 : f32 to vector<4x8x128xf32>
    %98 = arith.select %96, %97, %94 : vector<4x8x128xi1>, vector<4x8x128xf32>
    %99 = vector.shape_cast %98 : vector<4x8x128xf32> to vector<32x128xf32>
    %c0_41 = arith.constant 0 : index
    %c0_42 = arith.constant 0 : index
    %100 = vector.load %arg11[%c0_41, %c0_42] : memref<1x128xf32, #tpu.memory_space<vmem>>, vector<1x128xf32>
    %101 = vector.broadcast %100 : vector<1x128xf32> to vector<32x128xf32>
    %102 = arith.addf %99, %101 : vector<32x128xf32>
    %103 = arith.addf %1, %102 : vector<32x128xf32>
    %c0_43 = arith.constant 0 : index
    %c0_44 = arith.constant 0 : index
    %104 = vector.load %arg12[%c0_43, %c0_44] : memref<1x128xf32, #tpu.memory_space<vmem>>, vector<1x128xf32>
    %c0_45 = arith.constant 0 : index
    %c0_46 = arith.constant 0 : index
    %105 = vector.load %arg13[%c0_45, %c0_46] : memref<1x128xf32, #tpu.memory_space<vmem>>, vector<1x128xf32>
    %cst_47 = arith.constant dense<0.000000e+00> : vector<32xf32>
    %106 = vector.multi_reduction <add>, %103, %cst_47 [1] : vector<32x128xf32> to vector<32xf32>
    %107 = vector.shape_cast %106 : vector<32xf32> to vector<32x1xf32>
    %cst_48 = arith.constant 1.280000e+02 : f32
    %108 = vector.broadcast %cst_48 : f32 to vector<32x1xf32>
    %109 = arith.divf %107, %108 : vector<32x1xf32>
    %110 = vector.broadcast %109 : vector<32x1xf32> to vector<32x128xf32>
    %111 = arith.subf %103, %110 : vector<32x128xf32>
    %112 = arith.mulf %111, %111 : vector<32x128xf32>
    %cst_49 = arith.constant dense<0.000000e+00> : vector<32xf32>
    %113 = vector.multi_reduction <add>, %112, %cst_49 [1] : vector<32x128xf32> to vector<32xf32>
    %114 = vector.shape_cast %113 : vector<32xf32> to vector<32x1xf32>
    %cst_50 = arith.constant 1.280000e+02 : f32
    %115 = vector.broadcast %cst_50 : f32 to vector<32x1xf32>
    %116 = arith.divf %114, %115 : vector<32x1xf32>
    %cst_51 = arith.constant 9.99999974E-6 : f32
    %117 = vector.broadcast %cst_51 : f32 to vector<32x1xf32>
    %118 = arith.addf %116, %117 : vector<32x1xf32>
    %119 = math.rsqrt %118 : vector<32x1xf32>
    %120 = vector.broadcast %119 : vector<32x1xf32> to vector<32x128xf32>
    %121 = arith.mulf %111, %120 : vector<32x128xf32>
    %122 = vector.broadcast %104 : vector<1x128xf32> to vector<32x128xf32>
    %123 = arith.mulf %121, %122 : vector<32x128xf32>
    %124 = vector.broadcast %105 : vector<1x128xf32> to vector<32x128xf32>
    %125 = arith.addf %123, %124 : vector<32x128xf32>
    %126 = arith.truncf %125 : vector<32x128xf32> to vector<32x128xbf16>
    %c0_52 = arith.constant 0 : index
    %c0_53 = arith.constant 0 : index
    %127 = vector.load %arg14[%c0_52, %c0_53] : memref<128x256xbf16, #tpu.memory_space<vmem>>, vector<128x256xbf16>
    %cst_54 = arith.constant dense<0.000000e+00> : vector<32x256xf32>
    %128 = tpu.matmul %126, %127, %cst_54 {dimension_numbers = #tpu.dot_dimension_numbers<[1], [0], [0], [1], [0, 0, 1, 1], [], []>} : vector<32x128xbf16>, vector<128x256xbf16>, vector<32x256xf32> -> vector<32x256xf32>
    %c0_55 = arith.constant 0 : index
    %c0_56 = arith.constant 0 : index
    %129 = vector.load %arg15[%c0_55, %c0_56] : memref<1x256xf32, #tpu.memory_space<vmem>>, vector<1x256xf32>
    %130 = vector.broadcast %129 : vector<1x256xf32> to vector<32x256xf32>
    %131 = arith.addf %128, %130 : vector<32x256xf32>
    %cst_57 = arith.constant 0.000000e+00 : f32
    %132 = vector.broadcast %cst_57 : f32 to vector<32x256xf32>
    %133 = arith.maximumf %131, %132 : vector<32x256xf32>
    %134 = arith.truncf %133 : vector<32x256xf32> to vector<32x256xbf16>
    %c0_58 = arith.constant 0 : index
    %c0_59 = arith.constant 0 : index
    %135 = vector.load %arg16[%c0_58, %c0_59] : memref<256x128xbf16, #tpu.memory_space<vmem>>, vector<256x128xbf16>
    %cst_60 = arith.constant dense<0.000000e+00> : vector<32x128xf32>
    %136 = tpu.matmul %134, %135, %cst_60 {dimension_numbers = #tpu.dot_dimension_numbers<[1], [0], [0], [1], [0, 0, 1, 1], [], []>} : vector<32x256xbf16>, vector<256x128xbf16>, vector<32x128xf32> -> vector<32x128xf32>
    %c0_61 = arith.constant 0 : index
    %c0_62 = arith.constant 0 : index
    %137 = vector.load %arg17[%c0_61, %c0_62] : memref<1x128xf32, #tpu.memory_space<vmem>>, vector<1x128xf32>
    %138 = vector.broadcast %137 : vector<1x128xf32> to vector<32x128xf32>
    %139 = arith.addf %136, %138 : vector<32x128xf32>
    %140 = arith.addf %125, %139 : vector<32x128xf32>
    %c0_63 = arith.constant 0 : index
    %c0_64 = arith.constant 0 : index
    %141 = vector.load %arg18[%c0_63, %c0_64] : memref<1x128xf32, #tpu.memory_space<vmem>>, vector<1x128xf32>
    %c0_65 = arith.constant 0 : index
    %c0_66 = arith.constant 0 : index
    %142 = vector.load %arg19[%c0_65, %c0_66] : memref<1x128xf32, #tpu.memory_space<vmem>>, vector<1x128xf32>
    %cst_67 = arith.constant dense<0.000000e+00> : vector<32xf32>
    %143 = vector.multi_reduction <add>, %140, %cst_67 [1] : vector<32x128xf32> to vector<32xf32>
    %144 = vector.shape_cast %143 : vector<32xf32> to vector<32x1xf32>
    %cst_68 = arith.constant 1.280000e+02 : f32
    %145 = vector.broadcast %cst_68 : f32 to vector<32x1xf32>
    %146 = arith.divf %144, %145 : vector<32x1xf32>
    %147 = vector.broadcast %146 : vector<32x1xf32> to vector<32x128xf32>
    %148 = arith.subf %140, %147 : vector<32x128xf32>
    %149 = arith.mulf %148, %148 : vector<32x128xf32>
    %cst_69 = arith.constant dense<0.000000e+00> : vector<32xf32>
    %150 = vector.multi_reduction <add>, %149, %cst_69 [1] : vector<32x128xf32> to vector<32xf32>
    %151 = vector.shape_cast %150 : vector<32xf32> to vector<32x1xf32>
    %cst_70 = arith.constant 1.280000e+02 : f32
    %152 = vector.broadcast %cst_70 : f32 to vector<32x1xf32>
    %153 = arith.divf %151, %152 : vector<32x1xf32>
    %cst_71 = arith.constant 9.99999974E-6 : f32
    %154 = vector.broadcast %cst_71 : f32 to vector<32x1xf32>
    %155 = arith.addf %153, %154 : vector<32x1xf32>
    %156 = math.rsqrt %155 : vector<32x1xf32>
    %157 = vector.broadcast %156 : vector<32x1xf32> to vector<32x128xf32>
    %158 = arith.mulf %148, %157 : vector<32x128xf32>
    %159 = vector.broadcast %141 : vector<1x128xf32> to vector<32x128xf32>
    %160 = arith.mulf %158, %159 : vector<32x128xf32>
    %161 = vector.broadcast %142 : vector<1x128xf32> to vector<32x128xf32>
    %162 = arith.addf %160, %161 : vector<32x128xf32>
    %163 = vector.shape_cast %162 : vector<32x128xf32> to vector<4x8x128xf32>
    %c0_72 = arith.constant 0 : index
    %c0_73 = arith.constant 0 : index
    %c0_74 = arith.constant 0 : index
    %164 = vector.load %arg20[%c0_72, %c0_73, %c0_74] : memref<4x8x128xf32, #tpu.memory_space<vmem>>, vector<4x8x128xf32>
    tpu.vector_store %arg20[%c0_72, %c0_73, %c0_74], %163 {strides = array<i32>} : memref<4x8x128xf32, #tpu.memory_space<vmem>>, vector<4x8x128xf32>,
    return
  }
  func.func @transform_0(%arg0: i32) -> (i32, i32, i32) {
    %c0_i32 = arith.constant 0 : i32
    %c0_i32_0 = arith.constant 0 : i32
    %c0_i32_1 = arith.constant 0 : i32
    return %arg0, %c0_i32, %c0_i32_0 : i32, i32, i32
  }
  func.func @transform_1(%arg0: i32) -> (i32, i32, i32) {
    %c0_i32 = arith.constant 0 : i32
    %c0_i32_0 = arith.constant 0 : i32
    %c0_i32_1 = arith.constant 0 : i32
    return %arg0, %c0_i32, %c0_i32_0 : i32, i32, i32
  }
  func.func @transform_2(%arg0: i32) -> (i32, i32, i32) {
    %c0_i32 = arith.constant 0 : i32
    %c0_i32_0 = arith.constant 0 : i32
    %c0_i32_1 = arith.constant 0 : i32
    return %arg0, %c0_i32, %c0_i32_0 : i32, i32, i32
  }
  func.func @transform_3(%arg0: i32) -> (i32, i32) {
    %c0_i32 = arith.constant 0 : i32
    %c0_i32_0 = arith.constant 0 : i32
    %c0_i32_1 = arith.constant 0 : i32
    return %c0_i32, %c0_i32_0 : i32, i32
  }
  func.func @transform_4(%arg0: i32) -> (i32, i32) {
    %c0_i32 = arith.constant 0 : i32
    %c0_i32_0 = arith.constant 0 : i32
    %c0_i32_1 = arith.constant 0 : i32
    return %c0_i32, %c0_i32_0 : i32, i32
  }
  func.func @transform_5(%arg0: i32) -> (i32, i32) {
    %c0_i32 = arith.constant 0 : i32
    %c0_i32_0 = arith.constant 0 : i32
    %c0_i32_1 = arith.constant 0 : i32
    return %c0_i32, %c0_i32_0 : i32, i32
  }
  func.func @transform_6(%arg0: i32) -> (i32, i32) {
    %c0_i32 = arith.constant 0 : i32
    %c0_i32_0 = arith.constant 0 : i32
    %c0_i32_1 = arith.constant 0 : i32
    return %c0_i32, %c0_i32_0 : i32, i32
  }
  func.func @transform_7(%arg0: i32) -> (i32, i32) {
    %c0_i32 = arith.constant 0 : i32
    %c0_i32_0 = arith.constant 0 : i32
    %c0_i32_1 = arith.constant 0 : i32
    return %c0_i32, %c0_i32_0 : i32, i32
  }
  func.func @transform_8(%arg0: i32) -> (i32, i32) {
    %c0_i32 = arith.constant 0 : i32
    %c0_i32_0 = arith.constant 0 : i32
    %c0_i32_1 = arith.constant 0 : i32
    return %c0_i32, %c0_i32_0 : i32, i32
  }
  func.func @transform_9(%arg0: i32) -> (i32, i32) {
    %c0_i32 = arith.constant 0 : i32
    %c0_i32_0 = arith.constant 0 : i32
    %c0_i32_1 = arith.constant 0 : i32
    return %c0_i32, %c0_i32_0 : i32, i32
  }
  func.func @transform_10(%arg0: i32) -> (i32, i32) {
    %c0_i32 = arith.constant 0 : i32
    %c0_i32_0 = arith.constant 0 : i32
    %c0_i32_1 = arith.constant 0 : i32
    return %c0_i32, %c0_i32_0 : i32, i32
  }
  func.func @transform_11(%arg0: i32) -> (i32, i32) {
    %c0_i32 = arith.constant 0 : i32
    %c0_i32_0 = arith.constant 0 : i32
    %c0_i32_1 = arith.constant 0 : i32
    return %c0_i32, %c0_i32_0 : i32, i32
  }
  func.func @transform_12(%arg0: i32) -> (i32, i32) {
    %c0_i32 = arith.constant 0 : i32
    %c0_i32_0 = arith.constant 0 : i32
    %c0_i32_1 = arith.constant 0 : i32
    return %c0_i32, %c0_i32_0 : i32, i32
  }
  func.func @transform_13(%arg0: i32) -> (i32, i32) {
    %c0_i32 = arith.constant 0 : i32
    %c0_i32_0 = arith.constant 0 : i32
    %c0_i32_1 = arith.constant 0 : i32
    return %c0_i32, %c0_i32_0 : i32, i32
  }
  func.func @transform_14(%arg0: i32) -> (i32, i32) {
    %c0_i32 = arith.constant 0 : i32
    %c0_i32_0 = arith.constant 0 : i32
    %c0_i32_1 = arith.constant 0 : i32
    return %c0_i32, %c0_i32_0 : i32, i32
  }
  func.func @transform_15(%arg0: i32) -> (i32, i32) {
    %c0_i32 = arith.constant 0 : i32
    %c0_i32_0 = arith.constant 0 : i32
    %c0_i32_1 = arith.constant 0 : i32
    return %c0_i32, %c0_i32_0 : i32, i32
  }
  func.func @transform_16(%arg0: i32) -> (i32, i32) {
    %c0_i32 = arith.constant 0 : i32
    %c0_i32_0 = arith.constant 0 : i32
    %c0_i32_1 = arith.constant 0 : i32
    return %c0_i32, %c0_i32_0 : i32, i32
  }
  func.func @transform_17(%arg0: i32) -> (i32, i32) {
    %c0_i32 = arith.constant 0 : i32
    %c0_i32_0 = arith.constant 0 : i32
    %c0_i32_1 = arith.constant 0 : i32
    return %c0_i32, %c0_i32_0 : i32, i32
  }
  func.func @transform_18(%arg0: i32) -> (i32, i32) {
    %c0_i32 = arith.constant 0 : i32
    %c0_i32_0 = arith.constant 0 : i32
    %c0_i32_1 = arith.constant 0 : i32
    return %c0_i32, %c0_i32_0 : i32, i32
  }
  func.func @transform_19(%arg0: i32) -> (i32, i32, i32) {
    %c0_i32 = arith.constant 0 : i32
    %c0_i32_0 = arith.constant 0 : i32
    %c0_i32_1 = arith.constant 0 : i32
    return %arg0, %c0_i32, %c0_i32_0 : i32, i32, i32
  }
}

</mosaic_0001>

<llo_original>
// kernel: tpu_custom_call.1
$region0: #{tpu_custom_call.1}
  #allocation0 [shape = 'u32[]', space=smem, size = 0x4, offset = 0x4, fixed_abs, tag = 'smem constant byte address 0x4 - core index']
  #allocation1 [shape = 'u32[144,128]{1,0:T(1,128)}', space=vmem, size = 0x12000, scoped, tag = 'internal scratch']
  %s0 = inlined_call_operand.hbm [shape: f32[8,8,128], index: 0, kind: input, shape index: {}]
  %s1 = inlined_call_operand.hbm [shape: f32[8,8,128], index: 1, kind: input, shape index: {}]
  %s2 = inlined_call_operand.hbm [shape: f32[8,8,128], index: 2, kind: input, shape index: {}]
  %s3 = inlined_call_operand.hbm [shape: bf16[128,128], index: 3, kind: input, shape index: {}]
  %s4 = inlined_call_operand.hbm [shape: f32[1,128], index: 4, kind: input, shape index: {}]
  %s5 = inlined_call_operand.hbm [shape: bf16[128,128], index: 5, kind: input, shape index: {}]
  %s6 = inlined_call_operand.hbm [shape: f32[1,128], index: 6, kind: input, shape index: {}]
  %s7 = inlined_call_operand.hbm [shape: bf16[128,128], index: 7, kind: input, shape index: {}]
  %s8 = inlined_call_operand.hbm [shape: f32[1,128], index: 8, kind: input, shape index: {}]
  %s9 = inlined_call_operand.hbm [shape: bf16[128,128], index: 9, kind: input, shape index: {}]
  %s10 = inlined_call_operand.hbm [shape: f32[1,128], index: 10, kind: input, shape index: {}]
  %s11 = inlined_call_operand.hbm [shape: f32[1,128], index: 11, kind: input, shape index: {}]
  %s12 = inlined_call_operand.hbm [shape: f32[1,128], index: 12, kind: input, shape index: {}]
  %s13 = inlined_call_operand.hbm [shape: bf16[128,256], index: 13, kind: input, shape index: {}]
  %s14 = inlined_call_operand.hbm [shape: f32[1,256], index: 14, kind: input, shape index: {}]
  %s15 = inlined_call_operand.hbm [shape: bf16[256,128], index: 15, kind: input, shape index: {}]
  %s16 = inlined_call_operand.hbm [shape: f32[1,128], index: 16, kind: input, shape index: {}]
  %s17 = inlined_call_operand.hbm [shape: f32[1,128], index: 17, kind: input, shape index: {}]
  %s18 = inlined_call_operand.hbm [shape: f32[1,128], index: 18, kind: input, shape index: {}]
  %s19 = inlined_call_operand.hbm [shape: f32[8,8,128], index: 19, kind: output, shape index: {}]
  %s20 = sld [smem:[#allocation0]]
  $region185: #{tpu_custom_call.1} parent=0
    _
  %s22 = ssub.s32 1, %s20
  %s23 = scalar_select 0, %s22, %s20
  $region1: #{tpu_custom_call.1} parent=0
    #allocation2 [shape = 'u8[32768]{0}', space=vmem, size = 0x8000, scoped, tag = 'input window, operand 0']
    #allocation3 [shape = 's32[2]{0}', space=sflag, size = 0x8, scoped, tag = 'scoped memory for tpu_custom_call.1']
    #allocation4 [shape = 's32[2]{0}', space=sflag, size = 0x8, scoped, tag = 'scoped memory for tpu_custom_call.1']
    #allocation5 [shape = 'u8[32768]{0}', space=vmem, size = 0x8000, scoped, tag = 'input window, operand 1']
    #allocation6 [shape = 's32[2]{0}', space=sflag, size = 0x8, scoped, tag = 'scoped memory for tpu_custom_call.1']
    #allocation7 [shape = 'u8[32768]{0}', space=vmem, size = 0x8000, scoped, tag = 'input window, operand 2']
    #allocation8 [shape = 'u8[32768]{0}', space=vmem, size = 0x8000, scoped, tag = 'input window, operand 3, single buffered']
    #allocation9 [shape = 's32[1]{0}', space=sflag, size = 0x4, scoped, tag = 'scoped memory for tpu_custom_call.1']
    #allocation10 [shape = 'u8[512]{0}', space=vmem, size = 0x400, scoped, tag = 'input window, operand 4, single buffered']
    #allocation11 [shape = 'u8[32768]{0}', space=vmem, size = 0x8000, scoped, tag = 'input window, operand 5, single buffered']
    #allocation12 [shape = 's32[1]{0}', space=sflag, size = 0x4, scoped, tag = 'scoped memory for tpu_custom_call.1']
    #allocation13 [shape = 'u8[512]{0}', space=vmem, size = 0x400, scoped, tag = 'input window, operand 6, single buffered']
    #allocation14 [shape = 'u8[32768]{0}', space=vmem, size = 0x8000, scoped, tag = 'input window, operand 7, single buffered']
    #allocation15 [shape = 's32[1]{0}', space=sflag, size = 0x4, scoped, tag = 'scoped memory for tpu_custom_call.1']
    #allocation16 [shape = 'u8[512]{0}', space=vmem, size = 0x400, scoped, tag = 'input window, operand 8, single buffered']
    #allocation17 [shape = 'u8[32768]{0}', space=vmem, size = 0x8000, scoped, tag = 'input window, operand 9, single buffered']
    #allocation18 [shape = 's32[1]{0}', space=sflag, size = 0x4, scoped, tag = 'scoped memory for tpu_custom_call.1']
    #allocation19 [shape = 'u8[512]{0}', space=vmem, size = 0x400, scoped, tag = 'input window, operand 10, single buffered']
    #allocation20 [shape = 'u8[512]{0}', space=vmem, size = 0x400, scoped, tag = 'input window, operand 11, single buffered']
    #allocation21 [shape = 's32[1]{0}', space=sflag, size = 0x4, scoped, tag = 'scoped memory for tpu_custom_call.1']
    #allocation22 [shape = 'u8[512]{0}', space=vmem, size = 0x400, scoped, tag = 'input window, operand 12, single buffered']
    #allocation23 [shape = 'u8[65536]{0}', space=vmem, size = 0x10000, scoped, tag = 'input window, operand 13, single buffered']
    #allocation24 [shape = 's32[1]{0}', space=sflag, size = 0x4, scoped, tag = 'scoped memory for tpu_custom_call.1']
    #allocation25 [shape = 'u8[1024]{0}', space=vmem, size = 0x400, scoped, tag = 'input window, operand 14, single buffered']
    #allocation26 [shape = 'u8[65536]{0}', space=vmem, size = 0x10000, scoped, tag = 'input window, operand 15, single buffered']
    #allocation27 [shape = 's32[1]{0}', space=sflag, size = 0x4, scoped, tag = 'scoped memory for tpu_custom_call.1']
    #allocation28 [shape = 'u8[512]{0}', space=vmem, size = 0x400, scoped, tag = 'input window, operand 16, single buffered']
    #allocation29 [shape = 'u8[512]{0}', space=vmem, size = 0x400, scoped, tag = 'input window, operand 17, single buffered']
    #allocation30 [shape = 's32[1]{0}', space=sflag, size = 0x4, scoped, tag = 'scoped memory for tpu_custom_call.1']
    #allocation31 [shape = 'u8[512]{0}', space=vmem, size = 0x400, scoped, tag = 'input window, operand 18, single buffered']
    #allocation32 [shape = 'u8[32768]{0}', space=vmem, size = 0x8000, scoped, tag = 'output window, operand 0']
    %24 = vsyncpa [#allocation3], 0
    %s25 = scalar_lea.sflag [#allocation3], 1
    %26 = vsyncpa %s25, 0
    %27 = vsyncpa [#allocation6], 0
    %s28 = scalar_lea.sflag [#allocation6], 1
    %29 = vsyncpa %s28, 0
    %30 = vsyncpa [#allocation9], 0
    %31 = vsyncpa [#allocation12], 0
    %32 = vsyncpa [#allocation15], 0
    %33 = vsyncpa [#allocation18], 0
    %34 = vsyncpa [#allocation21], 0
    %35 = vsyncpa [#allocation24], 0
    %36 = vsyncpa [#allocation27], 0
    %37 = vsyncpa [#allocation30], 0
    %38 = vsyncpa [#allocation4], 0
    %s39 = scalar_lea.sflag [#allocation4], 1
    %40 = vsyncpa %s39, 0
    loop: start=0, step=1, limit=4
    $region2: #{tpu_custom_call.1} parent=1 // loop_pre_header
      _
    $region3: #{tpu_custom_call.1} parent=1 // loop_header
      %s42 = sphi 0, %s46
      %p43 = scmp.ge.s32.totalorder %s42, 4
      %s52 = sphi 0, %s54
      %s55 = sphi 0, %s52
      %s56 = sphi 0, %s55
      %s72 = sphi 0, %s56
      %s78 = sphi 0, %s80
      %s81 = sphi 0, %s78
      %s82 = sphi 0, %s81
      %s98 = sphi 0, %s82
      %s104 = sphi 0, %s106
      %s107 = sphi 0, %s104
      %s108 = sphi 0, %s107
      %s124 = sphi 0, %s108
      %s128 = sphi 0, %s128
      %s130 = sphi 0, %s128
      %s131 = sphi 0, %s130
      %s145 = sphi 0, %s131
      %s149 = sphi 0, %s149
      %s151 = sphi 0, %s149
      %s152 = sphi 0, %s151
      %s166 = sphi 0, %s152
      %s170 = sphi 0, %s170
      %s172 = sphi 0, %s170
      %s173 = sphi 0, %s172
      %s187 = sphi 0, %s173
      %s191 = sphi 0, %s191
      %s193 = sphi 0, %s191
      %s194 = sphi 0, %s193
      %s208 = sphi 0, %s194
      %s212 = sphi 0, %s212
      %s214 = sphi 0, %s212
      %s215 = sphi 0, %s214
      %s229 = sphi 0, %s215
      %s233 = sphi 0, %s233
      %s235 = sphi 0, %s233
      %s236 = sphi 0, %s235
      %s250 = sphi 0, %s236
      %s254 = sphi 0, %s254
      %s256 = sphi 0, %s254
      %s257 = sphi 0, %s256
      %s271 = sphi 0, %s257
      %s275 = sphi 0, %s275
      %s277 = sphi 0, %s275
      %s278 = sphi 0, %s277
      %s292 = sphi 0, %s278
      %s296 = sphi 0, %s296
      %s298 = sphi 0, %s296
      %s299 = sphi 0, %s298
      %s313 = sphi 0, %s299
      %s317 = sphi 0, %s317
      %s319 = sphi 0, %s317
      %s320 = sphi 0, %s319
      %s334 = sphi 0, %s320
      %s338 = sphi 0, %s338
      %s340 = sphi 0, %s338
      %s341 = sphi 0, %s340
      %s355 = sphi 0, %s341
      %s359 = sphi 0, %s359
      %s361 = sphi 0, %s359
      %s362 = sphi 0, %s361
      %s376 = sphi 0, %s362
      %s380 = sphi 0, %s380
      %s382 = sphi 0, %s380
      %s383 = sphi 0, %s382
      %s397 = sphi 0, %s383
      %s401 = sphi 0, %s401
      %s403 = sphi 0, %s401
      %s404 = sphi 0, %s403
      %s418 = sphi 0, %s404
      %s422 = sphi 0, %s422
      %s424 = sphi 0, %s422
      %s425 = sphi 0, %s424
      %s439 = sphi 0, %s425
      %s443 = sphi 0, %s443
      %s445 = sphi 0, %s443
      %s446 = sphi 0, %s445
      %s460 = sphi 0, %s446
      %s466 = sphi 0, %s468
      %s469 = sphi 0, %s466
      %s470 = sphi 0, %s469
      %s486 = sphi 0, %s470
    $region4: #{tpu_custom_call.1} parent=1 // loop_header_branch
      %45 = sbr.rel (%p43) target = $region8
    $region5: #{tpu_custom_call.1} parent=1 // loop_body
      %s47 = ssub.s32 %s42, 1
      %s48 = ssub.s32 %s42, 2
      %s49 = sadd.s32 %s42, 1
      %s50 = ssub.s32 %s42, %s49
      %p51 = scmp.eq.s32.totalorder %s50, 0
      %s53 = sadd.s32 %s52, 1
      %s54 = scalar_select %p51, %s52, %s53
      %p57 = pneg %p51
      %p58 = scmp.eq.s32.totalorder %s42, 1
      %p59 = por %p57, %p58
      %p60 = scmp.ne.s32.totalorder %s52, %s55
      %p61 = scmp.eq.s32.totalorder %s42, 0
      %p62 = por %p60, %p61
      %p63 = scmp.ne.s32.totalorder %s52, %s55
      %p64 = scmp.eq.s32.totalorder %s47, 1
      %p65 = por %p63, %p64
      %p66 = scmp.ne.s32.totalorder %s55, %s56
      %p67 = scmp.eq.s32.totalorder %s47, 0
      %p68 = por %p66, %p67
      %p69 = scmp.ne.s32.totalorder %s55, %s56
      %p70 = scmp.eq.s32.totalorder %s48, 1
      %p71 = por %p69, %p70
      %p73 = scmp.ne.s32.totalorder %s56, %s72
      %p74 = scmp.eq.s32.totalorder %s48, 0
      %p75 = por %p73, %p74
      %s76 = ssub.s32 %s42, %s49
      %p77 = scmp.eq.s32.totalorder %s76, 0
      %s79 = sadd.s32 %s78, 1
      %s80 = scalar_select %p77, %s78, %s79
      %p83 = pneg %p77
      %p84 = scmp.eq.s32.totalorder %s42, 1
      %p85 = por %p83, %p84
      %p86 = scmp.ne.s32.totalorder %s78, %s81
      %p87 = scmp.eq.s32.totalorder %s42, 0
      %p88 = por %p86, %p87
      %p89 = scmp.ne.s32.totalorder %s78, %s81
      %p90 = scmp.eq.s32.totalorder %s47, 1
      %p91 = por %p89, %p90
      %p92 = scmp.ne.s32.totalorder %s81, %s82
      %p93 = scmp.eq.s32.totalorder %s47, 0
      %p94 = por %p92, %p93
      %p95 = scmp.ne.s32.totalorder %s81, %s82
      %p96 = scmp.eq.s32.totalorder %s48, 1
      %p97 = por %p95, %p96
      %p99 = scmp.ne.s32.totalorder %s82, %s98
      %p100 = scmp.eq.s32.totalorder %s48, 0
      %p101 = por %p99, %p100
      %s102 = ssub.s32 %s42, %s49
      %p103 = scmp.eq.s32.totalorder %s102, 0
      %s105 = sadd.s32 %s104, 1
      %s106 = scalar_select %p103, %s104, %s105
      %p109 = pneg %p103
      %p110 = scmp.eq.s32.totalorder %s42, 1
      %p111 = por %p109, %p110
      %p112 = scmp.ne.s32.totalorder %s104, %s107
      %p113 = scmp.eq.s32.totalorder %s42, 0
      %p114 = por %p112, %p113
      %p115 = scmp.ne.s32.totalorder %s104, %s107
      %p116 = scmp.eq.s32.totalorder %s47, 1
      %p117 = por %p115, %p116
      %p118 = scmp.ne.s32.totalorder %s107, %s108
      %p119 = scmp.eq.s32.totalorder %s47, 0
      %p120 = por %p118, %p119
      %p121 = scmp.ne.s32.totalorder %s107, %s108
      %p122 = scmp.eq.s32.totalorder %s48, 1
      %p123 = por %p121, %p122
      %p125 = scmp.ne.s32.totalorder %s108, %s124
      %p126 = scmp.eq.s32.totalorder %s48, 0
      %p127 = por %p125, %p126
      %s129 = sadd.s32 %s128, 1
      %p132 = scmp.eq.s32.totalorder %s42, 1
      %p133 = scmp.ne.s32.totalorder %s128, %s130
      %p134 = scmp.eq.s32.totalorder %s42, 0
      %p135 = por %p133, %p134
      %p136 = scmp.ne.s32.totalorder %s128, %s130
      %p137 = scmp.eq.s32.totalorder %s47, 1
      %p138 = por %p136, %p137
      %p139 = scmp.ne.s32.totalorder %s130, %s131
      %p140 = scmp.eq.s32.totalorder %s47, 0
      %p141 = por %p139, %p140
      %p142 = scmp.ne.s32.totalorder %s130, %s131
      %p143 = scmp.eq.s32.totalorder %s48, 1
      %p144 = por %p142, %p143
      %p146 = scmp.ne.s32.totalorder %s131, %s145
      %p147 = scmp.eq.s32.totalorder %s48, 0
      %p148 = por %p146, %p147
      %s150 = sadd.s32 %s149, 1
      %p153 = scmp.eq.s32.totalorder %s42, 1
      %p154 = scmp.ne.s32.totalorder %s149, %s151
      %p155 = scmp.eq.s32.totalorder %s42, 0
      %p156 = por %p154, %p155
      %p157 = scmp.ne.s32.totalorder %s149, %s151
      %p158 = scmp.eq.s32.totalorder %s47, 1
      %p159 = por %p157, %p158
      %p160 = scmp.ne.s32.totalorder %s151, %s152
      %p161 = scmp.eq.s32.totalorder %s47, 0
      %p162 = por %p160, %p161
      %p163 = scmp.ne.s32.totalorder %s151, %s152
      %p164 = scmp.eq.s32.totalorder %s48, 1
      %p165 = por %p163, %p164
      %p167 = scmp.ne.s32.totalorder %s152, %s166
      %p168 = scmp.eq.s32.totalorder %s48, 0
      %p169 = por %p167, %p168
      %s171 = sadd.s32 %s170, 1
      %p174 = scmp.eq.s32.totalorder %s42, 1
      %p175 = scmp.ne.s32.totalorder %s170, %s172
      %p176 = scmp.eq.s32.totalorder %s42, 0
      %p177 = por %p175, %p176
      %p178 = scmp.ne.s32.totalorder %s170, %s172
      %p179 = scmp.eq.s32.totalorder %s47, 1
      %p180 = por %p178, %p179
      %p181 = scmp.ne.s32.totalorder %s172, %s173
      %p182 = scmp.eq.s32.totalorder %s47, 0
      %p183 = por %p181, %p182
      %p184 = scmp.ne.s32.totalorder %s172, %s173
      %p185 = scmp.eq.s32.totalorder %s48, 1
      %p186 = por %p184, %p185
      %p188 = scmp.ne.s32.totalorder %s173, %s187
      %p189 = scmp.eq.s32.totalorder %s48, 0
      %p190 = por %p188, %p189
      %s192 = sadd.s32 %s191, 1
      %p195 = scmp.eq.s32.totalorder %s42, 1
      %p196 = scmp.ne.s32.totalorder %s191, %s193
      %p197 = scmp.eq.s32.totalorder %s42, 0
      %p198 = por %p196, %p197
      %p199 = scmp.ne.s32.totalorder %s191, %s193
      %p200 = scmp.eq.s32.totalorder %s47, 1
      %p201 = por %p199, %p200
      %p202 = scmp.ne.s32.totalorder %s193, %s194
      %p203 = scmp.eq.s32.totalorder %s47, 0
      %p204 = por %p202, %p203
      %p205 = scmp.ne.s32.totalorder %s193, %s194
      %p206 = scmp.eq.s32.totalorder %s48, 1
      %p207 = por %p205, %p206
      %p209 = scmp.ne.s32.totalorder %s194, %s208
      %p210 = scmp.eq.s32.totalorder %s48, 0
      %p211 = por %p209, %p210
      %s213 = sadd.s32 %s212, 1
      %p216 = scmp.eq.s32.totalorder %s42, 1
      %p217 = scmp.ne.s32.totalorder %s212, %s214
      %p218 = scmp.eq.s32.totalorder %s42, 0
      %p219 = por %p217, %p218
      %p220 = scmp.ne.s32.totalorder %s212, %s214
      %p221 = scmp.eq.s32.totalorder %s47, 1
      %p222 = por %p220, %p221
      %p223 = scmp.ne.s32.totalorder %s214, %s215
      %p224 = scmp.eq.s32.totalorder %s47, 0
      %p225 = por %p223, %p224
      %p226 = scmp.ne.s32.totalorder %s214, %s215
      %p227 = scmp.eq.s32.totalorder %s48, 1
      %p228 = por %p226, %p227
      %p230 = scmp.ne.s32.totalorder %s215, %s229
      %p231 = scmp.eq.s32.totalorder %s48, 0
      %p232 = por %p230, %p231
      %s234 = sadd.s32 %s233, 1
      %p237 = scmp.eq.s32.totalorder %s42, 1
      %p238 = scmp.ne.s32.totalorder %s233, %s235
      %p239 = scmp.eq.s32.totalorder %s42, 0
      %p240 = por %p238, %p239
      %p241 = scmp.ne.s32.totalorder %s233, %s235
      %p242 = scmp.eq.s32.totalorder %s47, 1
      %p243 = por %p241, %p242
      %p244 = scmp.ne.s32.totalorder %s235, %s236
      %p245 = scmp.eq.s32.totalorder %s47, 0
      %p246 = por %p244, %p245
      %p247 = scmp.ne.s32.totalorder %s235, %s236
      %p248 = scmp.eq.s32.totalorder %s48, 1
      %p249 = por %p247, %p248
      %p251 = scmp.ne.s32.totalorder %s236, %s250
      %p252 = scmp.eq.s32.totalorder %s48, 0
      %p253 = por %p251, %p252
      %s255 = sadd.s32 %s254, 1
      %p258 = scmp.eq.s32.totalorder %s42, 1
      %p259 = scmp.ne.s32.totalorder %s254, %s256
      %p260 = scmp.eq.s32.totalorder %s42, 0
      %p261 = por %p259, %p260
      %p262 = scmp.ne.s32.totalorder %s254, %s256
      %p263 = scmp.eq.s32.totalorder %s47, 1
      %p264 = por %p262, %p263
      %p265 = scmp.ne.s32.totalorder %s256, %s257
      %p266 = scmp.eq.s32.totalorder %s47, 0
      %p267 = por %p265, %p266
      %p268 = scmp.ne.s32.totalorder %s256, %s257
      %p269 = scmp.eq.s32.totalorder %s48, 1
      %p270 = por %p268, %p269
      %p272 = scmp.ne.s32.totalorder %s257, %s271
      %p273 = scmp.eq.s32.totalorder %s48, 0
      %p274 = por %p272, %p273
      %s276 = sadd.s32 %s275, 1
      %p279 = scmp.eq.s32.totalorder %s42, 1
      %p280 = scmp.ne.s32.totalorder %s275, %s277
      %p281 = scmp.eq.s32.totalorder %s42, 0
      %p282 = por %p280, %p281
      %p283 = scmp.ne.s32.totalorder %s275, %s277
      %p284 = scmp.eq.s32.totalorder %s47, 1
      %p285 = por %p283, %p284
      %p286 = scmp.ne.s32.totalorder %s277, %s278
      %p287 = scmp.eq.s32.totalorder %s47, 0
      %p288 = por %p286, %p287
      %p289 = scmp.ne.s32.totalorder %s277, %s278
      %p290 = scmp.eq.s32.totalorder %s48, 1
      %p291 = por %p289, %p290
      %p293 = scmp.ne.s32.totalorder %s278, %s292
      %p294 = scmp.eq.s32.totalorder %s48, 0
      %p295 = por %p293, %p294
      %s297 = sadd.s32 %s296, 1
      %p300 = scmp.eq.s32.totalorder %s42, 1
      %p301 = scmp.ne.s32.totalorder %s296, %s298
      %p302 = scmp.eq.s32.totalorder %s42, 0
      %p303 = por %p301, %p302
      %p304 = scmp.ne.s32.totalorder %s296, %s298
      %p305 = scmp.eq.s32.totalorder %s47, 1
      %p306 = por %p304, %p305
      %p307 = scmp.ne.s32.totalorder %s298, %s299
      %p308 = scmp.eq.s32.totalorder %s47, 0
      %p309 = por %p307, %p308
      %p310 = scmp.ne.s32.totalorder %s298, %s299
      %p311 = scmp.eq.s32.totalorder %s48, 1
      %p312 = por %p310, %p311
      %p314 = scmp.ne.s32.totalorder %s299, %s313
      %p315 = scmp.eq.s32.totalorder %s48, 0
      %p316 = por %p314, %p315
      %s318 = sadd.s32 %s317, 1
      %p321 = scmp.eq.s32.totalorder %s42, 1
      %p322 = scmp.ne.s32.totalorder %s317, %s319
      %p323 = scmp.eq.s32.totalorder %s42, 0
      %p324 = por %p322, %p323
      %p325 = scmp.ne.s32.totalorder %s317, %s319
      %p326 = scmp.eq.s32.totalorder %s47, 1
      %p327 = por %p325, %p326
      %p328 = scmp.ne.s32.totalorder %s319, %s320
      %p329 = scmp.eq.s32.totalorder %s47, 0
      %p330 = por %p328, %p329
      %p331 = scmp.ne.s32.totalorder %s319, %s320
      %p332 = scmp.eq.s32.totalorder %s48, 1
      %p333 = por %p331, %p332
      %p335 = scmp.ne.s32.totalorder %s320, %s334
      %p336 = scmp.eq.s32.totalorder %s48, 0
      %p337 = por %p335, %p336
      %s339 = sadd.s32 %s338, 1
      %p342 = scmp.eq.s32.totalorder %s42, 1
      %p343 = scmp.ne.s32.totalorder %s338, %s340
      %p344 = scmp.eq.s32.totalorder %s42, 0
      %p345 = por %p343, %p344
      %p346 = scmp.ne.s32.totalorder %s338, %s340
      %p347 = scmp.eq.s32.totalorder %s47, 1
      %p348 = por %p346, %p347
      %p349 = scmp.ne.s32.totalorder %s340, %s341
      %p350 = scmp.eq.s32.totalorder %s47, 0
      %p351 = por %p349, %p350
      %p352 = scmp.ne.s32.totalorder %s340, %s341
      %p353 = scmp.eq.s32.totalorder %s48, 1
      %p354 = por %p352, %p353
      %p356 = scmp.ne.s32.totalorder %s341, %s355
      %p357 = scmp.eq.s32.totalorder %s48, 0
      %p358 = por %p356, %p357
      %s360 = sadd.s32 %s359, 1
      %p363 = scmp.eq.s32.totalorder %s42, 1
      %p364 = scmp.ne.s32.totalorder %s359, %s361
      %p365 = scmp.eq.s32.totalorder %s42, 0
      %p366 = por %p364, %p365
      %p367 = scmp.ne.s32.totalorder %s359, %s361
      %p368 = scmp.eq.s32.totalorder %s47, 1
      %p369 = por %p367, %p368
      %p370 = scmp.ne.s32.totalorder %s361, %s362
      %p371 = scmp.eq.s32.totalorder %s47, 0
      %p372 = por %p370, %p371
      %p373 = scmp.ne.s32.totalorder %s361, %s362
      %p374 = scmp.eq.s32.totalorder %s48, 1
      %p375 = por %p373, %p374
      %p377 = scmp.ne.s32.totalorder %s362, %s376
      %p378 = scmp.eq.s32.totalorder %s48, 0
      %p379 = por %p377, %p378
      %s381 = sadd.s32 %s380, 1
      %p384 = scmp.eq.s32.totalorder %s42, 1
      %p385 = scmp.ne.s32.totalorder %s380, %s382
      %p386 = scmp.eq.s32.totalorder %s42, 0
      %p387 = por %p385, %p386
      %p388 = scmp.ne.s32.totalorder %s380, %s382
      %p389 = scmp.eq.s32.totalorder %s47, 1
      %p390 = por %p388, %p389
      %p391 = scmp.ne.s32.totalorder %s382, %s383
      %p392 = scmp.eq.s32.totalorder %s47, 0
      %p393 = por %p391, %p392
      %p394 = scmp.ne.s32.totalorder %s382, %s383
      %p395 = scmp.eq.s32.totalorder %s48, 1
      %p396 = por %p394, %p395
      %p398 = scmp.ne.s32.totalorder %s383, %s397
      %p399 = scmp.eq.s32.totalorder %s48, 0
      %p400 = por %p398, %p399
      %s402 = sadd.s32 %s401, 1
      %p405 = scmp.eq.s32.totalorder %s42, 1
      %p406 = scmp.ne.s32.totalorder %s401, %s403
      %p407 = scmp.eq.s32.totalorder %s42, 0
      %p408 = por %p406, %p407
      %p409 = scmp.ne.s32.totalorder %s401, %s403
      %p410 = scmp.eq.s32.totalorder %s47, 1
      %p411 = por %p409, %p410
      %p412 = scmp.ne.s32.totalorder %s403, %s404
      %p413 = scmp.eq.s32.totalorder %s47, 0
      %p414 = por %p412, %p413
      %p415 = scmp.ne.s32.totalorder %s403, %s404
      %p416 = scmp.eq.s32.totalorder %s48, 1
      %p417 = por %p415, %p416
      %p419 = scmp.ne.s32.totalorder %s404, %s418
      %p420 = scmp.eq.s32.totalorder %s48, 0
      %p421 = por %p419, %p420
      %s423 = sadd.s32 %s422, 1
      %p426 = scmp.eq.s32.totalorder %s42, 1
      %p427 = scmp.ne.s32.totalorder %s422, %s424
      %p428 = scmp.eq.s32.totalorder %s42, 0
      %p429 = por %p427, %p428
      %p430 = scmp.ne.s32.totalorder %s422, %s424
      %p431 = scmp.eq.s32.totalorder %s47, 1
      %p432 = por %p430, %p431
      %p433 = scmp.ne.s32.totalorder %s424, %s425
      %p434 = scmp.eq.s32.totalorder %s47, 0
      %p435 = por %p433, %p434
      %p436 = scmp.ne.s32.totalorder %s424, %s425
      %p437 = scmp.eq.s32.totalorder %s48, 1
      %p438 = por %p436, %p437
      %p440 = scmp.ne.s32.totalorder %s425, %s439
      %p441 = scmp.eq.s32.totalorder %s48, 0
      %p442 = por %p440, %p441
      %s444 = sadd.s32 %s443, 1
      %p447 = scmp.eq.s32.totalorder %s42, 1
      %p448 = scmp.ne.s32.totalorder %s443, %s445
      %p449 = scmp.eq.s32.totalorder %s42, 0
      %p450 = por %p448, %p449
      %p451 = scmp.ne.s32.totalorder %s443, %s445
      %p452 = scmp.eq.s32.totalorder %s47, 1
      %p453 = por %p451, %p452
      %p454 = scmp.ne.s32.totalorder %s445, %s446
      %p455 = scmp.eq.s32.totalorder %s47, 0
      %p456 = por %p454, %p455
      %p457 = scmp.ne.s32.totalorder %s445, %s446
      %p458 = scmp.eq.s32.totalorder %s48, 1
      %p459 = por %p457, %p458
      %p461 = scmp.ne.s32.totalorder %s446, %s460
      %p462 = scmp.eq.s32.totalorder %s48, 0
      %p463 = por %p461, %p462
      %s464 = ssub.s32 %s42, %s49
      %p465 = scmp.eq.s32.totalorder %s464, 0
      %s467 = sadd.s32 %s466, 1
      %s468 = scalar_select %p465, %s466, %s467
      %p471 = pneg %p465
      %p472 = scmp.eq.s32.totalorder %s42, 1
      %p473 = por %p471, %p472
      %p474 = scmp.ne.s32.totalorder %s466, %s469
      %p475 = scmp.eq.s32.totalorder %s42, 0
      %p476 = por %p474, %p475
      %p477 = scmp.ne.s32.totalorder %s466, %s469
      %p478 = scmp.eq.s32.totalorder %s47, 1
      %p479 = por %p477, %p478
      %p480 = scmp.ne.s32.totalorder %s469, %s470
      %p481 = scmp.eq.s32.totalorder %s47, 0
      %p482 = por %p480, %p481
      %p483 = scmp.ne.s32.totalorder %s469, %s470
      %p484 = scmp.eq.s32.totalorder %s48, 1
      %p485 = por %p483, %p484
      %p487 = scmp.ne.s32.totalorder %s470, %s486
      %p488 = scmp.eq.s32.totalorder %s48, 0
      %p489 = por %p487, %p488
      %p490 = scmp.le.s32.totalorder 1, %s42
      %p491 = scmp.lt.s32.totalorder %s42, 3
      %p492 = pnand %p490, %p491
      %p493 = pneg %p492
      // Predicated region
      $region9: #{tpu_custom_call.1} parent=5 // pred_check
        _
      $region10: #{tpu_custom_call.1} parent=5 // pred_check_branch
        %495 = sbr.rel (%p492) target = $region12
      $region11: #{tpu_custom_call.1} parent=5 // pred_region
        %s496 = ssub.s32 %s42, 1
        // Predicated region
        $region13: #{tpu_custom_call.1} parent=11 // pred_check
          %p497 = pneg %p141
        $region14: #{tpu_custom_call.1} parent=11 // pred_check_branch
          %499 = sbr.rel (%p497) target = $region16
        $region15: #{tpu_custom_call.1} parent=11 // pred_region
          %s501 = ssub.s32 1024, 1024
          %502 = vsyncadd [#allocation9], %s501
          %s503 = sshll.u32 [#allocation8], 4
          %s504 = int_to_ptr.vmem [resolvable:$true] %s503
          %509 = dma.hbm_to_vmem [thread:$0]  %s3, 1024, %s504, [#allocation9], 64, 64, 4
        $region16: #{tpu_custom_call.1} parent=11 // pred_fallthru
          _
        // Predicated region
        $region17: #{tpu_custom_call.1} parent=11 // pred_check
          %p510 = pneg %p162
        $region18: #{tpu_custom_call.1} parent=11 // pred_check_branch
          %512 = sbr.rel (%p510) target = $region20
        $region19: #{tpu_custom_call.1} parent=11 // pred_region
          %s514 = ssub.s32 16, 16
          %515 = vsyncadd [#allocation9], %s514
          %s517 = sshll.u32 [#allocation10], 4
          %s518 = int_to_ptr.vmem [resolvable:$true] %s517
          %520 = dma.hbm_to_vmem [thread:$0]  %s4, 16, %s518, [#allocation9]
        $region20: #{tpu_custom_call.1} parent=11 // pred_fallthru
          _
        // Predicated region
        $region21: #{tpu_custom_call.1} parent=11 // pred_check
          %p521 = pneg %p183
        $region22: #{tpu_custom_call.1} parent=11 // pred_check_branch
          %523 = sbr.rel (%p521) target = $region24
        $region23: #{tpu_custom_call.1} parent=11 // pred_region
          %s525 = ssub.s32 1024, 1024
          %526 = vsyncadd [#allocation12], %s525
          %s527 = sshll.u32 [#allocation11], 4
          %s528 = int_to_ptr.vmem [resolvable:$true] %s527
          %533 = dma.hbm_to_vmem [thread:$0]  %s5, 1024, %s528, [#allocation12], 64, 64, 4
        $region24: #{tpu_custom_call.1} parent=11 // pred_fallthru
          _
        // Predicated region
        $region25: #{tpu_custom_call.1} parent=11 // pred_check
          %p534 = pneg %p204
        $region26: #{tpu_custom_call.1} parent=11 // pred_check_branch
          %536 = sbr.rel (%p534) target = $region28
        $region27: #{tpu_custom_call.1} parent=11 // pred_region
          %s538 = ssub.s32 16, 16
          %539 = vsyncadd [#allocation12], %s538
          %s541 = sshll.u32 [#allocation13], 4
          %s542 = int_to_ptr.vmem [resolvable:$true] %s541
          %544 = dma.hbm_to_vmem [thread:$0]  %s6, 16, %s542, [#allocation12]
        $region28: #{tpu_custom_call.1} parent=11 // pred_fallthru
          _
        // Predicated region
        $region29: #{tpu_custom_call.1} parent=11 // pred_check
          %p545 = pneg %p225
        $region30: #{tpu_custom_call.1} parent=11 // pred_check_branch
          %547 = sbr.rel (%p545) target = $region32
        $region31: #{tpu_custom_call.1} parent=11 // pred_region
          %s549 = ssub.s32 1024, 1024
          %550 = vsyncadd [#allocation15], %s549
          %s551 = sshll.u32 [#allocation14], 4
          %s552 = int_to_ptr.vmem [resolvable:$true] %s551
          %557 = dma.hbm_to_vmem [thread:$0]  %s7, 1024, %s552, [#allocation15], 64, 64, 4
        $region32: #{tpu_custom_call.1} parent=11 // pred_fallthru
          _
        // Predicated region
        $region33: #{tpu_custom_call.1} parent=11 // pred_check
          %p558 = pneg %p246
        $region34: #{tpu_custom_call.1} parent=11 // pred_check_branch
          %560 = sbr.rel (%p558) target = $region36
        $region35: #{tpu_custom_call.1} parent=11 // pred_region
          %s562 = ssub.s32 16, 16
          %563 = vsyncadd [#allocation15], %s562
          %s565 = sshll.u32 [#allocation16], 4
          %s566 = int_to_ptr.vmem [resolvable:$true] %s565
          %568 = dma.hbm_to_vmem [thread:$0]  %s8, 16, %s566, [#allocation15]
        $region36: #{tpu_custom_call.1} parent=11 // pred_fallthru
          _
        // Predicated region
        $region37: #{tpu_custom_call.1} parent=11 // pred_check
          %p569 = pneg %p267
        $region38: #{tpu_custom_call.1} parent=11 // pred_check_branch
          %571 = sbr.rel (%p569) target = $region40
        $region39: #{tpu_custom_call.1} parent=11 // pred_region
          %s573 = ssub.s32 1024, 1024
          %574 = vsyncadd [#allocation18], %s573
          %s575 = sshll.u32 [#allocation17], 4
          %s576 = int_to_ptr.vmem [resolvable:$true] %s575
          %581 = dma.hbm_to_vmem [thread:$0]  %s9, 1024, %s576, [#allocation18], 64, 64, 4
        $region40: #{tpu_custom_call.1} parent=11 // pred_fallthru
          _
        // Predicated region
        $region41: #{tpu_custom_call.1} parent=11 // pred_check
          %p582 = pneg %p288
        $region42: #{tpu_custom_call.1} parent=11 // pred_check_branch
          %584 = sbr.rel (%p582) target = $region44
        $region43: #{tpu_custom_call.1} parent=11 // pred_region
          %s586 = ssub.s32 16, 16
          %587 = vsyncadd [#allocation18], %s586
          %s589 = sshll.u32 [#allocation19], 4
          %s590 = int_to_ptr.vmem [resolvable:$true] %s589
          %592 = dma.hbm_to_vmem [thread:$0]  %s10, 16, %s590, [#allocation18]
        $region44: #{tpu_custom_call.1} parent=11 // pred_fallthru
          _
        // Predicated region
        $region45: #{tpu_custom_call.1} parent=11 // pred_check
          %p593 = pneg %p309
        $region46: #{tpu_custom_call.1} parent=11 // pred_check_branch
          %595 = sbr.rel (%p593) target = $region48
        $region47: #{tpu_custom_call.1} parent=11 // pred_region
          %s597 = ssub.s32 16, 16
          %598 = vsyncadd [#allocation21], %s597
          %s600 = sshll.u32 [#allocation20], 4
          %s601 = int_to_ptr.vmem [resolvable:$true] %s600
          %603 = dma.hbm_to_vmem [thread:$0]  %s11, 16, %s601, [#allocation21]
        $region48: #{tpu_custom_call.1} parent=11 // pred_fallthru
          _
        // Predicated region
        $region49: #{tpu_custom_call.1} parent=11 // pred_check
          %p604 = pneg %p330
        $region50: #{tpu_custom_call.1} parent=11 // pred_check_branch
          %606 = sbr.rel (%p604) target = $region52
        $region51: #{tpu_custom_call.1} parent=11 // pred_region
          %s608 = ssub.s32 16, 16
          %609 = vsyncadd [#allocation21], %s608
          %s611 = sshll.u32 [#allocation22], 4
          %s612 = int_to_ptr.vmem [resolvable:$true] %s611
          %614 = dma.hbm_to_vmem [thread:$0]  %s12, 16, %s612, [#allocation21]
        $region52: #{tpu_custom_call.1} parent=11 // pred_fallthru
          _
        // Predicated region
        $region53: #{tpu_custom_call.1} parent=11 // pred_check
          %p615 = pneg %p351
        $region54: #{tpu_custom_call.1} parent=11 // pred_check_branch
          %617 = sbr.rel (%p615) target = $region56
        $region55: #{tpu_custom_call.1} parent=11 // pred_region
          %s619 = ssub.s32 2048, 2048
          %620 = vsyncadd [#allocation24], %s619
          %s621 = sshll.u32 [#allocation23], 4
          %s622 = int_to_ptr.vmem [resolvable:$true] %s621
          %627 = dma.hbm_to_vmem [thread:$0]  %s13, 2048, %s622, [#allocation24], 128, 128, 8
        $region56: #{tpu_custom_call.1} parent=11 // pred_fallthru
          _
        // Predicated region
        $region57: #{tpu_custom_call.1} parent=11 // pred_check
          %p628 = pneg %p372
        $region58: #{tpu_custom_call.1} parent=11 // pred_check_branch
          %630 = sbr.rel (%p628) target = $region60
        $region59: #{tpu_custom_call.1} parent=11 // pred_region
          %s632 = ssub.s32 32, 32
          %633 = vsyncadd [#allocation24], %s632
          %s635 = sshll.u32 [#allocation25], 4
          %s636 = int_to_ptr.vmem [resolvable:$true] %s635
          %638 = dma.hbm_to_vmem [thread:$0]  %s14, 32, %s636, [#allocation24]
        $region60: #{tpu_custom_call.1} parent=11 // pred_fallthru
          _
        // Predicated region
        $region61: #{tpu_custom_call.1} parent=11 // pred_check
          %p639 = pneg %p393
        $region62: #{tpu_custom_call.1} parent=11 // pred_check_branch
          %641 = sbr.rel (%p639) target = $region64
        $region63: #{tpu_custom_call.1} parent=11 // pred_region
          %s643 = ssub.s32 2048, 2048
          %644 = vsyncadd [#allocation27], %s643
          %s645 = sshll.u32 [#allocation26], 4
          %s646 = int_to_ptr.vmem [resolvable:$true] %s645
          %651 = dma.hbm_to_vmem [thread:$0]  %s15, 2048, %s646, [#allocation27], 64, 64, 4
        $region64: #{tpu_custom_call.1} parent=11 // pred_fallthru
          _
        // Predicated region
        $region65: #{tpu_custom_call.1} parent=11 // pred_check
          %p652 = pneg %p414
        $region66: #{tpu_custom_call.1} parent=11 // pred_check_branch
          %654 = sbr.rel (%p652) target = $region68
        $region67: #{tpu_custom_call.1} parent=11 // pred_region
          %s656 = ssub.s32 16, 16
          %657 = vsyncadd [#allocation27], %s656
          %s659 = sshll.u32 [#allocation28], 4
          %s660 = int_to_ptr.vmem [resolvable:$true] %s659
          %662 = dma.hbm_to_vmem [thread:$0]  %s16, 16, %s660, [#allocation27]
        $region68: #{tpu_custom_call.1} parent=11 // pred_fallthru
          _
        // Predicated region
        $region69: #{tpu_custom_call.1} parent=11 // pred_check
          %p663 = pneg %p435
        $region70: #{tpu_custom_call.1} parent=11 // pred_check_branch
          %665 = sbr.rel (%p663) target = $region72
        $region71: #{tpu_custom_call.1} parent=11 // pred_region
          %s667 = ssub.s32 16, 16
          %668 = vsyncadd [#allocation30], %s667
          %s670 = sshll.u32 [#allocation29], 4
          %s671 = int_to_ptr.vmem [resolvable:$true] %s670
          %673 = dma.hbm_to_vmem [thread:$0]  %s17, 16, %s671, [#allocation30]
        $region72: #{tpu_custom_call.1} parent=11 // pred_fallthru
          _
        // Predicated region
        $region73: #{tpu_custom_call.1} parent=11 // pred_check
          %p674 = pneg %p456
        $region74: #{tpu_custom_call.1} parent=11 // pred_check_branch
          %676 = sbr.rel (%p674) target = $region76
        $region75: #{tpu_custom_call.1} parent=11 // pred_region
          %s678 = ssub.s32 16, 16
          %679 = vsyncadd [#allocation30], %s678
          %s681 = sshll.u32 [#allocation31], 4
          %s682 = int_to_ptr.vmem [resolvable:$true] %s681
          %684 = dma.hbm_to_vmem [thread:$0]  %s18, 16, %s682, [#allocation30]
        $region76: #{tpu_custom_call.1} parent=11 // pred_fallthru
          _
      $region12: #{tpu_custom_call.1} parent=5 // pred_fallthru
        _
      %p685 = scmp.lt.s32.totalorder %s42, 2
      // Predicated region
      $region77: #{tpu_custom_call.1} parent=5 // pred_check
        %p686 = pneg %p685
      $region78: #{tpu_custom_call.1} parent=5 // pred_check_branch
        %688 = sbr.rel (%p686) target = $region80
      $region79: #{tpu_custom_call.1} parent=5 // pred_region
        // Predicated region
        $region81: #{tpu_custom_call.1} parent=79 // pred_check
          %p689 = pneg %p62
        $region82: #{tpu_custom_call.1} parent=79 // pred_check_branch
          %691 = sbr.rel (%p689) target = $region84
        $region83: #{tpu_custom_call.1} parent=79 // pred_region
          %s692 = sand.u32 %s52, 1
          %s693 = scalar_lea.sflag [#allocation3], %s692
          %s694 = sand.u32 %s52, 1
          %s695 = smul.addr %s694, 32
          %s696 = scalar_lea.vmem [#allocation2], %s695
          %s697 = smul.u32 4, %s42
          %s699 = ssub.s32 512, 512
          %700 = vsyncadd %s693, %s699
          %s701 = smul.addr %s697, 128
          %s702 = scalar_lea.hbm %s0, %s701
          %s703 = sshll.u32 %s696, 4
          %s704 = int_to_ptr.vmem [resolvable:$true] %s703
          %709 = dma.hbm_to_vmem [thread:$0]  %s702, 512, %s704, %s693, 128, 128, 8
        $region84: #{tpu_custom_call.1} parent=79 // pred_fallthru
          _
        // Predicated region
        $region85: #{tpu_custom_call.1} parent=79 // pred_check
          %p710 = pneg %p88
        $region86: #{tpu_custom_call.1} parent=79 // pred_check_branch
          %712 = sbr.rel (%p710) target = $region88
        $region87: #{tpu_custom_call.1} parent=79 // pred_region
          %s713 = sand.u32 %s42, 1
          %s714 = scalar_lea.sflag [#allocation6], %s713
          %s715 = sand.u32 %s78, 1
          %s716 = smul.addr %s715, 32
          %s717 = scalar_lea.vmem [#allocation5], %s716
          %s718 = smul.u32 4, %s42
          %s720 = ssub.s32 512, 512
          %721 = vsyncadd %s714, %s720
          %s722 = smul.addr %s718, 128
          %s723 = scalar_lea.hbm %s1, %s722
          %s724 = sshll.u32 %s717, 4
          %s725 = int_to_ptr.vmem [resolvable:$true] %s724
          %730 = dma.hbm_to_vmem [thread:$0]  %s723, 512, %s725, %s714, 128, 128, 8
        $region88: #{tpu_custom_call.1} parent=79 // pred_fallthru
          _
        // Predicated region
        $region89: #{tpu_custom_call.1} parent=79 // pred_check
          %p731 = pneg %p114
        $region90: #{tpu_custom_call.1} parent=79 // pred_check_branch
          %733 = sbr.rel (%p731) target = $region92
        $region91: #{tpu_custom_call.1} parent=79 // pred_region
          %s734 = sand.u32 %s42, 1
          %s735 = scalar_lea.sflag [#allocation6], %s734
          %s736 = sand.u32 %s104, 1
          %s737 = smul.addr %s736, 32
          %s738 = scalar_lea.vmem [#allocation7], %s737
          %s739 = smul.u32 4, %s42
          %s741 = ssub.s32 512, 512
          %742 = vsyncadd %s735, %s741
          %s743 = smul.addr %s739, 128
          %s744 = scalar_lea.hbm %s2, %s743
          %s745 = sshll.u32 %s738, 4
          %s746 = int_to_ptr.vmem [resolvable:$true] %s745
          %751 = dma.hbm_to_vmem [thread:$0]  %s744, 512, %s746, %s735, 128, 128, 8
        $region92: #{tpu_custom_call.1} parent=79 // pred_fallthru
          _
      $region80: #{tpu_custom_call.1} parent=5 // pred_fallthru
        _
      %p752 = scmp.le.s32.totalorder 1, %s42
      %p753 = scmp.lt.s32.totalorder %s42, 3
      %p754 = pnand %p752, %p753
      %p755 = pneg %p754
      // Predicated region
      $region93: #{tpu_custom_call.1} parent=5 // pred_check
        _
      $region94: #{tpu_custom_call.1} parent=5 // pred_check_branch
        %757 = sbr.rel (%p754) target = $region96
      $region95: #{tpu_custom_call.1} parent=5 // pred_region
        %s758 = ssub.s32 %s42, 1
        %s759 = sand.u32 %s55, 1
        %s760 = scalar_lea.sflag [#allocation3], %s759
        %s761 = sand.u32 %s55, 1
        %s762 = smul.addr %s761, 32
        %s763 = scalar_lea.vmem [#allocation2], %s762
        // Predicated region
        $region97: #{tpu_custom_call.1} parent=95 // pred_check
          %p764 = pneg %p68
        $region98: #{tpu_custom_call.1} parent=95 // pred_check_branch
          %766 = sbr.rel (%p764) target = $region100
        $region99: #{tpu_custom_call.1} parent=95 // pred_region
          %767 = dma.done %s760, 512
        $region100: #{tpu_custom_call.1} parent=95 // pred_fallthru
          _
        %s768 = sand.u32 %s47, 1
        %s769 = scalar_lea.sflag [#allocation6], %s768
        %s770 = sand.u32 %s81, 1
        %s771 = smul.addr %s770, 32
        %s772 = scalar_lea.vmem [#allocation5], %s771
        // Predicated region
        $region101: #{tpu_custom_call.1} parent=95 // pred_check
          %p773 = pneg %p94
        $region102: #{tpu_custom_call.1} parent=95 // pred_check_branch
          %775 = sbr.rel (%p773) target = $region104
        $region103: #{tpu_custom_call.1} parent=95 // pred_region
          %776 = dma.done %s769, 512
        $region104: #{tpu_custom_call.1} parent=95 // pred_fallthru
          _
        %s777 = sand.u32 %s47, 1
        %s778 = scalar_lea.sflag [#allocation6], %s777
        %s779 = sand.u32 %s107, 1
        %s780 = smul.addr %s779, 32
        %s781 = scalar_lea.vmem [#allocation7], %s780
        // Predicated region
        $region105: #{tpu_custom_call.1} parent=95 // pred_check
          %p782 = pneg %p120
        $region106: #{tpu_custom_call.1} parent=95 // pred_check_branch
          %784 = sbr.rel (%p782) target = $region108
        $region107: #{tpu_custom_call.1} parent=95 // pred_region
          %785 = dma.done %s778, 512
        $region108: #{tpu_custom_call.1} parent=95 // pred_fallthru
          _
        // Predicated region
        $region109: #{tpu_custom_call.1} parent=95 // pred_check
          %p786 = pneg %p141
        $region110: #{tpu_custom_call.1} parent=95 // pred_check_branch
          %788 = sbr.rel (%p786) target = $region112
        $region111: #{tpu_custom_call.1} parent=95 // pred_region
          %789 = dma.done [#allocation9], 1024
        $region112: #{tpu_custom_call.1} parent=95 // pred_fallthru
          _
        // Predicated region
        $region113: #{tpu_custom_call.1} parent=95 // pred_check
          %p790 = pneg %p162
        $region114: #{tpu_custom_call.1} parent=95 // pred_check_branch
          %792 = sbr.rel (%p790) target = $region116
        $region115: #{tpu_custom_call.1} parent=95 // pred_region
          %793 = dma.done [#allocation9], 16
        $region116: #{tpu_custom_call.1} parent=95 // pred_fallthru
          _
        // Predicated region
        $region117: #{tpu_custom_call.1} parent=95 // pred_check
          %p794 = pneg %p183
        $region118: #{tpu_custom_call.1} parent=95 // pred_check_branch
          %796 = sbr.rel (%p794) target = $region120
        $region119: #{tpu_custom_call.1} parent=95 // pred_region
          %797 = dma.done [#allocation12], 1024
        $region120: #{tpu_custom_call.1} parent=95 // pred_fallthru
          _
        // Predicated region
        $region121: #{tpu_custom_call.1} parent=95 // pred_check
          %p798 = pneg %p204
        $region122: #{tpu_custom_call.1} parent=95 // pred_check_branch
          %800 = sbr.rel (%p798) target = $region124
        $region123: #{tpu_custom_call.1} parent=95 // pred_region
          %801 = dma.done [#allocation12], 16
        $region124: #{tpu_custom_call.1} parent=95 // pred_fallthru
          _
        // Predicated region
        $region125: #{tpu_custom_call.1} parent=95 // pred_check
          %p802 = pneg %p225
        $region126: #{tpu_custom_call.1} parent=95 // pred_check_branch
          %804 = sbr.rel (%p802) target = $region128
        $region127: #{tpu_custom_call.1} parent=95 // pred_region
          %805 = dma.done [#allocation15], 1024
        $region128: #{tpu_custom_call.1} parent=95 // pred_fallthru
          _
        // Predicated region
        $region129: #{tpu_custom_call.1} parent=95 // pred_check
          %p806 = pneg %p246
        $region130: #{tpu_custom_call.1} parent=95 // pred_check_branch
          %808 = sbr.rel (%p806) target = $region132
        $region131: #{tpu_custom_call.1} parent=95 // pred_region
          %809 = dma.done [#allocation15], 16
        $region132: #{tpu_custom_call.1} parent=95 // pred_fallthru
          _
        // Predicated region
        $region133: #{tpu_custom_call.1} parent=95 // pred_check
          %p810 = pneg %p267
        $region134: #{tpu_custom_call.1} parent=95 // pred_check_branch
          %812 = sbr.rel (%p810) target = $region136
        $region135: #{tpu_custom_call.1} parent=95 // pred_region
          %813 = dma.done [#allocation18], 1024
        $region136: #{tpu_custom_call.1} parent=95 // pred_fallthru
          _
        // Predicated region
        $region137: #{tpu_custom_call.1} parent=95 // pred_check
          %p814 = pneg %p288
        $region138: #{tpu_custom_call.1} parent=95 // pred_check_branch
          %816 = sbr.rel (%p814) target = $region140
        $region139: #{tpu_custom_call.1} parent=95 // pred_region
          %817 = dma.done [#allocation18], 16
        $region140: #{tpu_custom_call.1} parent=95 // pred_fallthru
          _
        // Predicated region
        $region141: #{tpu_custom_call.1} parent=95 // pred_check
          %p818 = pneg %p309
        $region142: #{tpu_custom_call.1} parent=95 // pred_check_branch
          %820 = sbr.rel (%p818) target = $region144
        $region143: #{tpu_custom_call.1} parent=95 // pred_region
          %821 = dma.done [#allocation21], 16
        $region144: #{tpu_custom_call.1} parent=95 // pred_fallthru
          _
        // Predicated region
        $region145: #{tpu_custom_call.1} parent=95 // pred_check
          %p822 = pneg %p330
        $region146: #{tpu_custom_call.1} parent=95 // pred_check_branch
          %824 = sbr.rel (%p822) target = $region148
        $region147: #{tpu_custom_call.1} parent=95 // pred_region
          %825 = dma.done [#allocation21], 16
        $region148: #{tpu_custom_call.1} parent=95 // pred_fallthru
          _
        // Predicated region
        $region149: #{tpu_custom_call.1} parent=95 // pred_check
          %p826 = pneg %p351
        $region150: #{tpu_custom_call.1} parent=95 // pred_check_branch
          %828 = sbr.rel (%p826) target = $region152
        $region151: #{tpu_custom_call.1} parent=95 // pred_region
          %829 = dma.done [#allocation24], 2048
        $region152: #{tpu_custom_call.1} parent=95 // pred_fallthru
          _
        // Predicated region
        $region153: #{tpu_custom_call.1} parent=95 // pred_check
          %p830 = pneg %p372
        $region154: #{tpu_custom_call.1} parent=95 // pred_check_branch
          %832 = sbr.rel (%p830) target = $region156
        $region155: #{tpu_custom_call.1} parent=95 // pred_region
          %833 = dma.done [#allocation24], 32
        $region156: #{tpu_custom_call.1} parent=95 // pred_fallthru
          _
        // Predicated region
        $region157: #{tpu_custom_call.1} parent=95 // pred_check
          %p834 = pneg %p393
        $region158: #{tpu_custom_call.1} parent=95 // pred_check_branch
          %836 = sbr.rel (%p834) target = $region160
        $region159: #{tpu_custom_call.1} parent=95 // pred_region
          %837 = dma.done [#allocation27], 2048
        $region160: #{tpu_custom_call.1} parent=95 // pred_fallthru
          _
        // Predicated region
        $region161: #{tpu_custom_call.1} parent=95 // pred_check
          %p838 = pneg %p414
        $region162: #{tpu_custom_call.1} parent=95 // pred_check_branch
          %840 = sbr.rel (%p838) target = $region164
        $region163: #{tpu_custom_call.1} parent=95 // pred_region
          %841 = dma.done [#allocation27], 16
        $region164: #{tpu_custom_call.1} parent=95 // pred_fallthru
          _
        // Predicated region
        $region165: #{tpu_custom_call.1} parent=95 // pred_check
          %p842 = pneg %p435
        $region166: #{tpu_custom_call.1} parent=95 // pred_check_branch
          %844 = sbr.rel (%p842) target = $region168
        $region167: #{tpu_custom_call.1} parent=95 // pred_region
          %845 = dma.done [#allocation30], 16
        $region168: #{tpu_custom_call.1} parent=95 // pred_fallthru
          _
        // Predicated region
        $region169: #{tpu_custom_call.1} parent=95 // pred_check
          %p846 = pneg %p456
        $region170: #{tpu_custom_call.1} parent=95 // pred_check_branch
          %848 = sbr.rel (%p846) target = $region172
        $region171: #{tpu_custom_call.1} parent=95 // pred_region
          %849 = dma.done [#allocation30], 16
        $region172: #{tpu_custom_call.1} parent=95 // pred_fallthru
          _
        %s850 = sand.u32 %s55, 1
        %s851 = scalar_lea.sflag [#allocation3], %s850
        %s852 = sand.u32 %s55, 1
        %s853 = smul.addr %s852, 32
        %s854 = scalar_lea.vmem [#allocation2], %s853
        %p855 = pneg %p68
        %p856 = pneg %p65
        %s857 = sand.u32 %s47, 1
        %s858 = scalar_lea.sflag [#allocation6], %s857
        %s859 = sand.u32 %s81, 1
        %s860 = smul.addr %s859, 32
        %s861 = scalar_lea.vmem [#allocation5], %s860
        %p862 = pneg %p94
        %p863 = pneg %p91
        %s864 = sand.u32 %s47, 1
        %s865 = scalar_lea.sflag [#allocation6], %s864
        %s866 = sand.u32 %s107, 1
        %s867 = smul.addr %s866, 32
        %s868 = scalar_lea.vmem [#allocation7], %s867
        %p869 = pneg %p120
        %p870 = pneg %p117
        %p871 = pneg %p141
        %p872 = pneg %p138
        %p873 = pneg %p162
        %p874 = pneg %p159
        %p875 = pneg %p183
        %p876 = pneg %p180
        %p877 = pneg %p204
        %p878 = pneg %p201
        %p879 = pneg %p225
        %p880 = pneg %p222
        %p881 = pneg %p246
        %p882 = pneg %p243
        %p883 = pneg %p267
        %p884 = pneg %p264
        %p885 = pneg %p288
        %p886 = pneg %p285
        %p887 = pneg %p309
        %p888 = pneg %p306
        %p889 = pneg %p330
        %p890 = pneg %p327
        %p891 = pneg %p351
        %p892 = pneg %p348
        %p893 = pneg %p372
        %p894 = pneg %p369
        %p895 = pneg %p393
        %p896 = pneg %p390
        %p897 = pneg %p414
        %p898 = pneg %p411
        %p899 = pneg %p435
        %p900 = pneg %p432
        %p901 = pneg %p456
        %p902 = pneg %p453
        %p903 = pneg %p482
        %p904 = pneg %p479
        %s905 = sand.u32 %s469, 1
        %s906 = scalar_lea.sflag [#allocation4], %s905
        %s907 = sand.u32 %s469, 1
        %s908 = smul.addr %s907, 32
        %s909 = scalar_lea.vmem [#allocation32], %s908
        %s910 = smul.u32 4, %s47
        %s911 = smul.u32 4, %s47
        %s912 = smul.u32 4, %s47
        %s913 = smul.u32 4, %s47
        %v915 = vld [vmem:[%s763] sm:$0xff]
        %v916 = vld [vmem:[%s763 + $0x8] sm:$0xff]
        %v917 = vld [vmem:[%s763 + $0x10] sm:$0xff]
        %v918 = vld [vmem:[%s763 + $0x18] sm:$0xff]
        %v919 = vld [vmem:[%s772] sm:$0xff]
        %v920 = vld [vmem:[%s772 + $0x8] sm:$0xff]
        %v921 = vld [vmem:[%s772 + $0x10] sm:$0xff]
        %v922 = vld [vmem:[%s772 + $0x18] sm:$0xff]
        %v923 = vld [vmem:[%s781] sm:$0xff]
        %v924 = vld [vmem:[%s781 + $0x8] sm:$0xff]
        %v925 = vld [vmem:[%s781 + $0x10] sm:$0xff]
        %v926 = vld [vmem:[%s781 + $0x18] sm:$0xff]
        %v927 = vpack.c.bf16 %v916, %v915
        %v928 = vpack.c.bf16 %v918, %v917
        %v929 = vld [vmem:[#allocation8] sm:$0xf]
        %v930 = vld [vmem:[#allocation8 + $0x4] sm:$0xf]
        %v931 = vld [vmem:[#allocation8 + $0x8] sm:$0xf]
        %v932 = vld [vmem:[#allocation8 + $0xc] sm:$0xf]
        %v933 = vld [vmem:[#allocation8 + $0x10] sm:$0xf]
        %v934 = vld [vmem:[#allocation8 + $0x14] sm:$0xf]
        %v935 = vld [vmem:[#allocation8 + $0x18] sm:$0xf]
        %v936 = vld [vmem:[#allocation8 + $0x1c] sm:$0xf]
        %v937 = vld [vmem:[#allocation8 + $0x20] sm:$0xf]
        %v938 = vld [vmem:[#allocation8 + $0x24] sm:$0xf]
        %v939 = vld [vmem:[#allocation8 + $0x28] sm:$0xf]
        %v940 = vld [vmem:[#allocation8 + $0x2c] sm:$0xf]
        %v941 = vld [vmem:[#allocation8 + $0x30] sm:$0xf]
        %v942 = vld [vmem:[#allocation8 + $0x34] sm:$0xf]
        %v943 = vld [vmem:[#allocation8 + $0x38] sm:$0xf]
        %v944 = vld [vmem:[#allocation8 + $0x3c] sm:$0xf]
        %v945 = vld [vmem:[#allocation10] sm:$0x1]
        %v947 = vlaneseq
        %v948 = vshrl.u32 %v947, 7
        %v949 = vsub.s32 0, %v948
        %v950 = vrot.slane %v945, %v949
        %v968 = vunpack.c.l.b16 %v929
        %v969 = vunpack.c.l.b16 %v930
        %v970 = vunpack.c.l.b16 %v931
        %v971 = vunpack.c.l.b16 %v932
        %v972 = vunpack.c.l.b16 %v933
        %v973 = vunpack.c.l.b16 %v934
        %v974 = vunpack.c.l.b16 %v935
        %v975 = vunpack.c.l.b16 %v936
        %v976 = vunpack.c.l.b16 %v937
        %v977 = vunpack.c.l.b16 %v938
        %v978 = vunpack.c.l.b16 %v939
        %v979 = vunpack.c.l.b16 %v940
        %v980 = vunpack.c.l.b16 %v941
        %v981 = vunpack.c.l.b16 %v942
        %v982 = vunpack.c.l.b16 %v943
        %v983 = vunpack.c.l.b16 %v944
        %v984 = vpack.c.b16 %v969, %v968
        %v985 = vpack.c.b16 %v971, %v970
        %v986 = vpack.c.b16 %v973, %v972
        %v987 = vpack.c.b16 %v975, %v974
        %v988 = vpack.c.b16 %v977, %v976
        %v989 = vpack.c.b16 %v979, %v978
        %v990 = vpack.c.b16 %v981, %v980
        %v991 = vpack.c.b16 %v983, %v982
        %1000 = vmatprep.subr.bf16.mxu0 0
        %1001 = vmatpush1.bf16.msra.mxu0 %v984
        %1002 = vmatprep.subr.bf16.mxu0 0
        %1003 = vmatpush1.bf16.msra.mxu0 %v985
        %1004 = vmatprep.subr.bf16.mxu0 0
        %1005 = vmatpush1.bf16.msra.mxu0 %v986
        %1006 = vmatprep.subr.bf16.mxu0 0
        %1007 = vmatpush1.bf16.msra.mxu0 %v987
        %1008 = vmatprep.subr.bf16.mxu0 0
        %1009 = vmatpush1.bf16.msra.mxu0 %v988
        %1010 = vmatprep.subr.bf16.mxu0 0
        %1011 = vmatpush1.bf16.msra.mxu0 %v989
        %1012 = vmatprep.subr.bf16.mxu0 0
        %1013 = vmatpush1.bf16.msra.mxu0 %v990
        %1014 = vmatprep.subr.bf16.mxu0 0
        %1015 = vmatpush1.bf16.msra.mxu0 %v991
        %1016 = vmatprep.subr.bf16.mxu0 0
        %1017 = vmatpush1.bf16.msra.mxu0 0
        %1018 = vmatprep.subr.bf16.mxu0 0
        %1019 = vmatpush1.bf16.msra.mxu0 0
        %1020 = vmatprep.subr.bf16.mxu0 0
        %1021 = vmatpush1.bf16.msra.mxu0 0
        %1022 = vmatprep.subr.bf16.mxu0 0
        %1023 = vmatpush1.bf16.msra.mxu0 0
        %1024 = vmatprep.subr.bf16.mxu0 0
        %1025 = vmatpush1.bf16.msra.mxu0 0
        %1026 = vmatprep.subr.bf16.mxu0 0
        %1027 = vmatpush1.bf16.msra.mxu0 0
        %1028 = vmatprep.subr.bf16.mxu0 0
        %1029 = vmatpush1.bf16.msra.mxu0 0
        %1030 = vmatprep.subr.bf16.mxu0 0
        %1031 = vmatpush1.bf16.msra.mxu0 0
        %1032 = vmatprep.mubr.bf16.mxu0 0
        %1033 = vmatmul.mubr.bf16.gmra.mrb[0].mxu0 %v927
        %v1034 = vpop.f32.mrb[0].mxu0
        %v1035 = vadd.f32 %v950, %v1034
        %v1036 = vpop.f32.mrb[0].mxu0
        %v1037 = vpop.f32.mrb[0].mxu0
        %v1038 = vadd.f32 %v950, %v1037
        %v1039 = vpop.f32.mrb[0].mxu0
        %1040 = vmatprep.mubr.bf16.mxu0 0
        %1041 = vmatmul.mubr.bf16.gmra.mrb[0].mxu0 %v928
        %v1042 = vpop.f32.mrb[0].mxu0
        %v1043 = vadd.f32 %v950, %v1042
        %v1044 = vpop.f32.mrb[0].mxu0
        %v1045 = vpop.f32.mrb[0].mxu0
        %v1046 = vadd.f32 %v950, %v1045
        %v1047 = vpop.f32.mrb[0].mxu0
        %1048 = vdwg.mxu0
        %v1049 = vmul.f32 %v1035, 0.125
        %v1050 = vmul.f32 %v1038, 0.125
        %v1051 = vmul.f32 %v1043, 0.125
        %v1052 = vmul.f32 %v1046, 0.125
        %v1053 = vpack.c.bf16 %v920, %v919
        %v1054 = vpack.c.bf16 %v922, %v921
        %v1055 = vld [vmem:[#allocation11] sm:$0xf]
        %v1056 = vld [vmem:[#allocation11 + $0x4] sm:$0xf]
        %v1057 = vld [vmem:[#allocation11 + $0x8] sm:$0xf]
        %v1058 = vld [vmem:[#allocation11 + $0xc] sm:$0xf]
        %v1059 = vld [vmem:[#allocation11 + $0x10] sm:$0xf]
        %v1060 = vld [vmem:[#allocation11 + $0x14] sm:$0xf]
        %v1061 = vld [vmem:[#allocation11 + $0x18] sm:$0xf]
        %v1062 = vld [vmem:[#allocation11 + $0x1c] sm:$0xf]
        %v1063 = vld [vmem:[#allocation11 + $0x20] sm:$0xf]
        %v1064 = vld [vmem:[#allocation11 + $0x24] sm:$0xf]
        %v1065 = vld [vmem:[#allocation11 + $0x28] sm:$0xf]
        %v1066 = vld [vmem:[#allocation11 + $0x2c] sm:$0xf]
        %v1067 = vld [vmem:[#allocation11 + $0x30] sm:$0xf]
        %v1068 = vld [vmem:[#allocation11 + $0x34] sm:$0xf]
        %v1069 = vld [vmem:[#allocation11 + $0x38] sm:$0xf]
        %v1070 = vld [vmem:[#allocation11 + $0x3c] sm:$0xf]
        %v1071 = vld [vmem:[#allocation13] sm:$0x1]
        %v1073 = vlaneseq
        %v1074 = vshrl.u32 %v1073, 7
        %v1075 = vsub.s32 0, %v1074
        %v1076 = vrot.slane %v1071, %v1075
        %v1094 = vunpack.c.l.b16 %v1055
        %v1095 = vunpack.c.l.b16 %v1056
        %v1096 = vunpack.c.l.b16 %v1057
        %v1097 = vunpack.c.l.b16 %v1058
        %v1098 = vunpack.c.l.b16 %v1059
        %v1099 = vunpack.c.l.b16 %v1060
        %v1100 = vunpack.c.l.b16 %v1061
        %v1101 = vunpack.c.l.b16 %v1062
        %v1102 = vunpack.c.l.b16 %v1063
        %v1103 = vunpack.c.l.b16 %v1064
        %v1104 = vunpack.c.l.b16 %v1065
        %v1105 = vunpack.c.l.b16 %v1066
        %v1106 = vunpack.c.l.b16 %v1067
        %v1107 = vunpack.c.l.b16 %v1068
        %v1108 = vunpack.c.l.b16 %v1069
        %v1109 = vunpack.c.l.b16 %v1070
        %v1110 = vpack.c.b16 %v1095, %v1094
        %v1111 = vpack.c.b16 %v1097, %v1096
        %v1112 = vpack.c.b16 %v1099, %v1098
        %v1113 = vpack.c.b16 %v1101, %v1100
        %v1114 = vpack.c.b16 %v1103, %v1102
        %v1115 = vpack.c.b16 %v1105, %v1104
        %v1116 = vpack.c.b16 %v1107, %v1106
        %v1117 = vpack.c.b16 %v1109, %v1108
        %1126 = vmatprep.subr.bf16.mxu0 0
        %1127 = vmatpush1.bf16.msra.mxu0 %v1110
        %1128 = vmatprep.subr.bf16.mxu0 0
        %1129 = vmatpush1.bf16.msra.mxu0 %v1111
        %1130 = vmatprep.subr.bf16.mxu0 0
        %1131 = vmatpush1.bf16.msra.mxu0 %v1112
        %1132 = vmatprep.subr.bf16.mxu0 0
        %1133 = vmatpush1.bf16.msra.mxu0 %v1113
        %1134 = vmatprep.subr.bf16.mxu0 0
        %1135 = vmatpush1.bf16.msra.mxu0 %v1114
        %1136 = vmatprep.subr.bf16.mxu0 0
        %1137 = vmatpush1.bf16.msra.mxu0 %v1115
        %1138 = vmatprep.subr.bf16.mxu0 0
        %1139 = vmatpush1.bf16.msra.mxu0 %v1116
        %1140 = vmatprep.subr.bf16.mxu0 0
        %1141 = vmatpush1.bf16.msra.mxu0 %v1117
        %1142 = vmatprep.subr.bf16.mxu0 0
        %1143 = vmatpush1.bf16.msra.mxu0 0
        %1144 = vmatprep.subr.bf16.mxu0 0
        %1145 = vmatpush1.bf16.msra.mxu0 0
        %1146 = vmatprep.subr.bf16.mxu0 0
        %1147 = vmatpush1.bf16.msra.mxu0 0
        %1148 = vmatprep.subr.bf16.mxu0 0
        %1149 = vmatpush1.bf16.msra.mxu0 0
        %1150 = vmatprep.subr.bf16.mxu0 0
        %1151 = vmatpush1.bf16.msra.mxu0 0
        %1152 = vmatprep.subr.bf16.mxu0 0
        %1153 = vmatpush1.bf16.msra.mxu0 0
        %1154 = vmatprep.subr.bf16.mxu0 0
        %1155 = vmatpush1.bf16.msra.mxu0 0
        %1156 = vmatprep.subr.bf16.mxu0 0
        %1157 = vmatpush1.bf16.msra.mxu0 0
        %1158 = vmatprep.mubr.bf16.mxu0 0
        %1159 = vmatmul.mubr.bf16.gmra.mrb[0].mxu0 %v1053
        %v1160 = vpop.f32.mrb[0].mxu0
        %v1161 = vadd.f32 %v1076, %v1160
        %v1162 = vpop.f32.mrb[0].mxu0
        %v1163 = vpop.f32.mrb[0].mxu0
        %v1164 = vadd.f32 %v1076, %v1163
        %v1165 = vpop.f32.mrb[0].mxu0
        %1166 = vmatprep.mubr.bf16.mxu0 0
        %1167 = vmatmul.mubr.bf16.gmra.mrb[0].mxu0 %v1054
        %v1168 = vpop.f32.mrb[0].mxu0
        %v1169 = vadd.f32 %v1076, %v1168
        %v1170 = vpop.f32.mrb[0].mxu0
        %v1171 = vpop.f32.mrb[0].mxu0
        %v1172 = vadd.f32 %v1076, %v1171
        %v1173 = vpop.f32.mrb[0].mxu0
        %1174 = vdwg.mxu0
        %v1175 = vpack.c.bf16 %v924, %v923
        %v1176 = vpack.c.bf16 %v926, %v925
        %v1177 = vld [vmem:[#allocation14] sm:$0xf]
        %v1178 = vld [vmem:[#allocation14 + $0x4] sm:$0xf]
        %v1179 = vld [vmem:[#allocation14 + $0x8] sm:$0xf]
        %v1180 = vld [vmem:[#allocation14 + $0xc] sm:$0xf]
        %v1181 = vld [vmem:[#allocation14 + $0x10] sm:$0xf]
        %v1182 = vld [vmem:[#allocation14 + $0x14] sm:$0xf]
        %v1183 = vld [vmem:[#allocation14 + $0x18] sm:$0xf]
        %v1184 = vld [vmem:[#allocation14 + $0x1c] sm:$0xf]
        %v1185 = vld [vmem:[#allocation14 + $0x20] sm:$0xf]
        %v1186 = vld [vmem:[#allocation14 + $0x24] sm:$0xf]
        %v1187 = vld [vmem:[#allocation14 + $0x28] sm:$0xf]
        %v1188 = vld [vmem:[#allocation14 + $0x2c] sm:$0xf]
        %v1189 = vld [vmem:[#allocation14 + $0x30] sm:$0xf]
        %v1190 = vld [vmem:[#allocation14 + $0x34] sm:$0xf]
        %v1191 = vld [vmem:[#allocation14 + $0x38] sm:$0xf]
        %v1192 = vld [vmem:[#allocation14 + $0x3c] sm:$0xf]
        %v1193 = vld [vmem:[#allocation16] sm:$0x1]
        %v1195 = vlaneseq
        %v1196 = vshrl.u32 %v1195, 7
        %v1197 = vsub.s32 0, %v1196
        %v1198 = vrot.slane %v1193, %v1197
        %v1216 = vunpack.c.l.b16 %v1177
        %v1217 = vunpack.c.l.b16 %v1178
        %v1218 = vunpack.c.l.b16 %v1179
        %v1219 = vunpack.c.l.b16 %v1180
        %v1220 = vunpack.c.l.b16 %v1181
        %v1221 = vunpack.c.l.b16 %v1182
        %v1222 = vunpack.c.l.b16 %v1183
        %v1223 = vunpack.c.l.b16 %v1184
        %v1224 = vunpack.c.l.b16 %v1185
        %v1225 = vunpack.c.l.b16 %v1186
        %v1226 = vunpack.c.l.b16 %v1187
        %v1227 = vunpack.c.l.b16 %v1188
        %v1228 = vunpack.c.l.b16 %v1189
        %v1229 = vunpack.c.l.b16 %v1190
        %v1230 = vunpack.c.l.b16 %v1191
        %v1231 = vunpack.c.l.b16 %v1192
        %v1232 = vpack.c.b16 %v1217, %v1216
        %v1233 = vpack.c.b16 %v1219, %v1218
        %v1234 = vpack.c.b16 %v1221, %v1220
        %v1235 = vpack.c.b16 %v1223, %v1222
        %v1236 = vpack.c.b16 %v1225, %v1224
        %v1237 = vpack.c.b16 %v1227, %v1226
        %v1238 = vpack.c.b16 %v1229, %v1228
        %v1239 = vpack.c.b16 %v1231, %v1230
        %1248 = vmatprep.subr.bf16.mxu0 0
        %1249 = vmatpush1.bf16.msra.mxu0 %v1232
        %1250 = vmatprep.subr.bf16.mxu0 0
        %1251 = vmatpush1.bf16.msra.mxu0 %v1233
        %1252 = vmatprep.subr.bf16.mxu0 0
        %1253 = vmatpush1.bf16.msra.mxu0 %v1234
        %1254 = vmatprep.subr.bf16.mxu0 0
        %1255 = vmatpush1.bf16.msra.mxu0 %v1235
        %1256 = vmatprep.subr.bf16.mxu0 0
        %1257 = vmatpush1.bf16.msra.mxu0 %v1236
        %1258 = vmatprep.subr.bf16.mxu0 0
        %1259 = vmatpush1.bf16.msra.mxu0 %v1237
        %1260 = vmatprep.subr.bf16.mxu0 0
        %1261 = vmatpush1.bf16.msra.mxu0 %v1238
        %1262 = vmatprep.subr.bf16.mxu0 0
        %1263 = vmatpush1.bf16.msra.mxu0 %v1239
        %1264 = vmatprep.subr.bf16.mxu0 0
        %1265 = vmatpush1.bf16.msra.mxu0 0
        %1266 = vmatprep.subr.bf16.mxu0 0
        %1267 = vmatpush1.bf16.msra.mxu0 0
        %1268 = vmatprep.subr.bf16.mxu0 0
        %1269 = vmatpush1.bf16.msra.mxu0 0
        %1270 = vmatprep.subr.bf16.mxu0 0
        %1271 = vmatpush1.bf16.msra.mxu0 0
        %1272 = vmatprep.subr.bf16.mxu0 0
        %1273 = vmatpush1.bf16.msra.mxu0 0
        %1274 = vmatprep.subr.bf16.mxu0 0
        %1275 = vmatpush1.bf16.msra.mxu0 0
        %1276 = vmatprep.subr.bf16.mxu0 0
        %1277 = vmatpush1.bf16.msra.mxu0 0
        %1278 = vmatprep.subr.bf16.mxu0 0
        %1279 = vmatpush1.bf16.msra.mxu0 0
        %1280 = vmatprep.mubr.bf16.mxu0 0
        %1281 = vmatmul.mubr.bf16.gmra.mrb[0].mxu0 %v1175
        %v1282 = vpop.f32.mrb[0].mxu0
        %v1283 = vadd.f32 %v1198, %v1282
        %v1284 = vpop.f32.mrb[0].mxu0
        %v1285 = vpop.f32.mrb[0].mxu0
        %v1286 = vadd.f32 %v1198, %v1285
        %v1287 = vpop.f32.mrb[0].mxu0
        %1288 = vmatprep.mubr.bf16.mxu0 0
        %1289 = vmatmul.mubr.bf16.gmra.mrb[0].mxu0 %v1176
        %v1290 = vpop.f32.mrb[0].mxu0
        %v1291 = vadd.f32 %v1198, %v1290
        %v1292 = vpop.f32.mrb[0].mxu0
        %v1293 = vpop.f32.mrb[0].mxu0
        %v1294 = vadd.f32 %v1198, %v1293
        %v1295 = vpop.f32.mrb[0].mxu0
        %1296 = vdwg.mxu0
        %v1297 = vpack.c.bf16 %v1050, %v1049
        %v1298 = vpack.c.bf16 %v1052, %v1051
        %v1299 = vpack.c.bf16 %v1164, %v1161
        %v1300 = vpack.c.bf16 %v1172, %v1169
        %v1301 = vpack.c.bf16 %v1286, %v1283
        %v1302 = vpack.c.bf16 %v1294, %v1291
        %v1303 = vlaneseq
        %v1304 = vshrl.u32 %v1303, 7
        %v1305 = vlaneseq
        %v1306 = vand.u32 %v1305, 127
        %vm1307 = vcmp.lt.s32.totalorder %v1306, %v1304
        %v1310 = vunpack.c.l.b16 %v1297
        %v1311 = vunpack.c.h.b16 %v1297
        %v1312 = vunpack.c.l.b16 %v1298
        %v1313 = vunpack.c.h.b16 %v1298
        %v1314 = vpack.c.b16 %v1310, %v1310
        %v1315 = vpack.c.b16 %v1311, %v1311
        %v1316 = vpack.c.b16 %v1312, %v1312
        %v1317 = vpack.c.b16 %v1313, %v1313
        %v1320 = vunpack.c.l.b16 %v1299
        %v1321 = vunpack.c.h.b16 %v1299
        %v1322 = vunpack.c.l.b16 %v1300
        %v1323 = vunpack.c.h.b16 %v1300
        %v1324 = vpack.c.b16 %v1320, %v1320
        %v1325 = vpack.c.b16 %v1321, %v1321
        %v1326 = vpack.c.b16 %v1322, %v1322
        %v1327 = vpack.c.b16 %v1323, %v1323
        %v1330 = vunpack.c.l.b16 %v1301
        %v1331 = vunpack.c.h.b16 %v1301
        %v1332 = vunpack.c.l.b16 %v1302
        %v1333 = vunpack.c.h.b16 %v1302
        %v1334 = vpack.c.b16 %v1330, %v1330
        %v1335 = vpack.c.b16 %v1331, %v1331
        %v1336 = vpack.c.b16 %v1332, %v1332
        %v1337 = vpack.c.b16 %v1333, %v1333
        %vm1338 = vcmask 523264
        %v1340 = vsel %vm1338, %v1314, 0
        %v1343 = vsel %vm1338, %v1324, 0
        %1345 = vmatprep.subr.bf16.mxu0 0
        %1346 = vmatpush1.bf16.xpose.msra.mxu0 %v1343
        %1347 = vmatprep.subr.bf16.mxu0 0
        %1348 = vmatpush1.bf16.xpose.msra.mxu0 0
        %1349 = vmatprep.subr.bf16.mxu0 0
        %1350 = vmatpush1.bf16.xpose.msra.mxu0 0
        %1351 = vmatprep.subr.bf16.mxu0 0
        %1352 = vmatpush1.bf16.xpose.msra.mxu0 0
        %1353 = vmatprep.subr.bf16.mxu0 0
        %1354 = vmatpush1.bf16.xpose.msra.mxu0 0
        %1355 = vmatprep.subr.bf16.mxu0 0
        %1356 = vmatpush1.bf16.xpose.msra.mxu0 0
        %1357 = vmatprep.subr.bf16.mxu0 0
        %1358 = vmatpush1.bf16.xpose.msra.mxu0 0
        %1359 = vmatprep.subr.bf16.mxu0 0
        %1360 = vmatpush1.bf16.xpose.msra.mxu0 0
        %1361 = vmatprep.subr.bf16.mxu0 0
        %1362 = vmatpush1.bf16.xpose.msra.mxu0 0
        %1363 = vmatprep.subr.bf16.mxu0 0
        %1364 = vmatpush1.bf16.xpose.msra.mxu0 0
        %1365 = vmatprep.subr.bf16.mxu0 0
        %1366 = vmatpush1.bf16.xpose.msra.mxu0 0
        %1367 = vmatprep.subr.bf16.mxu0 0
        %1368 = vmatpush1.bf16.xpose.msra.mxu0 0
        %1369 = vmatprep.subr.bf16.mxu0 0
        %1370 = vmatpush1.bf16.xpose.msra.mxu0 0
        %1371 = vmatprep.subr.bf16.mxu0 0
        %1372 = vmatpush1.bf16.xpose.msra.mxu0 0
        %1373 = vmatprep.subr.bf16.mxu0 0
        %1374 = vmatpush1.bf16.xpose.msra.mxu0 0
        %1375 = vmatprep.subr.bf16.mxu0 0
        %1376 = vmatpush1.bf16.xpose.msra.mxu0 0
        %1377 = vmatprep.mubr.bf16.mxu0 0
        %1378 = vmatmul.mubr.bf16.gmra.mrb[0].mxu0 %v1340
        %v1379 = vpop.f32.mrb[0].mxu0
        %v1380 = vadd.f32 0.0, %v1379
        %v1381 = vpop.f32.mrb[0].mxu0
        %v1382 = vpop.f32.mrb[0].mxu0
        %v1383 = vpop.f32.mrb[0].mxu0
        %1384 = vdwg.mxu0
        %v1386 = vsel %vm1338, %v1315, 0
        %v1389 = vsel %vm1338, %v1325, 0
        %1391 = vmatprep.subr.bf16.mxu0 0
        %1392 = vmatpush1.bf16.xpose.msra.mxu0 %v1389
        %1393 = vmatprep.subr.bf16.mxu0 0
        %1394 = vmatpush1.bf16.xpose.msra.mxu0 0
        %1395 = vmatprep.subr.bf16.mxu0 0
        %1396 = vmatpush1.bf16.xpose.msra.mxu0 0
        %1397 = vmatprep.subr.bf16.mxu0 0
        %1398 = vmatpush1.bf16.xpose.msra.mxu0 0
        %1399 = vmatprep.subr.bf16.mxu0 0
        %1400 = vmatpush1.bf16.xpose.msra.mxu0 0
        %1401 = vmatprep.subr.bf16.mxu0 0
        %1402 = vmatpush1.bf16.xpose.msra.mxu0 0
        %1403 = vmatprep.subr.bf16.mxu0 0
        %1404 = vmatpush1.bf16.xpose.msra.mxu0 0
        %1405 = vmatprep.subr.bf16.mxu0 0
        %1406 = vmatpush1.bf16.xpose.msra.mxu0 0
        %1407 = vmatprep.subr.bf16.mxu0 0
        %1408 = vmatpush1.bf16.xpose.msra.mxu0 0
        %1409 = vmatprep.subr.bf16.mxu0 0
        %1410 = vmatpush1.bf16.xpose.msra.mxu0 0
        %1411 = vmatprep.subr.bf16.mxu0 0
        %1412 = vmatpush1.bf16.xpose.msra.mxu0 0
        %1413 = vmatprep.subr.bf16.mxu0 0
        %1414 = vmatpush1.bf16.xpose.msra.mxu0 0
        %1415 = vmatprep.subr.bf16.mxu0 0
        %1416 = vmatpush1.bf16.xpose.msra.mxu0 0
        %1417 = vmatprep.subr.bf16.mxu0 0
        %1418 = vmatpush1.bf16.xpose.msra.mxu0 0
        %1419 = vmatprep.subr.bf16.mxu0 0
        %1420 = vmatpush1.bf16.xpose.msra.mxu0 0
        %1421 = vmatprep.subr.bf16.mxu0 0
        %1422 = vmatpush1.bf16.xpose.msra.mxu0 0
        %1423 = vmatprep.mubr.bf16.mxu0 0
        %1424 = vmatmul.mubr.bf16.gmra.mrb[0].mxu0 %v1386
        %v1425 = vpop.f32.mrb[0].mxu0
        %v1426 = vadd.f32 0.0, %v1425
        %v1427 = vpop.f32.mrb[0].mxu0
        %v1428 = vpop.f32.mrb[0].mxu0
        %v1429 = vpop.f32.mrb[0].mxu0
        %1430 = vdwg.mxu0
        %v1432 = vsel %vm1338, %v1316, 0
        %v1435 = vsel %vm1338, %v1326, 0
        %1437 = vmatprep.subr.bf16.mxu0 0
        %1438 = vmatpush1.bf16.xpose.msra.mxu0 %v1435
        %1439 = vmatprep.subr.bf16.mxu0 0
        %1440 = vmatpush1.bf16.xpose.msra.mxu0 0
        %1441 = vmatprep.subr.bf16.mxu0 0
        %1442 = vmatpush1.bf16.xpose.msra.mxu0 0
        %1443 = vmatprep.subr.bf16.mxu0 0
        %1444 = vmatpush1.bf16.xpose.msra.mxu0 0
        %1445 = vmatprep.subr.bf16.mxu0 0
        %1446 = vmatpush1.bf16.xpose.msra.mxu0 0
        %1447 = vmatprep.subr.bf16.mxu0 0
        %1448 = vmatpush1.bf16.xpose.msra.mxu0 0
        %1449 = vmatprep.subr.bf16.mxu0 0
        %1450 = vmatpush1.bf16.xpose.msra.mxu0 0
        %1451 = vmatprep.subr.bf16.mxu0 0
        %1452 = vmatpush1.bf16.xpose.msra.mxu0 0
        %1453 = vmatprep.subr.bf16.mxu0 0
        %1454 = vmatpush1.bf16.xpose.msra.mxu0 0
        %1455 = vmatprep.subr.bf16.mxu0 0
        %1456 = vmatpush1.bf16.xpose.msra.mxu0 0
        %1457 = vmatprep.subr.bf16.mxu0 0
        %1458 = vmatpush1.bf16.xpose.msra.mxu0 0
        %1459 = vmatprep.subr.bf16.mxu0 0
        %1460 = vmatpush1.bf16.xpose.msra.mxu0 0
        %1461 = vmatprep.subr.bf16.mxu0 0
        %1462 = vmatpush1.bf16.xpose.msra.mxu0 0
        %1463 = vmatprep.subr.bf16.mxu0 0
        %1464 = vmatpush1.bf16.xpose.msra.mxu0 0
        %1465 = vmatprep.subr.bf16.mxu0 0
        %1466 = vmatpush1.bf16.xpose.msra.mxu0 0
        %1467 = vmatprep.subr.bf16.mxu0 0
        %1468 = vmatpush1.bf16.xpose.msra.mxu0 0
        %1469 = vmatprep.mubr.bf16.mxu0 0
        %1470 = vmatmul.mubr.bf16.gmra.mrb[0].mxu0 %v1432
        %v1471 = vpop.f32.mrb[0].mxu0
        %v1472 = vadd.f32 0.0, %v1471
        %v1473 = vpop.f32.mrb[0].mxu0
        %v1474 = vpop.f32.mrb[0].mxu0
        %v1475 = vpop.f32.mrb[0].mxu0
        %1476 = vdwg.mxu0
        %v1478 = vsel %vm1338, %v1317, 0
        %v1481 = vsel %vm1338, %v1327, 0
        %1483 = vmatprep.subr.bf16.mxu0 0
        %1484 = vmatpush1.bf16.xpose.msra.mxu0 %v1481
        %1485 = vmatprep.subr.bf16.mxu0 0
        %1486 = vmatpush1.bf16.xpose.msra.mxu0 0
        %1487 = vmatprep.subr.bf16.mxu0 0
        %1488 = vmatpush1.bf16.xpose.msra.mxu0 0
        %1489 = vmatprep.subr.bf16.mxu0 0
        %1490 = vmatpush1.bf16.xpose.msra.mxu0 0
        %1491 = vmatprep.subr.bf16.mxu0 0
        %1492 = vmatpush1.bf16.xpose.msra.mxu0 0
        %1493 = vmatprep.subr.bf16.mxu0 0
        %1494 = vmatpush1.bf16.xpose.msra.mxu0 0
        %1495 = vmatprep.subr.bf16.mxu0 0
        %1496 = vmatpush1.bf16.xpose.msra.mxu0 0
        %1497 = vmatprep.subr.bf16.mxu0 0
        %1498 = vmatpush1.bf16.xpose.msra.mxu0 0
        %1499 = vmatprep.subr.bf16.mxu0 0
        %1500 = vmatpush1.bf16.xpose.msra.mxu0 0
        %1501 = vmatprep.subr.bf16.mxu0 0
        %1502 = vmatpush1.bf16.xpose.msra.mxu0 0
        %1503 = vmatprep.subr.bf16.mxu0 0
        %1504 = vmatpush1.bf16.xpose.msra.mxu0 0
        %1505 = vmatprep.subr.bf16.mxu0 0
        %1506 = vmatpush1.bf16.xpose.msra.mxu0 0
        %1507 = vmatprep.subr.bf16.mxu0 0
        %1508 = vmatpush1.bf16.xpose.msra.mxu0 0
        %1509 = vmatprep.subr.bf16.mxu0 0
        %1510 = vmatpush1.bf16.xpose.msra.mxu0 0
        %1511 = vmatprep.subr.bf16.mxu0 0
        %1512 = vmatpush1.bf16.xpose.msra.mxu0 0
        %1513 = vmatprep.subr.bf16.mxu0 0
        %1514 = vmatpush1.bf16.xpose.msra.mxu0 0
        %1515 = vmatprep.mubr.bf16.mxu0 0
        %1516 = vmatmul.mubr.bf16.gmra.mrb[0].mxu0 %v1478
        %v1517 = vpop.f32.mrb[0].mxu0
        %v1518 = vadd.f32 0.0, %v1517
        %v1519 = vpop.f32.mrb[0].mxu0
        %v1520 = vpop.f32.mrb[0].mxu0
        %v1521 = vpop.f32.mrb[0].mxu0
        %1522 = vdwg.mxu0
        %v1523 = vsel %vm1307, 1, 0
        %vm1524 = vcmp.eq.s32.totalorder %v1523, 1
        %v1525 = vsel %vm1524, %v1380, -1e+32
        %v1526 = vsel %vm1524, %v1426, -1e+32
        %v1527 = vsel %vm1524, %v1472, -1e+32
        %v1528 = vsel %vm1524, %v1518, -1e+32
        %vm1529 = vcmask 64512
        %v1530 = vsel %vm1529, %v1525, -inf
        %1531 = vmax.xlane.f32.xlu0 %v1530
        %v1532 = vpop.xlane.xlu0 %1531
        %v1533 = vsel %vm1529, %v1526, -inf
        %1534 = vmax.xlane.f32.xlu0 %v1533
        %v1535 = vpop.xlane.xlu0 %1534
        %v1536 = vsel %vm1529, %v1527, -inf
        %1537 = vmax.xlane.f32.xlu0 %v1536
        %v1538 = vpop.xlane.xlu0 %1537
        %v1539 = vsel %vm1529, %v1528, -inf
        %1540 = vmax.xlane.f32.xlu0 %v1539
        %v1541 = vpop.xlane.xlu0 %1540
        %v1542 = vsub.f32 %v1525, %v1532
        %v1543 = vsub.f32 %v1526, %v1535
        %v1544 = vsub.f32 %v1527, %v1538
        %v1545 = vsub.f32 %v1528, %v1541
        %v1546 = vmul.f32 %v1542, 1.442695
        %v1547 = vpow.pop %v1546
        %v1548 = vmul.f32 %v1543, 1.442695
        %v1549 = vpow.pop %v1548
        %v1550 = vmul.f32 %v1544, 1.442695
        %v1551 = vpow.pop %v1550
        %v1552 = vmul.f32 %v1545, 1.442695
        %v1553 = vpow.pop %v1552
        %v1554 = vsel %vm1529, %v1547, 0.0
        %1555 = vadd.xlane.f32.xlu0 %v1554
        %v1556 = vpop.xlane.xlu0 %1555
        %v1557 = vsel %vm1529, %v1549, 0.0
        %1558 = vadd.xlane.f32.xlu0 %v1557
        %v1559 = vpop.xlane.xlu0 %1558
        %v1560 = vsel %vm1529, %v1551, 0.0
        %1561 = vadd.xlane.f32.xlu0 %v1560
        %v1562 = vpop.xlane.xlu0 %1561
        %v1563 = vsel %vm1529, %v1553, 0.0
        %1564 = vadd.xlane.f32.xlu0 %v1563
        %v1565 = vpop.xlane.xlu0 %1564
        %v1566 = vrcp.pop %v1556
        %v1567 = vrcp.pop %v1559
        %v1568 = vrcp.pop %v1562
        %v1569 = vrcp.pop %v1565
        %v1570 = vmul.f32 %v1547, %v1566
        %v1571 = vmul.f32 %v1549, %v1567
        %v1572 = vmul.f32 %v1551, %v1568
        %v1573 = vmul.f32 %v1553, %v1569
        %v1574 = vpack.c.bf16 %v1570, %v1570
        %v1575 = vpack.c.bf16 %v1571, %v1571
        %v1576 = vpack.c.bf16 %v1572, %v1572
        %v1577 = vpack.c.bf16 %v1573, %v1573
        %v1579 = vsel %vm1529, %v1574, 0
        %vm1581 = vcmask 1043456
        %v1583 = vsel %vm1581, %v1334, 0
        %1585 = vmatprep.subr.bf16.mxu0 0
        %1586 = vmatpush1.bf16.msra.mxu0 %v1583
        %1587 = vmatprep.subr.bf16.mxu0 0
        %1588 = vmatpush1.bf16.msra.mxu0 0
        %1589 = vmatprep.subr.bf16.mxu0 0
        %1590 = vmatpush1.bf16.msra.mxu0 0
        %1591 = vmatprep.subr.bf16.mxu0 0
        %1592 = vmatpush1.bf16.msra.mxu0 0
        %1593 = vmatprep.subr.bf16.mxu0 0
        %1594 = vmatpush1.bf16.msra.mxu0 0
        %1595 = vmatprep.subr.bf16.mxu0 0
        %1596 = vmatpush1.bf16.msra.mxu0 0
        %1597 = vmatprep.subr.bf16.mxu0 0
        %1598 = vmatpush1.bf16.msra.mxu0 0
        %1599 = vmatprep.subr.bf16.mxu0 0
        %1600 = vmatpush1.bf16.msra.mxu0 0
        %1601 = vmatprep.subr.bf16.mxu0 0
        %1602 = vmatpush1.bf16.msra.mxu0 0
        %1603 = vmatprep.subr.bf16.mxu0 0
        %1604 = vmatpush1.bf16.msra.mxu0 0
        %1605 = vmatprep.subr.bf16.mxu0 0
        %1606 = vmatpush1.bf16.msra.mxu0 0
        %1607 = vmatprep.subr.bf16.mxu0 0
        %1608 = vmatpush1.bf16.msra.mxu0 0
        %1609 = vmatprep.subr.bf16.mxu0 0
        %1610 = vmatpush1.bf16.msra.mxu0 0
        %1611 = vmatprep.subr.bf16.mxu0 0
        %1612 = vmatpush1.bf16.msra.mxu0 0
        %1613 = vmatprep.subr.bf16.mxu0 0
        %1614 = vmatpush1.bf16.msra.mxu0 0
        %1615 = vmatprep.subr.bf16.mxu0 0
        %1616 = vmatpush1.bf16.msra.mxu0 0
        %1617 = vmatprep.mubr.bf16.mxu0 0
        %1618 = vmatmul.mubr.bf16.gmra.mrb[0].mxu0 %v1579
        %v1619 = vpop.f32.mrb[0].mxu0
        %v1620 = vadd.f32 0.0, %v1619
        %v1621 = vpop.f32.mrb[0].mxu0
        %v1622 = vpop.f32.mrb[0].mxu0
        %v1623 = vpop.f32.mrb[0].mxu0
        %1624 = vdwg.mxu0
        %v1626 = vsel %vm1529, %v1575, 0
        %v1629 = vsel %vm1581, %v1335, 0
        %1631 = vmatprep.subr.bf16.mxu0 0
        %1632 = vmatpush1.bf16.msra.mxu0 %v1629
        %1633 = vmatprep.subr.bf16.mxu0 0
        %1634 = vmatpush1.bf16.msra.mxu0 0
        %1635 = vmatprep.subr.bf16.mxu0 0
        %1636 = vmatpush1.bf16.msra.mxu0 0
        %1637 = vmatprep.subr.bf16.mxu0 0
        %1638 = vmatpush1.bf16.msra.mxu0 0
        %1639 = vmatprep.subr.bf16.mxu0 0
        %1640 = vmatpush1.bf16.msra.mxu0 0
        %1641 = vmatprep.subr.bf16.mxu0 0
        %1642 = vmatpush1.bf16.msra.mxu0 0
        %1643 = vmatprep.subr.bf16.mxu0 0
        %1644 = vmatpush1.bf16.msra.mxu0 0
        %1645 = vmatprep.subr.bf16.mxu0 0
        %1646 = vmatpush1.bf16.msra.mxu0 0
        %1647 = vmatprep.subr.bf16.mxu0 0
        %1648 = vmatpush1.bf16.msra.mxu0 0
        %1649 = vmatprep.subr.bf16.mxu0 0
        %1650 = vmatpush1.bf16.msra.mxu0 0
        %1651 = vmatprep.subr.bf16.mxu0 0
        %1652 = vmatpush1.bf16.msra.mxu0 0
        %1653 = vmatprep.subr.bf16.mxu0 0
        %1654 = vmatpush1.bf16.msra.mxu0 0
        %1655 = vmatprep.subr.bf16.mxu0 0
        %1656 = vmatpush1.bf16.msra.mxu0 0
        %1657 = vmatprep.subr.bf16.mxu0 0
        %1658 = vmatpush1.bf16.msra.mxu0 0
        %1659 = vmatprep.subr.bf16.mxu0 0
        %1660 = vmatpush1.bf16.msra.mxu0 0
        %1661 = vmatprep.subr.bf16.mxu0 0
        %1662 = vmatpush1.bf16.msra.mxu0 0
        %1663 = vmatprep.mubr.bf16.mxu0 0
        %1664 = vmatmul.mubr.bf16.gmra.mrb[0].mxu0 %v1626
        %v1665 = vpop.f32.mrb[0].mxu0
        %v1666 = vadd.f32 0.0, %v1665
        %v1667 = vpop.f32.mrb[0].mxu0
        %v1668 = vpop.f32.mrb[0].mxu0
        %v1669 = vpop.f32.mrb[0].mxu0
        %1670 = vdwg.mxu0
        %v1672 = vsel %vm1529, %v1576, 0
        %v1675 = vsel %vm1581, %v1336, 0
        %1677 = vmatprep.subr.bf16.mxu0 0
        %1678 = vmatpush1.bf16.msra.mxu0 %v1675
        %1679 = vmatprep.subr.bf16.mxu0 0
        %1680 = vmatpush1.bf16.msra.mxu0 0
        %1681 = vmatprep.subr.bf16.mxu0 0
        %1682 = vmatpush1.bf16.msra.mxu0 0
        %1683 = vmatprep.subr.bf16.mxu0 0
        %1684 = vmatpush1.bf16.msra.mxu0 0
        %1685 = vmatprep.subr.bf16.mxu0 0
        %1686 = vmatpush1.bf16.msra.mxu0 0
        %1687 = vmatprep.subr.bf16.mxu0 0
        %1688 = vmatpush1.bf16.msra.mxu0 0
        %1689 = vmatprep.subr.bf16.mxu0 0
        %1690 = vmatpush1.bf16.msra.mxu0 0
        %1691 = vmatprep.subr.bf16.mxu0 0
        %1692 = vmatpush1.bf16.msra.mxu0 0
        %1693 = vmatprep.subr.bf16.mxu0 0
        %1694 = vmatpush1.bf16.msra.mxu0 0
        %1695 = vmatprep.subr.bf16.mxu0 0
        %1696 = vmatpush1.bf16.msra.mxu0 0
        %1697 = vmatprep.subr.bf16.mxu0 0
        %1698 = vmatpush1.bf16.msra.mxu0 0
        %1699 = vmatprep.subr.bf16.mxu0 0
        %1700 = vmatpush1.bf16.msra.mxu0 0
        %1701 = vmatprep.subr.bf16.mxu0 0
        %1702 = vmatpush1.bf16.msra.mxu0 0
        %1703 = vmatprep.subr.bf16.mxu0 0
        %1704 = vmatpush1.bf16.msra.mxu0 0
        %1705 = vmatprep.subr.bf16.mxu0 0
        %1706 = vmatpush1.bf16.msra.mxu0 0
        %1707 = vmatprep.subr.bf16.mxu0 0
        %1708 = vmatpush1.bf16.msra.mxu0 0
        %1709 = vmatprep.mubr.bf16.mxu0 0
        %1710 = vmatmul.mubr.bf16.gmra.mrb[0].mxu0 %v1672
        %v1711 = vpop.f32.mrb[0].mxu0
        %v1712 = vadd.f32 0.0, %v1711
        %v1713 = vpop.f32.mrb[0].mxu0
        %v1714 = vpop.f32.mrb[0].mxu0
        %v1715 = vpop.f32.mrb[0].mxu0
        %1716 = vdwg.mxu0
        %v1718 = vsel %vm1529, %v1577, 0
        %v1721 = vsel %vm1581, %v1337, 0
        %1723 = vmatprep.subr.bf16.mxu0 0
        %1724 = vmatpush1.bf16.msra.mxu0 %v1721
        %1725 = vmatprep.subr.bf16.mxu0 0
        %1726 = vmatpush1.bf16.msra.mxu0 0
        %1727 = vmatprep.subr.bf16.mxu0 0
        %1728 = vmatpush1.bf16.msra.mxu0 0
        %1729 = vmatprep.subr.bf16.mxu0 0
        %1730 = vmatpush1.bf16.msra.mxu0 0
        %1731 = vmatprep.subr.bf16.mxu0 0
        %1732 = vmatpush1.bf16.msra.mxu0 0
        %1733 = vmatprep.subr.bf16.mxu0 0
        %1734 = vmatpush1.bf16.msra.mxu0 0
        %1735 = vmatprep.subr.bf16.mxu0 0
        %1736 = vmatpush1.bf16.msra.mxu0 0
        %1737 = vmatprep.subr.bf16.mxu0 0
        %1738 = vmatpush1.bf16.msra.mxu0 0
        %1739 = vmatprep.subr.bf16.mxu0 0
        %1740 = vmatpush1.bf16.msra.mxu0 0
        %1741 = vmatprep.subr.bf16.mxu0 0
        %1742 = vmatpush1.bf16.msra.mxu0 0
        %1743 = vmatprep.subr.bf16.mxu0 0
        %1744 = vmatpush1.bf16.msra.mxu0 0
        %1745 = vmatprep.subr.bf16.mxu0 0
        %1746 = vmatpush1.bf16.msra.mxu0 0
        %1747 = vmatprep.subr.bf16.mxu0 0
        %1748 = vmatpush1.bf16.msra.mxu0 0
        %1749 = vmatprep.subr.bf16.mxu0 0
        %1750 = vmatpush1.bf16.msra.mxu0 0
        %1751 = vmatprep.subr.bf16.mxu0 0
        %1752 = vmatpush1.bf16.msra.mxu0 0
        %1753 = vmatprep.subr.bf16.mxu0 0
        %1754 = vmatpush1.bf16.msra.mxu0 0
        %1755 = vmatprep.mubr.bf16.mxu0 0
        %1756 = vmatmul.mubr.bf16.gmra.mrb[0].mxu0 %v1718
        %v1757 = vpop.f32.mrb[0].mxu0
        %v1758 = vadd.f32 0.0, %v1757
        %v1759 = vpop.f32.mrb[0].mxu0
        %v1760 = vpop.f32.mrb[0].mxu0
        %v1761 = vpop.f32.mrb[0].mxu0
        %1762 = vdwg.mxu0
        %v1763 = vpack.c.bf16 %v1666, %v1620
        %v1764 = vpack.c.bf16 %v1758, %v1712
        %v1765 = vld [vmem:[#allocation17] sm:$0xf]
        %v1766 = vld [vmem:[#allocation17 + $0x4] sm:$0xf]
        %v1767 = vld [vmem:[#allocation17 + $0x8] sm:$0xf]
        %v1768 = vld [vmem:[#allocation17 + $0xc] sm:$0xf]
        %v1769 = vld [vmem:[#allocation17 + $0x10] sm:$0xf]
        %v1770 = vld [vmem:[#allocation17 + $0x14] sm:$0xf]
        %v1771 = vld [vmem:[#allocation17 + $0x18] sm:$0xf]
        %v1772 = vld [vmem:[#allocation17 + $0x1c] sm:$0xf]
        %1773 = vrot.lane.b32.xlu0 %v1314, 64
        %v1774 = vpop.permute.xlu0 %1773
        %1775 = vrot.lane.b32.xlu0 %v1324, 64
        %v1776 = vpop.permute.xlu0 %1775
        %v1778 = vsel %vm1338, %v1774, 0
        %v1781 = vsel %vm1338, %v1776, 0
        %1783 = vmatprep.subr.bf16.mxu0 0
        %1784 = vmatpush1.bf16.xpose.msra.mxu0 %v1781
        %1785 = vmatprep.subr.bf16.mxu0 0
        %1786 = vmatpush1.bf16.xpose.msra.mxu0 0
        %1787 = vmatprep.subr.bf16.mxu0 0
        %1788 = vmatpush1.bf16.xpose.msra.mxu0 0
        %1789 = vmatprep.subr.bf16.mxu0 0
        %1790 = vmatpush1.bf16.xpose.msra.mxu0 0
        %1791 = vmatprep.subr.bf16.mxu0 0
        %1792 = vmatpush1.bf16.xpose.msra.mxu0 0
        %1793 = vmatprep.subr.bf16.mxu0 0
        %1794 = vmatpush1.bf16.xpose.msra.mxu0 0
        %1795 = vmatprep.subr.bf16.mxu0 0
        %1796 = vmatpush1.bf16.xpose.msra.mxu0 0
        %1797 = vmatprep.subr.bf16.mxu0 0
        %1798 = vmatpush1.bf16.xpose.msra.mxu0 0
        %1799 = vmatprep.subr.bf16.mxu0 0
        %1800 = vmatpush1.bf16.xpose.msra.mxu0 0
        %1801 = vmatprep.subr.bf16.mxu0 0
        %1802 = vmatpush1.bf16.xpose.msra.mxu0 0
        %1803 = vmatprep.subr.bf16.mxu0 0
        %1804 = vmatpush1.bf16.xpose.msra.mxu0 0
        %1805 = vmatprep.subr.bf16.mxu0 0
        %1806 = vmatpush1.bf16.xpose.msra.mxu0 0
        %1807 = vmatprep.subr.bf16.mxu0 0
        %1808 = vmatpush1.bf16.xpose.msra.mxu0 0
        %1809 = vmatprep.subr.bf16.mxu0 0
        %1810 = vmatpush1.bf16.xpose.msra.mxu0 0
        %1811 = vmatprep.subr.bf16.mxu0 0
        %1812 = vmatpush1.bf16.xpose.msra.mxu0 0
        %1813 = vmatprep.subr.bf16.mxu0 0
        %1814 = vmatpush1.bf16.xpose.msra.mxu0 0
        %1815 = vmatprep.mubr.bf16.mxu0 0
        %1816 = vmatmul.mubr.bf16.gmra.mrb[0].mxu0 %v1778
        %v1817 = vpop.f32.mrb[0].mxu0
        %v1818 = vadd.f32 0.0, %v1817
        %v1819 = vpop.f32.mrb[0].mxu0
        %v1820 = vpop.f32.mrb[0].mxu0
        %v1821 = vpop.f32.mrb[0].mxu0
        %1822 = vdwg.mxu0
        %1823 = vrot.lane.b32.xlu0 %v1315, 64
        %v1824 = vpop.permute.xlu0 %1823
        %1825 = vrot.lane.b32.xlu0 %v1325, 64
        %v1826 = vpop.permute.xlu0 %1825
        %v1828 = vsel %vm1338, %v1824, 0
        %v1831 = vsel %vm1338, %v1826, 0
        %1833 = vmatprep.subr.bf16.mxu0 0
        %1834 = vmatpush1.bf16.xpose.msra.mxu0 %v1831
        %1835 = vmatprep.subr.bf16.mxu0 0
        %1836 = vmatpush1.bf16.xpose.msra.mxu0 0
        %1837 = vmatprep.subr.bf16.mxu0 0
        %1838 = vmatpush1.bf16.xpose.msra.mxu0 0
        %1839 = vmatprep.subr.bf16.mxu0 0
        %1840 = vmatpush1.bf16.xpose.msra.mxu0 0
        %1841 = vmatprep.subr.bf16.mxu0 0
        %1842 = vmatpush1.bf16.xpose.msra.mxu0 0
        %1843 = vmatprep.subr.bf16.mxu0 0
        %1844 = vmatpush1.bf16.xpose.msra.mxu0 0
        %1845 = vmatprep.subr.bf16.mxu0 0
        %1846 = vmatpush1.bf16.xpose.msra.mxu0 0
        %1847 = vmatprep.subr.bf16.mxu0 0
        %1848 = vmatpush1.bf16.xpose.msra.mxu0 0
        %1849 = vmatprep.subr.bf16.mxu0 0
        %1850 = vmatpush1.bf16.xpose.msra.mxu0 0
        %1851 = vmatprep.subr.bf16.mxu0 0
        %1852 = vmatpush1.bf16.xpose.msra.mxu0 0
        %1853 = vmatprep.subr.bf16.mxu0 0
        %1854 = vmatpush1.bf16.xpose.msra.mxu0 0
        %1855 = vmatprep.subr.bf16.mxu0 0
        %1856 = vmatpush1.bf16.xpose.msra.mxu0 0
        %1857 = vmatprep.subr.bf16.mxu0 0
        %1858 = vmatpush1.bf16.xpose.msra.mxu0 0
        %1859 = vmatprep.subr.bf16.mxu0 0
        %1860 = vmatpush1.bf16.xpose.msra.mxu0 0
        %1861 = vmatprep.subr.bf16.mxu0 0
        %1862 = vmatpush1.bf16.xpose.msra.mxu0 0
        %1863 = vmatprep.subr.bf16.mxu0 0
        %1864 = vmatpush1.bf16.xpose.msra.mxu0 0
        %1865 = vmatprep.mubr.bf16.mxu0 0
        %1866 = vmatmul.mubr.bf16.gmra.mrb[0].mxu0 %v1828
        %v1867 = vpop.f32.mrb[0].mxu0
        %v1868 = vadd.f32 0.0, %v1867
        %v1869 = vpop.f32.mrb[0].mxu0
        %v1870 = vpop.f32.mrb[0].mxu0
        %v1871 = vpop.f32.mrb[0].mxu0
        %1872 = vdwg.mxu0
        %1873 = vrot.lane.b32.xlu0 %v1316, 64
        %v1874 = vpop.permute.xlu0 %1873
        %1875 = vrot.lane.b32.xlu0 %v1326, 64
        %v1876 = vpop.permute.xlu0 %1875
        %v1878 = vsel %vm1338, %v1874, 0
        %v1881 = vsel %vm1338, %v1876, 0
        %1883 = vmatprep.subr.bf16.mxu0 0
        %1884 = vmatpush1.bf16.xpose.msra.mxu0 %v1881
        %1885 = vmatprep.subr.bf16.mxu0 0
        %1886 = vmatpush1.bf16.xpose.msra.mxu0 0
        %1887 = vmatprep.subr.bf16.mxu0 0
        %1888 = vmatpush1.bf16.xpose.msra.mxu0 0
        %1889 = vmatprep.subr.bf16.mxu0 0
        %1890 = vmatpush1.bf16.xpose.msra.mxu0 0
        %1891 = vmatprep.subr.bf16.mxu0 0
        %1892 = vmatpush1.bf16.xpose.msra.mxu0 0
        %1893 = vmatprep.subr.bf16.mxu0 0
        %1894 = vmatpush1.bf16.xpose.msra.mxu0 0
        %1895 = vmatprep.subr.bf16.mxu0 0
        %1896 = vmatpush1.bf16.xpose.msra.mxu0 0
        %1897 = vmatprep.subr.bf16.mxu0 0
        %1898 = vmatpush1.bf16.xpose.msra.mxu0 0
        %1899 = vmatprep.subr.bf16.mxu0 0
        %1900 = vmatpush1.bf16.xpose.msra.mxu0 0
        %1901 = vmatprep.subr.bf16.mxu0 0
        %1902 = vmatpush1.bf16.xpose.msra.mxu0 0
        %1903 = vmatprep.subr.bf16.mxu0 0
        %1904 = vmatpush1.bf16.xpose.msra.mxu0 0
        %1905 = vmatprep.subr.bf16.mxu0 0
        %1906 = vmatpush1.bf16.xpose.msra.mxu0 0
        %1907 = vmatprep.subr.bf16.mxu0 0
        %1908 = vmatpush1.bf16.xpose.msra.mxu0 0
        %1909 = vmatprep.subr.bf16.mxu0 0
        %1910 = vmatpush1.bf16.xpose.msra.mxu0 0
        %1911 = vmatprep.subr.bf16.mxu0 0
        %1912 = vmatpush1.bf16.xpose.msra.mxu0 0
        %1913 = vmatprep.subr.bf16.mxu0 0
        %1914 = vmatpush1.bf16.xpose.msra.mxu0 0
        %1915 = vmatprep.mubr.bf16.mxu0 0
        %1916 = vmatmul.mubr.bf16.gmra.mrb[0].mxu0 %v1878
        %v1917 = vpop.f32.mrb[0].mxu0
        %v1918 = vadd.f32 0.0, %v1917
        %v1919 = vpop.f32.mrb[0].mxu0
        %v1920 = vpop.f32.mrb[0].mxu0
        %v1921 = vpop.f32.mrb[0].mxu0
        %1922 = vdwg.mxu0
        %1923 = vrot.lane.b32.xlu0 %v1317, 64
        %v1924 = vpop.permute.xlu0 %1923
        %1925 = vrot.lane.b32.xlu0 %v1327, 64
        %v1926 = vpop.permute.xlu0 %1925
        %v1928 = vsel %vm1338, %v1924, 0
        %v1931 = vsel %vm1338, %v1926, 0
        %1933 = vmatprep.subr.bf16.mxu0 0
        %1934 = vmatpush1.bf16.xpose.msra.mxu0 %v1931
        %1935 = vmatprep.subr.bf16.mxu0 0
        %1936 = vmatpush1.bf16.xpose.msra.mxu0 0
        %1937 = vmatprep.subr.bf16.mxu0 0
        %1938 = vmatpush1.bf16.xpose.msra.mxu0 0
        %1939 = vmatprep.subr.bf16.mxu0 0
        %1940 = vmatpush1.bf16.xpose.msra.mxu0 0
        %1941 = vmatprep.subr.bf16.mxu0 0
        %1942 = vmatpush1.bf16.xpose.msra.mxu0 0
        %1943 = vmatprep.subr.bf16.mxu0 0
        %1944 = vmatpush1.bf16.xpose.msra.mxu0 0
        %1945 = vmatprep.subr.bf16.mxu0 0
        %1946 = vmatpush1.bf16.xpose.msra.mxu0 0
        %1947 = vmatprep.subr.bf16.mxu0 0
        %1948 = vmatpush1.bf16.xpose.msra.mxu0 0
        %1949 = vmatprep.subr.bf16.mxu0 0
        %1950 = vmatpush1.bf16.xpose.msra.mxu0 0
        %1951 = vmatprep.subr.bf16.mxu0 0
        %1952 = vmatpush1.bf16.xpose.msra.mxu0 0
        %1953 = vmatprep.subr.bf16.mxu0 0
        %1954 = vmatpush1.bf16.xpose.msra.mxu0 0
        %1955 = vmatprep.subr.bf16.mxu0 0
        %1956 = vmatpush1.bf16.xpose.msra.mxu0 0
        %1957 = vmatprep.subr.bf16.mxu0 0
        %1958 = vmatpush1.bf16.xpose.msra.mxu0 0
        %1959 = vmatprep.subr.bf16.mxu0 0
        %1960 = vmatpush1.bf16.xpose.msra.mxu0 0
        %1961 = vmatprep.subr.bf16.mxu0 0
        %1962 = vmatpush1.bf16.xpose.msra.mxu0 0
        %1963 = vmatprep.subr.bf16.mxu0 0
        %1964 = vmatpush1.bf16.xpose.msra.mxu0 0
        %1965 = vmatprep.mubr.bf16.mxu0 0
        %1966 = vmatmul.mubr.bf16.gmra.mrb[0].mxu0 %v1928
        %v1967 = vpop.f32.mrb[0].mxu0
        %v1968 = vadd.f32 0.0, %v1967
        %v1969 = vpop.f32.mrb[0].mxu0
        %v1970 = vpop.f32.mrb[0].mxu0
        %v1971 = vpop.f32.mrb[0].mxu0
        %1972 = vdwg.mxu0
        %v1973 = vsel %vm1524, %v1818, -1e+32
        %v1974 = vsel %vm1524, %v1868, -1e+32
        %v1975 = vsel %vm1524, %v1918, -1e+32
        %v1976 = vsel %vm1524, %v1968, -1e+32
        %v1977 = vsel %vm1529, %v1973, -inf
        %1978 = vmax.xlane.f32.xlu0 %v1977
        %v1979 = vpop.xlane.xlu0 %1978
        %v1980 = vsel %vm1529, %v1974, -inf
        %1981 = vmax.xlane.f32.xlu0 %v1980
        %v1982 = vpop.xlane.xlu0 %1981
        %v1983 = vsel %vm1529, %v1975, -inf
        %1984 = vmax.xlane.f32.xlu0 %v1983
        %v1985 = vpop.xlane.xlu0 %1984
        %v1986 = vsel %vm1529, %v1976, -inf
        %1987 = vmax.xlane.f32.xlu0 %v1986
        %v1988 = vpop.xlane.xlu0 %1987
        %v1989 = vsub.f32 %v1973, %v1979
        %v1990 = vsub.f32 %v1974, %v1982
        %v1991 = vsub.f32 %v1975, %v1985
        %v1992 = vsub.f32 %v1976, %v1988
        %v1993 = vmul.f32 %v1989, 1.442695
        %v1994 = vpow.pop %v1993
        %v1995 = vmul.f32 %v1990, 1.442695
        %v1996 = vpow.pop %v1995
        %v1997 = vmul.f32 %v1991, 1.442695
        %v1998 = vpow.pop %v1997
        %v1999 = vmul.f32 %v1992, 1.442695
        %v2000 = vpow.pop %v1999
        %v2001 = vsel %vm1529, %v1994, 0.0
        %2002 = vadd.xlane.f32.xlu0 %v2001
        %v2003 = vpop.xlane.xlu0 %2002
        %v2004 = vsel %vm1529, %v1996, 0.0
        %2005 = vadd.xlane.f32.xlu0 %v2004
        %v2006 = vpop.xlane.xlu0 %2005
        %v2007 = vsel %vm1529, %v1998, 0.0
        %2008 = vadd.xlane.f32.xlu0 %v2007
        %v2009 = vpop.xlane.xlu0 %2008
        %v2010 = vsel %vm1529, %v2000, 0.0
        %2011 = vadd.xlane.f32.xlu0 %v2010
        %v2012 = vpop.xlane.xlu0 %2011
        %v2013 = vrcp.pop %v2003
        %v2014 = vrcp.pop %v2006
        %v2015 = vrcp.pop %v2009
        %v2016 = vrcp.pop %v2012
        %v2017 = vmul.f32 %v1994, %v2013
        %v2018 = vmul.f32 %v1996, %v2014
        %v2019 = vmul.f32 %v1998, %v2015
        %v2020 = vmul.f32 %v2000, %v2016
        %v2021 = vpack.c.bf16 %v2017, %v2017
        %v2022 = vpack.c.bf16 %v2018, %v2018
        %v2023 = vpack.c.bf16 %v2019, %v2019
        %v2024 = vpack.c.bf16 %v2020, %v2020
        %2025 = vrot.lane.b32.xlu0 %v1334, 64
        %v2026 = vpop.permute.xlu0 %2025
        %v2028 = vsel %vm1529, %v2021, 0
        %v2031 = vsel %vm1581, %v2026, 0
        %2033 = vmatprep.subr.bf16.mxu0 0
        %2034 = vmatpush1.bf16.msra.mxu0 %v2031
        %2035 = vmatprep.subr.bf16.mxu0 0
        %2036 = vmatpush1.bf16.msra.mxu0 0
        %2037 = vmatprep.subr.bf16.mxu0 0
        %2038 = vmatpush1.bf16.msra.mxu0 0
        %2039 = vmatprep.subr.bf16.mxu0 0
        %2040 = vmatpush1.bf16.msra.mxu0 0
        %2041 = vmatprep.subr.bf16.mxu0 0
        %2042 = vmatpush1.bf16.msra.mxu0 0
        %2043 = vmatprep.subr.bf16.mxu0 0
        %2044 = vmatpush1.bf16.msra.mxu0 0
        %2045 = vmatprep.subr.bf16.mxu0 0
        %2046 = vmatpush1.bf16.msra.mxu0 0
        %2047 = vmatprep.subr.bf16.mxu0 0
        %2048 = vmatpush1.bf16.msra.mxu0 0
        %2049 = vmatprep.subr.bf16.mxu0 0
        %2050 = vmatpush1.bf16.msra.mxu0 0
        %2051 = vmatprep.subr.bf16.mxu0 0
        %2052 = vmatpush1.bf16.msra.mxu0 0
        %2053 = vmatprep.subr.bf16.mxu0 0
        %2054 = vmatpush1.bf16.msra.mxu0 0
        %2055 = vmatprep.subr.bf16.mxu0 0
        %2056 = vmatpush1.bf16.msra.mxu0 0
        %2057 = vmatprep.subr.bf16.mxu0 0
        %2058 = vmatpush1.bf16.msra.mxu0 0
        %2059 = vmatprep.subr.bf16.mxu0 0
        %2060 = vmatpush1.bf16.msra.mxu0 0
        %2061 = vmatprep.subr.bf16.mxu0 0
        %2062 = vmatpush1.bf16.msra.mxu0 0
        %2063 = vmatprep.subr.bf16.mxu0 0
        %2064 = vmatpush1.bf16.msra.mxu0 0
        %2065 = vmatprep.mubr.bf16.mxu0 0
        %2066 = vmatmul.mubr.bf16.gmra.mrb[0].mxu0 %v2028
        %v2067 = vpop.f32.mrb[0].mxu0
        %v2068 = vadd.f32 0.0, %v2067
        %v2069 = vpop.f32.mrb[0].mxu0
        %v2070 = vpop.f32.mrb[0].mxu0
        %v2071 = vpop.f32.mrb[0].mxu0
        %2072 = vdwg.mxu0
        %2073 = vrot.lane.b32.xlu0 %v1335, 64
        %v2074 = vpop.permute.xlu0 %2073
        %v2076 = vsel %vm1529, %v2022, 0
        %v2079 = vsel %vm1581, %v2074, 0
        %2081 = vmatprep.subr.bf16.mxu0 0
        %2082 = vmatpush1.bf16.msra.mxu0 %v2079
        %2083 = vmatprep.subr.bf16.mxu0 0
        %2084 = vmatpush1.bf16.msra.mxu0 0
        %2085 = vmatprep.subr.bf16.mxu0 0
        %2086 = vmatpush1.bf16.msra.mxu0 0
        %2087 = vmatprep.subr.bf16.mxu0 0
        %2088 = vmatpush1.bf16.msra.mxu0 0
        %2089 = vmatprep.subr.bf16.mxu0 0
        %2090 = vmatpush1.bf16.msra.mxu0 0
        %2091 = vmatprep.subr.bf16.mxu0 0
        %2092 = vmatpush1.bf16.msra.mxu0 0
        %2093 = vmatprep.subr.bf16.mxu0 0
        %2094 = vmatpush1.bf16.msra.mxu0 0
        %2095 = vmatprep.subr.bf16.mxu0 0
        %2096 = vmatpush1.bf16.msra.mxu0 0
        %2097 = vmatprep.subr.bf16.mxu0 0
        %2098 = vmatpush1.bf16.msra.mxu0 0
        %2099 = vmatprep.subr.bf16.mxu0 0
        %2100 = vmatpush1.bf16.msra.mxu0 0
        %2101 = vmatprep.subr.bf16.mxu0 0
        %2102 = vmatpush1.bf16.msra.mxu0 0
        %2103 = vmatprep.subr.bf16.mxu0 0
        %2104 = vmatpush1.bf16.msra.mxu0 0
        %2105 = vmatprep.subr.bf16.mxu0 0
        %2106 = vmatpush1.bf16.msra.mxu0 0
        %2107 = vmatprep.subr.bf16.mxu0 0
        %2108 = vmatpush1.bf16.msra.mxu0 0
        %2109 = vmatprep.subr.bf16.mxu0 0
        %2110 = vmatpush1.bf16.msra.mxu0 0
        %2111 = vmatprep.subr.bf16.mxu0 0
        %2112 = vmatpush1.bf16.msra.mxu0 0
        %2113 = vmatprep.mubr.bf16.mxu0 0
        %2114 = vmatmul.mubr.bf16.gmra.mrb[0].mxu0 %v2076
        %v2115 = vpop.f32.mrb[0].mxu0
        %v2116 = vadd.f32 0.0, %v2115
        %v2117 = vpop.f32.mrb[0].mxu0
        %v2118 = vpop.f32.mrb[0].mxu0
        %v2119 = vpop.f32.mrb[0].mxu0
        %2120 = vdwg.mxu0
        %2121 = vrot.lane.b32.xlu0 %v1336, 64
        %v2122 = vpop.permute.xlu0 %2121
        %v2124 = vsel %vm1529, %v2023, 0
        %v2127 = vsel %vm1581, %v2122, 0
        %2129 = vmatprep.subr.bf16.mxu0 0
        %2130 = vmatpush1.bf16.msra.mxu0 %v2127
        %2131 = vmatprep.subr.bf16.mxu0 0
        %2132 = vmatpush1.bf16.msra.mxu0 0
        %2133 = vmatprep.subr.bf16.mxu0 0
        %2134 = vmatpush1.bf16.msra.mxu0 0
        %2135 = vmatprep.subr.bf16.mxu0 0
        %2136 = vmatpush1.bf16.msra.mxu0 0
        %2137 = vmatprep.subr.bf16.mxu0 0
        %2138 = vmatpush1.bf16.msra.mxu0 0
        %2139 = vmatprep.subr.bf16.mxu0 0
        %2140 = vmatpush1.bf16.msra.mxu0 0
        %2141 = vmatprep.subr.bf16.mxu0 0
        %2142 = vmatpush1.bf16.msra.mxu0 0
        %2143 = vmatprep.subr.bf16.mxu0 0
        %2144 = vmatpush1.bf16.msra.mxu0 0
        %2145 = vmatprep.subr.bf16.mxu0 0
        %2146 = vmatpush1.bf16.msra.mxu0 0
        %2147 = vmatprep.subr.bf16.mxu0 0
        %2148 = vmatpush1.bf16.msra.mxu0 0
        %2149 = vmatprep.subr.bf16.mxu0 0
        %2150 = vmatpush1.bf16.msra.mxu0 0
        %2151 = vmatprep.subr.bf16.mxu0 0
        %2152 = vmatpush1.bf16.msra.mxu0 0
        %2153 = vmatprep.subr.bf16.mxu0 0
        %2154 = vmatpush1.bf16.msra.mxu0 0
        %2155 = vmatprep.subr.bf16.mxu0 0
        %2156 = vmatpush1.bf16.msra.mxu0 0
        %2157 = vmatprep.subr.bf16.mxu0 0
        %2158 = vmatpush1.bf16.msra.mxu0 0
        %2159 = vmatprep.subr.bf16.mxu0 0
        %2160 = vmatpush1.bf16.msra.mxu0 0
        %2161 = vmatprep.mubr.bf16.mxu0 0
        %2162 = vmatmul.mubr.bf16.gmra.mrb[0].mxu0 %v2124
        %v2163 = vpop.f32.mrb[0].mxu0
        %v2164 = vadd.f32 0.0, %v2163
        %v2165 = vpop.f32.mrb[0].mxu0
        %v2166 = vpop.f32.mrb[0].mxu0
        %v2167 = vpop.f32.mrb[0].mxu0
        %2168 = vdwg.mxu0
        %2169 = vrot.lane.b32.xlu0 %v1337, 64
        %v2170 = vpop.permute.xlu0 %2169
        %v2172 = vsel %vm1529, %v2024, 0
        %v2175 = vsel %vm1581, %v2170, 0
        %2177 = vmatprep.subr.bf16.mxu0 0
        %2178 = vmatpush1.bf16.msra.mxu0 %v2175
        %2179 = vmatprep.subr.bf16.mxu0 0
        %2180 = vmatpush1.bf16.msra.mxu0 0
        %2181 = vmatprep.subr.bf16.mxu0 0
        %2182 = vmatpush1.bf16.msra.mxu0 0
        %2183 = vmatprep.subr.bf16.mxu0 0
        %2184 = vmatpush1.bf16.msra.mxu0 0
        %2185 = vmatprep.subr.bf16.mxu0 0
        %2186 = vmatpush1.bf16.msra.mxu0 0
        %2187 = vmatprep.subr.bf16.mxu0 0
        %2188 = vmatpush1.bf16.msra.mxu0 0
        %2189 = vmatprep.subr.bf16.mxu0 0
        %2190 = vmatpush1.bf16.msra.mxu0 0
        %2191 = vmatprep.subr.bf16.mxu0 0
        %2192 = vmatpush1.bf16.msra.mxu0 0
        %2193 = vmatprep.subr.bf16.mxu0 0
        %2194 = vmatpush1.bf16.msra.mxu0 0
        %2195 = vmatprep.subr.bf16.mxu0 0
        %2196 = vmatpush1.bf16.msra.mxu0 0
        %2197 = vmatprep.subr.bf16.mxu0 0
        %2198 = vmatpush1.bf16.msra.mxu0 0
        %2199 = vmatprep.subr.bf16.mxu0 0
        %2200 = vmatpush1.bf16.msra.mxu0 0
        %2201 = vmatprep.subr.bf16.mxu0 0
        %2202 = vmatpush1.bf16.msra.mxu0 0
        %2203 = vmatprep.subr.bf16.mxu0 0
        %2204 = vmatpush1.bf16.msra.mxu0 0
        %2205 = vmatprep.subr.bf16.mxu0 0
        %2206 = vmatpush1.bf16.msra.mxu0 0
        %2207 = vmatprep.subr.bf16.mxu0 0
        %2208 = vmatpush1.bf16.msra.mxu0 0
        %2209 = vmatprep.mubr.bf16.mxu0 0
        %2210 = vmatmul.mubr.bf16.gmra.mrb[0].mxu0 %v2172
        %v2211 = vpop.f32.mrb[0].mxu0
        %v2212 = vadd.f32 0.0, %v2211
        %v2213 = vpop.f32.mrb[0].mxu0
        %v2214 = vpop.f32.mrb[0].mxu0
        %v2215 = vpop.f32.mrb[0].mxu0
        %2216 = vdwg.mxu0
        %v2217 = vpack.c.bf16 %v2116, %v2068
        %v2218 = vpack.c.bf16 %v2212, %v2164
        %v2219 = vld [vmem:[#allocation17 + $0x20] sm:$0xf]
        %v2220 = vld [vmem:[#allocation17 + $0x24] sm:$0xf]
        %v2221 = vld [vmem:[#allocation17 + $0x28] sm:$0xf]
        %v2222 = vld [vmem:[#allocation17 + $0x2c] sm:$0xf]
        %v2223 = vld [vmem:[#allocation17 + $0x30] sm:$0xf]
        %v2224 = vld [vmem:[#allocation17 + $0x34] sm:$0xf]
        %v2225 = vld [vmem:[#allocation17 + $0x38] sm:$0xf]
        %v2226 = vld [vmem:[#allocation17 + $0x3c] sm:$0xf]
        %v2235 = vunpack.c.l.b16 %v2219
        %v2236 = vunpack.c.l.b16 %v2220
        %v2237 = vunpack.c.l.b16 %v2221
        %v2238 = vunpack.c.l.b16 %v2222
        %v2239 = vunpack.c.l.b16 %v2223
        %v2240 = vunpack.c.l.b16 %v2224
        %v2241 = vunpack.c.l.b16 %v2225
        %v2242 = vunpack.c.l.b16 %v2226
        %v2243 = vpack.c.b16 %v2236, %v2235
        %v2244 = vpack.c.b16 %v2238, %v2237
        %v2245 = vpack.c.b16 %v2240, %v2239
        %v2246 = vpack.c.b16 %v2242, %v2241
        %v2252 = vsel %vm1338, %v2217, 0
        %v2255 = vsel %vm1338, %v2218, 0
        %2257 = vmatprep.subr.bf16.mxu0 0
        %2258 = vmatpush1.bf16.msra.mxu0 %v2243
        %2259 = vmatprep.subr.bf16.mxu0 0
        %2260 = vmatpush1.bf16.msra.mxu0 %v2244
        %2261 = vmatprep.subr.bf16.mxu0 0
        %2262 = vmatpush1.bf16.msra.mxu0 %v2245
        %2263 = vmatprep.subr.bf16.mxu0 0
        %2264 = vmatpush1.bf16.msra.mxu0 %v2246
        %2265 = vmatprep.subr.bf16.mxu0 0
        %2266 = vmatpush1.bf16.msra.mxu0 0
        %2267 = vmatprep.subr.bf16.mxu0 0
        %2268 = vmatpush1.bf16.msra.mxu0 0
        %2269 = vmatprep.subr.bf16.mxu0 0
        %2270 = vmatpush1.bf16.msra.mxu0 0
        %2271 = vmatprep.subr.bf16.mxu0 0
        %2272 = vmatpush1.bf16.msra.mxu0 0
        %2273 = vmatprep.subr.bf16.mxu0 0
        %2274 = vmatpush1.bf16.msra.mxu0 0
        %2275 = vmatprep.subr.bf16.mxu0 0
        %2276 = vmatpush1.bf16.msra.mxu0 0
        %2277 = vmatprep.subr.bf16.mxu0 0
        %2278 = vmatpush1.bf16.msra.mxu0 0
        %2279 = vmatprep.subr.bf16.mxu0 0
        %2280 = vmatpush1.bf16.msra.mxu0 0
        %2281 = vmatprep.subr.bf16.mxu0 0
        %2282 = vmatpush1.bf16.msra.mxu0 0
        %2283 = vmatprep.subr.bf16.mxu0 0
        %2284 = vmatpush1.bf16.msra.mxu0 0
        %2285 = vmatprep.subr.bf16.mxu0 0
        %2286 = vmatpush1.bf16.msra.mxu0 0
        %2287 = vmatprep.subr.bf16.mxu0 0
        %2288 = vmatpush1.bf16.msra.mxu0 0
        %2289 = vmatprep.mubr.bf16.mxu0 0
        %2290 = vmatmul.mubr.bf16.gmra.mrb[0].mxu0 %v2252
        %v2291 = vpop.f32.mrb[0].mxu0
        %v2292 = vadd.f32 0.0, %v2291
        %v2293 = vpop.f32.mrb[0].mxu0
        %v2294 = vpop.f32.mrb[0].mxu0
        %v2295 = vadd.f32 0.0, %v2294
        %v2296 = vpop.f32.mrb[0].mxu0
        %2297 = vmatprep.mubr.bf16.mxu0 0
        %2298 = vmatmul.mubr.bf16.gmra.mrb[0].mxu0 %v2255
        %v2299 = vpop.f32.mrb[0].mxu0
        %v2300 = vadd.f32 0.0, %v2299
        %v2301 = vpop.f32.mrb[0].mxu0
        %v2302 = vpop.f32.mrb[0].mxu0
        %v2303 = vadd.f32 0.0, %v2302
        %v2304 = vpop.f32.mrb[0].mxu0
        %2305 = vdwg.mxu0
        %v2314 = vunpack.c.l.b16 %v1765
        %v2315 = vunpack.c.l.b16 %v1766
        %v2316 = vunpack.c.l.b16 %v1767
        %v2317 = vunpack.c.l.b16 %v1768
        %v2318 = vunpack.c.l.b16 %v1769
        %v2319 = vunpack.c.l.b16 %v1770
        %v2320 = vunpack.c.l.b16 %v1771
        %v2321 = vunpack.c.l.b16 %v1772
        %v2322 = vpack.c.b16 %v2315, %v2314
        %v2323 = vpack.c.b16 %v2317, %v2316
        %v2324 = vpack.c.b16 %v2319, %v2318
        %v2325 = vpack.c.b16 %v2321, %v2320
        %v2331 = vsel %vm1338, %v1763, 0
        %v2334 = vsel %vm1338, %v1764, 0
        %2336 = vmatprep.subr.bf16.mxu0 0
        %2337 = vmatpush1.bf16.msra.mxu0 %v2322
        %2338 = vmatprep.subr.bf16.mxu0 0
        %2339 = vmatpush1.bf16.msra.mxu0 %v2323
        %2340 = vmatprep.subr.bf16.mxu0 0
        %2341 = vmatpush1.bf16.msra.mxu0 %v2324
        %2342 = vmatprep.subr.bf16.mxu0 0
        %2343 = vmatpush1.bf16.msra.mxu0 %v2325
        %2344 = vmatprep.subr.bf16.mxu0 0
        %2345 = vmatpush1.bf16.msra.mxu0 0
        %2346 = vmatprep.subr.bf16.mxu0 0
        %2347 = vmatpush1.bf16.msra.mxu0 0
        %2348 = vmatprep.subr.bf16.mxu0 0
        %2349 = vmatpush1.bf16.msra.mxu0 0
        %2350 = vmatprep.subr.bf16.mxu0 0
        %2351 = vmatpush1.bf16.msra.mxu0 0
        %2352 = vmatprep.subr.bf16.mxu0 0
        %2353 = vmatpush1.bf16.msra.mxu0 0
        %2354 = vmatprep.subr.bf16.mxu0 0
        %2355 = vmatpush1.bf16.msra.mxu0 0
        %2356 = vmatprep.subr.bf16.mxu0 0
        %2357 = vmatpush1.bf16.msra.mxu0 0
        %2358 = vmatprep.subr.bf16.mxu0 0
        %2359 = vmatpush1.bf16.msra.mxu0 0
        %2360 = vmatprep.subr.bf16.mxu0 0
        %2361 = vmatpush1.bf16.msra.mxu0 0
        %2362 = vmatprep.subr.bf16.mxu0 0
        %2363 = vmatpush1.bf16.msra.mxu0 0
        %2364 = vmatprep.subr.bf16.mxu0 0
        %2365 = vmatpush1.bf16.msra.mxu0 0
        %2366 = vmatprep.subr.bf16.mxu0 0
        %2367 = vmatpush1.bf16.msra.mxu0 0
        %2368 = vmatprep.mubr.bf16.mxu0 0
        %2369 = vmatmul.mubr.bf16.gmra.mrb[0].mxu0 %v2331
        %v2370 = vpop.f32.mrb[0].mxu0
        %v2371 = vadd.f32 %v2292, %v2370
        %v2372 = vpop.f32.mrb[0].mxu0
        %v2373 = vpop.f32.mrb[0].mxu0
        %v2374 = vadd.f32 %v2295, %v2373
        %v2375 = vpop.f32.mrb[0].mxu0
        %2376 = vmatprep.mubr.bf16.mxu0 0
        %2377 = vmatmul.mubr.bf16.gmra.mrb[0].mxu0 %v2334
        %v2378 = vpop.f32.mrb[0].mxu0
        %v2379 = vadd.f32 %v2300, %v2378
        %v2380 = vpop.f32.mrb[0].mxu0
        %v2381 = vpop.f32.mrb[0].mxu0
        %v2382 = vadd.f32 %v2303, %v2381
        %v2383 = vpop.f32.mrb[0].mxu0
        %2384 = vdwg.mxu0
        %vm2385 = vcmp.eq.s32.totalorder %v1304, 0
        %v2386 = vsel %vm2385, 1, 0
        %vm2387 = vcmp.eq.s32.totalorder %v2386, 1
        %v2388 = vsel %vm2387, 0.0, %v2371
        %v2389 = vsel %vm2387, 0.0, %v2374
        %v2390 = vsel %vm2387, 0.0, %v2379
        %v2391 = vsel %vm2387, 0.0, %v2382
        %v2392 = vld [vmem:[#allocation19] sm:$0x1]
        %v2394 = vlaneseq
        %v2395 = vshrl.u32 %v2394, 7
        %v2396 = vsub.s32 0, %v2395
        %v2397 = vrot.slane %v2392, %v2396
        %v2399 = vadd.f32 %v2388, %v2397
        %v2400 = vadd.f32 %v2389, %v2397
        %v2401 = vadd.f32 %v2390, %v2397
        %v2402 = vadd.f32 %v2391, %v2397
        %v2403 = vadd.f32 %v915, %v2399
        %v2404 = vadd.f32 %v916, %v2400
        %v2405 = vadd.f32 %v917, %v2401
        %v2406 = vadd.f32 %v918, %v2402
        %v2407 = vld [vmem:[#allocation20] sm:$0x1]
        %v2408 = vld [vmem:[#allocation22] sm:$0x1]
        %2409 = vadd.xlane.f32.xlu0 %v2403
        %v2410 = vpop.xlane.xlu0 %2409
        %2411 = vadd.xlane.f32.xlu0 %v2404
        %v2412 = vpop.xlane.xlu0 %2411
        %2413 = vadd.xlane.f32.xlu0 %v2405
        %v2414 = vpop.xlane.xlu0 %2413
        %2415 = vadd.xlane.f32.xlu0 %v2406
        %v2416 = vpop.xlane.xlu0 %2415
        %v2417 = vrcp.pop 128.0
        %v2418 = vmul.f32 %v2410, %v2417
        %v2419 = vmul.f32 %v2412, %v2417
        %v2420 = vmul.f32 %v2414, %v2417
        %v2421 = vmul.f32 %v2416, %v2417
        %v2422 = vsub.f32 %v2403, %v2418
        %v2423 = vsub.f32 %v2404, %v2419
        %v2424 = vsub.f32 %v2405, %v2420
        %v2425 = vsub.f32 %v2406, %v2421
        %v2426 = vmul.f32 %v2422, %v2422
        %v2427 = vmul.f32 %v2423, %v2423
        %v2428 = vmul.f32 %v2424, %v2424
        %v2429 = vmul.f32 %v2425, %v2425
        %2430 = vadd.xlane.f32.xlu0 %v2426
        %v2431 = vpop.xlane.xlu0 %2430
        %2432 = vadd.xlane.f32.xlu0 %v2427
        %v2433 = vpop.xlane.xlu0 %2432
        %2434 = vadd.xlane.f32.xlu0 %v2428
        %v2435 = vpop.xlane.xlu0 %2434
        %2436 = vadd.xlane.f32.xlu0 %v2429
        %v2437 = vpop.xlane.xlu0 %2436
        %v2438 = vmul.f32 %v2431, %v2417
        %v2439 = vmul.f32 %v2433, %v2417
        %v2440 = vmul.f32 %v2435, %v2417
        %v2441 = vmul.f32 %v2437, %v2417
        %v2442 = vadd.f32 %v2438, 1e-05
        %v2443 = vadd.f32 %v2439, 1e-05
        %v2444 = vadd.f32 %v2440, 1e-05
        %v2445 = vadd.f32 %v2441, 1e-05
        %v2446 = vrsqrt.pop %v2442
        %v2447 = vrsqrt.pop %v2443
        %v2448 = vrsqrt.pop %v2444
        %v2449 = vrsqrt.pop %v2445
        %v2450 = vmul.f32 %v2422, %v2446
        %v2451 = vmul.f32 %v2423, %v2447
        %v2452 = vmul.f32 %v2424, %v2448
        %v2453 = vmul.f32 %v2425, %v2449
        %v2455 = vlaneseq
        %v2456 = vshrl.u32 %v2455, 7
        %v2457 = vsub.s32 0, %v2456
        %v2458 = vrot.slane %v2407, %v2457
        %v2460 = vmul.f32 %v2450, %v2458
        %v2461 = vmul.f32 %v2451, %v2458
        %v2462 = vmul.f32 %v2452, %v2458
        %v2463 = vmul.f32 %v2453, %v2458
        %v2465 = vlaneseq
        %v2466 = vshrl.u32 %v2465, 7
        %v2467 = vsub.s32 0, %v2466
        %v2468 = vrot.slane %v2408, %v2467
        %v2470 = vadd.f32 %v2460, %v2468
        %v2471 = vadd.f32 %v2461, %v2468
        %v2472 = vadd.f32 %v2462, %v2468
        %v2473 = vadd.f32 %v2463, %v2468
        %v2474 = vpack.c.bf16 %v2471, %v2470
        %v2475 = vpack.c.bf16 %v2473, %v2472
        %v2476 = vld [vmem:[#allocation23] sm:$0xff]
        %v2477 = vld [vmem:[#allocation23 + $0x8] sm:$0xff]
        %v2478 = vld [vmem:[#allocation23 + $0x10] sm:$0xff]
        %v2479 = vld [vmem:[#allocation23 + $0x18] sm:$0xff]
        %v2480 = vld [vmem:[#allocation23 + $0x20] sm:$0xff]
        %v2481 = vld [vmem:[#allocation23 + $0x28] sm:$0xff]
        %v2482 = vld [vmem:[#allocation23 + $0x30] sm:$0xff]
        %v2483 = vld [vmem:[#allocation23 + $0x38] sm:$0xff]
        %v2484 = vld [vmem:[#allocation23 + $0x40] sm:$0xff]
        %v2485 = vld [vmem:[#allocation23 + $0x48] sm:$0xff]
        %v2486 = vld [vmem:[#allocation23 + $0x50] sm:$0xff]
        %v2487 = vld [vmem:[#allocation23 + $0x58] sm:$0xff]
        %v2488 = vld [vmem:[#allocation23 + $0x60] sm:$0xff]
        %v2489 = vld [vmem:[#allocation23 + $0x68] sm:$0xff]
        %v2490 = vld [vmem:[#allocation23 + $0x70] sm:$0xff]
        %v2491 = vld [vmem:[#allocation23 + $0x78] sm:$0xff]
        %v2492 = vld [vmem:[#allocation25] sm:$0x3]
        %v2494 = vlaneseq
        %v2495 = vshrl.u32 %v2494, 7
        %v2496 = vsub.s32 0, %v2495
        %v2497 = vrot.slane %v2492, %v2496
        %v2498 = vlaneseq
        %v2499 = vshrl.u32 %v2498, 7
        %v2500 = vsub.s32 1, %v2499
        %v2501 = vrot.slane %v2492, %v2500
        %v2520 = vunpack.c.l.b16 %v2476
        %v2521 = vunpack.c.h.b16 %v2476
        %v2522 = vunpack.c.l.b16 %v2477
        %v2523 = vunpack.c.h.b16 %v2477
        %v2524 = vunpack.c.l.b16 %v2478
        %v2525 = vunpack.c.h.b16 %v2478
        %v2526 = vunpack.c.l.b16 %v2479
        %v2527 = vunpack.c.h.b16 %v2479
        %v2528 = vunpack.c.l.b16 %v2480
        %v2529 = vunpack.c.h.b16 %v2480
        %v2530 = vunpack.c.l.b16 %v2481
        %v2531 = vunpack.c.h.b16 %v2481
        %v2532 = vunpack.c.l.b16 %v2482
        %v2533 = vunpack.c.h.b16 %v2482
        %v2534 = vunpack.c.l.b16 %v2483
        %v2535 = vunpack.c.h.b16 %v2483
        %v2536 = vunpack.c.l.b16 %v2484
        %v2537 = vunpack.c.h.b16 %v2484
        %v2538 = vunpack.c.l.b16 %v2485
        %v2539 = vunpack.c.h.b16 %v2485
        %v2540 = vunpack.c.l.b16 %v2486
        %v2541 = vunpack.c.h.b16 %v2486
        %v2542 = vunpack.c.l.b16 %v2487
        %v2543 = vunpack.c.h.b16 %v2487
        %v2544 = vunpack.c.l.b16 %v2488
        %v2545 = vunpack.c.h.b16 %v2488
        %v2546 = vunpack.c.l.b16 %v2489
        %v2547 = vunpack.c.h.b16 %v2489
        %v2548 = vunpack.c.l.b16 %v2490
        %v2549 = vunpack.c.h.b16 %v2490
        %v2550 = vunpack.c.l.b16 %v2491
        %v2551 = vunpack.c.h.b16 %v2491
        %v2552 = vpack.c.b16 %v2522, %v2520
        %v2553 = vpack.c.b16 %v2523, %v2521
        %v2554 = vpack.c.b16 %v2526, %v2524
        %v2555 = vpack.c.b16 %v2527, %v2525
        %v2556 = vpack.c.b16 %v2530, %v2528
        %v2557 = vpack.c.b16 %v2531, %v2529
        %v2558 = vpack.c.b16 %v2534, %v2532
        %v2559 = vpack.c.b16 %v2535, %v2533
        %v2560 = vpack.c.b16 %v2538, %v2536
        %v2561 = vpack.c.b16 %v2539, %v2537
        %v2562 = vpack.c.b16 %v2542, %v2540
        %v2563 = vpack.c.b16 %v2543, %v2541
        %v2564 = vpack.c.b16 %v2546, %v2544
        %v2565 = vpack.c.b16 %v2547, %v2545
        %v2566 = vpack.c.b16 %v2550, %v2548
        %v2567 = vpack.c.b16 %v2551, %v2549
        %2584 = vmatprep.subr.bf16.mxu0 %v2553
        %2585 = vmatpush1.bf16.msra.mxu0 %v2552
        %2586 = vmatprep.subr.bf16.mxu0 %v2555
        %2587 = vmatpush1.bf16.msra.mxu0 %v2554
        %2588 = vmatprep.subr.bf16.mxu0 %v2557
        %2589 = vmatpush1.bf16.msra.mxu0 %v2556
        %2590 = vmatprep.subr.bf16.mxu0 %v2559
        %2591 = vmatpush1.bf16.msra.mxu0 %v2558
        %2592 = vmatprep.subr.bf16.mxu0 %v2561
        %2593 = vmatpush1.bf16.msra.mxu0 %v2560
        %2594 = vmatprep.subr.bf16.mxu0 %v2563
        %2595 = vmatpush1.bf16.msra.mxu0 %v2562
        %2596 = vmatprep.subr.bf16.mxu0 %v2565
        %2597 = vmatpush1.bf16.msra.mxu0 %v2564
        %2598 = vmatprep.subr.bf16.mxu0 %v2567
        %2599 = vmatpush1.bf16.msra.mxu0 %v2566
        %2600 = vmatprep.subr.bf16.mxu0 0
        %2601 = vmatpush1.bf16.msra.mxu0 0
        %2602 = vmatprep.subr.bf16.mxu0 0
        %2603 = vmatpush1.bf16.msra.mxu0 0
        %2604 = vmatprep.subr.bf16.mxu0 0
        %2605 = vmatpush1.bf16.msra.mxu0 0
        %2606 = vmatprep.subr.bf16.mxu0 0
        %2607 = vmatpush1.bf16.msra.mxu0 0
        %2608 = vmatprep.subr.bf16.mxu0 0
        %2609 = vmatpush1.bf16.msra.mxu0 0
        %2610 = vmatprep.subr.bf16.mxu0 0
        %2611 = vmatpush1.bf16.msra.mxu0 0
        %2612 = vmatprep.subr.bf16.mxu0 0
        %2613 = vmatpush1.bf16.msra.mxu0 0
        %2614 = vmatprep.subr.bf16.mxu0 0
        %2615 = vmatpush1.bf16.msra.mxu0 0
        %2616 = vmatprep.mubr.bf16.mxu0 0
        %2617 = vmatmul.mubr.bf16.gmra.mrb[0].mxu0 %v2474
        %v2618 = vpop.f32.mrb[0].mxu0
        %v2619 = vadd.f32 %v2497, %v2618
        %v2620 = vpop.f32.mrb[0].mxu0
        %v2621 = vadd.f32 %v2501, %v2620
        %v2622 = vpop.f32.mrb[0].mxu0
        %v2623 = vadd.f32 %v2497, %v2622
        %v2624 = vpop.f32.mrb[0].mxu0
        %v2625 = vadd.f32 %v2501, %v2624
        %2626 = vmatprep.mubr.bf16.mxu0 0
        %2627 = vmatmul.mubr.bf16.gmra.mrb[0].mxu0 %v2475
        %v2628 = vpop.f32.mrb[0].mxu0
        %v2629 = vadd.f32 %v2497, %v2628
        %v2630 = vpop.f32.mrb[0].mxu0
        %v2631 = vadd.f32 %v2501, %v2630
        %v2632 = vpop.f32.mrb[0].mxu0
        %v2633 = vadd.f32 %v2497, %v2632
        %v2634 = vpop.f32.mrb[0].mxu0
        %v2635 = vadd.f32 %v2501, %v2634
        %2636 = vdwg.mxu0
        %v2637 = vmax.f32 %v2619, 0.0
        %v2638 = vmax.f32 %v2621, 0.0
        %v2639 = vmax.f32 %v2623, 0.0
        %v2640 = vmax.f32 %v2625, 0.0
        %v2641 = vmax.f32 %v2629, 0.0
        %v2642 = vmax.f32 %v2631, 0.0
        %v2643 = vmax.f32 %v2633, 0.0
        %v2644 = vmax.f32 %v2635, 0.0
        %v2645 = vpack.c.bf16 %v2639, %v2637
        %v2646 = vpack.c.bf16 %v2640, %v2638
        %v2647 = vpack.c.bf16 %v2643, %v2641
        %v2648 = vpack.c.bf16 %v2644, %v2642
        %v2649 = vld [vmem:[#allocation26] sm:$0xf]
        %v2650 = vld [vmem:[#allocation26 + $0x4] sm:$0xf]
        %v2651 = vld [vmem:[#allocation26 + $0x8] sm:$0xf]
        %v2652 = vld [vmem:[#allocation26 + $0xc] sm:$0xf]
        %v2653 = vld [vmem:[#allocation26 + $0x10] sm:$0xf]
        %v2654 = vld [vmem:[#allocation26 + $0x14] sm:$0xf]
        %v2655 = vld [vmem:[#allocation26 + $0x18] sm:$0xf]
        %v2656 = vld [vmem:[#allocation26 + $0x1c] sm:$0xf]
        %v2657 = vld [vmem:[#allocation26 + $0x20] sm:$0xf]
        %v2658 = vld [vmem:[#allocation26 + $0x24] sm:$0xf]
        %v2659 = vld [vmem:[#allocation26 + $0x28] sm:$0xf]
        %v2660 = vld [vmem:[#allocation26 + $0x2c] sm:$0xf]
        %v2661 = vld [vmem:[#allocation26 + $0x30] sm:$0xf]
        %v2662 = vld [vmem:[#allocation26 + $0x34] sm:$0xf]
        %v2663 = vld [vmem:[#allocation26 + $0x38] sm:$0xf]
        %v2664 = vld [vmem:[#allocation26 + $0x3c] sm:$0xf]
        %v2665 = vld [vmem:[#allocation26 + $0x40] sm:$0xf]
        %v2666 = vld [vmem:[#allocation26 + $0x44] sm:$0xf]
        %v2667 = vld [vmem:[#allocation26 + $0x48] sm:$0xf]
        %v2668 = vld [vmem:[#allocation26 + $0x4c] sm:$0xf]
        %v2669 = vld [vmem:[#allocation26 + $0x50] sm:$0xf]
        %v2670 = vld [vmem:[#allocation26 + $0x54] sm:$0xf]
        %v2671 = vld [vmem:[#allocation26 + $0x58] sm:$0xf]
        %v2672 = vld [vmem:[#allocation26 + $0x5c] sm:$0xf]
        %v2673 = vld [vmem:[#allocation26 + $0x60] sm:$0xf]
        %v2674 = vld [vmem:[#allocation26 + $0x64] sm:$0xf]
        %v2675 = vld [vmem:[#allocation26 + $0x68] sm:$0xf]
        %v2676 = vld [vmem:[#allocation26 + $0x6c] sm:$0xf]
        %v2677 = vld [vmem:[#allocation26 + $0x70] sm:$0xf]
        %v2678 = vld [vmem:[#allocation26 + $0x74] sm:$0xf]
        %v2679 = vld [vmem:[#allocation26 + $0x78] sm:$0xf]
        %v2680 = vld [vmem:[#allocation26 + $0x7c] sm:$0xf]
        %v2681 = vld [vmem:[#allocation28] sm:$0x1]
        %v2683 = vlaneseq
        %v2684 = vshrl.u32 %v2683, 7
        %v2685 = vsub.s32 0, %v2684
        %v2686 = vrot.slane %v2681, %v2685
        %v2720 = vunpack.c.l.b16 %v2649
        %v2721 = vunpack.c.l.b16 %v2650
        %v2722 = vunpack.c.l.b16 %v2651
        %v2723 = vunpack.c.l.b16 %v2652
        %v2724 = vunpack.c.l.b16 %v2653
        %v2725 = vunpack.c.l.b16 %v2654
        %v2726 = vunpack.c.l.b16 %v2655
        %v2727 = vunpack.c.l.b16 %v2656
        %v2728 = vunpack.c.l.b16 %v2657
        %v2729 = vunpack.c.l.b16 %v2658
        %v2730 = vunpack.c.l.b16 %v2659
        %v2731 = vunpack.c.l.b16 %v2660
        %v2732 = vunpack.c.l.b16 %v2661
        %v2733 = vunpack.c.l.b16 %v2662
        %v2734 = vunpack.c.l.b16 %v2663
        %v2735 = vunpack.c.l.b16 %v2664
        %v2736 = vunpack.c.l.b16 %v2665
        %v2737 = vunpack.c.l.b16 %v2666
        %v2738 = vunpack.c.l.b16 %v2667
        %v2739 = vunpack.c.l.b16 %v2668
        %v2740 = vunpack.c.l.b16 %v2669
        %v2741 = vunpack.c.l.b16 %v2670
        %v2742 = vunpack.c.l.b16 %v2671
        %v2743 = vunpack.c.l.b16 %v2672
        %v2744 = vunpack.c.l.b16 %v2673
        %v2745 = vunpack.c.l.b16 %v2674
        %v2746 = vunpack.c.l.b16 %v2675
        %v2747 = vunpack.c.l.b16 %v2676
        %v2748 = vunpack.c.l.b16 %v2677
        %v2749 = vunpack.c.l.b16 %v2678
        %v2750 = vunpack.c.l.b16 %v2679
        %v2751 = vunpack.c.l.b16 %v2680
        %v2752 = vpack.c.b16 %v2721, %v2720
        %v2753 = vpack.c.b16 %v2723, %v2722
        %v2754 = vpack.c.b16 %v2725, %v2724
        %v2755 = vpack.c.b16 %v2727, %v2726
        %v2756 = vpack.c.b16 %v2729, %v2728
        %v2757 = vpack.c.b16 %v2731, %v2730
        %v2758 = vpack.c.b16 %v2733, %v2732
        %v2759 = vpack.c.b16 %v2735, %v2734
        %v2760 = vpack.c.b16 %v2737, %v2736
        %v2761 = vpack.c.b16 %v2739, %v2738
        %v2762 = vpack.c.b16 %v2741, %v2740
        %v2763 = vpack.c.b16 %v2743, %v2742
        %v2764 = vpack.c.b16 %v2745, %v2744
        %v2765 = vpack.c.b16 %v2747, %v2746
        %v2766 = vpack.c.b16 %v2749, %v2748
        %v2767 = vpack.c.b16 %v2751, %v2750
        %2784 = vmatprep.subr.bf16.mxu0 0
        %2785 = vmatpush1.bf16.msra.mxu0 %v2752
        %2786 = vmatprep.subr.bf16.mxu0 0
        %2787 = vmatpush1.bf16.msra.mxu0 %v2753
        %2788 = vmatprep.subr.bf16.mxu0 0
        %2789 = vmatpush1.bf16.msra.mxu0 %v2754
        %2790 = vmatprep.subr.bf16.mxu0 0
        %2791 = vmatpush1.bf16.msra.mxu0 %v2755
        %2792 = vmatprep.subr.bf16.mxu0 0
        %2793 = vmatpush1.bf16.msra.mxu0 %v2756
        %2794 = vmatprep.subr.bf16.mxu0 0
        %2795 = vmatpush1.bf16.msra.mxu0 %v2757
        %2796 = vmatprep.subr.bf16.mxu0 0
        %2797 = vmatpush1.bf16.msra.mxu0 %v2758
        %2798 = vmatprep.subr.bf16.mxu0 0
        %2799 = vmatpush1.bf16.msra.mxu0 %v2759
        %2800 = vmatprep.subr.bf16.mxu0 0
        %2801 = vmatpush1.bf16.msra.mxu0 %v2760
        %2802 = vmatprep.subr.bf16.mxu0 0
        %2803 = vmatpush1.bf16.msra.mxu0 %v2761
        %2804 = vmatprep.subr.bf16.mxu0 0
        %2805 = vmatpush1.bf16.msra.mxu0 %v2762
        %2806 = vmatprep.subr.bf16.mxu0 0
        %2807 = vmatpush1.bf16.msra.mxu0 %v2763
        %2808 = vmatprep.subr.bf16.mxu0 0
        %2809 = vmatpush1.bf16.msra.mxu0 %v2764
        %2810 = vmatprep.subr.bf16.mxu0 0
        %2811 = vmatpush1.bf16.msra.mxu0 %v2765
        %2812 = vmatprep.subr.bf16.mxu0 0
        %2813 = vmatpush1.bf16.msra.mxu0 %v2766
        %2814 = vmatprep.subr.bf16.mxu0 0
        %2815 = vmatpush1.bf16.msra.mxu0 %v2767
        %2816 = vmatprep.mubr.bf16.mxu0 %v2646
        %2817 = vmatmul.mubr.bf16.gmra.mrb[0].mxu0 %v2645
        %v2818 = vpop.f32.mrb[0].mxu0
        %v2819 = vadd.f32 %v2686, %v2818
        %v2820 = vpop.f32.mrb[0].mxu0
        %v2821 = vpop.f32.mrb[0].mxu0
        %v2822 = vadd.f32 %v2686, %v2821
        %v2823 = vpop.f32.mrb[0].mxu0
        %2824 = vmatprep.mubr.bf16.mxu0 %v2648
        %2825 = vmatmul.mubr.bf16.gmra.mrb[0].mxu0 %v2647
        %v2826 = vpop.f32.mrb[0].mxu0
        %v2827 = vadd.f32 %v2686, %v2826
        %v2828 = vpop.f32.mrb[0].mxu0
        %v2829 = vpop.f32.mrb[0].mxu0
        %v2830 = vadd.f32 %v2686, %v2829
        %v2831 = vpop.f32.mrb[0].mxu0
        %2832 = vdwg.mxu0
        %v2833 = vadd.f32 %v2470, %v2819
        %v2834 = vadd.f32 %v2471, %v2822
        %v2835 = vadd.f32 %v2472, %v2827
        %v2836 = vadd.f32 %v2473, %v2830
        %v2837 = vld [vmem:[#allocation29] sm:$0x1]
        %v2838 = vld [vmem:[#allocation31] sm:$0x1]
        %2839 = vadd.xlane.f32.xlu0 %v2833
        %v2840 = vpop.xlane.xlu0 %2839
        %2841 = vadd.xlane.f32.xlu0 %v2834
        %v2842 = vpop.xlane.xlu0 %2841
        %2843 = vadd.xlane.f32.xlu0 %v2835
        %v2844 = vpop.xlane.xlu0 %2843
        %2845 = vadd.xlane.f32.xlu0 %v2836
        %v2846 = vpop.xlane.xlu0 %2845
        %v2847 = vmul.f32 %v2840, %v2417
        %v2848 = vmul.f32 %v2842, %v2417
        %v2849 = vmul.f32 %v2844, %v2417
        %v2850 = vmul.f32 %v2846, %v2417
        %v2851 = vsub.f32 %v2833, %v2847
        %v2852 = vsub.f32 %v2834, %v2848
        %v2853 = vsub.f32 %v2835, %v2849
        %v2854 = vsub.f32 %v2836, %v2850
        %v2855 = vmul.f32 %v2851, %v2851
        %v2856 = vmul.f32 %v2852, %v2852
        %v2857 = vmul.f32 %v2853, %v2853
        %v2858 = vmul.f32 %v2854, %v2854
        %2859 = vadd.xlane.f32.xlu0 %v2855
        %v2860 = vpop.xlane.xlu0 %2859
        %2861 = vadd.xlane.f32.xlu0 %v2856
        %v2862 = vpop.xlane.xlu0 %2861
        %2863 = vadd.xlane.f32.xlu0 %v2857
        %v2864 = vpop.xlane.xlu0 %2863
        %2865 = vadd.xlane.f32.xlu0 %v2858
        %v2866 = vpop.xlane.xlu0 %2865
        %v2867 = vmul.f32 %v2860, %v2417
        %v2868 = vmul.f32 %v2862, %v2417
        %v2869 = vmul.f32 %v2864, %v2417
        %v2870 = vmul.f32 %v2866, %v2417
        %v2871 = vadd.f32 %v2867, 1e-05
        %v2872 = vadd.f32 %v2868, 1e-05
        %v2873 = vadd.f32 %v2869, 1e-05
        %v2874 = vadd.f32 %v2870, 1e-05
        %v2875 = vrsqrt.pop %v2871
        %v2876 = vrsqrt.pop %v2872
        %v2877 = vrsqrt.pop %v2873
        %v2878 = vrsqrt.pop %v2874
        %v2879 = vmul.f32 %v2851, %v2875
        %v2880 = vmul.f32 %v2852, %v2876
        %v2881 = vmul.f32 %v2853, %v2877
        %v2882 = vmul.f32 %v2854, %v2878
        %v2884 = vlaneseq
        %v2885 = vshrl.u32 %v2884, 7
        %v2886 = vsub.s32 0, %v2885
        %v2887 = vrot.slane %v2837, %v2886
        %v2889 = vmul.f32 %v2879, %v2887
        %v2890 = vmul.f32 %v2880, %v2887
        %v2891 = vmul.f32 %v2881, %v2887
        %v2892 = vmul.f32 %v2882, %v2887
        %v2894 = vlaneseq
        %v2895 = vshrl.u32 %v2894, 7
        %v2896 = vsub.s32 0, %v2895
        %v2897 = vrot.slane %v2838, %v2896
        %v2899 = vadd.f32 %v2889, %v2897
        %v2900 = vadd.f32 %v2890, %v2897
        %v2901 = vadd.f32 %v2891, %v2897
        %v2902 = vadd.f32 %v2892, %v2897
        %2903 = vst [vmem:[%s909] sm:$0xff] %v2899
        %2904 = vst [vmem:[%s909 + $0x8] sm:$0xff] %v2900
        %2905 = vst [vmem:[%s909 + $0x10] sm:$0xff] %v2901
        %2906 = vst [vmem:[%s909 + $0x18] sm:$0xff] %v2902
        %s2907 = sand.u32 %s469, 1
        %s2908 = scalar_lea.sflag [#allocation4], %s2907
        %s2909 = sand.u32 %s469, 1
        %s2910 = smul.addr %s2909, 32
        %s2911 = scalar_lea.vmem [#allocation32], %s2910
        // Predicated region
        $region173: #{tpu_custom_call.1} parent=95 // pred_check
          %p2912 = pneg %p479
        $region174: #{tpu_custom_call.1} parent=95 // pred_check_branch
          %2914 = sbr.rel (%p2912) target = $region176
        $region175: #{tpu_custom_call.1} parent=95 // pred_region
          %s2915 = smul.u32 4, %s47
          %s2917 = ssub.s32 512, 512
          %2918 = vsyncadd %s2908, %s2917
          %s2919 = smul.addr %s2915, 128
          %s2920 = scalar_lea.hbm %s19, %s2919
          %s2921 = sshll.u32 %s2911, 4
          %s2922 = int_to_ptr.vmem [resolvable:$true] %s2921
          %2927 = dma.vmem_to_hbm [thread:$0]  %s2922, 512, %s2920, %s2908, 128, 128, 8
        $region176: #{tpu_custom_call.1} parent=95 // pred_fallthru
          _
      $region96: #{tpu_custom_call.1} parent=5 // pred_fallthru
        _
      %p2928 = scmp.le.s32.totalorder 2, %s42
      // Predicated region
      $region177: #{tpu_custom_call.1} parent=5 // pred_check
        %p2929 = pneg %p2928
      $region178: #{tpu_custom_call.1} parent=5 // pred_check_branch
        %2931 = sbr.rel (%p2929) target = $region180
      $region179: #{tpu_custom_call.1} parent=5 // pred_region
        %s2932 = ssub.s32 %s42, 2
        // Predicated region
        $region181: #{tpu_custom_call.1} parent=179 // pred_check
          %p2933 = pneg %p485
        $region182: #{tpu_custom_call.1} parent=179 // pred_check_branch
          %2935 = sbr.rel (%p2933) target = $region184
        $region183: #{tpu_custom_call.1} parent=179 // pred_region
          %s2936 = sand.u32 %s470, 1
          %s2937 = scalar_lea.sflag [#allocation4], %s2936
          %s2938 = sand.u32 %s470, 1
          %s2939 = smul.addr %s2938, 32
          %s2940 = scalar_lea.vmem [#allocation32], %s2939
          %2941 = dma.done %s2937, 512
        $region184: #{tpu_custom_call.1} parent=179 // pred_fallthru
          _
      $region180: #{tpu_custom_call.1} parent=5 // pred_fallthru
        _
    $region6: #{tpu_custom_call.1} parent=1 // loop_footer
      %s46 = sadd.s32 1, %s42
    $region7: #{tpu_custom_call.1} parent=1 // loop_footer_branch
      %41 = sbr.rel target = $region3
    $region8: #{tpu_custom_call.1} parent=1 // loop_exit
      _
    %2942 = vsyncpa [#allocation3], 1
    %s2943 = scalar_lea.sflag [#allocation3], 1
    %2944 = vsyncpa %s2943, 1
    %2945 = vsyncpa [#allocation6], 1
    %s2946 = scalar_lea.sflag [#allocation6], 1
    %2947 = vsyncpa %s2946, 1
    %2948 = vsyncpa [#allocation9], 1
    %2949 = vsyncpa [#allocation12], 1
    %2950 = vsyncpa [#allocation15], 1
    %2951 = vsyncpa [#allocation18], 1
    %2952 = vsyncpa [#allocation21], 1
    %2953 = vsyncpa [#allocation24], 1
    %2954 = vsyncpa [#allocation27], 1
    %2955 = vsyncpa [#allocation30], 1
    %2956 = vsyncpa [#allocation4], 1
    %s2957 = scalar_lea.sflag [#allocation4], 1
    %2958 = vsyncpa %s2957, 1

// kernel: tpu_custom_call.1
$region0: #{tpu_custom_call.1}
  #allocation0 [shape = 'u32[]', space=smem, size = 0x4, offset = 0x4, fixed_abs, tag = 'smem constant byte address 0x4 - core index']
  #allocation1 [shape = 'u32[144,128]{1,0:T(1,128)}', space=vmem, size = 0x12000, scoped, tag = 'internal scratch']
  %s0 = inlined_call_operand.hbm [shape: f32[8,8,128], index: 0, kind: input, shape index: {}]
  %s1 = inlined_call_operand.hbm [shape: f32[8,8,128], index: 1, kind: input, shape index: {}]
  %s2 = inlined_call_operand.hbm [shape: f32[8,8,128], index: 2, kind: input, shape index: {}]
  %s3 = inlined_call_operand.hbm [shape: bf16[128,128], index: 3, kind: input, shape index: {}]
  %s4 = inlined_call_operand.hbm [shape: f32[1,128], index: 4, kind: input, shape index: {}]
  %s5 = inlined_call_operand.hbm [shape: bf16[128,128], index: 5, kind: input, shape index: {}]
  %s6 = inlined_call_operand.hbm [shape: f32[1,128], index: 6, kind: input, shape index: {}]
  %s7 = inlined_call_operand.hbm [shape: bf16[128,128], index: 7, kind: input, shape index: {}]
  %s8 = inlined_call_operand.hbm [shape: f32[1,128], index: 8, kind: input, shape index: {}]
  %s9 = inlined_call_operand.hbm [shape: bf16[128,128], index: 9, kind: input, shape index: {}]
  %s10 = inlined_call_operand.hbm [shape: f32[1,128], index: 10, kind: input, shape index: {}]
  %s11 = inlined_call_operand.hbm [shape: f32[1,128], index: 11, kind: input, shape index: {}]
  %s12 = inlined_call_operand.hbm [shape: f32[1,128], index: 12, kind: input, shape index: {}]
  %s13 = inlined_call_operand.hbm [shape: bf16[128,256], index: 13, kind: input, shape index: {}]
  %s14 = inlined_call_operand.hbm [shape: f32[1,256], index: 14, kind: input, shape index: {}]
  %s15 = inlined_call_operand.hbm [shape: bf16[256,128], index: 15, kind: input, shape index: {}]
  %s16 = inlined_call_operand.hbm [shape: f32[1,128], index: 16, kind: input, shape index: {}]
  %s17 = inlined_call_operand.hbm [shape: f32[1,128], index: 17, kind: input, shape index: {}]
  %s18 = inlined_call_operand.hbm [shape: f32[1,128], index: 18, kind: input, shape index: {}]
  %s19 = inlined_call_operand.hbm [shape: f32[8,8,128], index: 19, kind: output, shape index: {}]
  %s20 = sld [smem:[#allocation0]]
  $region185: #{tpu_custom_call.1} parent=0
    _
  %s22 = ssub.s32 1, %s20
  %s23 = scalar_select 0, %s22, %s20
  $region1: #{tpu_custom_call.1} parent=0
    #allocation2 [shape = 'u8[32768]{0}', space=vmem, size = 0x8000, scoped, tag = 'input window, operand 0']
    #allocation3 [shape = 's32[2]{0}', space=sflag, size = 0x8, scoped, tag = 'scoped memory for tpu_custom_call.1']
    #allocation4 [shape = 's32[2]{0}', space=sflag, size = 0x8, scoped, tag = 'scoped memory for tpu_custom_call.1']
    #allocation5 [shape = 'u8[32768]{0}', space=vmem, size = 0x8000, scoped, tag = 'input window, operand 1']
    #allocation6 [shape = 's32[2]{0}', space=sflag, size = 0x8, scoped, tag = 'scoped memory for tpu_custom_call.1']
    #allocation7 [shape = 'u8[32768]{0}', space=vmem, size = 0x8000, scoped, tag = 'input window, operand 2']
    #allocation8 [shape = 'u8[32768]{0}', space=vmem, size = 0x8000, scoped, tag = 'input window, operand 3, single buffered']
    #allocation9 [shape = 's32[1]{0}', space=sflag, size = 0x4, scoped, tag = 'scoped memory for tpu_custom_call.1']
    #allocation10 [shape = 'u8[512]{0}', space=vmem, size = 0x400, scoped, tag = 'input window, operand 4, single buffered']
    #allocation11 [shape = 'u8[32768]{0}', space=vmem, size = 0x8000, scoped, tag = 'input window, operand 5, single buffered']
    #allocation12 [shape = 's32[1]{0}', space=sflag, size = 0x4, scoped, tag = 'scoped memory for tpu_custom_call.1']
    #allocation13 [shape = 'u8[512]{0}', space=vmem, size = 0x400, scoped, tag = 'input window, operand 6, single buffered']
    #allocation14 [shape = 'u8[32768]{0}', space=vmem, size = 0x8000, scoped, tag = 'input window, operand 7, single buffered']
    #allocation15 [shape = 's32[1]{0}', space=sflag, size = 0x4, scoped, tag = 'scoped memory for tpu_custom_call.1']
    #allocation16 [shape = 'u8[512]{0}', space=vmem, size = 0x400, scoped, tag = 'input window, operand 8, single buffered']
    #allocation17 [shape = 'u8[32768]{0}', space=vmem, size = 0x8000, scoped, tag = 'input window, operand 9, single buffered']
    #allocation18 [shape = 's32[1]{0}', space=sflag, size = 0x4, scoped, tag = 'scoped memory for tpu_custom_call.1']
    #allocation19 [shape = 'u8[512]{0}', space=vmem, size = 0x400, scoped, tag = 'input window, operand 10, single buffered']
    #allocation20 [shape = 'u8[512]{0}', space=vmem, size = 0x400, scoped, tag = 'input window, operand 11, single buffered']
    #allocation21 [shape = 's32[1]{0}', space=sflag, size = 0x4, scoped, tag = 'scoped memory for tpu_custom_call.1']
    #allocation22 [shape = 'u8[512]{0}', space=vmem, size = 0x400, scoped, tag = 'input window, operand 12, single buffered']
    #allocation23 [shape = 'u8[65536]{0}', space=vmem, size = 0x10000, scoped, tag = 'input window, operand 13, single buffered']
    #allocation24 [shape = 's32[1]{0}', space=sflag, size = 0x4, scoped, tag = 'scoped memory for tpu_custom_call.1']
    #allocation25 [shape = 'u8[1024]{0}', space=vmem, size = 0x400, scoped, tag = 'input window, operand 14, single buffered']
    #allocation26 [shape = 'u8[65536]{0}', space=vmem, size = 0x10000, scoped, tag = 'input window, operand 15, single buffered']
    #allocation27 [shape = 's32[1]{0}', space=sflag, size = 0x4, scoped, tag = 'scoped memory for tpu_custom_call.1']
    #allocation28 [shape = 'u8[512]{0}', space=vmem, size = 0x400, scoped, tag = 'input window, operand 16, single buffered']
    #allocation29 [shape = 'u8[512]{0}', space=vmem, size = 0x400, scoped, tag = 'input window, operand 17, single buffered']
    #allocation30 [shape = 's32[1]{0}', space=sflag, size = 0x4, scoped, tag = 'scoped memory for tpu_custom_call.1']
    #allocation31 [shape = 'u8[512]{0}', space=vmem, size = 0x400, scoped, tag = 'input window, operand 18, single buffered']
    #allocation32 [shape = 'u8[32768]{0}', space=vmem, size = 0x8000, scoped, tag = 'output window, operand 0']
    %24 = vsyncpa [#allocation3], 0
    %s25 = scalar_lea.sflag [#allocation3], 1
    %26 = vsyncpa %s25, 0
    %27 = vsyncpa [#allocation6], 0
    %s28 = scalar_lea.sflag [#allocation6], 1
    %29 = vsyncpa %s28, 0
    %30 = vsyncpa [#allocation9], 0
    %31 = vsyncpa [#allocation12], 0
    %32 = vsyncpa [#allocation15], 0
    %33 = vsyncpa [#allocation18], 0
    %34 = vsyncpa [#allocation21], 0
    %35 = vsyncpa [#allocation24], 0
    %36 = vsyncpa [#allocation27], 0
    %37 = vsyncpa [#allocation30], 0
    %38 = vsyncpa [#allocation4], 0
    %s39 = scalar_lea.sflag [#allocation4], 1
    %40 = vsyncpa %s39, 0
    loop: start=0, step=1, limit=4
    $region2: #{tpu_custom_call.1} parent=1 // loop_pre_header
      _
    $region3: #{tpu_custom_call.1} parent=1 // loop_header
      %s42 = sphi 0, %s46
      %p43 = scmp.ge.s32.totalorder %s42, 4
      %s52 = sphi 0, %s54
      %s55 = sphi 0, %s52
      %s56 = sphi 0, %s55
      %s72 = sphi 0, %s56
      %s78 = sphi 0, %s80
      %s81 = sphi 0, %s78
      %s82 = sphi 0, %s81
      %s98 = sphi 0, %s82
      %s104 = sphi 0, %s106
      %s107 = sphi 0, %s104
      %s108 = sphi 0, %s107
      %s124 = sphi 0, %s108
      %s128 = sphi 0, %s128
      %s130 = sphi 0, %s128
      %s131 = sphi 0, %s130
      %s145 = sphi 0, %s131
      %s149 = sphi 0, %s149
      %s151 = sphi 0, %s149
      %s152 = sphi 0, %s151
      %s166 = sphi 0, %s152
      %s170 = sphi 0, %s170
      %s172 = sphi 0, %s170
      %s173 = sphi 0, %s172
      %s187 = sphi 0, %s173
      %s191 = sphi 0, %s191
      %s193 = sphi 0, %s191
      %s194 = sphi 0, %s193
      %s208 = sphi 0, %s194
      %s212 = sphi 0, %s212
      %s214 = sphi 0, %s212
      %s215 = sphi 0, %s214
      %s229 = sphi 0, %s215
      %s233 = sphi 0, %s233
      %s235 = sphi 0, %s233
      %s236 = sphi 0, %s235
      %s250 = sphi 0, %s236
      %s254 = sphi 0, %s254
      %s256 = sphi 0, %s254
      %s257 = sphi 0, %s256
      %s271 = sphi 0, %s257
      %s275 = sphi 0, %s275
      %s277 = sphi 0, %s275
      %s278 = sphi 0, %s277
      %s292 = sphi 0, %s278
      %s296 = sphi 0, %s296
      %s298 = sphi 0, %s296
      %s299 = sphi 0, %s298
      %s313 = sphi 0, %s299
      %s317 = sphi 0, %s317
      %s319 = sphi 0, %s317
      %s320 = sphi 0, %s319
      %s334 = sphi 0, %s320
      %s338 = sphi 0, %s338
      %s340 = sphi 0, %s338
      %s341 = sphi 0, %s340
      %s355 = sphi 0, %s341
      %s359 = sphi 0, %s359
      %s361 = sphi 0, %s359
      %s362 = sphi 0, %s361
      %s376 = sphi 0, %s362
      %s380 = sphi 0, %s380
      %s382 = sphi 0, %s380
      %s383 = sphi 0, %s382
      %s397 = sphi 0, %s383
      %s401 = sphi 0, %s401
      %s403 = sphi 0, %s401
      %s404 = sphi 0, %s403
      %s418 = sphi 0, %s404
      %s422 = sphi 0, %s422
      %s424 = sphi 0, %s422
      %s425 = sphi 0, %s424
      %s439 = sphi 0, %s425
      %s443 = sphi 0, %s443
      %s445 = sphi 0, %s443
      %s446 = sphi 0, %s445
      %s460 = sphi 0, %s446
      %s466 = sphi 0, %s468
      %s469 = sphi 0, %s466
      %s470 = sphi 0, %s469
      %s486 = sphi 0, %s470
    $region4: #{tpu_custom_call.1} parent=1 // loop_header_branch
      %45 = sbr.rel (%p43) target = $region8
    $region5: #{tpu_custom_call.1} parent=1 // loop_body
      %s47 = ssub.s32 %s42, 1
      %s48 = ssub.s32 %s42, 2
      %s49 = sadd.s32 %s42, 1
      %s50 = ssub.s32 %s42, %s49
      %p51 = scmp.eq.s32.totalorder %s50, 0
      %s53 = sadd.s32 %s52, 1
      %s54 = scalar_select %p51, %s52, %s53
      %p57 = pneg %p51
      %p58 = scmp.eq.s32.totalorder %s42, 1
      %p59 = por %p57, %p58
      %p60 = scmp.ne.s32.totalorder %s52, %s55
      %p61 = scmp.eq.s32.totalorder %s42, 0
      %p62 = por %p60, %p61
      %p63 = scmp.ne.s32.totalorder %s52, %s55
      %p64 = scmp.eq.s32.totalorder %s47, 1
      %p65 = por %p63, %p64
      %p66 = scmp.ne.s32.totalorder %s55, %s56
      %p67 = scmp.eq.s32.totalorder %s47, 0
      %p68 = por %p66, %p67
      %p69 = scmp.ne.s32.totalorder %s55, %s56
      %p70 = scmp.eq.s32.totalorder %s48, 1
      %p71 = por %p69, %p70
      %p73 = scmp.ne.s32.totalorder %s56, %s72
      %p74 = scmp.eq.s32.totalorder %s48, 0
      %p75 = por %p73, %p74
      %s76 = ssub.s32 %s42, %s49
      %p77 = scmp.eq.s32.totalorder %s76, 0
      %s79 = sadd.s32 %s78, 1
      %s80 = scalar_select %p77, %s78, %s79
      %p83 = pneg %p77
      %p84 = scmp.eq.s32.totalorder %s42, 1
      %p85 = por %p83, %p84
      %p86 = scmp.ne.s32.totalorder %s78, %s81
      %p87 = scmp.eq.s32.totalorder %s42, 0
      %p88 = por %p86, %p87
      %p89 = scmp.ne.s32.totalorder %s78, %s81
      %p90 = scmp.eq.s32.totalorder %s47, 1
      %p91 = por %p89, %p90
      %p92 = scmp.ne.s32.totalorder %s81, %s82
      %p93 = scmp.eq.s32.totalorder %s47, 0
      %p94 = por %p92, %p93
      %p95 = scmp.ne.s32.totalorder %s81, %s82
      %p96 = scmp.eq.s32.totalorder %s48, 1
      %p97 = por %p95, %p96
      %p99 = scmp.ne.s32.totalorder %s82, %s98
      %p100 = scmp.eq.s32.totalorder %s48, 0
      %p101 = por %p99, %p100
      %s102 = ssub.s32 %s42, %s49
      %p103 = scmp.eq.s32.totalorder %s102, 0
      %s105 = sadd.s32 %s104, 1
      %s106 = scalar_select %p103, %s104, %s105
      %p109 = pneg %p103
      %p110 = scmp.eq.s32.totalorder %s42, 1
      %p111 = por %p109, %p110
      %p112 = scmp.ne.s32.totalorder %s104, %s107
      %p113 = scmp.eq.s32.totalorder %s42, 0
      %p114 = por %p112, %p113
      %p115 = scmp.ne.s32.totalorder %s104, %s107
      %p116 = scmp.eq.s32.totalorder %s47, 1
      %p117 = por %p115, %p116
      %p118 = scmp.ne.s32.totalorder %s107, %s108
      %p119 = scmp.eq.s32.totalorder %s47, 0
      %p120 = por %p118, %p119
      %p121 = scmp.ne.s32.totalorder %s107, %s108
      %p122 = scmp.eq.s32.totalorder %s48, 1
      %p123 = por %p121, %p122
      %p125 = scmp.ne.s32.totalorder %s108, %s124
      %p126 = scmp.eq.s32.totalorder %s48, 0
      %p127 = por %p125, %p126
      %s129 = sadd.s32 %s128, 1
      %p132 = scmp.eq.s32.totalorder %s42, 1
      %p133 = scmp.ne.s32.totalorder %s128, %s130
      %p134 = scmp.eq.s32.totalorder %s42, 0
      %p135 = por %p133, %p134
      %p136 = scmp.ne.s32.totalorder %s128, %s130
      %p137 = scmp.eq.s32.totalorder %s47, 1
      %p138 = por %p136, %p137
      %p139 = scmp.ne.s32.totalorder %s130, %s131
      %p140 = scmp.eq.s32.totalorder %s47, 0
      %p141 = por %p139, %p140
      %p142 = scmp.ne.s32.totalorder %s130, %s131
      %p143 = scmp.eq.s32.totalorder %s48, 1
      %p144 = por %p142, %p143
      %p146 = scmp.ne.s32.totalorder %s131, %s145
      %p147 = scmp.eq.s32.totalorder %s48, 0
      %p148 = por %p146, %p147
      %s150 = sadd.s32 %s149, 1
      %p153 = scmp.eq.s32.totalorder %s42, 1
      %p154 = scmp.ne.s32.totalorder %s149, %s151
      %p155 = scmp.eq.s32.totalorder %s42, 0
      %p156 = por %p154, %p155
      %p157 = scmp.ne.s32.totalorder %s149, %s151
      %p158 = scmp.eq.s32.totalorder %s47, 1
      %p159 = por %p157, %p158
      %p160 = scmp.ne.s32.totalorder %s151, %s152
      %p161 = scmp.eq.s32.totalorder %s47, 0
      %p162 = por %p160, %p161
      %p163 = scmp.ne.s32.totalorder %s151, %s152
      %p164 = scmp.eq.s32.totalorder %s48, 1
      %p165 = por %p163, %p164
      %p167 = scmp.ne.s32.totalorder %s152, %s166
      %p168 = scmp.eq.s32.totalorder %s48, 0
      %p169 = por %p167, %p168
      %s171 = sadd.s32 %s170, 1
      %p174 = scmp.eq.s32.totalorder %s42, 1
      %p175 = scmp.ne.s32.totalorder %s170, %s172
      %p176 = scmp.eq.s32.totalorder %s42, 0
      %p177 = por %p175, %p176
      %p178 = scmp.ne.s32.totalorder %s170, %s172
      %p179 = scmp.eq.s32.totalorder %s47, 1
      %p180 = por %p178, %p179
      %p181 = scmp.ne.s32.totalorder %s172, %s173
      %p182 = scmp.eq.s32.totalorder %s47, 0
      %p183 = por %p181, %p182
      %p184 = scmp.ne.s32.totalorder %s172, %s173
      %p185 = scmp.eq.s32.totalorder %s48, 1
      %p186 = por %p184, %p185
      %p188 = scmp.ne.s32.totalorder %s173, %s187
      %p189 = scmp.eq.s32.totalorder %s48, 0
      %p190 = por %p188, %p189
      %s192 = sadd.s32 %s191, 1
      %p195 = scmp.eq.s32.totalorder %s42, 1
      %p196 = scmp.ne.s32.totalorder %s191, %s193
      %p197 = scmp.eq.s32.totalorder %s42, 0
      %p198 = por %p196, %p197
      %p199 = scmp.ne.s32.totalorder %s191, %s193
      %p200 = scmp.eq.s32.totalorder %s47, 1
      %p201 = por %p199, %p200
      %p202 = scmp.ne.s32.totalorder %s193, %s194
      %p203 = scmp.eq.s32.totalorder %s47, 0
      %p204 = por %p202, %p203
      %p205 = scmp.ne.s32.totalorder %s193, %s194
      %p206 = scmp.eq.s32.totalorder %s48, 1
      %p207 = por %p205, %p206
      %p209 = scmp.ne.s32.totalorder %s194, %s208
      %p210 = scmp.eq.s32.totalorder %s48, 0
      %p211 = por %p209, %p210
      %s213 = sadd.s32 %s212, 1
      %p216 = scmp.eq.s32.totalorder %s42, 1
      %p217 = scmp.ne.s32.totalorder %s212, %s214
      %p218 = scmp.eq.s32.totalorder %s42, 0
      %p219 = por %p217, %p218
      %p220 = scmp.ne.s32.totalorder %s212, %s214
      %p221 = scmp.eq.s32.totalorder %s47, 1
      %p222 = por %p220, %p221
      %p223 = scmp.ne.s32.totalorder %s214, %s215
      %p224 = scmp.eq.s32.totalorder %s47, 0
      %p225 = por %p223, %p224
      %p226 = scmp.ne.s32.totalorder %s214, %s215
      %p227 = scmp.eq.s32.totalorder %s48, 1
      %p228 = por %p226, %p227
      %p230 = scmp.ne.s32.totalorder %s215, %s229
      %p231 = scmp.eq.s32.totalorder %s48, 0
      %p232 = por %p230, %p231
      %s234 = sadd.s32 %s233, 1
      %p237 = scmp.eq.s32.totalorder %s42, 1
      %p238 = scmp.ne.s32.totalorder %s233, %s235
      %p239 = scmp.eq.s32.totalorder %s42, 0
      %p240 = por %p238, %p239
      %p241 = scmp.ne.s32.totalorder %s233, %s235
      %p242 = scmp.eq.s32.totalorder %s47, 1
      %p243 = por %p241, %p242
      %p244 = scmp.ne.s32.totalorder %s235, %s236
      %p245 = scmp.eq.s32.totalorder %s47, 0
      %p246 = por %p244, %p245
      %p247 = scmp.ne.s32.totalorder %s235, %s236
      %p248 = scmp.eq.s32.totalorder %s48, 1
      %p249 = por %p247, %p248
      %p251 = scmp.ne.s32.totalorder %s236, %s250
      %p252 = scmp.eq.s32.totalorder %s48, 0
      %p253 = por %p251, %p252
      %s255 = sadd.s32 %s254, 1
      %p258 = scmp.eq.s32.totalorder %s42, 1
      %p259 = scmp.ne.s32.totalorder %s254, %s256
      %p260 = scmp.eq.s32.totalorder %s42, 0
      %p261 = por %p259, %p260
      %p262 = scmp.ne.s32.totalorder %s254, %s256
      %p263 = scmp.eq.s32.totalorder %s47, 1
      %p264 = por %p262, %p263
      %p265 = scmp.ne.s32.totalorder %s256, %s257
      %p266 = scmp.eq.s32.totalorder %s47, 0
      %p267 = por %p265, %p266
      %p268 = scmp.ne.s32.totalorder %s256, %s257
      %p269 = scmp.eq.s32.totalorder %s48, 1
      %p270 = por %p268, %p269
      %p272 = scmp.ne.s32.totalorder %s257, %s271
      %p273 = scmp.eq.s32.totalorder %s48, 0
      %p274 = por %p272, %p273
      %s276 = sadd.s32 %s275, 1
      %p279 = scmp.eq.s32.totalorder %s42, 1
      %p280 = scmp.ne.s32.totalorder %s275, %s277
      %p281 = scmp.eq.s32.totalorder %s42, 0
      %p282 = por %p280, %p281
      %p283 = scmp.ne.s32.totalorder %s275, %s277
      %p284 = scmp.eq.s32.totalorder %s47, 1
      %p285 = por %p283, %p284
      %p286 = scmp.ne.s32.totalorder %s277, %s278
      %p287 = scmp.eq.s32.totalorder %s47, 0
      %p288 = por %p286, %p287
      %p289 = scmp.ne.s32.totalorder %s277, %s278
      %p290 = scmp.eq.s32.totalorder %s48, 1
      %p291 = por %p289, %p290
      %p293 = scmp.ne.s32.totalorder %s278, %s292
      %p294 = scmp.eq.s32.totalorder %s48, 0
      %p295 = por %p293, %p294
      %s297 = sadd.s32 %s296, 1
      %p300 = scmp.eq.s32.totalorder %s42, 1
      %p301 = scmp.ne.s32.totalorder %s296, %s298
      %p302 = scmp.eq.s32.totalorder %s42, 0
      %p303 = por %p301, %p302
      %p304 = scmp.ne.s32.totalorder %s296, %s298
      %p305 = scmp.eq.s32.totalorder %s47, 1
      %p306 = por %p304, %p305
      %p307 = scmp.ne.s32.totalorder %s298, %s299
      %p308 = scmp.eq.s32.totalorder %s47, 0
      %p309 = por %p307, %p308
      %p310 = scmp.ne.s32.totalorder %s298, %s299
      %p311 = scmp.eq.s32.totalorder %s48, 1
      %p312 = por %p310, %p311
      %p314 = scmp.ne.s32.totalorder %s299, %s313
      %p315 = scmp.eq.s32.totalorder %s48, 0
      %p316 = por %p314, %p315
      %s318 = sadd.s32 %s317, 1
      %p321 = scmp.eq.s32.totalorder %s42, 1
      %p322 = scmp.ne.s32.totalorder %s317, %s319
      %p323 = scmp.eq.s32.totalorder %s42, 0
      %p324 = por %p322, %p323
      %p325 = scmp.ne.s32.totalorder %s317, %s319
      %p326 = scmp.eq.s32.totalorder %s47, 1
      %p327 = por %p325, %p326
      %p328 = scmp.ne.s32.totalorder %s319, %s320
      %p329 = scmp.eq.s32.totalorder %s47, 0
      %p330 = por %p328, %p329
      %p331 = scmp.ne.s32.totalorder %s319, %s320
      %p332 = scmp.eq.s32.totalorder %s48, 1
      %p333 = por %p331, %p332
      %p335 = scmp.ne.s32.totalorder %s320, %s334
      %p336 = scmp.eq.s32.totalorder %s48, 0
      %p337 = por %p335, %p336
      %s339 = sadd.s32 %s338, 1
      %p342 = scmp.eq.s32.totalorder %s42, 1
      %p343 = scmp.ne.s32.totalorder %s338, %s340
      %p344 = scmp.eq.s32.totalorder %s42, 0
      %p345 = por %p343, %p344
      %p346 = scmp.ne.s32.totalorder %s338, %s340
      %p347 = scmp.eq.s32.totalorder %s47, 1
      %p348 = por %p346, %p347
      %p349 = scmp.ne.s32.totalorder %s340, %s341
      %p350 = scmp.eq.s32.totalorder %s47, 0
      %p351 = por %p349, %p350
      %p352 = scmp.ne.s32.totalorder %s340, %s341
      %p353 = scmp.eq.s32.totalorder %s48, 1
      %p354 = por %p352, %p353
      %p356 = scmp.ne.s32.totalorder %s341, %s355
      %p357 = scmp.eq.s32.totalorder %s48, 0
      %p358 = por %p356, %p357
      %s360 = sadd.s32 %s359, 1
      %p363 = scmp.eq.s32.totalorder %s42, 1
      %p364 = scmp.ne.s32.totalorder %s359, %s361
      %p365 = scmp.eq.s32.totalorder %s42, 0
      %p366 = por %p364, %p365
      %p367 = scmp.ne.s32.totalorder %s359, %s361
      %p368 = scmp.eq.s32.totalorder %s47, 1
      %p369 = por %p367, %p368
      %p370 = scmp.ne.s32.totalorder %s361, %s362
      %p371 = scmp.eq.s32.totalorder %s47, 0
      %p372 = por %p370, %p371
      %p373 = scmp.ne.s32.totalorder %s361, %s362
      %p374 = scmp.eq.s32.totalorder %s48, 1
      %p375 = por %p373, %p374
      %p377 = scmp.ne.s32.totalorder %s362, %s376
      %p378 = scmp.eq.s32.totalorder %s48, 0
      %p379 = por %p377, %p378
      %s381 = sadd.s32 %s380, 1
      %p384 = scmp.eq.s32.totalorder %s42, 1
      %p385 = scmp.ne.s32.totalorder %s380, %s382
      %p386 = scmp.eq.s32.totalorder %s42, 0
      %p387 = por %p385, %p386
      %p388 = scmp.ne.s32.totalorder %s380, %s382
      %p389 = scmp.eq.s32.totalorder %s47, 1
      %p390 = por %p388, %p389
      %p391 = scmp.ne.s32.totalorder %s382, %s383
      %p392 = scmp.eq.s32.totalorder %s47, 0
      %p393 = por %p391, %p392
      %p394 = scmp.ne.s32.totalorder %s382, %s383
      %p395 = scmp.eq.s32.totalorder %s48, 1
      %p396 = por %p394, %p395
      %p398 = scmp.ne.s32.totalorder %s383, %s397
      %p399 = scmp.eq.s32.totalorder %s48, 0
      %p400 = por %p398, %p399
      %s402 = sadd.s32 %s401, 1
      %p405 = scmp.eq.s32.totalorder %s42, 1
      %p406 = scmp.ne.s32.totalorder %s401, %s403
      %p407 = scmp.eq.s32.totalorder %s42, 0
      %p408 = por %p406, %p407
      %p409 = scmp.ne.s32.totalorder %s401, %s403
      %p410 = scmp.eq.s32.totalorder %s47, 1
      %p411 = por %p409, %p410
      %p412 = scmp.ne.s32.totalorder %s403, %s404
      %p413 = scmp.eq.s32.totalorder %s47, 0
      %p414 = por %p412, %p413
      %p415 = scmp.ne.s32.totalorder %s403, %s404
      %p416 = scmp.eq.s32.totalorder %s48, 1
      %p417 = por %p415, %p416
      %p419 = scmp.ne.s32.totalorder %s404, %s418
      %p420 = scmp.eq.s32.totalorder %s48, 0
      %p421 = por %p419, %p420
      %s423 = sadd.s32 %s422, 1
      %p426 = scmp.eq.s32.totalorder %s42, 1
      %p427 = scmp.ne.s32.totalorder %s422, %s424
      %p428 = scmp.eq.s32.totalorder %s42, 0
      %p429 = por %p427, %p428
      %p430 = scmp.ne.s32.totalorder %s422, %s424
      %p431 = scmp.eq.s32.totalorder %s47, 1
      %p432 = por %p430, %p431
      %p433 = scmp.ne.s32.totalorder %s424, %s425
      %p434 = scmp.eq.s32.totalorder %s47, 0
      %p435 = por %p433, %p434
      %p436 = scmp.ne.s32.totalorder %s424, %s425
      %p437 = scmp.eq.s32.totalorder %s48, 1
      %p438 = por %p436, %p437
      %p440 = scmp.ne.s32.totalorder %s425, %s439
      %p441 = scmp.eq.s32.totalorder %s48, 0
      %p442 = por %p440, %p441
      %s444 = sadd.s32 %s443, 1
      %p447 = scmp.eq.s32.totalorder %s42, 1
      %p448 = scmp.ne.s32.totalorder %s443, %s445
      %p449 = scmp.eq.s32.totalorder %s42, 0
      %p450 = por %p448, %p449
      %p451 = scmp.ne.s32.totalorder %s443, %s445
      %p452 = scmp.eq.s32.totalorder %s47, 1
      %p453 = por %p451, %p452
      %p454 = scmp.ne.s32.totalorder %s445, %s446
      %p455 = scmp.eq.s32.totalorder %s47, 0
      %p456 = por %p454, %p455
      %p457 = scmp.ne.s32.totalorder %s445, %s446
      %p458 = scmp.eq.s32.totalorder %s48, 1
      %p459 = por %p457, %p458
      %p461 = scmp.ne.s32.totalorder %s446, %s460
      %p462 = scmp.eq.s32.totalorder %s48, 0
      %p463 = por %p461, %p462
      %s464 = ssub.s32 %s42, %s49
      %p465 = scmp.eq.s32.totalorder %s464, 0
      %s467 = sadd.s32 %s466, 1
      %s468 = scalar_select %p465, %s466, %s467
      %p471 = pneg %p465
      %p472 = scmp.eq.s32.totalorder %s42, 1
      %p473 = por %p471, %p472
      %p474 = scmp.ne.s32.totalorder %s466, %s469
      %p475 = scmp.eq.s32.totalorder %s42, 0
      %p476 = por %p474, %p475
      %p477 = scmp.ne.s32.totalorder %s466, %s469
      %p478 = scmp.eq.s32.totalorder %s47, 1
      %p479 = por %p477, %p478
      %p480 = scmp.ne.s32.totalorder %s469, %s470
      %p481 = scmp.eq.s32.totalorder %s47, 0
      %p482 = por %p480, %p481
      %p483 = scmp.ne.s32.totalorder %s469, %s470
      %p484 = scmp.eq.s32.totalorder %s48, 1
      %p485 = por %p483, %p484
      %p487 = scmp.ne.s32.totalorder %s470, %s486
      %p488 = scmp.eq.s32.totalorder %s48, 0
      %p489 = por %p487, %p488
      %p490 = scmp.le.s32.totalorder 1, %s42
      %p491 = scmp.lt.s32.totalorder %s42, 3
      %p492 = pnand %p490, %p491
      %p493 = pneg %p492
      // Predicated region
      $region9: #{tpu_custom_call.1} parent=5 // pred_check
        _
      $region10: #{tpu_custom_call.1} parent=5 // pred_check_branch
        %495 = sbr.rel (%p492) target = $region12
      $region11: #{tpu_custom_call.1} parent=5 // pred_region
        %s496 = ssub.s32 %s42, 1
        // Predicated region
        $region13: #{tpu_custom_call.1} parent=11 // pred_check
          %p497 = pneg %p141
        $region14: #{tpu_custom_call.1} parent=11 // pred_check_branch
          %499 = sbr.rel (%p497) target = $region16
        $region15: #{tpu_custom_call.1} parent=11 // pred_region
          %s501 = ssub.s32 1024, 1024
          %502 = vsyncadd [#allocation9], %s501
          %s503 = sshll.u32 [#allocation8], 4
          %s504 = int_to_ptr.vmem [resolvable:$true] %s503
          %509 = dma.hbm_to_vmem [thread:$0]  %s3, 1024, %s504, [#allocation9], 64, 64, 4
        $region16: #{tpu_custom_call.1} parent=11 // pred_fallthru
          _
        // Predicated region
        $region17: #{tpu_custom_call.1} parent=11 // pred_check
          %p510 = pneg %p162
        $region18: #{tpu_custom_call.1} parent=11 // pred_check_branch
          %512 = sbr.rel (%p510) target = $region20
        $region19: #{tpu_custom_call.1} parent=11 // pred_region
          %s514 = ssub.s32 16, 16
          %515 = vsyncadd [#allocation9], %s514
          %s517 = sshll.u32 [#allocation10], 4
          %s518 = int_to_ptr.vmem [resolvable:$true] %s517
          %520 = dma.hbm_to_vmem [thread:$0]  %s4, 16, %s518, [#allocation9]
        $region20: #{tpu_custom_call.1} parent=11 // pred_fallthru
          _
        // Predicated region
        $region21: #{tpu_custom_call.1} parent=11 // pred_check
          %p521 = pneg %p183
        $region22: #{tpu_custom_call.1} parent=11 // pred_check_branch
          %523 = sbr.rel (%p521) target = $region24
        $region23: #{tpu_custom_call.1} parent=11 // pred_region
          %s525 = ssub.s32 1024, 1024
          %526 = vsyncadd [#allocation12], %s525
          %s527 = sshll.u32 [#allocation11], 4
          %s528 = int_to_ptr.vmem [resolvable:$true] %s527
          %533 = dma.hbm_to_vmem [thread:$0]  %s5, 1024, %s528, [#allocation12], 64, 64, 4
        $region24: #{tpu_custom_call.1} parent=11 // pred_fallthru
          _
        // Predicated region
        $region25: #{tpu_custom_call.1} parent=11 // pred_check
          %p534 = pneg %p204
        $region26: #{tpu_custom_call.1} parent=11 // pred_check_branch
          %536 = sbr.rel (%p534) target = $region28
        $region27: #{tpu_custom_call.1} parent=11 // pred_region
          %s538 = ssub.s32 16, 16
          %539 = vsyncadd [#allocation12], %s538
          %s541 = sshll.u32 [#allocation13], 4
          %s542 = int_to_ptr.vmem [resolvable:$true] %s541
          %544 = dma.hbm_to_vmem [thread:$0]  %s6, 16, %s542, [#allocation12]
        $region28: #{tpu_custom_call.1} parent=11 // pred_fallthru
          _
        // Predicated region
        $region29: #{tpu_custom_call.1} parent=11 // pred_check
          %p545 = pneg %p225
        $region30: #{tpu_custom_call.1} parent=11 // pred_check_branch
          %547 = sbr.rel (%p545) target = $region32
        $region31: #{tpu_custom_call.1} parent=11 // pred_region
          %s549 = ssub.s32 1024, 1024
          %550 = vsyncadd [#allocation15], %s549
          %s551 = sshll.u32 [#allocation14], 4
          %s552 = int_to_ptr.vmem [resolvable:$true] %s551
          %557 = dma.hbm_to_vmem [thread:$0]  %s7, 1024, %s552, [#allocation15], 64, 64, 4
        $region32: #{tpu_custom_call.1} parent=11 // pred_fallthru
          _
        // Predicated region
        $region33: #{tpu_custom_call.1} parent=11 // pred_check
          %p558 = pneg %p246
        $region34: #{tpu_custom_call.1} parent=11 // pred_check_branch
          %560 = sbr.rel (%p558) target = $region36
        $region35: #{tpu_custom_call.1} parent=11 // pred_region
          %s562 = ssub.s32 16, 16
          %563 = vsyncadd [#allocation15], %s562
          %s565 = sshll.u32 [#allocation16], 4
          %s566 = int_to_ptr.vmem [resolvable:$true] %s565
          %568 = dma.hbm_to_vmem [thread:$0]  %s8, 16, %s566, [#allocation15]
        $region36: #{tpu_custom_call.1} parent=11 // pred_fallthru
          _
        // Predicated region
        $region37: #{tpu_custom_call.1} parent=11 // pred_check
          %p569 = pneg %p267
        $region38: #{tpu_custom_call.1} parent=11 // pred_check_branch
          %571 = sbr.rel (%p569) target = $region40
        $region39: #{tpu_custom_call.1} parent=11 // pred_region
          %s573 = ssub.s32 1024, 1024
          %574 = vsyncadd [#allocation18], %s573
          %s575 = sshll.u32 [#allocation17], 4
          %s576 = int_to_ptr.vmem [resolvable:$true] %s575
          %581 = dma.hbm_to_vmem [thread:$0]  %s9, 1024, %s576, [#allocation18], 64, 64, 4
        $region40: #{tpu_custom_call.1} parent=11 // pred_fallthru
          _
        // Predicated region
        $region41: #{tpu_custom_call.1} parent=11 // pred_check
          %p582 = pneg %p288
        $region42: #{tpu_custom_call.1} parent=11 // pred_check_branch
          %584 = sbr.rel (%p582) target = $region44
        $region43: #{tpu_custom_call.1} parent=11 // pred_region
          %s586 = ssub.s32 16, 16
          %587 = vsyncadd [#allocation18], %s586
          %s589 = sshll.u32 [#allocation19], 4
          %s590 = int_to_ptr.vmem [resolvable:$true] %s589
          %592 = dma.hbm_to_vmem [thread:$0]  %s10, 16, %s590, [#allocation18]
        $region44: #{tpu_custom_call.1} parent=11 // pred_fallthru
          _
        // Predicated region
        $region45: #{tpu_custom_call.1} parent=11 // pred_check
          %p593 = pneg %p309
        $region46: #{tpu_custom_call.1} parent=11 // pred_check_branch
          %595 = sbr.rel (%p593) target = $region48
        $region47: #{tpu_custom_call.1} parent=11 // pred_region
          %s597 = ssub.s32 16, 16
          %598 = vsyncadd [#allocation21], %s597
          %s600 = sshll.u32 [#allocation20], 4
          %s601 = int_to_ptr.vmem [resolvable:$true] %s600
          %603 = dma.hbm_to_vmem [thread:$0]  %s11, 16, %s601, [#allocation21]
        $region48: #{tpu_custom_call.1} parent=11 // pred_fallthru
          _
        // Predicated region
        $region49: #{tpu_custom_call.1} parent=11 // pred_check
          %p604 = pneg %p330
        $region50: #{tpu_custom_call.1} parent=11 // pred_check_branch
          %606 = sbr.rel (%p604) target = $region52
        $region51: #{tpu_custom_call.1} parent=11 // pred_region
          %s608 = ssub.s32 16, 16
          %609 = vsyncadd [#allocation21], %s608
          %s611 = sshll.u32 [#allocation22], 4
          %s612 = int_to_ptr.vmem [resolvable:$true] %s611
          %614 = dma.hbm_to_vmem [thread:$0]  %s12, 16, %s612, [#allocation21]
        $region52: #{tpu_custom_call.1} parent=11 // pred_fallthru
          _
        // Predicated region
        $region53: #{tpu_custom_call.1} parent=11 // pred_check
          %p615 = pneg %p351
        $region54: #{tpu_custom_call.1} parent=11 // pred_check_branch
          %617 = sbr.rel (%p615) target = $region56
        $region55: #{tpu_custom_call.1} parent=11 // pred_region
          %s619 = ssub.s32 2048, 2048
          %620 = vsyncadd [#allocation24], %s619
          %s621 = sshll.u32 [#allocation23], 4
          %s622 = int_to_ptr.vmem [resolvable:$true] %s621
          %627 = dma.hbm_to_vmem [thread:$0]  %s13, 2048, %s622, [#allocation24], 128, 128, 8
        $region56: #{tpu_custom_call.1} parent=11 // pred_fallthru
          _
        // Predicated region
        $region57: #{tpu_custom_call.1} parent=11 // pred_check
          %p628 = pneg %p372
        $region58: #{tpu_custom_call.1} parent=11 // pred_check_branch
          %630 = sbr.rel (%p628) target = $region60
        $region59: #{tpu_custom_call.1} parent=11 // pred_region
          %s632 = ssub.s32 32, 32
          %633 = vsyncadd [#allocation24], %s632
          %s635 = sshll.u32 [#allocation25], 4
          %s636 = int_to_ptr.vmem [resolvable:$true] %s635
          %638 = dma.hbm_to_vmem [thread:$0]  %s14, 32, %s636, [#allocation24]
        $region60: #{tpu_custom_call.1} parent=11 // pred_fallthru
          _
        // Predicated region
        $region61: #{tpu_custom_call.1} parent=11 // pred_check
          %p639 = pneg %p393
        $region62: #{tpu_custom_call.1} parent=11 // pred_check_branch
          %641 = sbr.rel (%p639) target = $region64
        $region63: #{tpu_custom_call.1} parent=11 // pred_region
          %s643 = ssub.s32 2048, 2048
          %644 = vsyncadd [#allocation27], %s643
          %s645 = sshll.u32 [#allocation26], 4
          %s646 = int_to_ptr.vmem [resolvable:$true] %s645
          %651 = dma.hbm_to_vmem [thread:$0]  %s15, 2048, %s646, [#allocation27], 64, 64, 4
        $region64: #{tpu_custom_call.1} parent=11 // pred_fallthru
          _
        // Predicated region
        $region65: #{tpu_custom_call.1} parent=11 // pred_check
          %p652 = pneg %p414
        $region66: #{tpu_custom_call.1} parent=11 // pred_check_branch
          %654 = sbr.rel (%p652) target = $region68
        $region67: #{tpu_custom_call.1} parent=11 // pred_region
          %s656 = ssub.s32 16, 16
          %657 = vsyncadd [#allocation27], %s656
          %s659 = sshll.u32 [#allocation28], 4
          %s660 = int_to_ptr.vmem [resolvable:$true] %s659
          %662 = dma.hbm_to_vmem [thread:$0]  %s16, 16, %s660, [#allocation27]
        $region68: #{tpu_custom_call.1} parent=11 // pred_fallthru
          _
        // Predicated region
        $region69: #{tpu_custom_call.1} parent=11 // pred_check
          %p663 = pneg %p435
        $region70: #{tpu_custom_call.1} parent=11 // pred_check_branch
          %665 = sbr.rel (%p663) target = $region72
        $region71: #{tpu_custom_call.1} parent=11 // pred_region
          %s667 = ssub.s32 16, 16
          %668 = vsyncadd [#allocation30], %s667
          %s670 = sshll.u32 [#allocation29], 4
          %s671 = int_to_ptr.vmem [resolvable:$true] %s670
          %673 = dma.hbm_to_vmem [thread:$0]  %s17, 16, %s671, [#allocation30]
        $region72: #{tpu_custom_call.1} parent=11 // pred_fallthru
          _
        // Predicated region
        $region73: #{tpu_custom_call.1} parent=11 // pred_check
          %p674 = pneg %p456
        $region74: #{tpu_custom_call.1} parent=11 // pred_check_branch
          %676 = sbr.rel (%p674) target = $region76
        $region75: #{tpu_custom_call.1} parent=11 // pred_region
          %s678 = ssub.s32 16, 16
          %679 = vsyncadd [#allocation30], %s678
          %s681 = sshll.u32 [#allocation31], 4
          %s682 = int_to_ptr.vmem [resolvable:$true] %s681
          %684 = dma.hbm_to_vmem [thread:$0]  %s18, 16, %s682, [#allocation30]
        $region76: #{tpu_custom_call.1} parent=11 // pred_fallthru
          _
      $region12: #{tpu_custom_call.1} parent=5 // pred_fallthru
        _
      %p685 = scmp.lt.s32.totalorder %s42, 2
      // Predicated region
      $region77: #{tpu_custom_call.1} parent=5 // pred_check
        %p686 = pneg %p685
      $region78: #{tpu_custom_call.1} parent=5 // pred_check_branch
        %688 = sbr.rel (%p686) target = $region80
      $region79: #{tpu_custom_call.1} parent=5 // pred_region
        // Predicated region
        $region81: #{tpu_custom_call.1} parent=79 // pred_check
          %p689 = pneg %p62
        $region82: #{tpu_custom_call.1} parent=79 // pred_check_branch
          %691 = sbr.rel (%p689) target = $region84
        $region83: #{tpu_custom_call.1} parent=79 // pred_region
          %s692 = sand.u32 %s52, 1
          %s693 = scalar_lea.sflag [#allocation3], %s692
          %s694 = sand.u32 %s52, 1
          %s695 = smul.addr %s694, 32
          %s696 = scalar_lea.vmem [#allocation2], %s695
          %s697 = smul.u32 4, %s42
          %s699 = ssub.s32 512, 512
          %700 = vsyncadd %s693, %s699
          %s701 = smul.addr %s697, 128
          %s702 = scalar_lea.hbm %s0, %s701
          %s703 = sshll.u32 %s696, 4
          %s704 = int_to_ptr.vmem [resolvable:$true] %s703
          %709 = dma.hbm_to_vmem [thread:$0]  %s702, 512, %s704, %s693, 128, 128, 8
        $region84: #{tpu_custom_call.1} parent=79 // pred_fallthru
          _
        // Predicated region
        $region85: #{tpu_custom_call.1} parent=79 // pred_check
          %p710 = pneg %p88
        $region86: #{tpu_custom_call.1} parent=79 // pred_check_branch
          %712 = sbr.rel (%p710) target = $region88
        $region87: #{tpu_custom_call.1} parent=79 // pred_region
          %s713 = sand.u32 %s42, 1
          %s714 = scalar_lea.sflag [#allocation6], %s713
          %s715 = sand.u32 %s78, 1
          %s716 = smul.addr %s715, 32
          %s717 = scalar_lea.vmem [#allocation5], %s716
          %s718 = smul.u32 4, %s42
          %s720 = ssub.s32 512, 512
          %721 = vsyncadd %s714, %s720
          %s722 = smul.addr %s718, 128
          %s723 = scalar_lea.hbm %s1, %s722
          %s724 = sshll.u32 %s717, 4
          %s725 = int_to_ptr.vmem [resolvable:$true] %s724
          %730 = dma.hbm_to_vmem [thread:$0]  %s723, 512, %s725, %s714, 128, 128, 8
        $region88: #{tpu_custom_call.1} parent=79 // pred_fallthru
          _
        // Predicated region
        $region89: #{tpu_custom_call.1} parent=79 // pred_check
          %p731 = pneg %p114
        $region90: #{tpu_custom_call.1} parent=79 // pred_check_branch
          %733 = sbr.rel (%p731) target = $region92
        $region91: #{tpu_custom_call.1} parent=79 // pred_region
          %s734 = sand.u32 %s42, 1
          %s735 = scalar_lea.sflag [#allocation6], %s734
          %s736 = sand.u32 %s104, 1
          %s737 = smul.addr %s736, 32
          %s738 = scalar_lea.vmem [#allocation7], %s737
          %s739 = smul.u32 4, %s42
          %s741 = ssub.s32 512, 512
          %742 = vsyncadd %s735, %s741
          %s743 = smul.addr %s739, 128
          %s744 = scalar_lea.hbm %s2, %s743
          %s745 = sshll.u32 %s738, 4
          %s746 = int_to_ptr.vmem [resolvable:$true] %s745
          %751 = dma.hbm_to_vmem [thread:$0]  %s744, 512, %s746, %s735, 128, 128, 8
        $region92: #{tpu_custom_call.1} parent=79 // pred_fallthru
          _
      $region80: #{tpu_custom_call.1} parent=5 // pred_fallthru
        _
      %p752 = scmp.le.s32.totalorder 1, %s42
      %p753 = scmp.lt.s32.totalorder %s42, 3
      %p754 = pnand %p752, %p753
      %p755 = pneg %p754
      // Predicated region
      $region93: #{tpu_custom_call.1} parent=5 // pred_check
        _
      $region94: #{tpu_custom_call.1} parent=5 // pred_check_branch
        %757 = sbr.rel (%p754) target = $region96
      $region95: #{tpu_custom_call.1} parent=5 // pred_region
        %s758 = ssub.s32 %s42, 1
        %s759 = sand.u32 %s55, 1
        %s760 = scalar_lea.sflag [#allocation3], %s759
        %s761 = sand.u32 %s55, 1
        %s762 = smul.addr %s761, 32
        %s763 = scalar_lea.vmem [#allocation2], %s762
        // Predicated region
        $region97: #{tpu_custom_call.1} parent=95 // pred_check
          %p764 = pneg %p68
        $region98: #{tpu_custom_call.1} parent=95 // pred_check_branch
          %766 = sbr.rel (%p764) target = $region100
        $region99: #{tpu_custom_call.1} parent=95 // pred_region
          %767 = dma.done %s760, 512
        $region100: #{tpu_custom_call.1} parent=95 // pred_fallthru
          _
        %s768 = sand.u32 %s47, 1
        %s769 = scalar_lea.sflag [#allocation6], %s768
        %s770 = sand.u32 %s81, 1
        %s771 = smul.addr %s770, 32
        %s772 = scalar_lea.vmem [#allocation5], %s771
        // Predicated region
        $region101: #{tpu_custom_call.1} parent=95 // pred_check
          %p773 = pneg %p94
        $region102: #{tpu_custom_call.1} parent=95 // pred_check_branch
          %775 = sbr.rel (%p773) target = $region104
        $region103: #{tpu_custom_call.1} parent=95 // pred_region
          %776 = dma.done %s769, 512
        $region104: #{tpu_custom_call.1} parent=95 // pred_fallthru
          _
        %s777 = sand.u32 %s47, 1
        %s778 = scalar_lea.sflag [#allocation6], %s777
        %s779 = sand.u32 %s107, 1
        %s780 = smul.addr %s779, 32
        %s781 = scalar_lea.vmem [#allocation7], %s780
        // Predicated region
        $region105: #{tpu_custom_call.1} parent=95 // pred_check
          %p782 = pneg %p120
        $region106: #{tpu_custom_call.1} parent=95 // pred_check_branch
          %784 = sbr.rel (%p782) target = $region108
        $region107: #{tpu_custom_call.1} parent=95 // pred_region
          %785 = dma.done %s778, 512
        $region108: #{tpu_custom_call.1} parent=95 // pred_fallthru
          _
        // Predicated region
        $region109: #{tpu_custom_call.1} parent=95 // pred_check
          %p786 = pneg %p141
        $region110: #{tpu_custom_call.1} parent=95 // pred_check_branch
          %788 = sbr.rel (%p786) target = $region112
        $region111: #{tpu_custom_call.1} parent=95 // pred_region
          %789 = dma.done [#allocation9], 1024
        $region112: #{tpu_custom_call.1} parent=95 // pred_fallthru
          _
        // Predicated region
        $region113: #{tpu_custom_call.1} parent=95 // pred_check
          %p790 = pneg %p162
        $region114: #{tpu_custom_call.1} parent=95 // pred_check_branch
          %792 = sbr.rel (%p790) target = $region116
        $region115: #{tpu_custom_call.1} parent=95 // pred_region
          %793 = dma.done [#allocation9], 16
        $region116: #{tpu_custom_call.1} parent=95 // pred_fallthru
          _
        // Predicated region
        $region117: #{tpu_custom_call.1} parent=95 // pred_check
          %p794 = pneg %p183
        $region118: #{tpu_custom_call.1} parent=95 // pred_check_branch
          %796 = sbr.rel (%p794) target = $region120
        $region119: #{tpu_custom_call.1} parent=95 // pred_region
          %797 = dma.done [#allocation12], 1024
        $region120: #{tpu_custom_call.1} parent=95 // pred_fallthru
          _
        // Predicated region
        $region121: #{tpu_custom_call.1} parent=95 // pred_check
          %p798 = pneg %p204
        $region122: #{tpu_custom_call.1} parent=95 // pred_check_branch
          %800 = sbr.rel (%p798) target = $region124
        $region123: #{tpu_custom_call.1} parent=95 // pred_region
          %801 = dma.done [#allocation12], 16
        $region124: #{tpu_custom_call.1} parent=95 // pred_fallthru
          _
        // Predicated region
        $region125: #{tpu_custom_call.1} parent=95 // pred_check
          %p802 = pneg %p225
        $region126: #{tpu_custom_call.1} parent=95 // pred_check_branch
          %804 = sbr.rel (%p802) target = $region128
        $region127: #{tpu_custom_call.1} parent=95 // pred_region
          %805 = dma.done [#allocation15], 1024
        $region128: #{tpu_custom_call.1} parent=95 // pred_fallthru
          _
        // Predicated region
        $region129: #{tpu_custom_call.1} parent=95 // pred_check
          %p806 = pneg %p246
        $region130: #{tpu_custom_call.1} parent=95 // pred_check_branch
          %808 = sbr.rel (%p806) target = $region132
        $region131: #{tpu_custom_call.1} parent=95 // pred_region
          %809 = dma.done [#allocation15], 16
        $region132: #{tpu_custom_call.1} parent=95 // pred_fallthru
          _
        // Predicated region
        $region133: #{tpu_custom_call.1} parent=95 // pred_check
          %p810 = pneg %p267
        $region134: #{tpu_custom_call.1} parent=95 // pred_check_branch
          %812 = sbr.rel (%p810) target = $region136
        $region135: #{tpu_custom_call.1} parent=95 // pred_region
          %813 = dma.done [#allocation18], 1024
        $region136: #{tpu_custom_call.1} parent=95 // pred_fallthru
          _
        // Predicated region
        $region137: #{tpu_custom_call.1} parent=95 // pred_check
          %p814 = pneg %p288
        $region138: #{tpu_custom_call.1} parent=95 // pred_check_branch
          %816 = sbr.rel (%p814) target = $region140
        $region139: #{tpu_custom_call.1} parent=95 // pred_region
          %817 = dma.done [#allocation18], 16
        $region140: #{tpu_custom_call.1} parent=95 // pred_fallthru
          _
        // Predicated region
        $region141: #{tpu_custom_call.1} parent=95 // pred_check
          %p818 = pneg %p309
        $region142: #{tpu_custom_call.1} parent=95 // pred_check_branch
          %820 = sbr.rel (%p818) target = $region144
        $region143: #{tpu_custom_call.1} parent=95 // pred_region
          %821 = dma.done [#allocation21], 16
        $region144: #{tpu_custom_call.1} parent=95 // pred_fallthru
          _
        // Predicated region
        $region145: #{tpu_custom_call.1} parent=95 // pred_check
          %p822 = pneg %p330
        $region146: #{tpu_custom_call.1} parent=95 // pred_check_branch
          %824 = sbr.rel (%p822) target = $region148
        $region147: #{tpu_custom_call.1} parent=95 // pred_region
          %825 = dma.done [#allocation21], 16
        $region148: #{tpu_custom_call.1} parent=95 // pred_fallthru
          _
        // Predicated region
        $region149: #{tpu_custom_call.1} parent=95 // pred_check
          %p826 = pneg %p351
        $region150: #{tpu_custom_call.1} parent=95 // pred_check_branch
          %828 = sbr.rel (%p826) target = $region152
        $region151: #{tpu_custom_call.1} parent=95 // pred_region
          %829 = dma.done [#allocation24], 2048
        $region152: #{tpu_custom_call.1} parent=95 // pred_fallthru
          _
        // Predicated region
        $region153: #{tpu_custom_call.1} parent=95 // pred_check
          %p830 = pneg %p372
        $region154: #{tpu_custom_call.1} parent=95 // pred_check_branch
          %832 = sbr.rel (%p830) target = $region156
        $region155: #{tpu_custom_call.1} parent=95 // pred_region
          %833 = dma.done [#allocation24], 32
        $region156: #{tpu_custom_call.1} parent=95 // pred_fallthru
          _
        // Predicated region
        $region157: #{tpu_custom_call.1} parent=95 // pred_check
          %p834 = pneg %p393
        $region158: #{tpu_custom_call.1} parent=95 // pred_check_branch
          %836 = sbr.rel (%p834) target = $region160
        $region159: #{tpu_custom_call.1} parent=95 // pred_region
          %837 = dma.done [#allocation27], 2048
        $region160: #{tpu_custom_call.1} parent=95 // pred_fallthru
          _
        // Predicated region
        $region161: #{tpu_custom_call.1} parent=95 // pred_check
          %p838 = pneg %p414
        $region162: #{tpu_custom_call.1} parent=95 // pred_check_branch
          %840 = sbr.rel (%p838) target = $region164
        $region163: #{tpu_custom_call.1} parent=95 // pred_region
          %841 = dma.done [#allocation27], 16
        $region164: #{tpu_custom_call.1} parent=95 // pred_fallthru
          _
        // Predicated region
        $region165: #{tpu_custom_call.1} parent=95 // pred_check
          %p842 = pneg %p435
        $region166: #{tpu_custom_call.1} parent=95 // pred_check_branch
          %844 = sbr.rel (%p842) target = $region168
        $region167: #{tpu_custom_call.1} parent=95 // pred_region
          %845 = dma.done [#allocation30], 16
        $region168: #{tpu_custom_call.1} parent=95 // pred_fallthru
          _
        // Predicated region
        $region169: #{tpu_custom_call.1} parent=95 // pred_check
          %p846 = pneg %p456
        $region170: #{tpu_custom_call.1} parent=95 // pred_check_branch
          %848 = sbr.rel (%p846) target = $region172
        $region171: #{tpu_custom_call.1} parent=95 // pred_region
          %849 = dma.done [#allocation30], 16
        $region172: #{tpu_custom_call.1} parent=95 // pred_fallthru
          _
        %s850 = sand.u32 %s55, 1
        %s851 = scalar_lea.sflag [#allocation3], %s850
        %s852 = sand.u32 %s55, 1
        %s853 = smul.addr %s852, 32
        %s854 = scalar_lea.vmem [#allocation2], %s853
        %p855 = pneg %p68
        %p856 = pneg %p65
        %s857 = sand.u32 %s47, 1
        %s858 = scalar_lea.sflag [#allocation6], %s857
        %s859 = sand.u32 %s81, 1
        %s860 = smul.addr %s859, 32
        %s861 = scalar_lea.vmem [#allocation5], %s860
        %p862 = pneg %p94
        %p863 = pneg %p91
        %s864 = sand.u32 %s47, 1
        %s865 = scalar_lea.sflag [#allocation6], %s864
        %s866 = sand.u32 %s107, 1
        %s867 = smul.addr %s866, 32
        %s868 = scalar_lea.vmem [#allocation7], %s867
        %p869 = pneg %p120
        %p870 = pneg %p117
        %p871 = pneg %p141
        %p872 = pneg %p138
        %p873 = pneg %p162
        %p874 = pneg %p159
        %p875 = pneg %p183
        %p876 = pneg %p180
        %p877 = pneg %p204
        %p878 = pneg %p201
        %p879 = pneg %p225
        %p880 = pneg %p222
        %p881 = pneg %p246
        %p882 = pneg %p243
        %p883 = pneg %p267
        %p884 = pneg %p264
        %p885 = pneg %p288
        %p886 = pneg %p285
        %p887 = pneg %p309
        %p888 = pneg %p306
        %p889 = pneg %p330
        %p890 = pneg %p327
        %p891 = pneg %p351
        %p892 = pneg %p348
        %p893 = pneg %p372
        %p894 = pneg %p369
        %p895 = pneg %p393
        %p896 = pneg %p390
        %p897 = pneg %p414
        %p898 = pneg %p411
        %p899 = pneg %p435
        %p900 = pneg %p432
        %p901 = pneg %p456
        %p902 = pneg %p453
        %p903 = pneg %p482
        %p904 = pneg %p479
        %s905 = sand.u32 %s469, 1
        %s906 = scalar_lea.sflag [#allocation4], %s905
        %s907 = sand.u32 %s469, 1
        %s908 = smul.addr %s907, 32
        %s909 = scalar_lea.vmem [#allocation32], %s908
        %s910 = smul.u32 4, %s47
        %s911 = smul.u32 4, %s47
        %s912 = smul.u32 4, %s47
        %s913 = smul.u32 4, %s47
        %v915 = vld [vmem:[%s763] sm:$0xff]
        %v916 = vld [vmem:[%s763 + $0x8] sm:$0xff]
        %v917 = vld [vmem:[%s763 + $0x10] sm:$0xff]
        %v918 = vld [vmem:[%s763 + $0x18] sm:$0xff]
        %v919 = vld [vmem:[%s772] sm:$0xff]
        %v920 = vld [vmem:[%s772 + $0x8] sm:$0xff]
        %v921 = vld [vmem:[%s772 + $0x10] sm:$0xff]
        %v922 = vld [vmem:[%s772 + $0x18] sm:$0xff]
        %v923 = vld [vmem:[%s781] sm:$0xff]
        %v924 = vld [vmem:[%s781 + $0x8] sm:$0xff]
        %v925 = vld [vmem:[%s781 + $0x10] sm:$0xff]
        %v926 = vld [vmem:[%s781 + $0x18] sm:$0xff]
        %v927 = vpack.c.bf16 %v916, %v915
        %v928 = vpack.c.bf16 %v918, %v917
        %v929 = vld [vmem:[#allocation8] sm:$0xf]
        %v930 = vld [vmem:[#allocation8 + $0x4] sm:$0xf]
        %v931 = vld [vmem:[#allocation8 + $0x8] sm:$0xf]
        %v932 = vld [vmem:[#allocation8 + $0xc] sm:$0xf]
        %v933 = vld [vmem:[#allocation8 + $0x10] sm:$0xf]
        %v934 = vld [vmem:[#allocation8 + $0x14] sm:$0xf]
        %v935 = vld [vmem:[#allocation8 + $0x18] sm:$0xf]
        %v936 = vld [vmem:[#allocation8 + $0x1c] sm:$0xf]
        %v937 = vld [vmem:[#allocation8 + $0x20] sm:$0xf]
        %v938 = vld [vmem:[#allocation8 + $0x24] sm:$0xf]
        %v939 = vld [vmem:[#allocation8 + $0x28] sm:$0xf]
        %v940 = vld [vmem:[#allocation8 + $0x2c] sm:$0xf]
        %v941 = vld [vmem:[#allocation8 + $0x30] sm:$0xf]
        %v942 = vld [vmem:[#allocation8 + $0x34] sm:$0xf]
        %v943 = vld [vmem:[#allocation8 + $0x38] sm:$0xf]
        %v944 = vld [vmem:[#allocation8 + $0x3c] sm:$0xf]
        %v945 = vld [vmem:[#allocation10] sm:$0x1]
        %v947 = vlaneseq
        %v948 = vshrl.u32 %v947, 7
        %v949 = vsub.s32 0, %v948
        %v950 = vrot.slane %v945, %v949
        %v968 = vunpack.c.l.b16 %v929
        %v969 = vunpack.c.l.b16 %v930
        %v970 = vunpack.c.l.b16 %v931
        %v971 = vunpack.c.l.b16 %v932
        %v972 = vunpack.c.l.b16 %v933
        %v973 = vunpack.c.l.b16 %v934
        %v974 = vunpack.c.l.b16 %v935
        %v975 = vunpack.c.l.b16 %v936
        %v976 = vunpack.c.l.b16 %v937
        %v977 = vunpack.c.l.b16 %v938
        %v978 = vunpack.c.l.b16 %v939
        %v979 = vunpack.c.l.b16 %v940
        %v980 = vunpack.c.l.b16 %v941
        %v981 = vunpack.c.l.b16 %v942
        %v982 = vunpack.c.l.b16 %v943
        %v983 = vunpack.c.l.b16 %v944
        %v984 = vpack.c.b16 %v969, %v968
        %v985 = vpack.c.b16 %v971, %v970
        %v986 = vpack.c.b16 %v973, %v972
        %v987 = vpack.c.b16 %v975, %v974
        %v988 = vpack.c.b16 %v977, %v976
        %v989 = vpack.c.b16 %v979, %v978
        %v990 = vpack.c.b16 %v981, %v980
        %v991 = vpack.c.b16 %v983, %v982
        %1000 = vmatprep.subr.bf16.mxu0 0
        %1001 = vmatpush1.bf16.msra.mxu0 %v984
        %1002 = vmatprep.subr.bf16.mxu0 0
        %1003 = vmatpush1.bf16.msra.mxu0 %v985
        %1004 = vmatprep.subr.bf16.mxu0 0
        %1005 = vmatpush1.bf16.msra.mxu0 %v986
        %1006 = vmatprep.subr.bf16.mxu0 0
        %1007 = vmatpush1.bf16.msra.mxu0 %v987
        %1008 = vmatprep.subr.bf16.mxu0 0
        %1009 = vmatpush1.bf16.msra.mxu0 %v988
        %1010 = vmatprep.subr.bf16.mxu0 0
        %1011 = vmatpush1.bf16.msra.mxu0 %v989
        %1012 = vmatprep.subr.bf16.mxu0 0
        %1013 = vmatpush1.bf16.msra.mxu0 %v990
        %1014 = vmatprep.subr.bf16.mxu0 0
        %1015 = vmatpush1.bf16.msra.mxu0 %v991
        %1016 = vmatprep.subr.bf16.mxu0 0
        %1017 = vmatpush1.bf16.msra.mxu0 0
        %1018 = vmatprep.subr.bf16.mxu0 0
        %1019 = vmatpush1.bf16.msra.mxu0 0
        %1020 = vmatprep.subr.bf16.mxu0 0
        %1021 = vmatpush1.bf16.msra.mxu0 0
        %1022 = vmatprep.subr.bf16.mxu0 0
        %1023 = vmatpush1.bf16.msra.mxu0 0
        %1024 = vmatprep.subr.bf16.mxu0 0
        %1025 = vmatpush1.bf16.msra.mxu0 0
        %1026 = vmatprep.subr.bf16.mxu0 0
        %1027 = vmatpush1.bf16.msra.mxu0 0
        %1028 = vmatprep.subr.bf16.mxu0 0
        %1029 = vmatpush1.bf16.msra.mxu0 0
        %1030 = vmatprep.subr.bf16.mxu0 0
        %1031 = vmatpush1.bf16.msra.mxu0 0
        %1032 = vmatprep.mubr.bf16.mxu0 0
        %1033 = vmatmul.mubr.bf16.gmra.mrb[0].mxu0 %v927
        %v1034 = vpop.f32.mrb[0].mxu0
        %v1035 = vadd.f32 %v950, %v1034
        %v1036 = vpop.f32.mrb[0].mxu0
        %v1037 = vpop.f32.mrb[0].mxu0
        %v1038 = vadd.f32 %v950, %v1037
        %v1039 = vpop.f32.mrb[0].mxu0
        %1040 = vmatprep.mubr.bf16.mxu0 0
        %1041 = vmatmul.mubr.bf16.gmra.mrb[0].mxu0 %v928
        %v1042 = vpop.f32.mrb[0].mxu0
        %v1043 = vadd.f32 %v950, %v1042
        %v1044 = vpop.f32.mrb[0].mxu0
        %v1045 = vpop.f32.mrb[0].mxu0
        %v1046 = vadd.f32 %v950, %v1045
        %v1047 = vpop.f32.mrb[0].mxu0
        %1048 = vdwg.mxu0
        %v1049 = vmul.f32 %v1035, 0.125
        %v1050 = vmul.f32 %v1038, 0.125
        %v1051 = vmul.f32 %v1043, 0.125
        %v1052 = vmul.f32 %v1046, 0.125
        %v1053 = vpack.c.bf16 %v920, %v919
        %v1054 = vpack.c.bf16 %v922, %v921
        %v1055 = vld [vmem:[#allocation11] sm:$0xf]
        %v1056 = vld [vmem:[#allocation11 + $0x4] sm:$0xf]
        %v1057 = vld [vmem:[#allocation11 + $0x8] sm:$0xf]
        %v1058 = vld [vmem:[#allocation11 + $0xc] sm:$0xf]
        %v1059 = vld [vmem:[#allocation11 + $0x10] sm:$0xf]
        %v1060 = vld [vmem:[#allocation11 + $0x14] sm:$0xf]
        %v1061 = vld [vmem:[#allocation11 + $0x18] sm:$0xf]
        %v1062 = vld [vmem:[#allocation11 + $0x1c] sm:$0xf]
        %v1063 = vld [vmem:[#allocation11 + $0x20] sm:$0xf]
        %v1064 = vld [vmem:[#allocation11 + $0x24] sm:$0xf]
        %v1065 = vld [vmem:[#allocation11 + $0x28] sm:$0xf]
        %v1066 = vld [vmem:[#allocation11 + $0x2c] sm:$0xf]
        %v1067 = vld [vmem:[#allocation11 + $0x30] sm:$0xf]
        %v1068 = vld [vmem:[#allocation11 + $0x34] sm:$0xf]
        %v1069 = vld [vmem:[#allocation11 + $0x38] sm:$0xf]
        %v1070 = vld [vmem:[#allocation11 + $0x3c] sm:$0xf]
        %v1071 = vld [vmem:[#allocation13] sm:$0x1]
        %v1073 = vlaneseq
        %v1074 = vshrl.u32 %v1073, 7
        %v1075 = vsub.s32 0, %v1074
        %v1076 = vrot.slane %v1071, %v1075
        %v1094 = vunpack.c.l.b16 %v1055
        %v1095 = vunpack.c.l.b16 %v1056
        %v1096 = vunpack.c.l.b16 %v1057
        %v1097 = vunpack.c.l.b16 %v1058
        %v1098 = vunpack.c.l.b16 %v1059
        %v1099 = vunpack.c.l.b16 %v1060
        %v1100 = vunpack.c.l.b16 %v1061
        %v1101 = vunpack.c.l.b16 %v1062
        %v1102 = vunpack.c.l.b16 %v1063
        %v1103 = vunpack.c.l.b16 %v1064
        %v1104 = vunpack.c.l.b16 %v1065
        %v1105 = vunpack.c.l.b16 %v1066
        %v1106 = vunpack.c.l.b16 %v1067
        %v1107 = vunpack.c.l.b16 %v1068
        %v1108 = vunpack.c.l.b16 %v1069
        %v1109 = vunpack.c.l.b16 %v1070
        %v1110 = vpack.c.b16 %v1095, %v1094
        %v1111 = vpack.c.b16 %v1097, %v1096
        %v1112 = vpack.c.b16 %v1099, %v1098
        %v1113 = vpack.c.b16 %v1101, %v1100
        %v1114 = vpack.c.b16 %v1103, %v1102
        %v1115 = vpack.c.b16 %v1105, %v1104
        %v1116 = vpack.c.b16 %v1107, %v1106
        %v1117 = vpack.c.b16 %v1109, %v1108
        %1126 = vmatprep.subr.bf16.mxu0 0
        %1127 = vmatpush1.bf16.msra.mxu0 %v1110
        %1128 = vmatprep.subr.bf16.mxu0 0
        %1129 = vmatpush1.bf16.msra.mxu0 %v1111
        %1130 = vmatprep.subr.bf16.mxu0 0
        %1131 = vmatpush1.bf16.msra.mxu0 %v1112
        %1132 = vmatprep.subr.bf16.mxu0 0
        %1133 = vmatpush1.bf16.msra.mxu0 %v1113
        %1134 = vmatprep.subr.bf16.mxu0 0
        %1135 = vmatpush1.bf16.msra.mxu0 %v1114
        %1136 = vmatprep.subr.bf16.mxu0 0
        %1137 = vmatpush1.bf16.msra.mxu0 %v1115
        %1138 = vmatprep.subr.bf16.mxu0 0
        %1139 = vmatpush1.bf16.msra.mxu0 %v1116
        %1140 = vmatprep.subr.bf16.mxu0 0
        %1141 = vmatpush1.bf16.msra.mxu0 %v1117
        %1142 = vmatprep.subr.bf16.mxu0 0
        %1143 = vmatpush1.bf16.msra.mxu0 0
        %1144 = vmatprep.subr.bf16.mxu0 0
        %1145 = vmatpush1.bf16.msra.mxu0 0
        %1146 = vmatprep.subr.bf16.mxu0 0
        %1147 = vmatpush1.bf16.msra.mxu0 0
        %1148 = vmatprep.subr.bf16.mxu0 0
        %1149 = vmatpush1.bf16.msra.mxu0 0
        %1150 = vmatprep.subr.bf16.mxu0 0
        %1151 = vmatpush1.bf16.msra.mxu0 0
        %1152 = vmatprep.subr.bf16.mxu0 0
        %1153 = vmatpush1.bf16.msra.mxu0 0
        %1154 = vmatprep.subr.bf16.mxu0 0
        %1155 = vmatpush1.bf16.msra.mxu0 0
        %1156 = vmatprep.subr.bf16.mxu0 0
        %1157 = vmatpush1.bf16.msra.mxu0 0
        %1158 = vmatprep.mubr.bf16.mxu0 0
        %1159 = vmatmul.mubr.bf16.gmra.mrb[0].mxu0 %v1053
        %v1160 = vpop.f32.mrb[0].mxu0
        %v1161 = vadd.f32 %v1076, %v1160
        %v1162 = vpop.f32.mrb[0].mxu0
        %v1163 = vpop.f32.mrb[0].mxu0
        %v1164 = vadd.f32 %v1076, %v1163
        %v1165 = vpop.f32.mrb[0].mxu0
        %1166 = vmatprep.mubr.bf16.mxu0 0
        %1167 = vmatmul.mubr.bf16.gmra.mrb[0].mxu0 %v1054
        %v1168 = vpop.f32.mrb[0].mxu0
        %v1169 = vadd.f32 %v1076, %v1168
        %v1170 = vpop.f32.mrb[0].mxu0
        %v1171 = vpop.f32.mrb[0].mxu0
        %v1172 = vadd.f32 %v1076, %v1171
        %v1173 = vpop.f32.mrb[0].mxu0
        %1174 = vdwg.mxu0
        %v1175 = vpack.c.bf16 %v924, %v923
        %v1176 = vpack.c.bf16 %v926, %v925
        %v1177 = vld [vmem:[#allocation14] sm:$0xf]
        %v1178 = vld [vmem:[#allocation14 + $0x4] sm:$0xf]
        %v1179 = vld [vmem:[#allocation14 + $0x8] sm:$0xf]
        %v1180 = vld [vmem:[#allocation14 + $0xc] sm:$0xf]
        %v1181 = vld [vmem:[#allocation14 + $0x10] sm:$0xf]
        %v1182 = vld [vmem:[#allocation14 + $0x14] sm:$0xf]
        %v1183 = vld [vmem:[#allocation14 + $0x18] sm:$0xf]
        %v1184 = vld [vmem:[#allocation14 + $0x1c] sm:$0xf]
        %v1185 = vld [vmem:[#allocation14 + $0x20] sm:$0xf]
        %v1186 = vld [vmem:[#allocation14 + $0x24] sm:$0xf]
        %v1187 = vld [vmem:[#allocation14 + $0x28] sm:$0xf]
        %v1188 = vld [vmem:[#allocation14 + $0x2c] sm:$0xf]
        %v1189 = vld [vmem:[#allocation14 + $0x30] sm:$0xf]
        %v1190 = vld [vmem:[#allocation14 + $0x34] sm:$0xf]
        %v1191 = vld [vmem:[#allocation14 + $0x38] sm:$0xf]
        %v1192 = vld [vmem:[#allocation14 + $0x3c] sm:$0xf]
        %v1193 = vld [vmem:[#allocation16] sm:$0x1]
        %v1195 = vlaneseq
        %v1196 = vshrl.u32 %v1195, 7
        %v1197 = vsub.s32 0, %v1196
        %v1198 = vrot.slane %v1193, %v1197
        %v1216 = vunpack.c.l.b16 %v1177
        %v1217 = vunpack.c.l.b16 %v1178
        %v1218 = vunpack.c.l.b16 %v1179
        %v1219 = vunpack.c.l.b16 %v1180
        %v1220 = vunpack.c.l.b16 %v1181
        %v1221 = vunpack.c.l.b16 %v1182
        %v1222 = vunpack.c.l.b16 %v1183
        %v1223 = vunpack.c.l.b16 %v1184
        %v1224 = vunpack.c.l.b16 %v1185
        %v1225 = vunpack.c.l.b16 %v1186
        %v1226 = vunpack.c.l.b16 %v1187
        %v1227 = vunpack.c.l.b16 %v1188
        %v1228 = vunpack.c.l.b16 %v1189
        %v1229 = vunpack.c.l.b16 %v1190
        %v1230 = vunpack.c.l.b16 %v1191
        %v1231 = vunpack.c.l.b16 %v1192
        %v1232 = vpack.c.b16 %v1217, %v1216
        %v1233 = vpack.c.b16 %v1219, %v1218
        %v1234 = vpack.c.b16 %v1221, %v1220
        %v1235 = vpack.c.b16 %v1223, %v1222
        %v1236 = vpack.c.b16 %v1225, %v1224
        %v1237 = vpack.c.b16 %v1227, %v1226
        %v1238 = vpack.c.b16 %v1229, %v1228
        %v1239 = vpack.c.b16 %v1231, %v1230
        %1248 = vmatprep.subr.bf16.mxu0 0
        %1249 = vmatpush1.bf16.msra.mxu0 %v1232
        %1250 = vmatprep.subr.bf16.mxu0 0
        %1251 = vmatpush1.bf16.msra.mxu0 %v1233
        %1252 = vmatprep.subr.bf16.mxu0 0
        %1253 = vmatpush1.bf16.msra.mxu0 %v1234
        %1254 = vmatprep.subr.bf16.mxu0 0
        %1255 = vmatpush1.bf16.msra.mxu0 %v1235
        %1256 = vmatprep.subr.bf16.mxu0 0
        %1257 = vmatpush1.bf16.msra.mxu0 %v1236
        %1258 = vmatprep.subr.bf16.mxu0 0
        %1259 = vmatpush1.bf16.msra.mxu0 %v1237
        %1260 = vmatprep.subr.bf16.mxu0 0
        %1261 = vmatpush1.bf16.msra.mxu0 %v1238
        %1262 = vmatprep.subr.bf16.mxu0 0
        %1263 = vmatpush1.bf16.msra.mxu0 %v1239
        %1264 = vmatprep.subr.bf16.mxu0 0
        %1265 = vmatpush1.bf16.msra.mxu0 0
        %1266 = vmatprep.subr.bf16.mxu0 0
        %1267 = vmatpush1.bf16.msra.mxu0 0
        %1268 = vmatprep.subr.bf16.mxu0 0
        %1269 = vmatpush1.bf16.msra.mxu0 0
        %1270 = vmatprep.subr.bf16.mxu0 0
        %1271 = vmatpush1.bf16.msra.mxu0 0
        %1272 = vmatprep.subr.bf16.mxu0 0
        %1273 = vmatpush1.bf16.msra.mxu0 0
        %1274 = vmatprep.subr.bf16.mxu0 0
        %1275 = vmatpush1.bf16.msra.mxu0 0
        %1276 = vmatprep.subr.bf16.mxu0 0
        %1277 = vmatpush1.bf16.msra.mxu0 0
        %1278 = vmatprep.subr.bf16.mxu0 0
        %1279 = vmatpush1.bf16.msra.mxu0 0
        %1280 = vmatprep.mubr.bf16.mxu0 0
        %1281 = vmatmul.mubr.bf16.gmra.mrb[0].mxu0 %v1175
        %v1282 = vpop.f32.mrb[0].mxu0
        %v1283 = vadd.f32 %v1198, %v1282
        %v1284 = vpop.f32.mrb[0].mxu0
        %v1285 = vpop.f32.mrb[0].mxu0
        %v1286 = vadd.f32 %v1198, %v1285
        %v1287 = vpop.f32.mrb[0].mxu0
        %1288 = vmatprep.mubr.bf16.mxu0 0
        %1289 = vmatmul.mubr.bf16.gmra.mrb[0].mxu0 %v1176
        %v1290 = vpop.f32.mrb[0].mxu0
        %v1291 = vadd.f32 %v1198, %v1290
        %v1292 = vpop.f32.mrb[0].mxu0
        %v1293 = vpop.f32.mrb[0].mxu0
        %v1294 = vadd.f32 %v1198, %v1293
        %v1295 = vpop.f32.mrb[0].mxu0
        %1296 = vdwg.mxu0
        %v1297 = vpack.c.bf16 %v1050, %v1049
        %v1298 = vpack.c.bf16 %v1052, %v1051
        %v1299 = vpack.c.bf16 %v1164, %v1161
        %v1300 = vpack.c.bf16 %v1172, %v1169
        %v1301 = vpack.c.bf16 %v1286, %v1283
        %v1302 = vpack.c.bf16 %v1294, %v1291
        %v1303 = vlaneseq
        %v1304 = vshrl.u32 %v1303, 7
        %v1305 = vlaneseq
        %v1306 = vand.u32 %v1305, 127
        %vm1307 = vcmp.lt.s32.totalorder %v1306, %v1304
        %v1310 = vunpack.c.l.b16 %v1297
        %v1311 = vunpack.c.h.b16 %v1297
        %v1312 = vunpack.c.l.b16 %v1298
        %v1313 = vunpack.c.h.b16 %v1298
        %v1314 = vpack.c.b16 %v1310, %v1310
        %v1315 = vpack.c.b16 %v1311, %v1311
        %v1316 = vpack.c.b16 %v1312, %v1312
        %v1317 = vpack.c.b16 %v1313, %v1313
        %v1320 = vunpack.c.l.b16 %v1299
        %v1321 = vunpack.c.h.b16 %v1299
        %v1322 = vunpack.c.l.b16 %v1300
        %v1323 = vunpack.c.h.b16 %v1300
        %v1324 = vpack.c.b16 %v1320, %v1320
        %v1325 = vpack.c.b16 %v1321, %v1321
        %v1326 = vpack.c.b16 %v1322, %v1322
        %v1327 = vpack.c.b16 %v1323, %v1323
        %v1330 = vunpack.c.l.b16 %v1301
        %v1331 = vunpack.c.h.b16 %v1301
        %v1332 = vunpack.c.l.b16 %v1302
        %v1333 = vunpack.c.h.b16 %v1302
        %v1334 = vpack.c.b16 %v1330, %v1330
        %v1335 = vpack.c.b16 %v1331, %v1331
        %v1336 = vpack.c.b16 %v1332, %v1332
        %v1337 = vpack.c.b16 %v1333, %v1333
        %vm1338 = vcmask 523264
        %v1340 = vsel %vm1338, %v1314, 0
        %v1343 = vsel %vm1338, %v1324, 0
        %1345 = vmatprep.subr.bf16.mxu0 0
        %1346 = vmatpush1.bf16.xpose.msra.mxu0 %v1343
        %1347 = vmatprep.subr.bf16.mxu0 0
        %1348 = vmatpush1.bf16.xpose.msra.mxu0 0
        %1349 = vmatprep.subr.bf16.mxu0 0
        %1350 = vmatpush1.bf16.xpose.msra.mxu0 0
        %1351 = vmatprep.subr.bf16.mxu0 0
        %1352 = vmatpush1.bf16.xpose.msra.mxu0 0
        %1353 = vmatprep.subr.bf16.mxu0 0
        %1354 = vmatpush1.bf16.xpose.msra.mxu0 0
        %1355 = vmatprep.subr.bf16.mxu0 0
        %1356 = vmatpush1.bf16.xpose.msra.mxu0 0
        %1357 = vmatprep.subr.bf16.mxu0 0
        %1358 = vmatpush1.bf16.xpose.msra.mxu0 0
        %1359 = vmatprep.subr.bf16.mxu0 0
        %1360 = vmatpush1.bf16.xpose.msra.mxu0 0
        %1361 = vmatprep.subr.bf16.mxu0 0
        %1362 = vmatpush1.bf16.xpose.msra.mxu0 0
        %1363 = vmatprep.subr.bf16.mxu0 0
        %1364 = vmatpush1.bf16.xpose.msra.mxu0 0
        %1365 = vmatprep.subr.bf16.mxu0 0
        %1366 = vmatpush1.bf16.xpose.msra.mxu0 0
        %1367 = vmatprep.subr.bf16.mxu0 0
        %1368 = vmatpush1.bf16.xpose.msra.mxu0 0
        %1369 = vmatprep.subr.bf16.mxu0 0
        %1370 = vmatpush1.bf16.xpose.msra.mxu0 0
        %1371 = vmatprep.subr.bf16.mxu0 0
        %1372 = vmatpush1.bf16.xpose.msra.mxu0 0
        %1373 = vmatprep.subr.bf16.mxu0 0
        %1374 = vmatpush1.bf16.xpose.msra.mxu0 0
        %1375 = vmatprep.subr.bf16.mxu0 0
        %1376 = vmatpush1.bf16.xpose.msra.mxu0 0
        %1377 = vmatprep.mubr.bf16.mxu0 0
        %1378 = vmatmul.mubr.bf16.gmra.mrb[0].mxu0 %v1340
        %v1379 = vpop.f32.mrb[0].mxu0
        %v1380 = vadd.f32 0.0, %v1379
        %v1381 = vpop.f32.mrb[0].mxu0
        %v1382 = vpop.f32.mrb[0].mxu0
        %v1383 = vpop.f32.mrb[0].mxu0
        %1384 = vdwg.mxu0
        %v1386 = vsel %vm1338, %v1315, 0
        %v1389 = vsel %vm1338, %v1325, 0
        %1391 = vmatprep.subr.bf16.mxu0 0
        %1392 = vmatpush1.bf16.xpose.msra.mxu0 %v1389
        %1393 = vmatprep.subr.bf16.mxu0 0
        %1394 = vmatpush1.bf16.xpose.msra.mxu0 0
        %1395 = vmatprep.subr.bf16.mxu0 0
        %1396 = vmatpush1.bf16.xpose.msra.mxu0 0
        %1397 = vmatprep.subr.bf16.mxu0 0
        %1398 = vmatpush1.bf16.xpose.msra.mxu0 0
        %1399 = vmatprep.subr.bf16.mxu0 0
        %1400 = vmatpush1.bf16.xpose.msra.mxu0 0
        %1401 = vmatprep.subr.bf16.mxu0 0
        %1402 = vmatpush1.bf16.xpose.msra.mxu0 0
        %1403 = vmatprep.subr.bf16.mxu0 0
        %1404 = vmatpush1.bf16.xpose.msra.mxu0 0
        %1405 = vmatprep.subr.bf16.mxu0 0
        %1406 = vmatpush1.bf16.xpose.msra.mxu0 0
        %1407 = vmatprep.subr.bf16.mxu0 0
        %1408 = vmatpush1.bf16.xpose.msra.mxu0 0
        %1409 = vmatprep.subr.bf16.mxu0 0
        %1410 = vmatpush1.bf16.xpose.msra.mxu0 0
        %1411 = vmatprep.subr.bf16.mxu0 0
        %1412 = vmatpush1.bf16.xpose.msra.mxu0 0
        %1413 = vmatprep.subr.bf16.mxu0 0
        %1414 = vmatpush1.bf16.xpose.msra.mxu0 0
        %1415 = vmatprep.subr.bf16.mxu0 0
        %1416 = vmatpush1.bf16.xpose.msra.mxu0 0
        %1417 = vmatprep.subr.bf16.mxu0 0
        %1418 = vmatpush1.bf16.xpose.msra.mxu0 0
        %1419 = vmatprep.subr.bf16.mxu0 0
        %1420 = vmatpush1.bf16.xpose.msra.mxu0 0
        %1421 = vmatprep.subr.bf16.mxu0 0
        %1422 = vmatpush1.bf16.xpose.msra.mxu0 0
        %1423 = vmatprep.mubr.bf16.mxu0 0
        %1424 = vmatmul.mubr.bf16.gmra.mrb[0].mxu0 %v1386
        %v1425 = vpop.f32.mrb[0].mxu0
        %v1426 = vadd.f32 0.0, %v1425
        %v1427 = vpop.f32.mrb[0].mxu0
        %v1428 = vpop.f32.mrb[0].mxu0
        %v1429 = vpop.f32.mrb[0].mxu0
        %1430 = vdwg.mxu0
        %v1432 = vsel %vm1338, %v1316, 0
        %v1435 = vsel %vm1338, %v1326, 0
        %1437 = vmatprep.subr.bf16.mxu0 0
        %1438 = vmatpush1.bf16.xpose.msra.mxu0 %v1435
        %1439 = vmatprep.subr.bf16.mxu0 0
        %1440 = vmatpush1.bf16.xpose.msra.mxu0 0
        %1441 = vmatprep.subr.bf16.mxu0 0
        %1442 = vmatpush1.bf16.xpose.msra.mxu0 0
        %1443 = vmatprep.subr.bf16.mxu0 0
        %1444 = vmatpush1.bf16.xpose.msra.mxu0 0
        %1445 = vmatprep.subr.bf16.mxu0 0
        %1446 = vmatpush1.bf16.xpose.msra.mxu0 0
        %1447 = vmatprep.subr.bf16.mxu0 0
        %1448 = vmatpush1.bf16.xpose.msra.mxu0 0
        %1449 = vmatprep.subr.bf16.mxu0 0
        %1450 = vmatpush1.bf16.xpose.msra.mxu0 0
        %1451 = vmatprep.subr.bf16.mxu0 0
        %1452 = vmatpush1.bf16.xpose.msra.mxu0 0
        %1453 = vmatprep.subr.bf16.mxu0 0
        %1454 = vmatpush1.bf16.xpose.msra.mxu0 0
        %1455 = vmatprep.subr.bf16.mxu0 0
        %1456 = vmatpush1.bf16.xpose.msra.mxu0 0
        %1457 = vmatprep.subr.bf16.mxu0 0
        %1458 = vmatpush1.bf16.xpose.msra.mxu0 0
        %1459 = vmatprep.subr.bf16.mxu0 0
        %1460 = vmatpush1.bf16.xpose.msra.mxu0 0
        %1461 = vmatprep.subr.bf16.mxu0 0
        %1462 = vmatpush1.bf16.xpose.msra.mxu0 0
        %1463 = vmatprep.subr.bf16.mxu0 0
        %1464 = vmatpush1.bf16.xpose.msra.mxu0 0
        %1465 = vmatprep.subr.bf16.mxu0 0
        %1466 = vmatpush1.bf16.xpose.msra.mxu0 0
        %1467 = vmatprep.subr.bf16.mxu0 0
        %1468 = vmatpush1.bf16.xpose.msra.mxu0 0
        %1469 = vmatprep.mubr.bf16.mxu0 0
        %1470 = vmatmul.mubr.bf16.gmra.mrb[0].mxu0 %v1432
        %v1471 = vpop.f32.mrb[0].mxu0
        %v1472 = vadd.f32 0.0, %v1471
        %v1473 = vpop.f32.mrb[0].mxu0
        %v1474 = vpop.f32.mrb[0].mxu0
        %v1475 = vpop.f32.mrb[0].mxu0
        %1476 = vdwg.mxu0
        %v1478 = vsel %vm1338, %v1317, 0
        %v1481 = vsel %vm1338, %v1327, 0
        %1483 = vmatprep.subr.bf16.mxu0 0
        %1484 = vmatpush1.bf16.xpose.msra.mxu0 %v1481
        %1485 = vmatprep.subr.bf16.mxu0 0
        %1486 = vmatpush1.bf16.xpose.msra.mxu0 0
        %1487 = vmatprep.subr.bf16.mxu0 0
        %1488 = vmatpush1.bf16.xpose.msra.mxu0 0
        %1489 = vmatprep.subr.bf16.mxu0 0
        %1490 = vmatpush1.bf16.xpose.msra.mxu0 0
        %1491 = vmatprep.subr.bf16.mxu0 0
        %1492 = vmatpush1.bf16.xpose.msra.mxu0 0
        %1493 = vmatprep.subr.bf16.mxu0 0
        %1494 = vmatpush1.bf16.xpose.msra.mxu0 0
        %1495 = vmatprep.subr.bf16.mxu0 0
        %1496 = vmatpush1.bf16.xpose.msra.mxu0 0
        %1497 = vmatprep.subr.bf16.mxu0 0
        %1498 = vmatpush1.bf16.xpose.msra.mxu0 0
        %1499 = vmatprep.subr.bf16.mxu0 0
        %1500 = vmatpush1.bf16.xpose.msra.mxu0 0
        %1501 = vmatprep.subr.bf16.mxu0 0
        %1502 = vmatpush1.bf16.xpose.msra.mxu0 0
        %1503 = vmatprep.subr.bf16.mxu0 0
        %1504 = vmatpush1.bf16.xpose.msra.mxu0 0
        %1505 = vmatprep.subr.bf16.mxu0 0
        %1506 = vmatpush1.bf16.xpose.msra.mxu0 0
        %1507 = vmatprep.subr.bf16.mxu0 0
        %1508 = vmatpush1.bf16.xpose.msra.mxu0 0
        %1509 = vmatprep.subr.bf16.mxu0 0
        %1510 = vmatpush1.bf16.xpose.msra.mxu0 0
        %1511 = vmatprep.subr.bf16.mxu0 0
        %1512 = vmatpush1.bf16.xpose.msra.mxu0 0
        %1513 = vmatprep.subr.bf16.mxu0 0
        %1514 = vmatpush1.bf16.xpose.msra.mxu0 0
        %1515 = vmatprep.mubr.bf16.mxu0 0
        %1516 = vmatmul.mubr.bf16.gmra.mrb[0].mxu0 %v1478
        %v1517 = vpop.f32.mrb[0].mxu0
        %v1518 = vadd.f32 0.0, %v1517
        %v1519 = vpop.f32.mrb[0].mxu0
        %v1520 = vpop.f32.mrb[0].mxu0
        %v1521 = vpop.f32.mrb[0].mxu0
        %1522 = vdwg.mxu0
        %v1523 = vsel %vm1307, 1, 0
        %vm1524 = vcmp.eq.s32.totalorder %v1523, 1
        %v1525 = vsel %vm1524, %v1380, -1e+32
        %v1526 = vsel %vm1524, %v1426, -1e+32
        %v1527 = vsel %vm1524, %v1472, -1e+32
        %v1528 = vsel %vm1524, %v1518, -1e+32
        %vm1529 = vcmask 64512
        %v1530 = vsel %vm1529, %v1525, -inf
        %1531 = vmax.xlane.f32.xlu0 %v1530
        %v1532 = vpop.xlane.xlu0 %1531
        %v1533 = vsel %vm1529, %v1526, -inf
        %1534 = vmax.xlane.f32.xlu0 %v1533
        %v1535 = vpop.xlane.xlu0 %1534
        %v1536 = vsel %vm1529, %v1527, -inf
        %1537 = vmax.xlane.f32.xlu0 %v1536
        %v1538 = vpop.xlane.xlu0 %1537
        %v1539 = vsel %vm1529, %v1528, -inf
        %1540 = vmax.xlane.f32.xlu0 %v1539
        %v1541 = vpop.xlane.xlu0 %1540
        %v1542 = vsub.f32 %v1525, %v1532
        %v1543 = vsub.f32 %v1526, %v1535
        %v1544 = vsub.f32 %v1527, %v1538
        %v1545 = vsub.f32 %v1528, %v1541
        %v1546 = vmul.f32 %v1542, 1.442695
        %v1547 = vpow.pop %v1546
        %v1548 = vmul.f32 %v1543, 1.442695
        %v1549 = vpow.pop %v1548
        %v1550 = vmul.f32 %v1544, 1.442695
        %v1551 = vpow.pop %v1550
        %v1552 = vmul.f32 %v1545, 1.442695
        %v1553 = vpow.pop %v1552
        %v1554 = vsel %vm1529, %v1547, 0.0
        %1555 = vadd.xlane.f32.xlu0 %v1554
        %v1556 = vpop.xlane.xlu0 %1555
        %v1557 = vsel %vm1529, %v1549, 0.0
        %1558 = vadd.xlane.f32.xlu0 %v1557
        %v1559 = vpop.xlane.xlu0 %1558
        %v1560 = vsel %vm1529, %v1551, 0.0
        %1561 = vadd.xlane.f32.xlu0 %v1560
        %v1562 = vpop.xlane.xlu0 %1561
        %v1563 = vsel %vm1529, %v1553, 0.0
        %1564 = vadd.xlane.f32.xlu0 %v1563
        %v1565 = vpop.xlane.xlu0 %1564
        %v1566 = vrcp.pop %v1556
        %v1567 = vrcp.pop %v1559
        %v1568 = vrcp.pop %v1562
        %v1569 = vrcp.pop %v1565
        %v1570 = vmul.f32 %v1547, %v1566
        %v1571 = vmul.f32 %v1549, %v1567
        %v1572 = vmul.f32 %v1551, %v1568
        %v1573 = vmul.f32 %v1553, %v1569
        %v1574 = vpack.c.bf16 %v1570, %v1570
        %v1575 = vpack.c.bf16 %v1571, %v1571
        %v1576 = vpack.c.bf16 %v1572, %v1572
        %v1577 = vpack.c.bf16 %v1573, %v1573
        %v1579 = vsel %vm1529, %v1574, 0
        %vm1581 = vcmask 1043456
        %v1583 = vsel %vm1581, %v1334, 0
        %1585 = vmatprep.subr.bf16.mxu0 0
        %1586 = vmatpush1.bf16.msra.mxu0 %v1583
        %1587 = vmatprep.subr.bf16.mxu0 0
        %1588 = vmatpush1.bf16.msra.mxu0 0
        %1589 = vmatprep.subr.bf16.mxu0 0
        %1590 = vmatpush1.bf16.msra.mxu0 0
        %1591 = vmatprep.subr.bf16.mxu0 0
        %1592 = vmatpush1.bf16.msra.mxu0 0
        %1593 = vmatprep.subr.bf16.mxu0 0
        %1594 = vmatpush1.bf16.msra.mxu0 0
        %1595 = vmatprep.subr.bf16.mxu0 0
        %1596 = vmatpush1.bf16.msra.mxu0 0
        %1597 = vmatprep.subr.bf16.mxu0 0
        %1598 = vmatpush1.bf16.msra.mxu0 0
        %1599 = vmatprep.subr.bf16.mxu0 0
        %1600 = vmatpush1.bf16.msra.mxu0 0
        %1601 = vmatprep.subr.bf16.mxu0 0
        %1602 = vmatpush1.bf16.msra.mxu0 0
        %1603 = vmatprep.subr.bf16.mxu0 0
        %1604 = vmatpush1.bf16.msra.mxu0 0
        %1605 = vmatprep.subr.bf16.mxu0 0
        %1606 = vmatpush1.bf16.msra.mxu0 0
        %1607 = vmatprep.subr.bf16.mxu0 0
        %1608 = vmatpush1.bf16.msra.mxu0 0
        %1609 = vmatprep.subr.bf16.mxu0 0
        %1610 = vmatpush1.bf16.msra.mxu0 0
        %1611 = vmatprep.subr.bf16.mxu0 0
        %1612 = vmatpush1.bf16.msra.mxu0 0
        %1613 = vmatprep.subr.bf16.mxu0 0
        %1614 = vmatpush1.bf16.msra.mxu0 0
        %1615 = vmatprep.subr.bf16.mxu0 0
        %1616 = vmatpush1.bf16.msra.mxu0 0
        %1617 = vmatprep.mubr.bf16.mxu0 0
        %1618 = vmatmul.mubr.bf16.gmra.mrb[0].mxu0 %v1579
        %v1619 = vpop.f32.mrb[0].mxu0
        %v1620 = vadd.f32 0.0, %v1619
        %v1621 = vpop.f32.mrb[0].mxu0
        %v1622 = vpop.f32.mrb[0].mxu0
        %v1623 = vpop.f32.mrb[0].mxu0
        %1624 = vdwg.mxu0
        %v1626 = vsel %vm1529, %v1575, 0
        %v1629 = vsel %vm1581, %v1335, 0
        %1631 = vmatprep.subr.bf16.mxu0 0
        %1632 = vmatpush1.bf16.msra.mxu0 %v1629
        %1633 = vmatprep.subr.bf16.mxu0 0
        %1634 = vmatpush1.bf16.msra.mxu0 0
        %1635 = vmatprep.subr.bf16.mxu0 0
        %1636 = vmatpush1.bf16.msra.mxu0 0
        %1637 = vmatprep.subr.bf16.mxu0 0
        %1638 = vmatpush1.bf16.msra.mxu0 0
        %1639 = vmatprep.subr.bf16.mxu0 0
        %1640 = vmatpush1.bf16.msra.mxu0 0
        %1641 = vmatprep.subr.bf16.mxu0 0
        %1642 = vmatpush1.bf16.msra.mxu0 0
        %1643 = vmatprep.subr.bf16.mxu0 0
        %1644 = vmatpush1.bf16.msra.mxu0 0
        %1645 = vmatprep.subr.bf16.mxu0 0
        %1646 = vmatpush1.bf16.msra.mxu0 0
        %1647 = vmatprep.subr.bf16.mxu0 0
        %1648 = vmatpush1.bf16.msra.mxu0 0
        %1649 = vmatprep.subr.bf16.mxu0 0
        %1650 = vmatpush1.bf16.msra.mxu0 0
        %1651 = vmatprep.subr.bf16.mxu0 0
        %1652 = vmatpush1.bf16.msra.mxu0 0
        %1653 = vmatprep.subr.bf16.mxu0 0
        %1654 = vmatpush1.bf16.msra.mxu0 0
        %1655 = vmatprep.subr.bf16.mxu0 0
        %1656 = vmatpush1.bf16.msra.mxu0 0
        %1657 = vmatprep.subr.bf16.mxu0 0
        %1658 = vmatpush1.bf16.msra.mxu0 0
        %1659 = vmatprep.subr.bf16.mxu0 0
        %1660 = vmatpush1.bf16.msra.mxu0 0
        %1661 = vmatprep.subr.bf16.mxu0 0
        %1662 = vmatpush1.bf16.msra.mxu0 0
        %1663 = vmatprep.mubr.bf16.mxu0 0
        %1664 = vmatmul.mubr.bf16.gmra.mrb[0].mxu0 %v1626
        %v1665 = vpop.f32.mrb[0].mxu0
        %v1666 = vadd.f32 0.0, %v1665
        %v1667 = vpop.f32.mrb[0].mxu0
        %v1668 = vpop.f32.mrb[0].mxu0
        %v1669 = vpop.f32.mrb[0].mxu0
        %1670 = vdwg.mxu0
        %v1672 = vsel %vm1529, %v1576, 0
        %v1675 = vsel %vm1581, %v1336, 0
        %1677 = vmatprep.subr.bf16.mxu0 0
        %1678 = vmatpush1.bf16.msra.mxu0 %v1675
        %1679 = vmatprep.subr.bf16.mxu0 0
        %1680 = vmatpush1.bf16.msra.mxu0 0
        %1681 = vmatprep.subr.bf16.mxu0 0
        %1682 = vmatpush1.bf16.msra.mxu0 0
        %1683 = vmatprep.subr.bf16.mxu0 0
        %1684 = vmatpush1.bf16.msra.mxu0 0
        %1685 = vmatprep.subr.bf16.mxu0 0
        %1686 = vmatpush1.bf16.msra.mxu0 0
        %1687 = vmatprep.subr.bf16.mxu0 0
        %1688 = vmatpush1.bf16.msra.mxu0 0
        %1689 = vmatprep.subr.bf16.mxu0 0
        %1690 = vmatpush1.bf16.msra.mxu0 0
        %1691 = vmatprep.subr.bf16.mxu0 0
        %1692 = vmatpush1.bf16.msra.mxu0 0
        %1693 = vmatprep.subr.bf16.mxu0 0
        %1694 = vmatpush1.bf16.msra.mxu0 0
        %1695 = vmatprep.subr.bf16.mxu0 0
        %1696 = vmatpush1.bf16.msra.mxu0 0
        %1697 = vmatprep.subr.bf16.mxu0 0
        %1698 = vmatpush1.bf16.msra.mxu0 0
        %1699 = vmatprep.subr.bf16.mxu0 0
        %1700 = vmatpush1.bf16.msra.mxu0 0
        %1701 = vmatprep.subr.bf16.mxu0 0
        %1702 = vmatpush1.bf16.msra.mxu0 0
        %1703 = vmatprep.subr.bf16.mxu0 0
        %1704 = vmatpush1.bf16.msra.mxu0 0
        %1705 = vmatprep.subr.bf16.mxu0 0
        %1706 = vmatpush1.bf16.msra.mxu0 0
        %1707 = vmatprep.subr.bf16.mxu0 0
        %1708 = vmatpush1.bf16.msra.mxu0 0
        %1709 = vmatprep.mubr.bf16.mxu0 0
        %1710 = vmatmul.mubr.bf16.gmra.mrb[0].mxu0 %v1672
        %v1711 = vpop.f32.mrb[0].mxu0
        %v1712 = vadd.f32 0.0, %v1711
        %v1713 = vpop.f32.mrb[0].mxu0
        %v1714 = vpop.f32.mrb[0].mxu0
        %v1715 = vpop.f32.mrb[0].mxu0
        %1716 = vdwg.mxu0
        %v1718 = vsel %vm1529, %v1577, 0
        %v1721 = vsel %vm1581, %v1337, 0
        %1723 = vmatprep.subr.bf16.mxu0 0
        %1724 = vmatpush1.bf16.msra.mxu0 %v1721
        %1725 = vmatprep.subr.bf16.mxu0 0
        %1726 = vmatpush1.bf16.msra.mxu0 0
        %1727 = vmatprep.subr.bf16.mxu0 0
        %1728 = vmatpush1.bf16.msra.mxu0 0
        %1729 = vmatprep.subr.bf16.mxu0 0
        %1730 = vmatpush1.bf16.msra.mxu0 0
        %1731 = vmatprep.subr.bf16.mxu0 0
        %1732 = vmatpush1.bf16.msra.mxu0 0
        %1733 = vmatprep.subr.bf16.mxu0 0
        %1734 = vmatpush1.bf16.msra.mxu0 0
        %1735 = vmatprep.subr.bf16.mxu0 0
        %1736 = vmatpush1.bf16.msra.mxu0 0
        %1737 = vmatprep.subr.bf16.mxu0 0
        %1738 = vmatpush1.bf16.msra.mxu0 0
        %1739 = vmatprep.subr.bf16.mxu0 0
        %1740 = vmatpush1.bf16.msra.mxu0 0
        %1741 = vmatprep.subr.bf16.mxu0 0
        %1742 = vmatpush1.bf16.msra.mxu0 0
        %1743 = vmatprep.subr.bf16.mxu0 0
        %1744 = vmatpush1.bf16.msra.mxu0 0
        %1745 = vmatprep.subr.bf16.mxu0 0
        %1746 = vmatpush1.bf16.msra.mxu0 0
        %1747 = vmatprep.subr.bf16.mxu0 0
        %1748 = vmatpush1.bf16.msra.mxu0 0
        %1749 = vmatprep.subr.bf16.mxu0 0
        %1750 = vmatpush1.bf16.msra.mxu0 0
        %1751 = vmatprep.subr.bf16.mxu0 0
        %1752 = vmatpush1.bf16.msra.mxu0 0
        %1753 = vmatprep.subr.bf16.mxu0 0
        %1754 = vmatpush1.bf16.msra.mxu0 0
        %1755 = vmatprep.mubr.bf16.mxu0 0
        %1756 = vmatmul.mubr.bf16.gmra.mrb[0].mxu0 %v1718
        %v1757 = vpop.f32.mrb[0].mxu0
        %v1758 = vadd.f32 0.0, %v1757
        %v1759 = vpop.f32.mrb[0].mxu0
        %v1760 = vpop.f32.mrb[0].mxu0
        %v1761 = vpop.f32.mrb[0].mxu0
        %1762 = vdwg.mxu0
        %v1763 = vpack.c.bf16 %v1666, %v1620
        %v1764 = vpack.c.bf16 %v1758, %v1712
        %v1765 = vld [vmem:[#allocation17] sm:$0xf]
        %v1766 = vld [vmem:[#allocation17 + $0x4] sm:$0xf]
        %v1767 = vld [vmem:[#allocation17 + $0x8] sm:$0xf]
        %v1768 = vld [vmem:[#allocation17 + $0xc] sm:$0xf]
        %v1769 = vld [vmem:[#allocation17 + $0x10] sm:$0xf]
        %v1770 = vld [vmem:[#allocation17 + $0x14] sm:$0xf]
        %v1771 = vld [vmem:[#allocation17 + $0x18] sm:$0xf]
        %v1772 = vld [vmem:[#allocation17 + $0x1c] sm:$0xf]
        %1773 = vrot.lane.b32.xlu0 %v1314, 64
        %v1774 = vpop.permute.xlu0 %1773
        %1775 = vrot.lane.b32.xlu0 %v1324, 64
        %v1776 = vpop.permute.xlu0 %1775
        %v1778 = vsel %vm1338, %v1774, 0
        %v1781 = vsel %vm1338, %v1776, 0
        %1783 = vmatprep.subr.bf16.mxu0 0
        %1784 = vmatpush1.bf16.xpose.msra.mxu0 %v1781
        %1785 = vmatprep.subr.bf16.mxu0 0
        %1786 = vmatpush1.bf16.xpose.msra.mxu0 0
        %1787 = vmatprep.subr.bf16.mxu0 0
        %1788 = vmatpush1.bf16.xpose.msra.mxu0 0
        %1789 = vmatprep.subr.bf16.mxu0 0
        %1790 = vmatpush1.bf16.xpose.msra.mxu0 0
        %1791 = vmatprep.subr.bf16.mxu0 0
        %1792 = vmatpush1.bf16.xpose.msra.mxu0 0
        %1793 = vmatprep.subr.bf16.mxu0 0
        %1794 = vmatpush1.bf16.xpose.msra.mxu0 0
        %1795 = vmatprep.subr.bf16.mxu0 0
        %1796 = vmatpush1.bf16.xpose.msra.mxu0 0
        %1797 = vmatprep.subr.bf16.mxu0 0
        %1798 = vmatpush1.bf16.xpose.msra.mxu0 0
        %1799 = vmatprep.subr.bf16.mxu0 0
        %1800 = vmatpush1.bf16.xpose.msra.mxu0 0
        %1801 = vmatprep.subr.bf16.mxu0 0
        %1802 = vmatpush1.bf16.xpose.msra.mxu0 0
        %1803 = vmatprep.subr.bf16.mxu0 0
        %1804 = vmatpush1.bf16.xpose.msra.mxu0 0
        %1805 = vmatprep.subr.bf16.mxu0 0
        %1806 = vmatpush1.bf16.xpose.msra.mxu0 0
        %1807 = vmatprep.subr.bf16.mxu0 0
        %1808 = vmatpush1.bf16.xpose.msra.mxu0 0
        %1809 = vmatprep.subr.bf16.mxu0 0
        %1810 = vmatpush1.bf16.xpose.msra.mxu0 0
        %1811 = vmatprep.subr.bf16.mxu0 0
        %1812 = vmatpush1.bf16.xpose.msra.mxu0 0
        %1813 = vmatprep.subr.bf16.mxu0 0
        %1814 = vmatpush1.bf16.xpose.msra.mxu0 0
        %1815 = vmatprep.mubr.bf16.mxu0 0
        %1816 = vmatmul.mubr.bf16.gmra.mrb[0].mxu0 %v1778
        %v1817 = vpop.f32.mrb[0].mxu0
        %v1818 = vadd.f32 0.0, %v1817
        %v1819 = vpop.f32.mrb[0].mxu0
        %v1820 = vpop.f32.mrb[0].mxu0
        %v1821 = vpop.f32.mrb[0].mxu0
        %1822 = vdwg.mxu0
        %1823 = vrot.lane.b32.xlu0 %v1315, 64
        %v1824 = vpop.permute.xlu0 %1823
        %1825 = vrot.lane.b32.xlu0 %v1325, 64
        %v1826 = vpop.permute.xlu0 %1825
        %v1828 = vsel %vm1338, %v1824, 0
        %v1831 = vsel %vm1338, %v1826, 0
        %1833 = vmatprep.subr.bf16.mxu0 0
        %1834 = vmatpush1.bf16.xpose.msra.mxu0 %v1831
        %1835 = vmatprep.subr.bf16.mxu0 0
        %1836 = vmatpush1.bf16.xpose.msra.mxu0 0
        %1837 = vmatprep.subr.bf16.mxu0 0
        %1838 = vmatpush1.bf16.xpose.msra.mxu0 0
        %1839 = vmatprep.subr.bf16.mxu0 0
        %1840 = vmatpush1.bf16.xpose.msra.mxu0 0
        %1841 = vmatprep.subr.bf16.mxu0 0
        %1842 = vmatpush1.bf16.xpose.msra.mxu0 0
        %1843 = vmatprep.subr.bf16.mxu0 0
        %1844 = vmatpush1.bf16.xpose.msra.mxu0 0
        %1845 = vmatprep.subr.bf16.mxu0 0
        %1846 = vmatpush1.bf16.xpose.msra.mxu0 0
        %1847 = vmatprep.subr.bf16.mxu0 0
        %1848 = vmatpush1.bf16.xpose.msra.mxu0 0
        %1849 = vmatprep.subr.bf16.mxu0 0
        %1850 = vmatpush1.bf16.xpose.msra.mxu0 0
        %1851 = vmatprep.subr.bf16.mxu0 0
        %1852 = vmatpush1.bf16.xpose.msra.mxu0 0
        %1853 = vmatprep.subr.bf16.mxu0 0
        %1854 = vmatpush1.bf16.xpose.msra.mxu0 0
        %1855 = vmatprep.subr.bf16.mxu0 0
        %1856 = vmatpush1.bf16.xpose.msra.mxu0 0
        %1857 = vmatprep.subr.bf16.mxu0 0
        %1858 = vmatpush1.bf16.xpose.msra.mxu0 0
        %1859 = vmatprep.subr.bf16.mxu0 0
        %1860 = vmatpush1.bf16.xpose.msra.mxu0 0
        %1861 = vmatprep.subr.bf16.mxu0 0
        %1862 = vmatpush1.bf16.xpose.msra.mxu0 0
        %1863 = vmatprep.subr.bf16.mxu0 0
        %1864 = vmatpush1.bf16.xpose.msra.mxu0 0
        %1865 = vmatprep.mubr.bf16.mxu0 0
        %1866 = vmatmul.mubr.bf16.gmra.mrb[0].mxu0 %v1828
        %v1867 = vpop.f32.mrb[0].mxu0
        %v1868 = vadd.f32 0.0, %v1867
        %v1869 = vpop.f32.mrb[0].mxu0
        %v1870 = vpop.f32.mrb[0].mxu0
        %v1871 = vpop.f32.mrb[0].mxu0
        %1872 = vdwg.mxu0
        %1873 = vrot.lane.b32.xlu0 %v1316, 64
        %v1874 = vpop.permute.xlu0 %1873
        %1875 = vrot.lane.b32.xlu0 %v1326, 64
        %v1876 = vpop.permute.xlu0 %1875
        %v1878 = vsel %vm1338, %v1874, 0
        %v1881 = vsel %vm1338, %v1876, 0
        %1883 = vmatprep.subr.bf16.mxu0 0
        %1884 = vmatpush1.bf16.xpose.msra.mxu0 %v1881
        %1885 = vmatprep.subr.bf16.mxu0 0
        %1886 = vmatpush1.bf16.xpose.msra.mxu0 0
        %1887 = vmatprep.subr.bf16.mxu0 0
        %1888 = vmatpush1.bf16.xpose.msra.mxu0 0
        %1889 = vmatprep.subr.bf16.mxu0 0
        %1890 = vmatpush1.bf16.xpose.msra.mxu0 0
        %1891 = vmatprep.subr.bf16.mxu0 0
        %1892 = vmatpush1.bf16.xpose.msra.mxu0 0
        %1893 = vmatprep.subr.bf16.mxu0 0
        %1894 = vmatpush1.bf16.xpose.msra.mxu0 0
        %1895 = vmatprep.subr.bf16.mxu0 0
        %1896 = vmatpush1.bf16.xpose.msra.mxu0 0
        %1897 = vmatprep.subr.bf16.mxu0 0
        %1898 = vmatpush1.bf16.xpose.msra.mxu0 0
        %1899 = vmatprep.subr.bf16.mxu0 0
        %1900 = vmatpush1.bf16.xpose.msra.mxu0 0
        %1901 = vmatprep.subr.bf16.mxu0 0
        %1902 = vmatpush1.bf16.xpose.msra.mxu0 0
        %1903 = vmatprep.subr.bf16.mxu0 0
        %1904 = vmatpush1.bf16.xpose.msra.mxu0 0
        %1905 = vmatprep.subr.bf16.mxu0 0
        %1906 = vmatpush1.bf16.xpose.msra.mxu0 0
        %1907 = vmatprep.subr.bf16.mxu0 0
        %1908 = vmatpush1.bf16.xpose.msra.mxu0 0
        %1909 = vmatprep.subr.bf16.mxu0 0
        %1910 = vmatpush1.bf16.xpose.msra.mxu0 0
        %1911 = vmatprep.subr.bf16.mxu0 0
        %1912 = vmatpush1.bf16.xpose.msra.mxu0 0
        %1913 = vmatprep.subr.bf16.mxu0 0
        %1914 = vmatpush1.bf16.xpose.msra.mxu0 0
        %1915 = vmatprep.mubr.bf16.mxu0 0
        %1916 = vmatmul.mubr.bf16.gmra.mrb[0].mxu0 %v1878
        %v1917 = vpop.f32.mrb[0].mxu0
        %v1918 = vadd.f32 0.0, %v1917
        %v1919 = vpop.f32.mrb[0].mxu0
        %v1920 = vpop.f32.mrb[0].mxu0
        %v1921 = vpop.f32.mrb[0].mxu0
        %1922 = vdwg.mxu0
        %1923 = vrot.lane.b32.xlu0 %v1317, 64
        %v1924 = vpop.permute.xlu0 %1923
        %1925 = vrot.lane.b32.xlu0 %v1327, 64
        %v1926 = vpop.permute.xlu0 %1925
        %v1928 = vsel %vm1338, %v1924, 0
        %v1931 = vsel %vm1338, %v1926, 0
        %1933 = vmatprep.subr.bf16.mxu0 0
        %1934 = vmatpush1.bf16.xpose.msra.mxu0 %v1931
        %1935 = vmatprep.subr.bf16.mxu0 0
        %1936 = vmatpush1.bf16.xpose.msra.mxu0 0
        %1937 = vmatprep.subr.bf16.mxu0 0
        %1938 = vmatpush1.bf16.xpose.msra.mxu0 0
        %1939 = vmatprep.subr.bf16.mxu0 0
        %1940 = vmatpush1.bf16.xpose.msra.mxu0 0
        %1941 = vmatprep.subr.bf16.mxu0 0
        %1942 = vmatpush1.bf16.xpose.msra.mxu0 0
        %1943 = vmatprep.subr.bf16.mxu0 0
        %1944 = vmatpush1.bf16.xpose.msra.mxu0 0
        %1945 = vmatprep.subr.bf16.mxu0 0
        %1946 = vmatpush1.bf16.xpose.msra.mxu0 0
        %1947 = vmatprep.subr.bf16.mxu0 0
        %1948 = vmatpush1.bf16.xpose.msra.mxu0 0
        %1949 = vmatprep.subr.bf16.mxu0 0
        %1950 = vmatpush1.bf16.xpose.msra.mxu0 0
        %1951 = vmatprep.subr.bf16.mxu0 0
        %1952 = vmatpush1.bf16.xpose.msra.mxu0 0
        %1953 = vmatprep.subr.bf16.mxu0 0
        %1954 = vmatpush1.bf16.xpose.msra.mxu0 0
        %1955 = vmatprep.subr.bf16.mxu0 0
        %1956 = vmatpush1.bf16.xpose.msra.mxu0 0
        %1957 = vmatprep.subr.bf16.mxu0 0
        %1958 = vmatpush1.bf16.xpose.msra.mxu0 0
        %1959 = vmatprep.subr.bf16.mxu0 0
        %1960 = vmatpush1.bf16.xpose.msra.mxu0 0
        %1961 = vmatprep.subr.bf16.mxu0 0
        %1962 = vmatpush1.bf16.xpose.msra.mxu0 0
        %1963 = vmatprep.subr.bf16.mxu0 0
        %1964 = vmatpush1.bf16.xpose.msra.mxu0 0
        %1965 = vmatprep.mubr.bf16.mxu0 0
        %1966 = vmatmul.mubr.bf16.gmra.mrb[0].mxu0 %v1928
        %v1967 = vpop.f32.mrb[0].mxu0
        %v1968 = vadd.f32 0.0, %v1967
        %v1969 = vpop.f32.mrb[0].mxu0
        %v1970 = vpop.f32.mrb[0].mxu0
        %v1971 = vpop.f32.mrb[0].mxu0
        %1972 = vdwg.mxu0
        %v1973 = vsel %vm1524, %v1818, -1e+32
        %v1974 = vsel %vm1524, %v1868, -1e+32
        %v1975 = vsel %vm1524, %v1918, -1e+32
        %v1976 = vsel %vm1524, %v1968, -1e+32
        %v1977 = vsel %vm1529, %v1973, -inf
        %1978 = vmax.xlane.f32.xlu0 %v1977
        %v1979 = vpop.xlane.xlu0 %1978
        %v1980 = vsel %vm1529, %v1974, -inf
        %1981 = vmax.xlane.f32.xlu0 %v1980
        %v1982 = vpop.xlane.xlu0 %1981
        %v1983 = vsel %vm1529, %v1975, -inf
        %1984 = vmax.xlane.f32.xlu0 %v1983
        %v1985 = vpop.xlane.xlu0 %1984
        %v1986 = vsel %vm1529, %v1976, -inf
        %1987 = vmax.xlane.f32.xlu0 %v1986
        %v1988 = vpop.xlane.xlu0 %1987
        %v1989 = vsub.f32 %v1973, %v1979
        %v1990 = vsub.f32 %v1974, %v1982
        %v1991 = vsub.f32 %v1975, %v1985
        %v1992 = vsub.f32 %v1976, %v1988
        %v1993 = vmul.f32 %v1989, 1.442695
        %v1994 = vpow.pop %v1993
        %v1995 = vmul.f32 %v1990, 1.442695
        %v1996 = vpow.pop %v1995
        %v1997 = vmul.f32 %v1991, 1.442695
        %v1998 = vpow.pop %v1997
        %v1999 = vmul.f32 %v1992, 1.442695
        %v2000 = vpow.pop %v1999
        %v2001 = vsel %vm1529, %v1994, 0.0
        %2002 = vadd.xlane.f32.xlu0 %v2001
        %v2003 = vpop.xlane.xlu0 %2002
        %v2004 = vsel %vm1529, %v1996, 0.0
        %2005 = vadd.xlane.f32.xlu0 %v2004
        %v2006 = vpop.xlane.xlu0 %2005
        %v2007 = vsel %vm1529, %v1998, 0.0
        %2008 = vadd.xlane.f32.xlu0 %v2007
        %v2009 = vpop.xlane.xlu0 %2008
        %v2010 = vsel %vm1529, %v2000, 0.0
        %2011 = vadd.xlane.f32.xlu0 %v2010
        %v2012 = vpop.xlane.xlu0 %2011
        %v2013 = vrcp.pop %v2003
        %v2014 = vrcp.pop %v2006
        %v2015 = vrcp.pop %v2009
        %v2016 = vrcp.pop %v2012
        %v2017 = vmul.f32 %v1994, %v2013
        %v2018 = vmul.f32 %v1996, %v2014
        %v2019 = vmul.f32 %v1998, %v2015
        %v2020 = vmul.f32 %v2000, %v2016
        %v2021 = vpack.c.bf16 %v2017, %v2017
        %v2022 = vpack.c.bf16 %v2018, %v2018
        %v2023 = vpack.c.bf16 %v2019, %v2019
        %v2024 = vpack.c.bf16 %v2020, %v2020
        %2025 = vrot.lane.b32.xlu0 %v1334, 64
        %v2026 = vpop.permute.xlu0 %2025
        %v2028 = vsel %vm1529, %v2021, 0
        %v2031 = vsel %vm1581, %v2026, 0
        %2033 = vmatprep.subr.bf16.mxu0 0
        %2034 = vmatpush1.bf16.msra.mxu0 %v2031
        %2035 = vmatprep.subr.bf16.mxu0 0
        %2036 = vmatpush1.bf16.msra.mxu0 0
        %2037 = vmatprep.subr.bf16.mxu0 0
        %2038 = vmatpush1.bf16.msra.mxu0 0
        %2039 = vmatprep.subr.bf16.mxu0 0
        %2040 = vmatpush1.bf16.msra.mxu0 0
        %2041 = vmatprep.subr.bf16.mxu0 0
        %2042 = vmatpush1.bf16.msra.mxu0 0
        %2043 = vmatprep.subr.bf16.mxu0 0
        %2044 = vmatpush1.bf16.msra.mxu0 0
        %2045 = vmatprep.subr.bf16.mxu0 0
        %2046 = vmatpush1.bf16.msra.mxu0 0
        %2047 = vmatprep.subr.bf16.mxu0 0
        %2048 = vmatpush1.bf16.msra.mxu0 0
        %2049 = vmatprep.subr.bf16.mxu0 0
        %2050 = vmatpush1.bf16.msra.mxu0 0
        %2051 = vmatprep.subr.bf16.mxu0 0
        %2052 = vmatpush1.bf16.msra.mxu0 0
        %2053 = vmatprep.subr.bf16.mxu0 0
        %2054 = vmatpush1.bf16.msra.mxu0 0
        %2055 = vmatprep.subr.bf16.mxu0 0
        %2056 = vmatpush1.bf16.msra.mxu0 0
        %2057 = vmatprep.subr.bf16.mxu0 0
        %2058 = vmatpush1.bf16.msra.mxu0 0
        %2059 = vmatprep.subr.bf16.mxu0 0
        %2060 = vmatpush1.bf16.msra.mxu0 0
        %2061 = vmatprep.subr.bf16.mxu0 0
        %2062 = vmatpush1.bf16.msra.mxu0 0
        %2063 = vmatprep.subr.bf16.mxu0 0
        %2064 = vmatpush1.bf16.msra.mxu0 0
        %2065 = vmatprep.mubr.bf16.mxu0 0
        %2066 = vmatmul.mubr.bf16.gmra.mrb[0].mxu0 %v2028
        %v2067 = vpop.f32.mrb[0].mxu0
        %v2068 = vadd.f32 0.0, %v2067
        %v2069 = vpop.f32.mrb[0].mxu0
        %v2070 = vpop.f32.mrb[0].mxu0
        %v2071 = vpop.f32.mrb[0].mxu0
        %2072 = vdwg.mxu0
        %2073 = vrot.lane.b32.xlu0 %v1335, 64
        %v2074 = vpop.permute.xlu0 %2073
        %v2076 = vsel %vm1529, %v2022, 0
        %v2079 = vsel %vm1581, %v2074, 0
        %2081 = vmatprep.subr.bf16.mxu0 0
        %2082 = vmatpush1.bf16.msra.mxu0 %v2079
        %2083 = vmatprep.subr.bf16.mxu0 0
        %2084 = vmatpush1.bf16.msra.mxu0 0
        %2085 = vmatprep.subr.bf16.mxu0 0
        %2086 = vmatpush1.bf16.msra.mxu0 0
        %2087 = vmatprep.subr.bf16.mxu0 0
        %2088 = vmatpush1.bf16.msra.mxu0 0
        %2089 = vmatprep.subr.bf16.mxu0 0
        %2090 = vmatpush1.bf16.msra.mxu0 0
        %2091 = vmatprep.subr.bf16.mxu0 0
        %2092 = vmatpush1.bf16.msra.mxu0 0
        %2093 = vmatprep.subr.bf16.mxu0 0
        %2094 = vmatpush1.bf16.msra.mxu0 0
        %2095 = vmatprep.subr.bf16.mxu0 0
        %2096 = vmatpush1.bf16.msra.mxu0 0
        %2097 = vmatprep.subr.bf16.mxu0 0
        %2098 = vmatpush1.bf16.msra.mxu0 0
        %2099 = vmatprep.subr.bf16.mxu0 0
        %2100 = vmatpush1.bf16.msra.mxu0 0
        %2101 = vmatprep.subr.bf16.mxu0 0
        %2102 = vmatpush1.bf16.msra.mxu0 0
        %2103 = vmatprep.subr.bf16.mxu0 0
        %2104 = vmatpush1.bf16.msra.mxu0 0
        %2105 = vmatprep.subr.bf16.mxu0 0
        %2106 = vmatpush1.bf16.msra.mxu0 0
        %2107 = vmatprep.subr.bf16.mxu0 0
        %2108 = vmatpush1.bf16.msra.mxu0 0
        %2109 = vmatprep.subr.bf16.mxu0 0
        %2110 = vmatpush1.bf16.msra.mxu0 0
        %2111 = vmatprep.subr.bf16.mxu0 0
        %2112 = vmatpush1.bf16.msra.mxu0 0
        %2113 = vmatprep.mubr.bf16.mxu0 0
        %2114 = vmatmul.mubr.bf16.gmra.mrb[0].mxu0 %v2076
        %v2115 = vpop.f32.mrb[0].mxu0
        %v2116 = vadd.f32 0.0, %v2115
        %v2117 = vpop.f32.mrb[0].mxu0
        %v2118 = vpop.f32.mrb[0].mxu0
        %v2119 = vpop.f32.mrb[0].mxu0
        %2120 = vdwg.mxu0
        %2121 = vrot.lane.b32.xlu0 %v1336, 64
        %v2122 = vpop.permute.xlu0 %2121
        %v2124 = vsel %vm1529, %v2023, 0
        %v2127 = vsel %vm1581, %v2122, 0
        %2129 = vmatprep.subr.bf16.mxu0 0
        %2130 = vmatpush1.bf16.msra.mxu0 %v2127
        %2131 = vmatprep.subr.bf16.mxu0 0
        %2132 = vmatpush1.bf16.msra.mxu0 0
        %2133 = vmatprep.subr.bf16.mxu0 0
        %2134 = vmatpush1.bf16.msra.mxu0 0
        %2135 = vmatprep.subr.bf16.mxu0 0
        %2136 = vmatpush1.bf16.msra.mxu0 0
        %2137 = vmatprep.subr.bf16.mxu0 0
        %2138 = vmatpush1.bf16.msra.mxu0 0
        %2139 = vmatprep.subr.bf16.mxu0 0
        %2140 = vmatpush1.bf16.msra.mxu0 0
        %2141 = vmatprep.subr.bf16.mxu0 0
        %2142 = vmatpush1.bf16.msra.mxu0 0
        %2143 = vmatprep.subr.bf16.mxu0 0
        %2144 = vmatpush1.bf16.msra.mxu0 0
        %2145 = vmatprep.subr.bf16.mxu0 0
        %2146 = vmatpush1.bf16.msra.mxu0 0
        %2147 = vmatprep.subr.bf16.mxu0 0
        %2148 = vmatpush1.bf16.msra.mxu0 0
        %2149 = vmatprep.subr.bf16.mxu0 0
        %2150 = vmatpush1.bf16.msra.mxu0 0
        %2151 = vmatprep.subr.bf16.mxu0 0
        %2152 = vmatpush1.bf16.msra.mxu0 0
        %2153 = vmatprep.subr.bf16.mxu0 0
        %2154 = vmatpush1.bf16.msra.mxu0 0
        %2155 = vmatprep.subr.bf16.mxu0 0
        %2156 = vmatpush1.bf16.msra.mxu0 0
        %2157 = vmatprep.subr.bf16.mxu0 0
        %2158 = vmatpush1.bf16.msra.mxu0 0
        %2159 = vmatprep.subr.bf16.mxu0 0
        %2160 = vmatpush1.bf16.msra.mxu0 0
        %2161 = vmatprep.mubr.bf16.mxu0 0
        %2162 = vmatmul.mubr.bf16.gmra.mrb[0].mxu0 %v2124
        %v2163 = vpop.f32.mrb[0].mxu0
        %v2164 = vadd.f32 0.0, %v2163
        %v2165 = vpop.f32.mrb[0].mxu0
        %v2166 = vpop.f32.mrb[0].mxu0
        %v2167 = vpop.f32.mrb[0].mxu0
        %2168 = vdwg.mxu0
        %2169 = vrot.lane.b32.xlu0 %v1337, 64
        %v2170 = vpop.permute.xlu0 %2169
        %v2172 = vsel %vm1529, %v2024, 0
        %v2175 = vsel %vm1581, %v2170, 0
        %2177 = vmatprep.subr.bf16.mxu0 0
        %2178 = vmatpush1.bf16.msra.mxu0 %v2175
        %2179 = vmatprep.subr.bf16.mxu0 0
        %2180 = vmatpush1.bf16.msra.mxu0 0
        %2181 = vmatprep.subr.bf16.mxu0 0
        %2182 = vmatpush1.bf16.msra.mxu0 0
        %2183 = vmatprep.subr.bf16.mxu0 0
        %2184 = vmatpush1.bf16.msra.mxu0 0
        %2185 = vmatprep.subr.bf16.mxu0 0
        %2186 = vmatpush1.bf16.msra.mxu0 0
        %2187 = vmatprep.subr.bf16.mxu0 0
        %2188 = vmatpush1.bf16.msra.mxu0 0
        %2189 = vmatprep.subr.bf16.mxu0 0
        %2190 = vmatpush1.bf16.msra.mxu0 0
        %2191 = vmatprep.subr.bf16.mxu0 0
        %2192 = vmatpush1.bf16.msra.mxu0 0
        %2193 = vmatprep.subr.bf16.mxu0 0
        %2194 = vmatpush1.bf16.msra.mxu0 0
        %2195 = vmatprep.subr.bf16.mxu0 0
        %2196 = vmatpush1.bf16.msra.mxu0 0
        %2197 = vmatprep.subr.bf16.mxu0 0
        %2198 = vmatpush1.bf16.msra.mxu0 0
        %2199 = vmatprep.subr.bf16.mxu0 0
        %2200 = vmatpush1.bf16.msra.mxu0 0
        %2201 = vmatprep.subr.bf16.mxu0 0
        %2202 = vmatpush1.bf16.msra.mxu0 0
        %2203 = vmatprep.subr.bf16.mxu0 0
        %2204 = vmatpush1.bf16.msra.mxu0 0
        %2205 = vmatprep.subr.bf16.mxu0 0
        %2206 = vmatpush1.bf16.msra.mxu0 0
        %2207 = vmatprep.subr.bf16.mxu0 0
        %2208 = vmatpush1.bf16.msra.mxu0 0
        %2209 = vmatprep.mubr.bf16.mxu0 0
        %2210 = vmatmul.mubr.bf16.gmra.mrb[0].mxu0 %v2172
        %v2211 = vpop.f32.mrb[0].mxu0
        %v2212 = vadd.f32 0.0, %v2211
        %v2213 = vpop.f32.mrb[0].mxu0
        %v2214 = vpop.f32.mrb[0].mxu0
        %v2215 = vpop.f32.mrb[0].mxu0
        %2216 = vdwg.mxu0
        %v2217 = vpack.c.bf16 %v2116, %v2068
        %v2218 = vpack.c.bf16 %v2212, %v2164
        %v2219 = vld [vmem:[#allocation17 + $0x20] sm:$0xf]
        %v2220 = vld [vmem:[#allocation17 + $0x24] sm:$0xf]
        %v2221 = vld [vmem:[#allocation17 + $0x28] sm:$0xf]
        %v2222 = vld [vmem:[#allocation17 + $0x2c] sm:$0xf]
        %v2223 = vld [vmem:[#allocation17 + $0x30] sm:$0xf]
        %v2224 = vld [vmem:[#allocation17 + $0x34] sm:$0xf]
        %v2225 = vld [vmem:[#allocation17 + $0x38] sm:$0xf]
        %v2226 = vld [vmem:[#allocation17 + $0x3c] sm:$0xf]
        %v2235 = vunpack.c.l.b16 %v2219
        %v2236 = vunpack.c.l.b16 %v2220
        %v2237 = vunpack.c.l.b16 %v2221
        %v2238 = vunpack.c.l.b16 %v2222
        %v2239 = vunpack.c.l.b16 %v2223
        %v2240 = vunpack.c.l.b16 %v2224
        %v2241 = vunpack.c.l.b16 %v2225
        %v2242 = vunpack.c.l.b16 %v2226
        %v2243 = vpack.c.b16 %v2236, %v2235
        %v2244 = vpack.c.b16 %v2238, %v2237
        %v2245 = vpack.c.b16 %v2240, %v2239
        %v2246 = vpack.c.b16 %v2242, %v2241
        %v2252 = vsel %vm1338, %v2217, 0
        %v2255 = vsel %vm1338, %v2218, 0
        %2257 = vmatprep.subr.bf16.mxu0 0
        %2258 = vmatpush1.bf16.msra.mxu0 %v2243
        %2259 = vmatprep.subr.bf16.mxu0 0
        %2260 = vmatpush1.bf16.msra.mxu0 %v2244
        %2261 = vmatprep.subr.bf16.mxu0 0
        %2262 = vmatpush1.bf16.msra.mxu0 %v2245
        %2263 = vmatprep.subr.bf16.mxu0 0
        %2264 = vmatpush1.bf16.msra.mxu0 %v2246
        %2265 = vmatprep.subr.bf16.mxu0 0
        %2266 = vmatpush1.bf16.msra.mxu0 0
        %2267 = vmatprep.subr.bf16.mxu0 0
        %2268 = vmatpush1.bf16.msra.mxu0 0
        %2269 = vmatprep.subr.bf16.mxu0 0
        %2270 = vmatpush1.bf16.msra.mxu0 0
        %2271 = vmatprep.subr.bf16.mxu0 0
        %2272 = vmatpush1.bf16.msra.mxu0 0
        %2273 = vmatprep.subr.bf16.mxu0 0
        %2274 = vmatpush1.bf16.msra.mxu0 0
        %2275 = vmatprep.subr.bf16.mxu0 0
        %2276 = vmatpush1.bf16.msra.mxu0 0
        %2277 = vmatprep.subr.bf16.mxu0 0
        %2278 = vmatpush1.bf16.msra.mxu0 0
        %2279 = vmatprep.subr.bf16.mxu0 0
        %2280 = vmatpush1.bf16.msra.mxu0 0
        %2281 = vmatprep.subr.bf16.mxu0 0
        %2282 = vmatpush1.bf16.msra.mxu0 0
        %2283 = vmatprep.subr.bf16.mxu0 0
        %2284 = vmatpush1.bf16.msra.mxu0 0
        %2285 = vmatprep.subr.bf16.mxu0 0
        %2286 = vmatpush1.bf16.msra.mxu0 0
        %2287 = vmatprep.subr.bf16.mxu0 0
        %2288 = vmatpush1.bf16.msra.mxu0 0
        %2289 = vmatprep.mubr.bf16.mxu0 0
        %2290 = vmatmul.mubr.bf16.gmra.mrb[0].mxu0 %v2252
        %v2291 = vpop.f32.mrb[0].mxu0
        %v2292 = vadd.f32 0.0, %v2291
        %v2293 = vpop.f32.mrb[0].mxu0
        %v2294 = vpop.f32.mrb[0].mxu0
        %v2295 = vadd.f32 0.0, %v2294
        %v2296 = vpop.f32.mrb[0].mxu0
        %2297 = vmatprep.mubr.bf16.mxu0 0
        %2298 = vmatmul.mubr.bf16.gmra.mrb[0].mxu0 %v2255
        %v2299 = vpop.f32.mrb[0].mxu0
        %v2300 = vadd.f32 0.0, %v2299
        %v2301 = vpop.f32.mrb[0].mxu0
        %v2302 = vpop.f32.mrb[0].mxu0
        %v2303 = vadd.f32 0.0, %v2302
        %v2304 = vpop.f32.mrb[0].mxu0
        %2305 = vdwg.mxu0
        %v2314 = vunpack.c.l.b16 %v1765
        %v2315 = vunpack.c.l.b16 %v1766
        %v2316 = vunpack.c.l.b16 %v1767
        %v2317 = vunpack.c.l.b16 %v1768
        %v2318 = vunpack.c.l.b16 %v1769
        %v2319 = vunpack.c.l.b16 %v1770
        %v2320 = vunpack.c.l.b16 %v1771
        %v2321 = vunpack.c.l.b16 %v1772
        %v2322 = vpack.c.b16 %v2315, %v2314
        %v2323 = vpack.c.b16 %v2317, %v2316
        %v2324 = vpack.c.b16 %v2319, %v2318
        %v2325 = vpack.c.b16 %v2321, %v2320
        %v2331 = vsel %vm1338, %v1763, 0
        %v2334 = vsel %vm1338, %v1764, 0
        %2336 = vmatprep.subr.bf16.mxu0 0
        %2337 = vmatpush1.bf16.msra.mxu0 %v2322
        %2338 = vmatprep.subr.bf16.mxu0 0
        %2339 = vmatpush1.bf16.msra.mxu0 %v2323
        %2340 = vmatprep.subr.bf16.mxu0 0
        %2341 = vmatpush1.bf16.msra.mxu0 %v2324
        %2342 = vmatprep.subr.bf16.mxu0 0
        %2343 = vmatpush1.bf16.msra.mxu0 %v2325
        %2344 = vmatprep.subr.bf16.mxu0 0
        %2345 = vmatpush1.bf16.msra.mxu0 0
        %2346 = vmatprep.subr.bf16.mxu0 0
        %2347 = vmatpush1.bf16.msra.mxu0 0
        %2348 = vmatprep.subr.bf16.mxu0 0
        %2349 = vmatpush1.bf16.msra.mxu0 0
        %2350 = vmatprep.subr.bf16.mxu0 0
        %2351 = vmatpush1.bf16.msra.mxu0 0
        %2352 = vmatprep.subr.bf16.mxu0 0
        %2353 = vmatpush1.bf16.msra.mxu0 0
        %2354 = vmatprep.subr.bf16.mxu0 0
        %2355 = vmatpush1.bf16.msra.mxu0 0
        %2356 = vmatprep.subr.bf16.mxu0 0
        %2357 = vmatpush1.bf16.msra.mxu0 0
        %2358 = vmatprep.subr.bf16.mxu0 0
        %2359 = vmatpush1.bf16.msra.mxu0 0
        %2360 = vmatprep.subr.bf16.mxu0 0
        %2361 = vmatpush1.bf16.msra.mxu0 0
        %2362 = vmatprep.subr.bf16.mxu0 0
        %2363 = vmatpush1.bf16.msra.mxu0 0
        %2364 = vmatprep.subr.bf16.mxu0 0
        %2365 = vmatpush1.bf16.msra.mxu0 0
        %2366 = vmatprep.subr.bf16.mxu0 0
        %2367 = vmatpush1.bf16.msra.mxu0 0
        %2368 = vmatprep.mubr.bf16.mxu0 0
        %2369 = vmatmul.mubr.bf16.gmra.mrb[0].mxu0 %v2331
        %v2370 = vpop.f32.mrb[0].mxu0
        %v2371 = vadd.f32 %v2292, %v2370
        %v2372 = vpop.f32.mrb[0].mxu0
        %v2373 = vpop.f32.mrb[0].mxu0
        %v2374 = vadd.f32 %v2295, %v2373
        %v2375 = vpop.f32.mrb[0].mxu0
        %2376 = vmatprep.mubr.bf16.mxu0 0
        %2377 = vmatmul.mubr.bf16.gmra.mrb[0].mxu0 %v2334
        %v2378 = vpop.f32.mrb[0].mxu0
        %v2379 = vadd.f32 %v2300, %v2378
        %v2380 = vpop.f32.mrb[0].mxu0
        %v2381 = vpop.f32.mrb[0].mxu0
        %v2382 = vadd.f32 %v2303, %v2381
        %v2383 = vpop.f32.mrb[0].mxu0
        %2384 = vdwg.mxu0
        %vm2385 = vcmp.eq.s32.totalorder %v1304, 0
        %v2386 = vsel %vm2385, 1, 0
        %vm2387 = vcmp.eq.s32.totalorder %v2386, 1
        %v2388 = vsel %vm2387, 0.0, %v2371
        %v2389 = vsel %vm2387, 0.0, %v2374
        %v2390 = vsel %vm2387, 0.0, %v2379
        %v2391 = vsel %vm2387, 0.0, %v2382
        %v2392 = vld [vmem:[#allocation19] sm:$0x1]
        %v2394 = vlaneseq
        %v2395 = vshrl.u32 %v2394, 7
        %v2396 = vsub.s32 0, %v2395
        %v2397 = vrot.slane %v2392, %v2396
        %v2399 = vadd.f32 %v2388, %v2397
        %v2400 = vadd.f32 %v2389, %v2397
        %v2401 = vadd.f32 %v2390, %v2397
        %v2402 = vadd.f32 %v2391, %v2397
        %v2403 = vadd.f32 %v915, %v2399
        %v2404 = vadd.f32 %v916, %v2400
        %v2405 = vadd.f32 %v917, %v2401
        %v2406 = vadd.f32 %v918, %v2402
        %v2407 = vld [vmem:[#allocation20] sm:$0x1]
        %v2408 = vld [vmem:[#allocation22] sm:$0x1]
        %2409 = vadd.xlane.f32.xlu0 %v2403
        %v2410 = vpop.xlane.xlu0 %2409
        %2411 = vadd.xlane.f32.xlu0 %v2404
        %v2412 = vpop.xlane.xlu0 %2411
        %2413 = vadd.xlane.f32.xlu0 %v2405
        %v2414 = vpop.xlane.xlu0 %2413
        %2415 = vadd.xlane.f32.xlu0 %v2406
        %v2416 = vpop.xlane.xlu0 %2415
        %v2417 = vrcp.pop 128.0
        %v2418 = vmul.f32 %v2410, %v2417
        %v2419 = vmul.f32 %v2412, %v2417
        %v2420 = vmul.f32 %v2414, %v2417
        %v2421 = vmul.f32 %v2416, %v2417
        %v2422 = vsub.f32 %v2403, %v2418
        %v2423 = vsub.f32 %v2404, %v2419
        %v2424 = vsub.f32 %v2405, %v2420
        %v2425 = vsub.f32 %v2406, %v2421
        %v2426 = vmul.f32 %v2422, %v2422
        %v2427 = vmul.f32 %v2423, %v2423
        %v2428 = vmul.f32 %v2424, %v2424
        %v2429 = vmul.f32 %v2425, %v2425
        %2430 = vadd.xlane.f32.xlu0 %v2426
        %v2431 = vpop.xlane.xlu0 %2430
        %2432 = vadd.xlane.f32.xlu0 %v2427
        %v2433 = vpop.xlane.xlu0 %2432
        %2434 = vadd.xlane.f32.xlu0 %v2428
        %v2435 = vpop.xlane.xlu0 %2434
        %2436 = vadd.xlane.f32.xlu0 %v2429
        %v2437 = vpop.xlane.xlu0 %2436
        %v2438 = vmul.f32 %v2431, %v2417
        %v2439 = vmul.f32 %v2433, %v2417
        %v2440 = vmul.f32 %v2435, %v2417
        %v2441 = vmul.f32 %v2437, %v2417
        %v2442 = vadd.f32 %v2438, 1e-05
        %v2443 = vadd.f32 %v2439, 1e-05
        %v2444 = vadd.f32 %v2440, 1e-05
        %v2445 = vadd.f32 %v2441, 1e-05
        %v2446 = vrsqrt.pop %v2442
        %v2447 = vrsqrt.pop %v2443
        %v2448 = vrsqrt.pop %v2444
        %v2449 = vrsqrt.pop %v2445
        %v2450 = vmul.f32 %v2422, %v2446
        %v2451 = vmul.f32 %v2423, %v2447
        %v2452 = vmul.f32 %v2424, %v2448
        %v2453 = vmul.f32 %v2425, %v2449
        %v2455 = vlaneseq
        %v2456 = vshrl.u32 %v2455, 7
        %v2457 = vsub.s32 0, %v2456
        %v2458 = vrot.slane %v2407, %v2457
        %v2460 = vmul.f32 %v2450, %v2458
        %v2461 = vmul.f32 %v2451, %v2458
        %v2462 = vmul.f32 %v2452, %v2458
        %v2463 = vmul.f32 %v2453, %v2458
        %v2465 = vlaneseq
        %v2466 = vshrl.u32 %v2465, 7
        %v2467 = vsub.s32 0, %v2466
        %v2468 = vrot.slane %v2408, %v2467
        %v2470 = vadd.f32 %v2460, %v2468
        %v2471 = vadd.f32 %v2461, %v2468
        %v2472 = vadd.f32 %v2462, %v2468
        %v2473 = vadd.f32 %v2463, %v2468
        %v2474 = vpack.c.bf16 %v2471, %v2470
        %v2475 = vpack.c.bf16 %v2473, %v2472
        %v2476 = vld [vmem:[#allocation23] sm:$0xff]
        %v2477 = vld [vmem:[#allocation23 + $0x8] sm:$0xff]
        %v2478 = vld [vmem:[#allocation23 + $0x10] sm:$0xff]
        %v2479 = vld [vmem:[#allocation23 + $0x18] sm:$0xff]
        %v2480 = vld [vmem:[#allocation23 + $0x20] sm:$0xff]
        %v2481 = vld [vmem:[#allocation23 + $0x28] sm:$0xff]
        %v2482 = vld [vmem:[#allocation23 + $0x30] sm:$0xff]
        %v2483 = vld [vmem:[#allocation23 + $0x38] sm:$0xff]
        %v2484 = vld [vmem:[#allocation23 + $0x40] sm:$0xff]
        %v2485 = vld [vmem:[#allocation23 + $0x48] sm:$0xff]
        %v2486 = vld [vmem:[#allocation23 + $0x50] sm:$0xff]
        %v2487 = vld [vmem:[#allocation23 + $0x58] sm:$0xff]
        %v2488 = vld [vmem:[#allocation23 + $0x60] sm:$0xff]
        %v2489 = vld [vmem:[#allocation23 + $0x68] sm:$0xff]
        %v2490 = vld [vmem:[#allocation23 + $0x70] sm:$0xff]
        %v2491 = vld [vmem:[#allocation23 + $0x78] sm:$0xff]
        %v2492 = vld [vmem:[#allocation25] sm:$0x3]
        %v2494 = vlaneseq
        %v2495 = vshrl.u32 %v2494, 7
        %v2496 = vsub.s32 0, %v2495
        %v2497 = vrot.slane %v2492, %v2496
        %v2498 = vlaneseq
        %v2499 = vshrl.u32 %v2498, 7
        %v2500 = vsub.s32 1, %v2499
        %v2501 = vrot.slane %v2492, %v2500
        %v2520 = vunpack.c.l.b16 %v2476
        %v2521 = vunpack.c.h.b16 %v2476
        %v2522 = vunpack.c.l.b16 %v2477
        %v2523 = vunpack.c.h.b16 %v2477
        %v2524 = vunpack.c.l.b16 %v2478
        %v2525 = vunpack.c.h.b16 %v2478
        %v2526 = vunpack.c.l.b16 %v2479
        %v2527 = vunpack.c.h.b16 %v2479
        %v2528 = vunpack.c.l.b16 %v2480
        %v2529 = vunpack.c.h.b16 %v2480
        %v2530 = vunpack.c.l.b16 %v2481
        %v2531 = vunpack.c.h.b16 %v2481
        %v2532 = vunpack.c.l.b16 %v2482
        %v2533 = vunpack.c.h.b16 %v2482
        %v2534 = vunpack.c.l.b16 %v2483
        %v2535 = vunpack.c.h.b16 %v2483
        %v2536 = vunpack.c.l.b16 %v2484
        %v2537 = vunpack.c.h.b16 %v2484
        %v2538 = vunpack.c.l.b16 %v2485
        %v2539 = vunpack.c.h.b16 %v2485
        %v2540 = vunpack.c.l.b16 %v2486
        %v2541 = vunpack.c.h.b16 %v2486
        %v2542 = vunpack.c.l.b16 %v2487
        %v2543 = vunpack.c.h.b16 %v2487
        %v2544 = vunpack.c.l.b16 %v2488
        %v2545 = vunpack.c.h.b16 %v2488
        %v2546 = vunpack.c.l.b16 %v2489
        %v2547 = vunpack.c.h.b16 %v2489
        %v2548 = vunpack.c.l.b16 %v2490
        %v2549 = vunpack.c.h.b16 %v2490
        %v2550 = vunpack.c.l.b16 %v2491
        %v2551 = vunpack.c.h.b16 %v2491
        %v2552 = vpack.c.b16 %v2522, %v2520
        %v2553 = vpack.c.b16 %v2523, %v2521
        %v2554 = vpack.c.b16 %v2526, %v2524
        %v2555 = vpack.c.b16 %v2527, %v2525
        %v2556 = vpack.c.b16 %v2530, %v2528
        %v2557 = vpack.c.b16 %v2531, %v2529
        %v2558 = vpack.c.b16 %v2534, %v2532
        %v2559 = vpack.c.b16 %v2535, %v2533
        %v2560 = vpack.c.b16 %v2538, %v2536
        %v2561 = vpack.c.b16 %v2539, %v2537
        %v2562 = vpack.c.b16 %v2542, %v2540
        %v2563 = vpack.c.b16 %v2543, %v2541
        %v2564 = vpack.c.b16 %v2546, %v2544
        %v2565 = vpack.c.b16 %v2547, %v2545
        %v2566 = vpack.c.b16 %v2550, %v2548
        %v2567 = vpack.c.b16 %v2551, %v2549
        %2584 = vmatprep.subr.bf16.mxu0 %v2553
        %2585 = vmatpush1.bf16.msra.mxu0 %v2552
        %2586 = vmatprep.subr.bf16.mxu0 %v2555
        %2587 = vmatpush1.bf16.msra.mxu0 %v2554
        %2588 = vmatprep.subr.bf16.mxu0 %v2557
        %2589 = vmatpush1.bf16.msra.mxu0 %v2556
        %2590 = vmatprep.subr.bf16.mxu0 %v2559
        %2591 = vmatpush1.bf16.msra.mxu0 %v2558
        %2592 = vmatprep.subr.bf16.mxu0 %v2561
        %2593 = vmatpush1.bf16.msra.mxu0 %v2560
        %2594 = vmatprep.subr.bf16.mxu0 %v2563
        %2595 = vmatpush1.bf16.msra.mxu0 %v2562
        %2596 = vmatprep.subr.bf16.mxu0 %v2565
        %2597 = vmatpush1.bf16.msra.mxu0 %v2564
        %2598 = vmatprep.subr.bf16.mxu0 %v2567
        %2599 = vmatpush1.bf16.msra.mxu0 %v2566
        %2600 = vmatprep.subr.bf16.mxu0 0
        %2601 = vmatpush1.bf16.msra.mxu0 0
        %2602 = vmatprep.subr.bf16.mxu0 0
        %2603 = vmatpush1.bf16.msra.mxu0 0
        %2604 = vmatprep.subr.bf16.mxu0 0
        %2605 = vmatpush1.bf16.msra.mxu0 0
        %2606 = vmatprep.subr.bf16.mxu0 0
        %2607 = vmatpush1.bf16.msra.mxu0 0
        %2608 = vmatprep.subr.bf16.mxu0 0
        %2609 = vmatpush1.bf16.msra.mxu0 0
        %2610 = vmatprep.subr.bf16.mxu0 0
        %2611 = vmatpush1.bf16.msra.mxu0 0
        %2612 = vmatprep.subr.bf16.mxu0 0
        %2613 = vmatpush1.bf16.msra.mxu0 0
        %2614 = vmatprep.subr.bf16.mxu0 0
        %2615 = vmatpush1.bf16.msra.mxu0 0
        %2616 = vmatprep.mubr.bf16.mxu0 0
        %2617 = vmatmul.mubr.bf16.gmra.mrb[0].mxu0 %v2474
        %v2618 = vpop.f32.mrb[0].mxu0
        %v2619 = vadd.f32 %v2497, %v2618
        %v2620 = vpop.f32.mrb[0].mxu0
        %v2621 = vadd.f32 %v2501, %v2620
        %v2622 = vpop.f32.mrb[0].mxu0
        %v2623 = vadd.f32 %v2497, %v2622
        %v2624 = vpop.f32.mrb[0].mxu0
        %v2625 = vadd.f32 %v2501, %v2624
        %2626 = vmatprep.mubr.bf16.mxu0 0
        %2627 = vmatmul.mubr.bf16.gmra.mrb[0].mxu0 %v2475
        %v2628 = vpop.f32.mrb[0].mxu0
        %v2629 = vadd.f32 %v2497, %v2628
        %v2630 = vpop.f32.mrb[0].mxu0
        %v2631 = vadd.f32 %v2501, %v2630
        %v2632 = vpop.f32.mrb[0].mxu0
        %v2633 = vadd.f32 %v2497, %v2632
        %v2634 = vpop.f32.mrb[0].mxu0
        %v2635 = vadd.f32 %v2501, %v2634
        %2636 = vdwg.mxu0
        %v2637 = vmax.f32 %v2619, 0.0
        %v2638 = vmax.f32 %v2621, 0.0
        %v2639 = vmax.f32 %v2623, 0.0
        %v2640 = vmax.f32 %v2625, 0.0
        %v2641 = vmax.f32 %v2629, 0.0
        %v2642 = vmax.f32 %v2631, 0.0
        %v2643 = vmax.f32 %v2633, 0.0
        %v2644 = vmax.f32 %v2635, 0.0
        %v2645 = vpack.c.bf16 %v2639, %v2637
        %v2646 = vpack.c.bf16 %v2640, %v2638
        %v2647 = vpack.c.bf16 %v2643, %v2641
        %v2648 = vpack.c.bf16 %v2644, %v2642
        %v2649 = vld [vmem:[#allocation26] sm:$0xf]
        %v2650 = vld [vmem:[#allocation26 + $0x4] sm:$0xf]
        %v2651 = vld [vmem:[#allocation26 + $0x8] sm:$0xf]
        %v2652 = vld [vmem:[#allocation26 + $0xc] sm:$0xf]
        %v2653 = vld [vmem:[#allocation26 + $0x10] sm:$0xf]
        %v2654 = vld [vmem:[#allocation26 + $0x14] sm:$0xf]
        %v2655 = vld [vmem:[#allocation26 + $0x18] sm:$0xf]
        %v2656 = vld [vmem:[#allocation26 + $0x1c] sm:$0xf]
        %v2657 = vld [vmem:[#allocation26 + $0x20] sm:$0xf]
        %v2658 = vld [vmem:[#allocation26 + $0x24] sm:$0xf]
        %v2659 = vld [vmem:[#allocation26 + $0x28] sm:$0xf]
        %v2660 = vld [vmem:[#allocation26 + $0x2c] sm:$0xf]
        %v2661 = vld [vmem:[#allocation26 + $0x30] sm:$0xf]
        %v2662 = vld [vmem:[#allocation26 + $0x34] sm:$0xf]
        %v2663 = vld [vmem:[#allocation26 + $0x38] sm:$0xf]
        %v2664 = vld [vmem:[#allocation26 + $0x3c] sm:$0xf]
        %v2665 = vld [vmem:[#allocation26 + $0x40] sm:$0xf]
        %v2666 = vld [vmem:[#allocation26 + $0x44] sm:$0xf]
        %v2667 = vld [vmem:[#allocation26 + $0x48] sm:$0xf]
        %v2668 = vld [vmem:[#allocation26 + $0x4c] sm:$0xf]
        %v2669 = vld [vmem:[#allocation26 + $0x50] sm:$0xf]
        %v2670 = vld [vmem:[#allocation26 + $0x54] sm:$0xf]
        %v2671 = vld [vmem:[#allocation26 + $0x58] sm:$0xf]
        %v2672 = vld [vmem:[#allocation26 + $0x5c] sm:$0xf]
        %v2673 = vld [vmem:[#allocation26 + $0x60] sm:$0xf]
        %v2674 = vld [vmem:[#allocation26 + $0x64] sm:$0xf]
        %v2675 = vld [vmem:[#allocation26 + $0x68] sm:$0xf]
        %v2676 = vld [vmem:[#allocation26 + $0x6c] sm:$0xf]
        %v2677 = vld [vmem:[#allocation26 + $0x70] sm:$0xf]
        %v2678 = vld [vmem:[#allocation26 + $0x74] sm:$0xf]
        %v2679 = vld [vmem:[#allocation26 + $0x78] sm:$0xf]
        %v2680 = vld [vmem:[#allocation26 + $0x7c] sm:$0xf]
        %v2681 = vld [vmem:[#allocation28] sm:$0x1]
        %v2683 = vlaneseq
        %v2684 = vshrl.u32 %v2683, 7
        %v2685 = vsub.s32 0, %v2684
        %v2686 = vrot.slane %v2681, %v2685
        %v2720 = vunpack.c.l.b16 %v2649
        %v2721 = vunpack.c.l.b16 %v2650
        %v2722 = vunpack.c.l.b16 %v2651
        %v2723 = vunpack.c.l.b16 %v2652
        %v2724 = vunpack.c.l.b16 %v2653
        %v2725 = vunpack.c.l.b16 %v2654
        %v2726 = vunpack.c.l.b16 %v2655
        %v2727 = vunpack.c.l.b16 %v2656
        %v2728 = vunpack.c.l.b16 %v2657
        %v2729 = vunpack.c.l.b16 %v2658
        %v2730 = vunpack.c.l.b16 %v2659
        %v2731 = vunpack.c.l.b16 %v2660
        %v2732 = vunpack.c.l.b16 %v2661
        %v2733 = vunpack.c.l.b16 %v2662
        %v2734 = vunpack.c.l.b16 %v2663
        %v2735 = vunpack.c.l.b16 %v2664
        %v2736 = vunpack.c.l.b16 %v2665
        %v2737 = vunpack.c.l.b16 %v2666
        %v2738 = vunpack.c.l.b16 %v2667
        %v2739 = vunpack.c.l.b16 %v2668
        %v2740 = vunpack.c.l.b16 %v2669
        %v2741 = vunpack.c.l.b16 %v2670
        %v2742 = vunpack.c.l.b16 %v2671
        %v2743 = vunpack.c.l.b16 %v2672
        %v2744 = vunpack.c.l.b16 %v2673
        %v2745 = vunpack.c.l.b16 %v2674
        %v2746 = vunpack.c.l.b16 %v2675
        %v2747 = vunpack.c.l.b16 %v2676
        %v2748 = vunpack.c.l.b16 %v2677
        %v2749 = vunpack.c.l.b16 %v2678
        %v2750 = vunpack.c.l.b16 %v2679
        %v2751 = vunpack.c.l.b16 %v2680
        %v2752 = vpack.c.b16 %v2721, %v2720
        %v2753 = vpack.c.b16 %v2723, %v2722
        %v2754 = vpack.c.b16 %v2725, %v2724
        %v2755 = vpack.c.b16 %v2727, %v2726
        %v2756 = vpack.c.b16 %v2729, %v2728
        %v2757 = vpack.c.b16 %v2731, %v2730
        %v2758 = vpack.c.b16 %v2733, %v2732
        %v2759 = vpack.c.b16 %v2735, %v2734
        %v2760 = vpack.c.b16 %v2737, %v2736
        %v2761 = vpack.c.b16 %v2739, %v2738
        %v2762 = vpack.c.b16 %v2741, %v2740
        %v2763 = vpack.c.b16 %v2743, %v2742
        %v2764 = vpack.c.b16 %v2745, %v2744
        %v2765 = vpack.c.b16 %v2747, %v2746
        %v2766 = vpack.c.b16 %v2749, %v2748
        %v2767 = vpack.c.b16 %v2751, %v2750
        %2784 = vmatprep.subr.bf16.mxu0 0
        %2785 = vmatpush1.bf16.msra.mxu0 %v2752
        %2786 = vmatprep.subr.bf16.mxu0 0
        %2787 = vmatpush1.bf16.msra.mxu0 %v2753
        %2788 = vmatprep.subr.bf16.mxu0 0
        %2789 = vmatpush1.bf16.msra.mxu0 %v2754
        %2790 = vmatprep.subr.bf16.mxu0 0
        %2791 = vmatpush1.bf16.msra.mxu0 %v2755
        %2792 = vmatprep.subr.bf16.mxu0 0
        %2793 = vmatpush1.bf16.msra.mxu0 %v2756
        %2794 = vmatprep.subr.bf16.mxu0 0
        %2795 = vmatpush1.bf16.msra.mxu0 %v2757
        %2796 = vmatprep.subr.bf16.mxu0 0
        %2797 = vmatpush1.bf16.msra.mxu0 %v2758
        %2798 = vmatprep.subr.bf16.mxu0 0
        %2799 = vmatpush1.bf16.msra.mxu0 %v2759
        %2800 = vmatprep.subr.bf16.mxu0 0
        %2801 = vmatpush1.bf16.msra.mxu0 %v2760
        %2802 = vmatprep.subr.bf16.mxu0 0
        %2803 = vmatpush1.bf16.msra.mxu0 %v2761
        %2804 = vmatprep.subr.bf16.mxu0 0
        %2805 = vmatpush1.bf16.msra.mxu0 %v2762
        %2806 = vmatprep.subr.bf16.mxu0 0
        %2807 = vmatpush1.bf16.msra.mxu0 %v2763
        %2808 = vmatprep.subr.bf16.mxu0 0
        %2809 = vmatpush1.bf16.msra.mxu0 %v2764
        %2810 = vmatprep.subr.bf16.mxu0 0
        %2811 = vmatpush1.bf16.msra.mxu0 %v2765
        %2812 = vmatprep.subr.bf16.mxu0 0
        %2813 = vmatpush1.bf16.msra.mxu0 %v2766
        %2814 = vmatprep.subr.bf16.mxu0 0
        %2815 = vmatpush1.bf16.msra.mxu0 %v2767
        %2816 = vmatprep.mubr.bf16.mxu0 %v2646
        %2817 = vmatmul.mubr.bf16.gmra.mrb[0].mxu0 %v2645
        %v2818 = vpop.f32.mrb[0].mxu0
        %v2819 = vadd.f32 %v2686, %v2818
        %v2820 = vpop.f32.mrb[0].mxu0
        %v2821 = vpop.f32.mrb[0].mxu0
        %v2822 = vadd.f32 %v2686, %v2821
        %v2823 = vpop.f32.mrb[0].mxu0
        %2824 = vmatprep.mubr.bf16.mxu0 %v2648
        %2825 = vmatmul.mubr.bf16.gmra.mrb[0].mxu0 %v2647
        %v2826 = vpop.f32.mrb[0].mxu0
        %v2827 = vadd.f32 %v2686, %v2826
        %v2828 = vpop.f32.mrb[0].mxu0
        %v2829 = vpop.f32.mrb[0].mxu0
        %v2830 = vadd.f32 %v2686, %v2829
        %v2831 = vpop.f32.mrb[0].mxu0
        %2832 = vdwg.mxu0
        %v2833 = vadd.f32 %v2470, %v2819
        %v2834 = vadd.f32 %v2471, %v2822
        %v2835 = vadd.f32 %v2472, %v2827
        %v2836 = vadd.f32 %v2473, %v2830
        %v2837 = vld [vmem:[#allocation29] sm:$0x1]
        %v2838 = vld [vmem:[#allocation31] sm:$0x1]
        %2839 = vadd.xlane.f32.xlu0 %v2833
        %v2840 = vpop.xlane.xlu0 %2839
        %2841 = vadd.xlane.f32.xlu0 %v2834
        %v2842 = vpop.xlane.xlu0 %2841
        %2843 = vadd.xlane.f32.xlu0 %v2835
        %v2844 = vpop.xlane.xlu0 %2843
        %2845 = vadd.xlane.f32.xlu0 %v2836
        %v2846 = vpop.xlane.xlu0 %2845
        %v2847 = vmul.f32 %v2840, %v2417
        %v2848 = vmul.f32 %v2842, %v2417
        %v2849 = vmul.f32 %v2844, %v2417
        %v2850 = vmul.f32 %v2846, %v2417
        %v2851 = vsub.f32 %v2833, %v2847
        %v2852 = vsub.f32 %v2834, %v2848
        %v2853 = vsub.f32 %v2835, %v2849
        %v2854 = vsub.f32 %v2836, %v2850
        %v2855 = vmul.f32 %v2851, %v2851
        %v2856 = vmul.f32 %v2852, %v2852
        %v2857 = vmul.f32 %v2853, %v2853
        %v2858 = vmul.f32 %v2854, %v2854
        %2859 = vadd.xlane.f32.xlu0 %v2855
        %v2860 = vpop.xlane.xlu0 %2859
        %2861 = vadd.xlane.f32.xlu0 %v2856
        %v2862 = vpop.xlane.xlu0 %2861
        %2863 = vadd.xlane.f32.xlu0 %v2857
        %v2864 = vpop.xlane.xlu0 %2863
        %2865 = vadd.xlane.f32.xlu0 %v2858
        %v2866 = vpop.xlane.xlu0 %2865
        %v2867 = vmul.f32 %v2860, %v2417
        %v2868 = vmul.f32 %v2862, %v2417
        %v2869 = vmul.f32 %v2864, %v2417
        %v2870 = vmul.f32 %v2866, %v2417
        %v2871 = vadd.f32 %v2867, 1e-05
        %v2872 = vadd.f32 %v2868, 1e-05
        %v2873 = vadd.f32 %v2869, 1e-05
        %v2874 = vadd.f32 %v2870, 1e-05
        %v2875 = vrsqrt.pop %v2871
        %v2876 = vrsqrt.pop %v2872
        %v2877 = vrsqrt.pop %v2873
        %v2878 = vrsqrt.pop %v2874
        %v2879 = vmul.f32 %v2851, %v2875
        %v2880 = vmul.f32 %v2852, %v2876
        %v2881 = vmul.f32 %v2853, %v2877
        %v2882 = vmul.f32 %v2854, %v2878
        %v2884 = vlaneseq
        %v2885 = vshrl.u32 %v2884, 7
        %v2886 = vsub.s32 0, %v2885
        %v2887 = vrot.slane %v2837, %v2886
        %v2889 = vmul.f32 %v2879, %v2887
        %v2890 = vmul.f32 %v2880, %v2887
        %v2891 = vmul.f32 %v2881, %v2887
        %v2892 = vmul.f32 %v2882, %v2887
        %v2894 = vlaneseq
        %v2895 = vshrl.u32 %v2894, 7
        %v2896 = vsub.s32 0, %v2895
        %v2897 = vrot.slane %v2838, %v2896
        %v2899 = vadd.f32 %v2889, %v2897
        %v2900 = vadd.f32 %v2890, %v2897
        %v2901 = vadd.f32 %v2891, %v2897
        %v2902 = vadd.f32 %v2892, %v2897
        %2903 = vst [vmem:[%s909] sm:$0xff] %v2899
        %2904 = vst [vmem:[%s909 + $0x8] sm:$0xff] %v2900
        %2905 = vst [vmem:[%s909 + $0x10] sm:$0xff] %v2901
        %2906 = vst [vmem:[%s909 + $0x18] sm:$0xff] %v2902
        %s2907 = sand.u32 %s469, 1
        %s2908 = scalar_lea.sflag [#allocation4], %s2907
        %s2909 = sand.u32 %s469, 1
        %s2910 = smul.addr %s2909, 32
        %s2911 = scalar_lea.vmem [#allocation32], %s2910
        // Predicated region
        $region173: #{tpu_custom_call.1} parent=95 // pred_check
          %p2912 = pneg %p479
        $region174: #{tpu_custom_call.1} parent=95 // pred_check_branch
          %2914 = sbr.rel (%p2912) target = $region176
        $region175: #{tpu_custom_call.1} parent=95 // pred_region
          %s2915 = smul.u32 4, %s47
          %s2917 = ssub.s32 512, 512
          %2918 = vsyncadd %s2908, %s2917
          %s2919 = smul.addr %s2915, 128
          %s2920 = scalar_lea.hbm %s19, %s2919
          %s2921 = sshll.u32 %s2911, 4
          %s2922 = int_to_ptr.vmem [resolvable:$true] %s2921
          %2927 = dma.vmem_to_hbm [thread:$0]  %s2922, 512, %s2920, %s2908, 128, 128, 8
        $region176: #{tpu_custom_call.1} parent=95 // pred_fallthru
          _
      $region96: #{tpu_custom_call.1} parent=5 // pred_fallthru
        _
      %p2928 = scmp.le.s32.totalorder 2, %s42
      // Predicated region
      $region177: #{tpu_custom_call.1} parent=5 // pred_check
        %p2929 = pneg %p2928
      $region178: #{tpu_custom_call.1} parent=5 // pred_check_branch
        %2931 = sbr.rel (%p2929) target = $region180
      $region179: #{tpu_custom_call.1} parent=5 // pred_region
        %s2932 = ssub.s32 %s42, 2
        // Predicated region
        $region181: #{tpu_custom_call.1} parent=179 // pred_check
          %p2933 = pneg %p485
        $region182: #{tpu_custom_call.1} parent=179 // pred_check_branch
          %2935 = sbr.rel (%p2933) target = $region184
        $region183: #{tpu_custom_call.1} parent=179 // pred_region
          %s2936 = sand.u32 %s470, 1
          %s2937 = scalar_lea.sflag [#allocation4], %s2936
          %s2938 = sand.u32 %s470, 1
          %s2939 = smul.addr %s2938, 32
          %s2940 = scalar_lea.vmem [#allocation32], %s2939
          %2941 = dma.done %s2937, 512
        $region184: #{tpu_custom_call.1} parent=179 // pred_fallthru
          _
      $region180: #{tpu_custom_call.1} parent=5 // pred_fallthru
        _
    $region6: #{tpu_custom_call.1} parent=1 // loop_footer
      %s46 = sadd.s32 1, %s42
    $region7: #{tpu_custom_call.1} parent=1 // loop_footer_branch
      %41 = sbr.rel target = $region3
    $region8: #{tpu_custom_call.1} parent=1 // loop_exit
      _
    %2942 = vsyncpa [#allocation3], 1
    %s2943 = scalar_lea.sflag [#allocation3], 1
    %2944 = vsyncpa %s2943, 1
    %2945 = vsyncpa [#allocation6], 1
    %s2946 = scalar_lea.sflag [#allocation6], 1
    %2947 = vsyncpa %s2946, 1
    %2948 = vsyncpa [#allocation9], 1
    %2949 = vsyncpa [#allocation12], 1
    %2950 = vsyncpa [#allocation15], 1
    %2951 = vsyncpa [#allocation18], 1
    %2952 = vsyncpa [#allocation21], 1
    %2953 = vsyncpa [#allocation24], 1
    %2954 = vsyncpa [#allocation27], 1
    %2955 = vsyncpa [#allocation30], 1
    %2956 = vsyncpa [#allocation4], 1
    %s2957 = scalar_lea.sflag [#allocation4], 1
    %2958 = vsyncpa %s2957, 1

</llo_original>
